<compile_context>
chip_gen: v7x
topology: tpu7x:2x2x1
jax: 0.10.0
libtpu: 0.0.40
codegen_flags: <defaults>
</compile_context>

<pallas_src>
import jax
import jax.numpy as jnp
from jax.experimental import pallas as pl
from jax.experimental.pallas import tpu as pltpu

D_IN = 512
D_HID = 2048
EPS = 1e-5
INV_SQRT2 = 0.7071067811865476


def ffn_kernel(x_ref, g_ref, b_ref, w1_ref, b1_ref, w2_ref, b2_ref, o_ref,
               xn_ref, acc_ref):
    k = pl.program_id(1)

    @pl.when(k == 0)
    def _():
        # LayerNorm over the channel (lane) dim, in f32; computed once per row
        # block and cached as bf16 for the MXU.
        x = x_ref[...].astype(jnp.float32)
        mu = jnp.mean(x, axis=-1, keepdims=True)
        var = jnp.mean((x - mu) * (x - mu), axis=-1, keepdims=True)
        xn = (x - mu) * jax.lax.rsqrt(var + EPS)
        xn = xn * g_ref[...] + b_ref[...]
        xn_ref[...] = xn.astype(jnp.bfloat16)
        acc_ref[...] = jnp.zeros_like(acc_ref)

    # Linear 512 -> TK chunk (bf16 operands, f32 accumulation) + bias chunk.
    h = jnp.dot(xn_ref[...], w1_ref[...],
                preferred_element_type=jnp.float32) + b1_ref[...]

    # Exact GELU (approximate='none'); elementwise over hidden, so per-chunk
    # evaluation is exact.  Dropout p=0.0 -> identity (no-op).
    h = 0.5 * h * (1.0 + jax.lax.erf(h * INV_SQRT2))

    # Partial Linear TK -> 512 accumulated in f32.
    acc_ref[...] += jnp.dot(h.astype(jnp.bfloat16), w2_ref[...],
                            preferred_element_type=jnp.float32)

    @pl.when(k == pl.num_programs(1) - 1)
    def _():
        o_ref[...] = (acc_ref[...] + b2_ref[...]).astype(o_ref.dtype)


def _tpu_config():
    """(n_row_blocks, tk) per TPU generation; safe defaults if detection fails."""
    kind = ""
    try:
        kind = jax.devices()[0].device_kind.lower()
    except Exception:
        pass
    if "v5" in kind:
        return 1, 512            # v5e: single core, smaller weight chunks
    if "v7" in kind or "7x" in kind:
        return 2, 1024           # v7x: 2 TensorCores -> 2 parallel row blocks
    return 1, 1024               # v6e / unknown


def _make_ffn_call(n_rows_pad, row_blk, tk, out_dtype):
    n_k = D_HID // tk
    grid_spec = pltpu.PrefetchScalarGridSpec(
        num_scalar_prefetch=0,
        grid=(n_rows_pad // row_blk, n_k),
        in_specs=[
            pl.BlockSpec((row_blk, D_IN), lambda i, k: (i, 0)),   # x rows
            pl.BlockSpec((1, D_IN), lambda i, k: (0, 0)),         # gamma
            pl.BlockSpec((1, D_IN), lambda i, k: (0, 0)),         # beta
            pl.BlockSpec((D_IN, tk), lambda i, k: (0, k)),        # W1 chunk (bf16)
            pl.BlockSpec((1, tk), lambda i, k: (0, k)),           # b1 chunk
            pl.BlockSpec((tk, D_IN), lambda i, k: (k, 0)),        # W2 chunk (bf16)
            pl.BlockSpec((1, D_IN), lambda i, k: (0, 0)),         # b2
        ],
        out_specs=pl.BlockSpec((row_blk, D_IN), lambda i, k: (i, 0)),
        scratch_shapes=[
            pltpu.VMEM((row_blk, D_IN), jnp.bfloat16),   # cached LayerNorm output
            pltpu.VMEM((row_blk, D_IN), jnp.float32),    # output accumulator
        ],
    )

    bytes_accessed = int(
        2 * n_rows_pad * D_IN * 4                 # x in + out (f32)
        + (D_IN * D_HID + D_HID * D_IN) * 2       # bf16 weights
        + (2 * D_IN + D_HID + D_IN) * 4           # gamma, beta, b1, b2 (f32)
    )

    return pl.pallas_call(
        ffn_kernel,
        out_shape=jax.ShapeDtypeStruct((n_rows_pad, D_IN), out_dtype),
        grid_spec=grid_spec,
        compiler_params=pltpu.CompilerParams(
            dimension_semantics=("parallel", "arbitrary")),
        cost_estimate=pl.CostEstimate(
            flops=int(2 * n_rows_pad * D_IN * D_HID * 2),   # two matmuls
            transcendentals=int(n_rows_pad * D_HID),        # erf
            bytes_accessed=bytes_accessed),
    )


def ln_linear_gelu_linear(x, gamma, beta, w1_bf, b1, w2_bf, b2):
    """x: [B, H, W, C] f32.  w1_bf / w2_bf must already be bf16 (cast once at
    init, outside this call path).  Pure function -- jit it at the call site."""
    B, H, W, C = x.shape
    assert C == D_IN
    n_tok = B * H * W
    x2d = x.reshape(n_tok, C)

    n_row_blocks, tk = _tpu_config()
    if n_row_blocks == 1:
        # Full-dim row block: legal without padding (block dims == array dims),
        # so no pad/slice HBM round-trips on the single-core path.
        row_blk = n_tok
        n_pad = n_tok
    else:
        # Multi-core path: pad rows so each block is a multiple of 16
        # (sublane-clean for the bf16 casts of xn / h).
        row_blk = -(-n_tok // (n_row_blocks * 16)) * 16
        n_pad = row_blk * n_row_blocks
        x2d = jnp.pad(x2d, ((0, n_pad - n_tok), (0, 0)))

    out = _make_ffn_call(n_pad, row_blk, tk, x.dtype)(
        x2d, gamma, beta, w1_bf, b1, w2_bf, b2)
    return out[:n_tok].reshape(B, H, W, C)


def reference_f32(x, gamma, beta, w1, b1, w2, b2):
    """Pure f32 reference matching the PyTorch module exactly."""
    mu = jnp.mean(x, axis=-1, keepdims=True)
    var = jnp.mean((x - mu) ** 2, axis=-1, keepdims=True)
    xn = (x - mu) * jax.lax.rsqrt(var + EPS) * gamma[0] + beta[0]
    h = xn @ w1 + b1[0]
    h = 0.5 * h * (1.0 + jax.lax.erf(h * INV_SQRT2))
    return h @ w2 + b2[0]


def reference_mixed(x, gamma, beta, w1, b1, w2, b2):
    """Reference using the same bf16-operand / f32-accumulate matmuls as the kernel."""
    mu = jnp.mean(x, axis=-1, keepdims=True)
    var = jnp.mean((x - mu) ** 2, axis=-1, keepdims=True)
    xn = (x - mu) * jax.lax.rsqrt(var + EPS) * gamma[0] + beta[0]
    h = jnp.dot(xn.astype(jnp.bfloat16), w1.astype(jnp.bfloat16),
                preferred_element_type=jnp.float32) + b1[0]
    h = 0.5 * h * (1.0 + jax.lax.erf(h * INV_SQRT2))
    return jnp.dot(h.astype(jnp.bfloat16), w2.astype(jnp.bfloat16),
                   preferred_element_type=jnp.float32) + b2[0]


if __name__ == "__main__":
    key = jax.random.PRNGKey(0)
    kx, kw1, kb1, kw2, kb2 = jax.random.split(key, 5)

    # input shape implied by the module's forward: [1, 14, 14, 512]
    x = jax.random.normal(kx, (1, 14, 14, D_IN), dtype=jnp.float32)

    # deterministic parameter init (LayerNorm default: gamma=1, beta=0)
    gamma = jnp.ones((1, D_IN), dtype=jnp.float32)
    beta = jnp.zeros((1, D_IN), dtype=jnp.float32)
    w1 = jax.random.normal(kw1, (D_IN, D_HID), dtype=jnp.float32) * 0.02
    b1 = jax.random.normal(kb1, (1, D_HID), dtype=jnp.float32) * 0.02
    w2 = jax.random.normal(kw2, (D_HID, D_IN), dtype=jnp.float32) * 0.02
    b2 = jax.random.normal(kb2, (1, D_IN), dtype=jnp.float32) * 0.02

    # Cast weights to bf16 ONCE at init time (not per call).
    w1_bf = jax.block_until_ready(w1.astype(jnp.bfloat16))
    w2_bf = jax.block_until_ready(w2.astype(jnp.bfloat16))

    # Jit the whole wrapper (reshape + pallas_call + reshape) once.
    ffn = jax.jit(ln_linear_gelu_linear)

    out = ffn(x, gamma, beta, w1_bf, b1, w2_bf, b2)
    out = jax.block_until_ready(out)
    assert out.shape == (1, 14, 14, D_IN)

    # Tight check against a reference using the same mixed-precision matmuls.
    ref_m = reference_mixed(x, gamma, beta, w1, b1, w2, b2)
    assert jnp.allclose(out, ref_m, atol=2e-3, rtol=2e-3)

    # Looser check against the exact f32 module semantics (bounds bf16 error).
    ref_f = reference_f32(x, gamma, beta, w1, b1, w2, b2)
    assert jnp.allclose(out, ref_f, atol=2e-2, rtol=2e-2)

    print("KERNEL_OK")
</pallas_src>

<mosaic_0001>
module attributes {stable_mosaic.version = 11 : i64} {
  func.func @ffn_kernel(%arg0: i32, %arg1: i32, %arg2: memref<196x512xf32, #tpu.memory_space<vmem>>, %arg3: memref<1x512xf32, #tpu.memory_space<vmem>>, %arg4: memref<1x512xf32, #tpu.memory_space<vmem>>, %arg5: memref<512x1024xbf16, #tpu.memory_space<vmem>>, %arg6: memref<1x1024xf32, #tpu.memory_space<vmem>>, %arg7: memref<1024x512xbf16, #tpu.memory_space<vmem>>, %arg8: memref<1x512xf32, #tpu.memory_space<vmem>>, %arg9: memref<196x512xf32, #tpu.memory_space<vmem>>, %arg10: memref<196x512xbf16, #tpu.memory_space<vmem>>, %arg11: memref<196x512xf32, #tpu.memory_space<vmem>>) attributes {dimension_semantics = [#tpu.dimension_semantics<parallel>, #tpu.dimension_semantics<arbitrary>], iteration_bounds = array<i64: 1, 2>, scalar_prefetch = 0 : i64, scratch_operands = 2 : i64, tpu.core_type = #tpu.core_type<tc>, window_params = [{transform_indices = @transform_0, window_bounds = array<i64: 196, 512>}, {pipeline_mode = #tpu.pipeline_mode<synchronous>, transform_indices = @transform_1, window_bounds = array<i64: 1, 512>}, {pipeline_mode = #tpu.pipeline_mode<synchronous>, transform_indices = @transform_2, window_bounds = array<i64: 1, 512>}, {transform_indices = @transform_3, window_bounds = array<i64: 512, 1024>}, {transform_indices = @transform_4, window_bounds = array<i64: 1, 1024>}, {transform_indices = @transform_5, window_bounds = array<i64: 1024, 512>}, {pipeline_mode = #tpu.pipeline_mode<synchronous>, transform_indices = @transform_6, window_bounds = array<i64: 1, 512>}, {transform_indices = @transform_7, window_bounds = array<i64: 196, 512>}]} {
    %c0_i32 = arith.constant 0 : i32
    %0 = arith.cmpi eq, %arg1, %c0_i32 : i32
    %1 = arith.extui %0 : i1 to i32
    %c0_i32_0 = arith.constant 0 : i32
    %2 = arith.cmpi ne, %1, %c0_i32_0 : i32
    scf.if %2 {
      %c0_17 = arith.constant 0 : index
      %c0_18 = arith.constant 0 : index
      %26 = vector.load %arg2[%c0_17, %c0_18] : memref<196x512xf32, #tpu.memory_space<vmem>>, vector<196x512xf32>
      %cst_19 = arith.constant dense<0.000000e+00> : vector<196xf32>
      %27 = vector.multi_reduction <add>, %26, %cst_19 [1] : vector<196x512xf32> to vector<196xf32>
      %28 = vector.shape_cast %27 : vector<196xf32> to vector<196x1xf32>
      %cst_20 = arith.constant 5.120000e+02 : f32
      %29 = vector.broadcast %cst_20 : f32 to vector<196x1xf32>
      %30 = arith.divf %28, %29 : vector<196x1xf32>
      %31 = vector.broadcast %30 : vector<196x1xf32> to vector<196x512xf32>
      %32 = arith.subf %26, %31 : vector<196x512xf32>
      %33 = vector.broadcast %30 : vector<196x1xf32> to vector<196x512xf32>
      %34 = arith.subf %26, %33 : vector<196x512xf32>
      %35 = arith.mulf %32, %34 : vector<196x512xf32>
      %cst_21 = arith.constant dense<0.000000e+00> : vector<196xf32>
      %36 = vector.multi_reduction <add>, %35, %cst_21 [1] : vector<196x512xf32> to vector<196xf32>
      %37 = vector.shape_cast %36 : vector<196xf32> to vector<196x1xf32>
      %cst_22 = arith.constant 5.120000e+02 : f32
      %38 = vector.broadcast %cst_22 : f32 to vector<196x1xf32>
      %39 = arith.divf %37, %38 : vector<196x1xf32>
      %40 = vector.broadcast %30 : vector<196x1xf32> to vector<196x512xf32>
      %41 = arith.subf %26, %40 : vector<196x512xf32>
      %cst_23 = arith.constant 9.99999974E-6 : f32
      %42 = vector.broadcast %cst_23 : f32 to vector<196x1xf32>
      %43 = arith.addf %39, %42 : vector<196x1xf32>
      %44 = math.rsqrt %43 : vector<196x1xf32>
      %45 = vector.broadcast %44 : vector<196x1xf32> to vector<196x512xf32>
      %46 = arith.mulf %41, %45 : vector<196x512xf32>
      %c0_24 = arith.constant 0 : index
      %c0_25 = arith.constant 0 : index
      %47 = vector.load %arg3[%c0_24, %c0_25] : memref<1x512xf32, #tpu.memory_space<vmem>>, vector<1x512xf32>
      %48 = vector.broadcast %47 : vector<1x512xf32> to vector<196x512xf32>
      %49 = arith.mulf %46, %48 : vector<196x512xf32>
      %c0_26 = arith.constant 0 : index
      %c0_27 = arith.constant 0 : index
      %50 = vector.load %arg4[%c0_26, %c0_27] : memref<1x512xf32, #tpu.memory_space<vmem>>, vector<1x512xf32>
      %51 = vector.broadcast %50 : vector<1x512xf32> to vector<196x512xf32>
      %52 = arith.addf %49, %51 : vector<196x512xf32>
      %53 = arith.truncf %52 : vector<196x512xf32> to vector<196x512xbf16>
      %c0_28 = arith.constant 0 : index
      %c0_29 = arith.constant 0 : index
      %54 = vector.load %arg10[%c0_28, %c0_29] : memref<196x512xbf16, #tpu.memory_space<vmem>>, vector<196x512xbf16>
      tpu.vector_store %arg10[%c0_28, %c0_29], %53 {strides = array<i32>} : memref<196x512xbf16, #tpu.memory_space<vmem>>, vector<196x512xbf16>,
      %cst_30 = arith.constant 0.000000e+00 : f32
      %55 = vector.broadcast %cst_30 : f32 to vector<196x512xf32>
      %c0_31 = arith.constant 0 : index
      %c0_32 = arith.constant 0 : index
      %56 = vector.load %arg11[%c0_31, %c0_32] : memref<196x512xf32, #tpu.memory_space<vmem>>, vector<196x512xf32>
      tpu.vector_store %arg11[%c0_31, %c0_32], %55 {strides = array<i32>} : memref<196x512xf32, #tpu.memory_space<vmem>>, vector<196x512xf32>,
    } else {
    }
    %c0 = arith.constant 0 : index
    %c0_1 = arith.constant 0 : index
    %3 = vector.load %arg10[%c0, %c0_1] : memref<196x512xbf16, #tpu.memory_space<vmem>>, vector<196x512xbf16>
    %c0_2 = arith.constant 0 : index
    %c0_3 = arith.constant 0 : index
    %4 = vector.load %arg5[%c0_2, %c0_3] : memref<512x1024xbf16, #tpu.memory_space<vmem>>, vector<512x1024xbf16>
    %cst = arith.constant dense<0.000000e+00> : vector<196x1024xf32>
    %5 = tpu.matmul %3, %4, %cst {dimension_numbers = #tpu.dot_dimension_numbers<[1], [0], [0], [1], [0, 0, 1, 1], [], []>} : vector<196x512xbf16>, vector<512x1024xbf16>, vector<196x1024xf32> -> vector<196x1024xf32>
    %c0_4 = arith.constant 0 : index
    %c0_5 = arith.constant 0 : index
    %6 = vector.load %arg6[%c0_4, %c0_5] : memref<1x1024xf32, #tpu.memory_space<vmem>>, vector<1x1024xf32>
    %7 = vector.broadcast %6 : vector<1x1024xf32> to vector<196x1024xf32>
    %8 = arith.addf %5, %7 : vector<196x1024xf32>
    %cst_6 = arith.constant 5.000000e-01 : f32
    %9 = vector.broadcast %cst_6 : f32 to vector<196x1024xf32>
    %10 = arith.mulf %9, %8 : vector<196x1024xf32>
    %cst_7 = arith.constant 0.707106769 : f32
    %11 = vector.broadcast %cst_7 : f32 to vector<196x1024xf32>
    %12 = arith.mulf %8, %11 : vector<196x1024xf32>
    %13 = math.erf %12 : vector<196x1024xf32>
    %cst_8 = arith.constant 1.000000e+00 : f32
    %14 = vector.broadcast %cst_8 : f32 to vector<196x1024xf32>
    %15 = arith.addf %14, %13 : vector<196x1024xf32>
    %16 = arith.mulf %10, %15 : vector<196x1024xf32>
    %c0_9 = arith.constant 0 : index
    %c0_10 = arith.constant 0 : index
    %17 = vector.load %arg11[%c0_9, %c0_10] : memref<196x512xf32, #tpu.memory_space<vmem>>, vector<196x512xf32>
    %18 = arith.truncf %16 : vector<196x1024xf32> to vector<196x1024xbf16>
    %c0_11 = arith.constant 0 : index
    %c0_12 = arith.constant 0 : index
    %19 = vector.load %arg7[%c0_11, %c0_12] : memref<1024x512xbf16, #tpu.memory_space<vmem>>, vector<1024x512xbf16>
    %cst_13 = arith.constant dense<0.000000e+00> : vector<196x512xf32>
    %20 = tpu.matmul %18, %19, %cst_13 {dimension_numbers = #tpu.dot_dimension_numbers<[1], [0], [0], [1], [0, 0, 1, 1], [], []>} : vector<196x1024xbf16>, vector<1024x512xbf16>, vector<196x512xf32> -> vector<196x512xf32>
    %21 = arith.addf %17, %20 : vector<196x512xf32>
    %c0_14 = arith.constant 0 : index
    %c0_15 = arith.constant 0 : index
    %22 = vector.load %arg11[%c0_14, %c0_15] : memref<196x512xf32, #tpu.memory_space<vmem>>, vector<196x512xf32>
    tpu.vector_store %arg11[%c0_14, %c0_15], %21 {strides = array<i32>} : memref<196x512xf32, #tpu.memory_space<vmem>>, vector<196x512xf32>,
    %c1_i32 = arith.constant 1 : i32
    %23 = arith.cmpi eq, %arg1, %c1_i32 : i32
    %24 = arith.extui %23 : i1 to i32
    %c0_i32_16 = arith.constant 0 : i32
    %25 = arith.cmpi ne, %24, %c0_i32_16 : i32
    scf.if %25 {
      %c0_17 = arith.constant 0 : index
      %c0_18 = arith.constant 0 : index
      %26 = vector.load %arg11[%c0_17, %c0_18] : memref<196x512xf32, #tpu.memory_space<vmem>>, vector<196x512xf32>
      %c0_19 = arith.constant 0 : index
      %c0_20 = arith.constant 0 : index
      %27 = vector.load %arg8[%c0_19, %c0_20] : memref<1x512xf32, #tpu.memory_space<vmem>>, vector<1x512xf32>
      %28 = vector.broadcast %27 : vector<1x512xf32> to vector<196x512xf32>
      %29 = arith.addf %26, %28 : vector<196x512xf32>
      %c0_21 = arith.constant 0 : index
      %c0_22 = arith.constant 0 : index
      %30 = vector.load %arg9[%c0_21, %c0_22] : memref<196x512xf32, #tpu.memory_space<vmem>>, vector<196x512xf32>
      tpu.vector_store %arg9[%c0_21, %c0_22], %29 {strides = array<i32>} : memref<196x512xf32, #tpu.memory_space<vmem>>, vector<196x512xf32>,
    } else {
    }
    return
  }
  func.func @transform_0(%arg0: i32, %arg1: i32) -> (i32, i32) {
    %c0_i32 = arith.constant 0 : i32
    %c0_i32_0 = arith.constant 0 : i32
    return %arg0, %c0_i32 : i32, i32
  }
  func.func @transform_1(%arg0: i32, %arg1: i32) -> (i32, i32) {
    %c0_i32 = arith.constant 0 : i32
    %c0_i32_0 = arith.constant 0 : i32
    %c0_i32_1 = arith.constant 0 : i32
    return %c0_i32, %c0_i32_0 : i32, i32
  }
  func.func @transform_2(%arg0: i32, %arg1: i32) -> (i32, i32) {
    %c0_i32 = arith.constant 0 : i32
    %c0_i32_0 = arith.constant 0 : i32
    %c0_i32_1 = arith.constant 0 : i32
    return %c0_i32, %c0_i32_0 : i32, i32
  }
  func.func @transform_3(%arg0: i32, %arg1: i32) -> (i32, i32) {
    %c0_i32 = arith.constant 0 : i32
    %c0_i32_0 = arith.constant 0 : i32
    return %c0_i32, %arg1 : i32, i32
  }
  func.func @transform_4(%arg0: i32, %arg1: i32) -> (i32, i32) {
    %c0_i32 = arith.constant 0 : i32
    %c0_i32_0 = arith.constant 0 : i32
    return %c0_i32, %arg1 : i32, i32
  }
  func.func @transform_5(%arg0: i32, %arg1: i32) -> (i32, i32) {
    %c0_i32 = arith.constant 0 : i32
    %c0_i32_0 = arith.constant 0 : i32
    return %arg1, %c0_i32 : i32, i32
  }
  func.func @transform_6(%arg0: i32, %arg1: i32) -> (i32, i32) {
    %c0_i32 = arith.constant 0 : i32
    %c0_i32_0 = arith.constant 0 : i32
    %c0_i32_1 = arith.constant 0 : i32
    return %c0_i32, %c0_i32_0 : i32, i32
  }
  func.func @transform_7(%arg0: i32, %arg1: i32) -> (i32, i32) {
    %c0_i32 = arith.constant 0 : i32
    %c0_i32_0 = arith.constant 0 : i32
    return %arg0, %c0_i32 : i32, i32
  }
}

</mosaic_0001>

<llo_original>
// kernel: ln_linear_gelu_linear.1
$region0: #{ln_linear_gelu_linear.1}
  #allocation0 [shape = 'u32[]', space=smem, size = 0x4, offset = 0x4, fixed_abs, tag = 'smem constant byte address 0x4 - core index']
  #allocation1 [shape = 'u32[144,128]{1,0:T(1,128)}', space=vmem, size = 0x12000, scoped, tag = 'internal scratch']
  #allocation2 [shape = 'bf16[196,512]{1,0:T(8,128)(2,1)}', space=vmem, size = 0x32000, scoped, tag = 'scratch operand']
  #allocation3 [shape = 'f32[196,512]{1,0:T(8,128)}', space=vmem, size = 0x64000, scoped, tag = 'scratch operand']
  %s0 = inlined_call_operand.vmem [shape: f32[196,512], index: 0, kind: input, shape index: {}]
  %s1 = inlined_call_operand.hbm [shape: f32[1,512], index: 1, kind: input, shape index: {}]
  %s2 = inlined_call_operand.hbm [shape: f32[1,512], index: 2, kind: input, shape index: {}]
  %s3 = inlined_call_operand.hbm [shape: bf16[512,2048], index: 3, kind: input, shape index: {}]
  %s4 = inlined_call_operand.hbm [shape: f32[1,2048], index: 4, kind: input, shape index: {}]
  %s5 = inlined_call_operand.hbm [shape: bf16[2048,512], index: 5, kind: input, shape index: {}]
  %s6 = inlined_call_operand.hbm [shape: f32[1,512], index: 6, kind: input, shape index: {}]
  %s7 = inlined_call_operand.vmem [shape: f32[196,512], index: 7, kind: output, shape index: {}]
  %s8 = sld [smem:[#allocation0]]
  $region93: #{ln_linear_gelu_linear.1} parent=0
    _
  %s10 = ssub.s32 1, %s8
  %s11 = scalar_select 0, %s10, %s8
  $region1: #{ln_linear_gelu_linear.1} parent=0
    #allocation4 [shape = 'u8[2048]{0}', space=vmem, size = 0x800, scoped, tag = 'input window, operand 1, single buffered']
    #allocation5 [shape = 's32[2]{0}', space=sflag, size = 0x8, scoped, tag = 'scoped memory for ln_linear_gelu_linear.1']
    #allocation6 [shape = 'u8[2048]{0}', space=vmem, size = 0x800, scoped, tag = 'input window, operand 2, single buffered']
    #allocation7 [shape = 's32[1]{0}', space=sflag, size = 0x4, scoped, tag = 'scoped memory for ln_linear_gelu_linear.1']
    #allocation8 [shape = 'u8[2097152]{0}', space=vmem, size = 0x200000, scoped, tag = 'input window, operand 3']
    #allocation9 [shape = 'u8[8192]{0}', space=vmem, size = 0x2000, scoped, tag = 'input window, operand 4']
    #allocation10 [shape = 'u8[2097152]{0}', space=vmem, size = 0x200000, scoped, tag = 'input window, operand 5']
    #allocation11 [shape = 'u8[2048]{0}', space=vmem, size = 0x800, scoped, tag = 'input window, operand 6, single buffered']
    %12 = vsyncpa [#allocation5], 0
    %13 = vsyncpa [#allocation7], 0
    loop: start=0, step=1, limit=4
    $region2: #{ln_linear_gelu_linear.1} parent=1 // loop_pre_header
      _
    $region3: #{ln_linear_gelu_linear.1} parent=1 // loop_header
      %s15 = sphi 0, %s19
      %p16 = scmp.ge.s32.totalorder %s15, 4
      %s22 = sphi 0, %s34
      %s23 = sphi 0, %s30
      %s24 = sphi 0, %s22
      %s25 = sphi 0, %s23
      %s26 = sphi 0, %s24
      %s27 = sphi 0, %s25
      %s37 = sphi 0, %s39
      %s40 = sphi 0, %s37
      %s41 = sphi 0, %s40
      %s57 = sphi 0, %s41
      %s61 = sphi 0, %s61
      %s63 = sphi 0, %s61
      %s64 = sphi 0, %s63
      %s78 = sphi 0, %s64
      %s82 = sphi 0, %s82
      %s84 = sphi 0, %s82
      %s85 = sphi 0, %s84
      %s99 = sphi 0, %s85
      %s105 = sphi 0, %s107
      %s108 = sphi 0, %s105
      %s109 = sphi 0, %s108
      %s125 = sphi 0, %s109
      %s131 = sphi 0, %s133
      %s134 = sphi 0, %s131
      %s135 = sphi 0, %s134
      %s151 = sphi 0, %s135
      %s157 = sphi 0, %s159
      %s160 = sphi 0, %s157
      %s161 = sphi 0, %s160
      %s177 = sphi 0, %s161
      %s181 = sphi 0, %s181
      %s183 = sphi 0, %s181
      %s184 = sphi 0, %s183
      %s198 = sphi 0, %s184
      %s204 = sphi 0, %s206
      %s207 = sphi 0, %s204
      %s208 = sphi 0, %s207
      %s224 = sphi 0, %s208
    $region4: #{ln_linear_gelu_linear.1} parent=1 // loop_header_branch
      %18 = sbr.rel (%p16) target = $region8
    $region5: #{ln_linear_gelu_linear.1} parent=1 // loop_body
      %s20 = ssub.s32 %s15, 1
      %s21 = ssub.s32 %s15, 2
      %s28 = sadd.s32 1, %s23
      %p29 = scmp.ge.s32.totalorder %s28, 2
      %s30 = scalar_select %p29, 0, %s28
      %s31 = sadd.s32 1, %s22
      %s32 = scalar_select %p29, %s31, %s22
      %p33 = scmp.ge.s32.totalorder %s32, 1
      %s34 = scalar_select %p33, 0, %s32
      %s35 = ssub.s32 %s22, %s34
      %p36 = scmp.eq.s32.totalorder %s35, 0
      %s38 = sadd.s32 %s37, 1
      %s39 = scalar_select %p36, %s37, %s38
      %p42 = pneg %p36
      %p43 = scmp.eq.s32.totalorder %s15, 1
      %p44 = por %p42, %p43
      %p45 = scmp.ne.s32.totalorder %s37, %s40
      %p46 = scmp.eq.s32.totalorder %s15, 0
      %p47 = por %p45, %p46
      %p48 = scmp.ne.s32.totalorder %s37, %s40
      %p49 = scmp.eq.s32.totalorder %s20, 1
      %p50 = por %p48, %p49
      %p51 = scmp.ne.s32.totalorder %s40, %s41
      %p52 = scmp.eq.s32.totalorder %s20, 0
      %p53 = por %p51, %p52
      %p54 = scmp.ne.s32.totalorder %s40, %s41
      %p55 = scmp.eq.s32.totalorder %s21, 1
      %p56 = por %p54, %p55
      %p58 = scmp.ne.s32.totalorder %s41, %s57
      %p59 = scmp.eq.s32.totalorder %s21, 0
      %p60 = por %p58, %p59
      %s62 = sadd.s32 %s61, 1
      %p65 = scmp.eq.s32.totalorder %s15, 1
      %p66 = scmp.ne.s32.totalorder %s61, %s63
      %p67 = scmp.eq.s32.totalorder %s15, 0
      %p68 = por %p66, %p67
      %p69 = scmp.ne.s32.totalorder %s61, %s63
      %p70 = scmp.eq.s32.totalorder %s20, 1
      %p71 = por %p69, %p70
      %p72 = scmp.ne.s32.totalorder %s63, %s64
      %p73 = scmp.eq.s32.totalorder %s20, 0
      %p74 = por %p72, %p73
      %p75 = scmp.ne.s32.totalorder %s63, %s64
      %p76 = scmp.eq.s32.totalorder %s21, 1
      %p77 = por %p75, %p76
      %p79 = scmp.ne.s32.totalorder %s64, %s78
      %p80 = scmp.eq.s32.totalorder %s21, 0
      %p81 = por %p79, %p80
      %s83 = sadd.s32 %s82, 1
      %p86 = scmp.eq.s32.totalorder %s15, 1
      %p87 = scmp.ne.s32.totalorder %s82, %s84
      %p88 = scmp.eq.s32.totalorder %s15, 0
      %p89 = por %p87, %p88
      %p90 = scmp.ne.s32.totalorder %s82, %s84
      %p91 = scmp.eq.s32.totalorder %s20, 1
      %p92 = por %p90, %p91
      %p93 = scmp.ne.s32.totalorder %s84, %s85
      %p94 = scmp.eq.s32.totalorder %s20, 0
      %p95 = por %p93, %p94
      %p96 = scmp.ne.s32.totalorder %s84, %s85
      %p97 = scmp.eq.s32.totalorder %s21, 1
      %p98 = por %p96, %p97
      %p100 = scmp.ne.s32.totalorder %s85, %s99
      %p101 = scmp.eq.s32.totalorder %s21, 0
      %p102 = por %p100, %p101
      %s103 = ssub.s32 %s23, %s30
      %p104 = scmp.eq.s32.totalorder %s103, 0
      %s106 = sadd.s32 %s105, 1
      %s107 = scalar_select %p104, %s105, %s106
      %p110 = pneg %p104
      %p111 = scmp.eq.s32.totalorder %s15, 1
      %p112 = por %p110, %p111
      %p113 = scmp.ne.s32.totalorder %s105, %s108
      %p114 = scmp.eq.s32.totalorder %s15, 0
      %p115 = por %p113, %p114
      %p116 = scmp.ne.s32.totalorder %s105, %s108
      %p117 = scmp.eq.s32.totalorder %s20, 1
      %p118 = por %p116, %p117
      %p119 = scmp.ne.s32.totalorder %s108, %s109
      %p120 = scmp.eq.s32.totalorder %s20, 0
      %p121 = por %p119, %p120
      %p122 = scmp.ne.s32.totalorder %s108, %s109
      %p123 = scmp.eq.s32.totalorder %s21, 1
      %p124 = por %p122, %p123
      %p126 = scmp.ne.s32.totalorder %s109, %s125
      %p127 = scmp.eq.s32.totalorder %s21, 0
      %p128 = por %p126, %p127
      %s129 = ssub.s32 %s23, %s30
      %p130 = scmp.eq.s32.totalorder %s129, 0
      %s132 = sadd.s32 %s131, 1
      %s133 = scalar_select %p130, %s131, %s132
      %p136 = pneg %p130
      %p137 = scmp.eq.s32.totalorder %s15, 1
      %p138 = por %p136, %p137
      %p139 = scmp.ne.s32.totalorder %s131, %s134
      %p140 = scmp.eq.s32.totalorder %s15, 0
      %p141 = por %p139, %p140
      %p142 = scmp.ne.s32.totalorder %s131, %s134
      %p143 = scmp.eq.s32.totalorder %s20, 1
      %p144 = por %p142, %p143
      %p145 = scmp.ne.s32.totalorder %s134, %s135
      %p146 = scmp.eq.s32.totalorder %s20, 0
      %p147 = por %p145, %p146
      %p148 = scmp.ne.s32.totalorder %s134, %s135
      %p149 = scmp.eq.s32.totalorder %s21, 1
      %p150 = por %p148, %p149
      %p152 = scmp.ne.s32.totalorder %s135, %s151
      %p153 = scmp.eq.s32.totalorder %s21, 0
      %p154 = por %p152, %p153
      %s155 = ssub.s32 %s23, %s30
      %p156 = scmp.eq.s32.totalorder %s155, 0
      %s158 = sadd.s32 %s157, 1
      %s159 = scalar_select %p156, %s157, %s158
      %p162 = pneg %p156
      %p163 = scmp.eq.s32.totalorder %s15, 1
      %p164 = por %p162, %p163
      %p165 = scmp.ne.s32.totalorder %s157, %s160
      %p166 = scmp.eq.s32.totalorder %s15, 0
      %p167 = por %p165, %p166
      %p168 = scmp.ne.s32.totalorder %s157, %s160
      %p169 = scmp.eq.s32.totalorder %s20, 1
      %p170 = por %p168, %p169
      %p171 = scmp.ne.s32.totalorder %s160, %s161
      %p172 = scmp.eq.s32.totalorder %s20, 0
      %p173 = por %p171, %p172
      %p174 = scmp.ne.s32.totalorder %s160, %s161
      %p175 = scmp.eq.s32.totalorder %s21, 1
      %p176 = por %p174, %p175
      %p178 = scmp.ne.s32.totalorder %s161, %s177
      %p179 = scmp.eq.s32.totalorder %s21, 0
      %p180 = por %p178, %p179
      %s182 = sadd.s32 %s181, 1
      %p185 = scmp.eq.s32.totalorder %s15, 1
      %p186 = scmp.ne.s32.totalorder %s181, %s183
      %p187 = scmp.eq.s32.totalorder %s15, 0
      %p188 = por %p186, %p187
      %p189 = scmp.ne.s32.totalorder %s181, %s183
      %p190 = scmp.eq.s32.totalorder %s20, 1
      %p191 = por %p189, %p190
      %p192 = scmp.ne.s32.totalorder %s183, %s184
      %p193 = scmp.eq.s32.totalorder %s20, 0
      %p194 = por %p192, %p193
      %p195 = scmp.ne.s32.totalorder %s183, %s184
      %p196 = scmp.eq.s32.totalorder %s21, 1
      %p197 = por %p195, %p196
      %p199 = scmp.ne.s32.totalorder %s184, %s198
      %p200 = scmp.eq.s32.totalorder %s21, 0
      %p201 = por %p199, %p200
      %s202 = ssub.s32 %s22, %s34
      %p203 = scmp.eq.s32.totalorder %s202, 0
      %s205 = sadd.s32 %s204, 1
      %s206 = scalar_select %p203, %s204, %s205
      %p209 = pneg %p203
      %p210 = scmp.eq.s32.totalorder %s15, 1
      %p211 = por %p209, %p210
      %p212 = scmp.ne.s32.totalorder %s204, %s207
      %p213 = scmp.eq.s32.totalorder %s15, 0
      %p214 = por %p212, %p213
      %p215 = scmp.ne.s32.totalorder %s204, %s207
      %p216 = scmp.eq.s32.totalorder %s20, 1
      %p217 = por %p215, %p216
      %p218 = scmp.ne.s32.totalorder %s207, %s208
      %p219 = scmp.eq.s32.totalorder %s20, 0
      %p220 = por %p218, %p219
      %p221 = scmp.ne.s32.totalorder %s207, %s208
      %p222 = scmp.eq.s32.totalorder %s21, 1
      %p223 = por %p221, %p222
      %p225 = scmp.ne.s32.totalorder %s208, %s224
      %p226 = scmp.eq.s32.totalorder %s21, 0
      %p227 = por %p225, %p226
      %p228 = scmp.le.s32.totalorder 1, %s15
      %p229 = scmp.lt.s32.totalorder %s15, 3
      %p230 = pnand %p228, %p229
      %p231 = pneg %p230
      // Predicated region
      $region9: #{ln_linear_gelu_linear.1} parent=5 // pred_check
        _
      $region10: #{ln_linear_gelu_linear.1} parent=5 // pred_check_branch
        %233 = sbr.rel (%p230) target = $region12
      $region11: #{ln_linear_gelu_linear.1} parent=5 // pred_region
        %s234 = ssub.s32 %s15, 1
        // Predicated region
        $region13: #{ln_linear_gelu_linear.1} parent=11 // pred_check
          %p235 = pneg %p53
        $region14: #{ln_linear_gelu_linear.1} parent=11 // pred_check_branch
          %237 = sbr.rel (%p235) target = $region16
        $region15: #{ln_linear_gelu_linear.1} parent=11 // pred_region
          %s238 = smul.u32 25, %s24
          %p239 = scmp.lt.s32.totalorder %s238, 24
          %s240 = scalar_select %p239, %s238, 24
          %s241 = smul.addr %s240, 4
          %s242 = smul.addr %s241, 8
          %s243 = scalar_lea.vmem %s0, %s242
          %s244 = smul.u32 25, %s24
        $region16: #{ln_linear_gelu_linear.1} parent=11 // pred_fallthru
          _
        // Predicated region
        $region17: #{ln_linear_gelu_linear.1} parent=11 // pred_check
          %p245 = pneg %p74
        $region18: #{ln_linear_gelu_linear.1} parent=11 // pred_check_branch
          %247 = sbr.rel (%p245) target = $region20
        $region19: #{ln_linear_gelu_linear.1} parent=11 // pred_region
          %s249 = ssub.s32 64, 64
          %250 = vsyncadd [#allocation5], %s249
          %s252 = sshll.u32 [#allocation4], 4
          %s253 = int_to_ptr.vmem [resolvable:$true] %s252
          %255 = dma.hbm_to_vmem [thread:$0]  %s1, 64, %s253, [#allocation5]
        $region20: #{ln_linear_gelu_linear.1} parent=11 // pred_fallthru
          _
        // Predicated region
        $region21: #{ln_linear_gelu_linear.1} parent=11 // pred_check
          %p256 = pneg %p95
        $region22: #{ln_linear_gelu_linear.1} parent=11 // pred_check_branch
          %258 = sbr.rel (%p256) target = $region24
        $region23: #{ln_linear_gelu_linear.1} parent=11 // pred_region
          %s260 = ssub.s32 64, 64
          %261 = vsyncadd [#allocation7], %s260
          %s263 = sshll.u32 [#allocation6], 4
          %s264 = int_to_ptr.vmem [resolvable:$true] %s263
          %266 = dma.hbm_to_vmem [thread:$0]  %s2, 64, %s264, [#allocation7]
        $region24: #{ln_linear_gelu_linear.1} parent=11 // pred_fallthru
          _
        // Predicated region
        $region25: #{ln_linear_gelu_linear.1} parent=11 // pred_check
          %p267 = pneg %p194
        $region26: #{ln_linear_gelu_linear.1} parent=11 // pred_check_branch
          %269 = sbr.rel (%p267) target = $region28
        $region27: #{ln_linear_gelu_linear.1} parent=11 // pred_region
          %s271 = ssub.s32 64, 64
          %272 = vsyncadd [#allocation7], %s271
          %s274 = sshll.u32 [#allocation11], 4
          %s275 = int_to_ptr.vmem [resolvable:$true] %s274
          %277 = dma.hbm_to_vmem [thread:$0]  %s6, 64, %s275, [#allocation7]
        $region28: #{ln_linear_gelu_linear.1} parent=11 // pred_fallthru
          _
      $region12: #{ln_linear_gelu_linear.1} parent=5 // pred_fallthru
        _
      %p278 = scmp.lt.s32.totalorder %s15, 2
      // Predicated region
      $region29: #{ln_linear_gelu_linear.1} parent=5 // pred_check
        %p279 = pneg %p278
      $region30: #{ln_linear_gelu_linear.1} parent=5 // pred_check_branch
        %281 = sbr.rel (%p279) target = $region32
      $region31: #{ln_linear_gelu_linear.1} parent=5 // pred_region
        // Predicated region
        $region33: #{ln_linear_gelu_linear.1} parent=31 // pred_check
          %p282 = pneg %p115
        $region34: #{ln_linear_gelu_linear.1} parent=31 // pred_check_branch
          %284 = sbr.rel (%p282) target = $region36
        $region35: #{ln_linear_gelu_linear.1} parent=31 // pred_region
          %s285 = sand.u32 %s15, 1
          %s286 = scalar_lea.sflag [#allocation5], %s285
          %s287 = sand.u32 %s105, 1
          %s288 = smul.addr %s287, 2048
          %s289 = scalar_lea.vmem [#allocation8], %s288
          %s290 = smul.u32 8, %s23
          %s292 = ssub.s32 32768, 32768
          %293 = vsyncadd %s286, %s292
          %s294 = smul.addr %s290, 64
          %s295 = scalar_lea.hbm %s3, %s294
          %s296 = sshll.u32 %s289, 4
          %s297 = int_to_ptr.vmem [resolvable:$true] %s296
          %302 = dma.hbm_to_vmem [thread:$0]  %s295, 32768, %s297, %s286, 1024, 512, 32
        $region36: #{ln_linear_gelu_linear.1} parent=31 // pred_fallthru
          _
        // Predicated region
        $region37: #{ln_linear_gelu_linear.1} parent=31 // pred_check
          %p303 = pneg %p141
        $region38: #{ln_linear_gelu_linear.1} parent=31 // pred_check_branch
          %305 = sbr.rel (%p303) target = $region40
        $region39: #{ln_linear_gelu_linear.1} parent=31 // pred_region
          %s306 = sand.u32 %s15, 1
          %s307 = scalar_lea.sflag [#allocation5], %s306
          %s308 = sand.u32 %s131, 1
          %s309 = smul.addr %s308, 8
          %s310 = scalar_lea.vmem [#allocation9], %s309
          %s311 = smul.u32 8, %s23
          %s313 = ssub.s32 128, 128
          %314 = vsyncadd %s307, %s313
          %s315 = smul.addr %s311, 16
          %s316 = scalar_lea.hbm %s4, %s315
          %s318 = sshll.u32 %s310, 4
          %s319 = int_to_ptr.vmem [resolvable:$true] %s318
          %321 = dma.hbm_to_vmem [thread:$0]  %s316, 128, %s319, %s307
        $region40: #{ln_linear_gelu_linear.1} parent=31 // pred_fallthru
          _
        // Predicated region
        $region41: #{ln_linear_gelu_linear.1} parent=31 // pred_check
          %p322 = pneg %p167
        $region42: #{ln_linear_gelu_linear.1} parent=31 // pred_check_branch
          %324 = sbr.rel (%p322) target = $region44
        $region43: #{ln_linear_gelu_linear.1} parent=31 // pred_region
          %s325 = sand.u32 %s15, 1
          %s326 = scalar_lea.sflag [#allocation5], %s325
          %s327 = sand.u32 %s157, 1
          %s328 = smul.addr %s327, 2048
          %s329 = scalar_lea.vmem [#allocation10], %s328
          %s330 = smul.u32 128, %s23
          %s332 = ssub.s32 32768, 32768
          %333 = vsyncadd %s326, %s332
          %s334 = smul.addr %s330, 4
          %s335 = smul.addr %s334, 64
          %s336 = scalar_lea.hbm %s5, %s335
          %s337 = sshll.u32 %s329, 4
          %s338 = int_to_ptr.vmem [resolvable:$true] %s337
          %343 = dma.hbm_to_vmem [thread:$0]  %s336, 32768, %s338, %s326, 256, 256, 16
        $region44: #{ln_linear_gelu_linear.1} parent=31 // pred_fallthru
          _
      $region32: #{ln_linear_gelu_linear.1} parent=5 // pred_fallthru
        _
      %p344 = scmp.le.s32.totalorder 1, %s15
      %p345 = scmp.lt.s32.totalorder %s15, 3
      %p346 = pnand %p344, %p345
      %p347 = pneg %p346
      // Predicated region
      $region45: #{ln_linear_gelu_linear.1} parent=5 // pred_check
        _
      $region46: #{ln_linear_gelu_linear.1} parent=5 // pred_check_branch
        %349 = sbr.rel (%p346) target = $region48
      $region47: #{ln_linear_gelu_linear.1} parent=5 // pred_region
        %s350 = ssub.s32 %s15, 1
        // Predicated region
        $region49: #{ln_linear_gelu_linear.1} parent=47 // pred_check
          %p351 = pneg %p74
        $region50: #{ln_linear_gelu_linear.1} parent=47 // pred_check_branch
          %353 = sbr.rel (%p351) target = $region52
        $region51: #{ln_linear_gelu_linear.1} parent=47 // pred_region
          %354 = dma.done [#allocation5], 64
        $region52: #{ln_linear_gelu_linear.1} parent=47 // pred_fallthru
          _
        // Predicated region
        $region53: #{ln_linear_gelu_linear.1} parent=47 // pred_check
          %p355 = pneg %p95
        $region54: #{ln_linear_gelu_linear.1} parent=47 // pred_check_branch
          %357 = sbr.rel (%p355) target = $region56
        $region55: #{ln_linear_gelu_linear.1} parent=47 // pred_region
          %358 = dma.done [#allocation7], 64
        $region56: #{ln_linear_gelu_linear.1} parent=47 // pred_fallthru
          _
        %s359 = sand.u32 %s20, 1
        %s360 = scalar_lea.sflag [#allocation5], %s359
        %s361 = sand.u32 %s108, 1
        %s362 = smul.addr %s361, 2048
        %s363 = scalar_lea.vmem [#allocation8], %s362
        // Predicated region
        $region57: #{ln_linear_gelu_linear.1} parent=47 // pred_check
          %p364 = pneg %p121
        $region58: #{ln_linear_gelu_linear.1} parent=47 // pred_check_branch
          %366 = sbr.rel (%p364) target = $region60
        $region59: #{ln_linear_gelu_linear.1} parent=47 // pred_region
          %367 = dma.done %s360, 32768
        $region60: #{ln_linear_gelu_linear.1} parent=47 // pred_fallthru
          _
        %s368 = sand.u32 %s20, 1
        %s369 = scalar_lea.sflag [#allocation5], %s368
        %s370 = sand.u32 %s134, 1
        %s371 = smul.addr %s370, 8
        %s372 = scalar_lea.vmem [#allocation9], %s371
        // Predicated region
        $region61: #{ln_linear_gelu_linear.1} parent=47 // pred_check
          %p373 = pneg %p147
        $region62: #{ln_linear_gelu_linear.1} parent=47 // pred_check_branch
          %375 = sbr.rel (%p373) target = $region64
        $region63: #{ln_linear_gelu_linear.1} parent=47 // pred_region
          %376 = dma.done %s369, 128
        $region64: #{ln_linear_gelu_linear.1} parent=47 // pred_fallthru
          _
        %s377 = sand.u32 %s20, 1
        %s378 = scalar_lea.sflag [#allocation5], %s377
        %s379 = sand.u32 %s160, 1
        %s380 = smul.addr %s379, 2048
        %s381 = scalar_lea.vmem [#allocation10], %s380
        // Predicated region
        $region65: #{ln_linear_gelu_linear.1} parent=47 // pred_check
          %p382 = pneg %p173
        $region66: #{ln_linear_gelu_linear.1} parent=47 // pred_check_branch
          %384 = sbr.rel (%p382) target = $region68
        $region67: #{ln_linear_gelu_linear.1} parent=47 // pred_region
          %385 = dma.done %s378, 32768
        $region68: #{ln_linear_gelu_linear.1} parent=47 // pred_fallthru
          _
        // Predicated region
        $region69: #{ln_linear_gelu_linear.1} parent=47 // pred_check
          %p386 = pneg %p194
        $region70: #{ln_linear_gelu_linear.1} parent=47 // pred_check_branch
          %388 = sbr.rel (%p386) target = $region72
        $region71: #{ln_linear_gelu_linear.1} parent=47 // pred_region
          %389 = dma.done [#allocation7], 64
        $region72: #{ln_linear_gelu_linear.1} parent=47 // pred_fallthru
          _
        %s390 = smul.u32 25, %s24
        %p391 = scmp.lt.s32.totalorder %s390, 24
        %s392 = scalar_select %p391, %s390, 24
        %s393 = smul.addr %s392, 4
        %s394 = smul.addr %s393, 8
        %s395 = scalar_lea.vmem %s0, %s394
        %p396 = pneg %p53
        %p397 = pneg %p50
        %p398 = pneg %p74
        %p399 = pneg %p71
        %p400 = pneg %p95
        %p401 = pneg %p92
        %s402 = sand.u32 %s20, 1
        %s403 = scalar_lea.sflag [#allocation5], %s402
        %s404 = sand.u32 %s108, 1
        %s405 = smul.addr %s404, 2048
        %s406 = scalar_lea.vmem [#allocation8], %s405
        %p407 = pneg %p121
        %p408 = pneg %p118
        %s409 = sand.u32 %s20, 1
        %s410 = scalar_lea.sflag [#allocation5], %s409
        %s411 = sand.u32 %s134, 1
        %s412 = smul.addr %s411, 8
        %s413 = scalar_lea.vmem [#allocation9], %s412
        %p414 = pneg %p147
        %p415 = pneg %p144
        %s416 = sand.u32 %s20, 1
        %s417 = scalar_lea.sflag [#allocation5], %s416
        %s418 = sand.u32 %s160, 1
        %s419 = smul.addr %s418, 2048
        %s420 = scalar_lea.vmem [#allocation10], %s419
        %p421 = pneg %p173
        %p422 = pneg %p170
        %p423 = pneg %p194
        %p424 = pneg %p191
        %p425 = pneg %p220
        %p426 = pneg %p217
        %s427 = smul.u32 25, %s24
        %p428 = scmp.lt.s32.totalorder %s427, 24
        %s429 = scalar_select %p428, %s427, 24
        %s430 = smul.addr %s429, 4
        %s431 = smul.addr %s430, 8
        %s432 = scalar_lea.vmem %s7, %s431
        %s433 = smul.u32 25, %s24
        %p434 = scmp.lt.s32.totalorder %s433, 24
        %s435 = scalar_select %p434, %s433, 24
        %s436 = smul.addr %s435, 4
        %s437 = smul.addr %s436, 8
        %s438 = scalar_lea.vmem %s0, %s437
        %s439 = smul.u32 25, %s24
        %s440 = smul.u32 8, %s25
        %s441 = smul.u32 8, %s25
        %s442 = smul.u32 128, %s25
        %s443 = smul.u32 25, %s24
        %p444 = scmp.lt.s32.totalorder %s443, 24
        %s445 = scalar_select %p444, %s443, 24
        %s446 = smul.addr %s445, 4
        %s447 = smul.addr %s446, 8
        %s448 = scalar_lea.vmem %s7, %s447
        %s449 = smul.u32 25, %s24
        %p450 = scmp.eq.s32.totalorder %s25, 0
        // Predicated region
        $region73: #{ln_linear_gelu_linear.1} parent=47 // pred_check
          %p451 = pneg %p450
        $region74: #{ln_linear_gelu_linear.1} parent=47 // pred_check_branch
          %453 = sbr.rel (%p451) target = $region76
        $region75: #{ln_linear_gelu_linear.1} parent=47 // pred_region
          %v454 = vld [vmem:[%s438] sm:$0xff]
          %v455 = vld [vmem:[%s438 + $0x8] sm:$0xff]
          %v456 = vld [vmem:[%s438 + $0x10] sm:$0xff]
          %v457 = vld [vmem:[%s438 + $0x18] sm:$0xff]
          %v458 = vld [vmem:[%s438 + $0x20] sm:$0xff]
          %v459 = vld [vmem:[%s438 + $0x28] sm:$0xff]
          %v460 = vld [vmem:[%s438 + $0x30] sm:$0xff]
          %v461 = vld [vmem:[%s438 + $0x38] sm:$0xff]
          %v462 = vld [vmem:[%s438 + $0x40] sm:$0xff]
          %v463 = vld [vmem:[%s438 + $0x48] sm:$0xff]
          %v464 = vld [vmem:[%s438 + $0x50] sm:$0xff]
          %v465 = vld [vmem:[%s438 + $0x58] sm:$0xff]
          %v466 = vld [vmem:[%s438 + $0x60] sm:$0xff]
          %v467 = vld [vmem:[%s438 + $0x68] sm:$0xff]
          %v468 = vld [vmem:[%s438 + $0x70] sm:$0xff]
          %v469 = vld [vmem:[%s438 + $0x78] sm:$0xff]
          %v470 = vld [vmem:[%s438 + $0x80] sm:$0xff]
          %v471 = vld [vmem:[%s438 + $0x88] sm:$0xff]
          %v472 = vld [vmem:[%s438 + $0x90] sm:$0xff]
          %v473 = vld [vmem:[%s438 + $0x98] sm:$0xff]
          %v474 = vld [vmem:[%s438 + $0xa0] sm:$0xff]
          %v475 = vld [vmem:[%s438 + $0xa8] sm:$0xff]
          %v476 = vld [vmem:[%s438 + $0xb0] sm:$0xff]
          %v477 = vld [vmem:[%s438 + $0xb8] sm:$0xff]
          %v478 = vld [vmem:[%s438 + $0xc0] sm:$0xff]
          %v479 = vld [vmem:[%s438 + $0xc8] sm:$0xff]
          %v480 = vld [vmem:[%s438 + $0xd0] sm:$0xff]
          %v481 = vld [vmem:[%s438 + $0xd8] sm:$0xff]
          %v482 = vld [vmem:[%s438 + $0xe0] sm:$0xff]
          %v483 = vld [vmem:[%s438 + $0xe8] sm:$0xff]
          %v484 = vld [vmem:[%s438 + $0xf0] sm:$0xff]
          %v485 = vld [vmem:[%s438 + $0xf8] sm:$0xff]
          %v486 = vld [vmem:[%s438 + $0x100] sm:$0xff]
          %v487 = vld [vmem:[%s438 + $0x108] sm:$0xff]
          %v488 = vld [vmem:[%s438 + $0x110] sm:$0xff]
          %v489 = vld [vmem:[%s438 + $0x118] sm:$0xff]
          %v490 = vld [vmem:[%s438 + $0x120] sm:$0xff]
          %v491 = vld [vmem:[%s438 + $0x128] sm:$0xff]
          %v492 = vld [vmem:[%s438 + $0x130] sm:$0xff]
          %v493 = vld [vmem:[%s438 + $0x138] sm:$0xff]
          %v494 = vld [vmem:[%s438 + $0x140] sm:$0xff]
          %v495 = vld [vmem:[%s438 + $0x148] sm:$0xff]
          %v496 = vld [vmem:[%s438 + $0x150] sm:$0xff]
          %v497 = vld [vmem:[%s438 + $0x158] sm:$0xff]
          %v498 = vld [vmem:[%s438 + $0x160] sm:$0xff]
          %v499 = vld [vmem:[%s438 + $0x168] sm:$0xff]
          %v500 = vld [vmem:[%s438 + $0x170] sm:$0xff]
          %v501 = vld [vmem:[%s438 + $0x178] sm:$0xff]
          %v502 = vld [vmem:[%s438 + $0x180] sm:$0xff]
          %v503 = vld [vmem:[%s438 + $0x188] sm:$0xff]
          %v504 = vld [vmem:[%s438 + $0x190] sm:$0xff]
          %v505 = vld [vmem:[%s438 + $0x198] sm:$0xff]
          %v506 = vld [vmem:[%s438 + $0x1a0] sm:$0xff]
          %v507 = vld [vmem:[%s438 + $0x1a8] sm:$0xff]
          %v508 = vld [vmem:[%s438 + $0x1b0] sm:$0xff]
          %v509 = vld [vmem:[%s438 + $0x1b8] sm:$0xff]
          %v510 = vld [vmem:[%s438 + $0x1c0] sm:$0xff]
          %v511 = vld [vmem:[%s438 + $0x1c8] sm:$0xff]
          %v512 = vld [vmem:[%s438 + $0x1d0] sm:$0xff]
          %v513 = vld [vmem:[%s438 + $0x1d8] sm:$0xff]
          %v514 = vld [vmem:[%s438 + $0x1e0] sm:$0xff]
          %v515 = vld [vmem:[%s438 + $0x1e8] sm:$0xff]
          %v516 = vld [vmem:[%s438 + $0x1f0] sm:$0xff]
          %v517 = vld [vmem:[%s438 + $0x1f8] sm:$0xff]
          %v518 = vld [vmem:[%s438 + $0x200] sm:$0xff]
          %v519 = vld [vmem:[%s438 + $0x208] sm:$0xff]
          %v520 = vld [vmem:[%s438 + $0x210] sm:$0xff]
          %v521 = vld [vmem:[%s438 + $0x218] sm:$0xff]
          %v522 = vld [vmem:[%s438 + $0x220] sm:$0xff]
          %v523 = vld [vmem:[%s438 + $0x228] sm:$0xff]
          %v524 = vld [vmem:[%s438 + $0x230] sm:$0xff]
          %v525 = vld [vmem:[%s438 + $0x238] sm:$0xff]
          %v526 = vld [vmem:[%s438 + $0x240] sm:$0xff]
          %v527 = vld [vmem:[%s438 + $0x248] sm:$0xff]
          %v528 = vld [vmem:[%s438 + $0x250] sm:$0xff]
          %v529 = vld [vmem:[%s438 + $0x258] sm:$0xff]
          %v530 = vld [vmem:[%s438 + $0x260] sm:$0xff]
          %v531 = vld [vmem:[%s438 + $0x268] sm:$0xff]
          %v532 = vld [vmem:[%s438 + $0x270] sm:$0xff]
          %v533 = vld [vmem:[%s438 + $0x278] sm:$0xff]
          %v534 = vld [vmem:[%s438 + $0x280] sm:$0xff]
          %v535 = vld [vmem:[%s438 + $0x288] sm:$0xff]
          %v536 = vld [vmem:[%s438 + $0x290] sm:$0xff]
          %v537 = vld [vmem:[%s438 + $0x298] sm:$0xff]
          %v538 = vld [vmem:[%s438 + $0x2a0] sm:$0xff]
          %v539 = vld [vmem:[%s438 + $0x2a8] sm:$0xff]
          %v540 = vld [vmem:[%s438 + $0x2b0] sm:$0xff]
          %v541 = vld [vmem:[%s438 + $0x2b8] sm:$0xff]
          %v542 = vld [vmem:[%s438 + $0x2c0] sm:$0xff]
          %v543 = vld [vmem:[%s438 + $0x2c8] sm:$0xff]
          %v544 = vld [vmem:[%s438 + $0x2d0] sm:$0xff]
          %v545 = vld [vmem:[%s438 + $0x2d8] sm:$0xff]
          %v546 = vld [vmem:[%s438 + $0x2e0] sm:$0xff]
          %v547 = vld [vmem:[%s438 + $0x2e8] sm:$0xff]
          %v548 = vld [vmem:[%s438 + $0x2f0] sm:$0xff]
          %v549 = vld [vmem:[%s438 + $0x2f8] sm:$0xff]
          %v550 = vld [vmem:[%s438 + $0x300] sm:$0xf]
          %v551 = vld [vmem:[%s438 + $0x308] sm:$0xf]
          %v552 = vld [vmem:[%s438 + $0x310] sm:$0xf]
          %v553 = vld [vmem:[%s438 + $0x318] sm:$0xf]
          %v554 = vadd.f32 %v454, %v455
          %v555 = vadd.f32 %v554, %v456
          %v556 = vadd.f32 %v555, %v457
          %557 = vadd.xlane.f32.xlu0 %v556
          %v558 = vpop.xlane.xlu0 %557
          %v559 = vadd.f32 %v458, %v459
          %v560 = vadd.f32 %v559, %v460
          %v561 = vadd.f32 %v560, %v461
          %562 = vadd.xlane.f32.xlu0 %v561
          %v563 = vpop.xlane.xlu0 %562
          %v564 = vadd.f32 %v462, %v463
          %v565 = vadd.f32 %v564, %v464
          %v566 = vadd.f32 %v565, %v465
          %567 = vadd.xlane.f32.xlu0 %v566
          %v568 = vpop.xlane.xlu0 %567
          %v569 = vadd.f32 %v466, %v467
          %v570 = vadd.f32 %v569, %v468
          %v571 = vadd.f32 %v570, %v469
          %572 = vadd.xlane.f32.xlu0 %v571
          %v573 = vpop.xlane.xlu0 %572
          %v574 = vadd.f32 %v470, %v471
          %v575 = vadd.f32 %v574, %v472
          %v576 = vadd.f32 %v575, %v473
          %577 = vadd.xlane.f32.xlu0 %v576
          %v578 = vpop.xlane.xlu0 %577
          %v579 = vadd.f32 %v474, %v475
          %v580 = vadd.f32 %v579, %v476
          %v581 = vadd.f32 %v580, %v477
          %582 = vadd.xlane.f32.xlu0 %v581
          %v583 = vpop.xlane.xlu0 %582
          %v584 = vadd.f32 %v478, %v479
          %v585 = vadd.f32 %v584, %v480
          %v586 = vadd.f32 %v585, %v481
          %587 = vadd.xlane.f32.xlu0 %v586
          %v588 = vpop.xlane.xlu0 %587
          %v589 = vadd.f32 %v482, %v483
          %v590 = vadd.f32 %v589, %v484
          %v591 = vadd.f32 %v590, %v485
          %592 = vadd.xlane.f32.xlu0 %v591
          %v593 = vpop.xlane.xlu0 %592
          %v594 = vadd.f32 %v486, %v487
          %v595 = vadd.f32 %v594, %v488
          %v596 = vadd.f32 %v595, %v489
          %597 = vadd.xlane.f32.xlu0 %v596
          %v598 = vpop.xlane.xlu0 %597
          %v599 = vadd.f32 %v490, %v491
          %v600 = vadd.f32 %v599, %v492
          %v601 = vadd.f32 %v600, %v493
          %602 = vadd.xlane.f32.xlu0 %v601
          %v603 = vpop.xlane.xlu0 %602
          %v604 = vadd.f32 %v494, %v495
          %v605 = vadd.f32 %v604, %v496
          %v606 = vadd.f32 %v605, %v497
          %607 = vadd.xlane.f32.xlu0 %v606
          %v608 = vpop.xlane.xlu0 %607
          %v609 = vadd.f32 %v498, %v499
          %v610 = vadd.f32 %v609, %v500
          %v611 = vadd.f32 %v610, %v501
          %612 = vadd.xlane.f32.xlu0 %v611
          %v613 = vpop.xlane.xlu0 %612
          %v614 = vadd.f32 %v502, %v503
          %v615 = vadd.f32 %v614, %v504
          %v616 = vadd.f32 %v615, %v505
          %617 = vadd.xlane.f32.xlu0 %v616
          %v618 = vpop.xlane.xlu0 %617
          %v619 = vadd.f32 %v506, %v507
          %v620 = vadd.f32 %v619, %v508
          %v621 = vadd.f32 %v620, %v509
          %622 = vadd.xlane.f32.xlu0 %v621
          %v623 = vpop.xlane.xlu0 %622
          %v624 = vadd.f32 %v510, %v511
          %v625 = vadd.f32 %v624, %v512
          %v626 = vadd.f32 %v625, %v513
          %627 = vadd.xlane.f32.xlu0 %v626
          %v628 = vpop.xlane.xlu0 %627
          %v629 = vadd.f32 %v514, %v515
          %v630 = vadd.f32 %v629, %v516
          %v631 = vadd.f32 %v630, %v517
          %632 = vadd.xlane.f32.xlu0 %v631
          %v633 = vpop.xlane.xlu0 %632
          %v634 = vadd.f32 %v518, %v519
          %v635 = vadd.f32 %v634, %v520
          %v636 = vadd.f32 %v635, %v521
          %637 = vadd.xlane.f32.xlu0 %v636
          %v638 = vpop.xlane.xlu0 %637
          %v639 = vadd.f32 %v522, %v523
          %v640 = vadd.f32 %v639, %v524
          %v641 = vadd.f32 %v640, %v525
          %642 = vadd.xlane.f32.xlu0 %v641
          %v643 = vpop.xlane.xlu0 %642
          %v644 = vadd.f32 %v526, %v527
          %v645 = vadd.f32 %v644, %v528
          %v646 = vadd.f32 %v645, %v529
          %647 = vadd.xlane.f32.xlu0 %v646
          %v648 = vpop.xlane.xlu0 %647
          %v649 = vadd.f32 %v530, %v531
          %v650 = vadd.f32 %v649, %v532
          %v651 = vadd.f32 %v650, %v533
          %652 = vadd.xlane.f32.xlu0 %v651
          %v653 = vpop.xlane.xlu0 %652
          %v654 = vadd.f32 %v534, %v535
          %v655 = vadd.f32 %v654, %v536
          %v656 = vadd.f32 %v655, %v537
          %657 = vadd.xlane.f32.xlu0 %v656
          %v658 = vpop.xlane.xlu0 %657
          %v659 = vadd.f32 %v538, %v539
          %v660 = vadd.f32 %v659, %v540
          %v661 = vadd.f32 %v660, %v541
          %662 = vadd.xlane.f32.xlu0 %v661
          %v663 = vpop.xlane.xlu0 %662
          %v664 = vadd.f32 %v542, %v543
          %v665 = vadd.f32 %v664, %v544
          %v666 = vadd.f32 %v665, %v545
          %667 = vadd.xlane.f32.xlu0 %v666
          %v668 = vpop.xlane.xlu0 %667
          %v669 = vadd.f32 %v546, %v547
          %v670 = vadd.f32 %v669, %v548
          %v671 = vadd.f32 %v670, %v549
          %672 = vadd.xlane.f32.xlu0 %v671
          %v673 = vpop.xlane.xlu0 %672
          %vm674 = vcmask 1043456
          %v675 = vsel %vm674, %v550, 0.0
          %v676 = vsel %vm674, %v551, 0.0
          %v677 = vadd.f32 %v675, %v676
          %v678 = vsel %vm674, %v552, 0.0
          %v679 = vadd.f32 %v677, %v678
          %v680 = vsel %vm674, %v553, 0.0
          %v681 = vadd.f32 %v679, %v680
          %682 = vadd.xlane.f32.xlu0 %v681
          %v683 = vpop.xlane.xlu0 %682
          %v684 = vrcp.pop 512.0
          %v685 = vmul.f32 %v558, %v684
          %v686 = vmul.f32 %v563, %v684
          %v687 = vmul.f32 %v568, %v684
          %v688 = vmul.f32 %v573, %v684
          %v689 = vmul.f32 %v578, %v684
          %v690 = vmul.f32 %v583, %v684
          %v691 = vmul.f32 %v588, %v684
          %v692 = vmul.f32 %v593, %v684
          %v693 = vmul.f32 %v598, %v684
          %v694 = vmul.f32 %v603, %v684
          %v695 = vmul.f32 %v608, %v684
          %v696 = vmul.f32 %v613, %v684
          %v697 = vmul.f32 %v618, %v684
          %v698 = vmul.f32 %v623, %v684
          %v699 = vmul.f32 %v628, %v684
          %v700 = vmul.f32 %v633, %v684
          %v701 = vmul.f32 %v638, %v684
          %v702 = vmul.f32 %v643, %v684
          %v703 = vmul.f32 %v648, %v684
          %v704 = vmul.f32 %v653, %v684
          %v705 = vmul.f32 %v658, %v684
          %v706 = vmul.f32 %v663, %v684
          %v707 = vmul.f32 %v668, %v684
          %v708 = vmul.f32 %v673, %v684
          %v709 = vmul.f32 %v683, %v684
          %v710 = vsub.f32 %v454, %v685
          %v711 = vsub.f32 %v455, %v685
          %v712 = vsub.f32 %v456, %v685
          %v713 = vsub.f32 %v457, %v685
          %v714 = vsub.f32 %v458, %v686
          %v715 = vsub.f32 %v459, %v686
          %v716 = vsub.f32 %v460, %v686
          %v717 = vsub.f32 %v461, %v686
          %v718 = vsub.f32 %v462, %v687
          %v719 = vsub.f32 %v463, %v687
          %v720 = vsub.f32 %v464, %v687
          %v721 = vsub.f32 %v465, %v687
          %v722 = vsub.f32 %v466, %v688
          %v723 = vsub.f32 %v467, %v688
          %v724 = vsub.f32 %v468, %v688
          %v725 = vsub.f32 %v469, %v688
          %v726 = vsub.f32 %v470, %v689
          %v727 = vsub.f32 %v471, %v689
          %v728 = vsub.f32 %v472, %v689
          %v729 = vsub.f32 %v473, %v689
          %v730 = vsub.f32 %v474, %v690
          %v731 = vsub.f32 %v475, %v690
          %v732 = vsub.f32 %v476, %v690
          %v733 = vsub.f32 %v477, %v690
          %v734 = vsub.f32 %v478, %v691
          %v735 = vsub.f32 %v479, %v691
          %v736 = vsub.f32 %v480, %v691
          %v737 = vsub.f32 %v481, %v691
          %v738 = vsub.f32 %v482, %v692
          %v739 = vsub.f32 %v483, %v692
          %v740 = vsub.f32 %v484, %v692
          %v741 = vsub.f32 %v485, %v692
          %v742 = vsub.f32 %v486, %v693
          %v743 = vsub.f32 %v487, %v693
          %v744 = vsub.f32 %v488, %v693
          %v745 = vsub.f32 %v489, %v693
          %v746 = vsub.f32 %v490, %v694
          %v747 = vsub.f32 %v491, %v694
          %v748 = vsub.f32 %v492, %v694
          %v749 = vsub.f32 %v493, %v694
          %v750 = vsub.f32 %v494, %v695
          %v751 = vsub.f32 %v495, %v695
          %v752 = vsub.f32 %v496, %v695
          %v753 = vsub.f32 %v497, %v695
          %v754 = vsub.f32 %v498, %v696
          %v755 = vsub.f32 %v499, %v696
          %v756 = vsub.f32 %v500, %v696
          %v757 = vsub.f32 %v501, %v696
          %v758 = vsub.f32 %v502, %v697
          %v759 = vsub.f32 %v503, %v697
          %v760 = vsub.f32 %v504, %v697
          %v761 = vsub.f32 %v505, %v697
          %v762 = vsub.f32 %v506, %v698
          %v763 = vsub.f32 %v507, %v698
          %v764 = vsub.f32 %v508, %v698
          %v765 = vsub.f32 %v509, %v698
          %v766 = vsub.f32 %v510, %v699
          %v767 = vsub.f32 %v511, %v699
          %v768 = vsub.f32 %v512, %v699
          %v769 = vsub.f32 %v513, %v699
          %v770 = vsub.f32 %v514, %v700
          %v771 = vsub.f32 %v515, %v700
          %v772 = vsub.f32 %v516, %v700
          %v773 = vsub.f32 %v517, %v700
          %v774 = vsub.f32 %v518, %v701
          %v775 = vsub.f32 %v519, %v701
          %v776 = vsub.f32 %v520, %v701
          %v777 = vsub.f32 %v521, %v701
          %v778 = vsub.f32 %v522, %v702
          %v779 = vsub.f32 %v523, %v702
          %v780 = vsub.f32 %v524, %v702
          %v781 = vsub.f32 %v525, %v702
          %v782 = vsub.f32 %v526, %v703
          %v783 = vsub.f32 %v527, %v703
          %v784 = vsub.f32 %v528, %v703
          %v785 = vsub.f32 %v529, %v703
          %v786 = vsub.f32 %v530, %v704
          %v787 = vsub.f32 %v531, %v704
          %v788 = vsub.f32 %v532, %v704
          %v789 = vsub.f32 %v533, %v704
          %v790 = vsub.f32 %v534, %v705
          %v791 = vsub.f32 %v535, %v705
          %v792 = vsub.f32 %v536, %v705
          %v793 = vsub.f32 %v537, %v705
          %v794 = vsub.f32 %v538, %v706
          %v795 = vsub.f32 %v539, %v706
          %v796 = vsub.f32 %v540, %v706
          %v797 = vsub.f32 %v541, %v706
          %v798 = vsub.f32 %v542, %v707
          %v799 = vsub.f32 %v543, %v707
          %v800 = vsub.f32 %v544, %v707
          %v801 = vsub.f32 %v545, %v707
          %v802 = vsub.f32 %v546, %v708
          %v803 = vsub.f32 %v547, %v708
          %v804 = vsub.f32 %v548, %v708
          %v805 = vsub.f32 %v549, %v708
          %v806 = vsub.f32 %v550, %v709
          %v807 = vsub.f32 %v551, %v709
          %v808 = vsub.f32 %v552, %v709
          %v809 = vsub.f32 %v553, %v709
          %v810 = vmul.f32 %v710, %v710
          %v811 = vmul.f32 %v711, %v711
          %v812 = vmul.f32 %v712, %v712
          %v813 = vmul.f32 %v713, %v713
          %v814 = vmul.f32 %v714, %v714
          %v815 = vmul.f32 %v715, %v715
          %v816 = vmul.f32 %v716, %v716
          %v817 = vmul.f32 %v717, %v717
          %v818 = vmul.f32 %v718, %v718
          %v819 = vmul.f32 %v719, %v719
          %v820 = vmul.f32 %v720, %v720
          %v821 = vmul.f32 %v721, %v721
          %v822 = vmul.f32 %v722, %v722
          %v823 = vmul.f32 %v723, %v723
          %v824 = vmul.f32 %v724, %v724
          %v825 = vmul.f32 %v725, %v725
          %v826 = vmul.f32 %v726, %v726
          %v827 = vmul.f32 %v727, %v727
          %v828 = vmul.f32 %v728, %v728
          %v829 = vmul.f32 %v729, %v729
          %v830 = vmul.f32 %v730, %v730
          %v831 = vmul.f32 %v731, %v731
          %v832 = vmul.f32 %v732, %v732
          %v833 = vmul.f32 %v733, %v733
          %v834 = vmul.f32 %v734, %v734
          %v835 = vmul.f32 %v735, %v735
          %v836 = vmul.f32 %v736, %v736
          %v837 = vmul.f32 %v737, %v737
          %v838 = vmul.f32 %v738, %v738
          %v839 = vmul.f32 %v739, %v739
          %v840 = vmul.f32 %v740, %v740
          %v841 = vmul.f32 %v741, %v741
          %v842 = vmul.f32 %v742, %v742
          %v843 = vmul.f32 %v743, %v743
          %v844 = vmul.f32 %v744, %v744
          %v845 = vmul.f32 %v745, %v745
          %v846 = vmul.f32 %v746, %v746
          %v847 = vmul.f32 %v747, %v747
          %v848 = vmul.f32 %v748, %v748
          %v849 = vmul.f32 %v749, %v749
          %v850 = vmul.f32 %v750, %v750
          %v851 = vmul.f32 %v751, %v751
          %v852 = vmul.f32 %v752, %v752
          %v853 = vmul.f32 %v753, %v753
          %v854 = vmul.f32 %v754, %v754
          %v855 = vmul.f32 %v755, %v755
          %v856 = vmul.f32 %v756, %v756
          %v857 = vmul.f32 %v757, %v757
          %v858 = vmul.f32 %v758, %v758
          %v859 = vmul.f32 %v759, %v759
          %v860 = vmul.f32 %v760, %v760
          %v861 = vmul.f32 %v761, %v761
          %v862 = vmul.f32 %v762, %v762
          %v863 = vmul.f32 %v763, %v763
          %v864 = vmul.f32 %v764, %v764
          %v865 = vmul.f32 %v765, %v765
          %v866 = vmul.f32 %v766, %v766
          %v867 = vmul.f32 %v767, %v767
          %v868 = vmul.f32 %v768, %v768
          %v869 = vmul.f32 %v769, %v769
          %v870 = vmul.f32 %v770, %v770
          %v871 = vmul.f32 %v771, %v771
          %v872 = vmul.f32 %v772, %v772
          %v873 = vmul.f32 %v773, %v773
          %v874 = vmul.f32 %v774, %v774
          %v875 = vmul.f32 %v775, %v775
          %v876 = vmul.f32 %v776, %v776
          %v877 = vmul.f32 %v777, %v777
          %v878 = vmul.f32 %v778, %v778
          %v879 = vmul.f32 %v779, %v779
          %v880 = vmul.f32 %v780, %v780
          %v881 = vmul.f32 %v781, %v781
          %v882 = vmul.f32 %v782, %v782
          %v883 = vmul.f32 %v783, %v783
          %v884 = vmul.f32 %v784, %v784
          %v885 = vmul.f32 %v785, %v785
          %v886 = vmul.f32 %v786, %v786
          %v887 = vmul.f32 %v787, %v787
          %v888 = vmul.f32 %v788, %v788
          %v889 = vmul.f32 %v789, %v789
          %v890 = vmul.f32 %v790, %v790
          %v891 = vmul.f32 %v791, %v791
          %v892 = vmul.f32 %v792, %v792
          %v893 = vmul.f32 %v793, %v793
          %v894 = vmul.f32 %v794, %v794
          %v895 = vmul.f32 %v795, %v795
          %v896 = vmul.f32 %v796, %v796
          %v897 = vmul.f32 %v797, %v797
          %v898 = vmul.f32 %v798, %v798
          %v899 = vmul.f32 %v799, %v799
          %v900 = vmul.f32 %v800, %v800
          %v901 = vmul.f32 %v801, %v801
          %v902 = vmul.f32 %v802, %v802
          %v903 = vmul.f32 %v803, %v803
          %v904 = vmul.f32 %v804, %v804
          %v905 = vmul.f32 %v805, %v805
          %v906 = vmul.f32 %v806, %v806
          %v907 = vmul.f32 %v807, %v807
          %v908 = vmul.f32 %v808, %v808
          %v909 = vmul.f32 %v809, %v809
          %v910 = vadd.f32 %v810, %v811
          %v911 = vadd.f32 %v910, %v812
          %v912 = vadd.f32 %v911, %v813
          %913 = vadd.xlane.f32.xlu0 %v912
          %v914 = vpop.xlane.xlu0 %913
          %v915 = vadd.f32 %v814, %v815
          %v916 = vadd.f32 %v915, %v816
          %v917 = vadd.f32 %v916, %v817
          %918 = vadd.xlane.f32.xlu0 %v917
          %v919 = vpop.xlane.xlu0 %918
          %v920 = vadd.f32 %v818, %v819
          %v921 = vadd.f32 %v920, %v820
          %v922 = vadd.f32 %v921, %v821
          %923 = vadd.xlane.f32.xlu0 %v922
          %v924 = vpop.xlane.xlu0 %923
          %v925 = vadd.f32 %v822, %v823
          %v926 = vadd.f32 %v925, %v824
          %v927 = vadd.f32 %v926, %v825
          %928 = vadd.xlane.f32.xlu0 %v927
          %v929 = vpop.xlane.xlu0 %928
          %v930 = vadd.f32 %v826, %v827
          %v931 = vadd.f32 %v930, %v828
          %v932 = vadd.f32 %v931, %v829
          %933 = vadd.xlane.f32.xlu0 %v932
          %v934 = vpop.xlane.xlu0 %933
          %v935 = vadd.f32 %v830, %v831
          %v936 = vadd.f32 %v935, %v832
          %v937 = vadd.f32 %v936, %v833
          %938 = vadd.xlane.f32.xlu0 %v937
          %v939 = vpop.xlane.xlu0 %938
          %v940 = vadd.f32 %v834, %v835
          %v941 = vadd.f32 %v940, %v836
          %v942 = vadd.f32 %v941, %v837
          %943 = vadd.xlane.f32.xlu0 %v942
          %v944 = vpop.xlane.xlu0 %943
          %v945 = vadd.f32 %v838, %v839
          %v946 = vadd.f32 %v945, %v840
          %v947 = vadd.f32 %v946, %v841
          %948 = vadd.xlane.f32.xlu0 %v947
          %v949 = vpop.xlane.xlu0 %948
          %v950 = vadd.f32 %v842, %v843
          %v951 = vadd.f32 %v950, %v844
          %v952 = vadd.f32 %v951, %v845
          %953 = vadd.xlane.f32.xlu0 %v952
          %v954 = vpop.xlane.xlu0 %953
          %v955 = vadd.f32 %v846, %v847
          %v956 = vadd.f32 %v955, %v848
          %v957 = vadd.f32 %v956, %v849
          %958 = vadd.xlane.f32.xlu0 %v957
          %v959 = vpop.xlane.xlu0 %958
          %v960 = vadd.f32 %v850, %v851
          %v961 = vadd.f32 %v960, %v852
          %v962 = vadd.f32 %v961, %v853
          %963 = vadd.xlane.f32.xlu0 %v962
          %v964 = vpop.xlane.xlu0 %963
          %v965 = vadd.f32 %v854, %v855
          %v966 = vadd.f32 %v965, %v856
          %v967 = vadd.f32 %v966, %v857
          %968 = vadd.xlane.f32.xlu0 %v967
          %v969 = vpop.xlane.xlu0 %968
          %v970 = vadd.f32 %v858, %v859
          %v971 = vadd.f32 %v970, %v860
          %v972 = vadd.f32 %v971, %v861
          %973 = vadd.xlane.f32.xlu0 %v972
          %v974 = vpop.xlane.xlu0 %973
          %v975 = vadd.f32 %v862, %v863
          %v976 = vadd.f32 %v975, %v864
          %v977 = vadd.f32 %v976, %v865
          %978 = vadd.xlane.f32.xlu0 %v977
          %v979 = vpop.xlane.xlu0 %978
          %v980 = vadd.f32 %v866, %v867
          %v981 = vadd.f32 %v980, %v868
          %v982 = vadd.f32 %v981, %v869
          %983 = vadd.xlane.f32.xlu0 %v982
          %v984 = vpop.xlane.xlu0 %983
          %v985 = vadd.f32 %v870, %v871
          %v986 = vadd.f32 %v985, %v872
          %v987 = vadd.f32 %v986, %v873
          %988 = vadd.xlane.f32.xlu0 %v987
          %v989 = vpop.xlane.xlu0 %988
          %v990 = vadd.f32 %v874, %v875
          %v991 = vadd.f32 %v990, %v876
          %v992 = vadd.f32 %v991, %v877
          %993 = vadd.xlane.f32.xlu0 %v992
          %v994 = vpop.xlane.xlu0 %993
          %v995 = vadd.f32 %v878, %v879
          %v996 = vadd.f32 %v995, %v880
          %v997 = vadd.f32 %v996, %v881
          %998 = vadd.xlane.f32.xlu0 %v997
          %v999 = vpop.xlane.xlu0 %998
          %v1000 = vadd.f32 %v882, %v883
          %v1001 = vadd.f32 %v1000, %v884
          %v1002 = vadd.f32 %v1001, %v885
          %1003 = vadd.xlane.f32.xlu0 %v1002
          %v1004 = vpop.xlane.xlu0 %1003
          %v1005 = vadd.f32 %v886, %v887
          %v1006 = vadd.f32 %v1005, %v888
          %v1007 = vadd.f32 %v1006, %v889
          %1008 = vadd.xlane.f32.xlu0 %v1007
          %v1009 = vpop.xlane.xlu0 %1008
          %v1010 = vadd.f32 %v890, %v891
          %v1011 = vadd.f32 %v1010, %v892
          %v1012 = vadd.f32 %v1011, %v893
          %1013 = vadd.xlane.f32.xlu0 %v1012
          %v1014 = vpop.xlane.xlu0 %1013
          %v1015 = vadd.f32 %v894, %v895
          %v1016 = vadd.f32 %v1015, %v896
          %v1017 = vadd.f32 %v1016, %v897
          %1018 = vadd.xlane.f32.xlu0 %v1017
          %v1019 = vpop.xlane.xlu0 %1018
          %v1020 = vadd.f32 %v898, %v899
          %v1021 = vadd.f32 %v1020, %v900
          %v1022 = vadd.f32 %v1021, %v901
          %1023 = vadd.xlane.f32.xlu0 %v1022
          %v1024 = vpop.xlane.xlu0 %1023
          %v1025 = vadd.f32 %v902, %v903
          %v1026 = vadd.f32 %v1025, %v904
          %v1027 = vadd.f32 %v1026, %v905
          %1028 = vadd.xlane.f32.xlu0 %v1027
          %v1029 = vpop.xlane.xlu0 %1028
          %v1030 = vsel %vm674, %v906, 0.0
          %v1031 = vsel %vm674, %v907, 0.0
          %v1032 = vadd.f32 %v1030, %v1031
          %v1033 = vsel %vm674, %v908, 0.0
          %v1034 = vadd.f32 %v1032, %v1033
          %v1035 = vsel %vm674, %v909, 0.0
          %v1036 = vadd.f32 %v1034, %v1035
          %1037 = vadd.xlane.f32.xlu0 %v1036
          %v1038 = vpop.xlane.xlu0 %1037
          %v1039 = vmul.f32 %v914, %v684
          %v1040 = vmul.f32 %v919, %v684
          %v1041 = vmul.f32 %v924, %v684
          %v1042 = vmul.f32 %v929, %v684
          %v1043 = vmul.f32 %v934, %v684
          %v1044 = vmul.f32 %v939, %v684
          %v1045 = vmul.f32 %v944, %v684
          %v1046 = vmul.f32 %v949, %v684
          %v1047 = vmul.f32 %v954, %v684
          %v1048 = vmul.f32 %v959, %v684
          %v1049 = vmul.f32 %v964, %v684
          %v1050 = vmul.f32 %v969, %v684
          %v1051 = vmul.f32 %v974, %v684
          %v1052 = vmul.f32 %v979, %v684
          %v1053 = vmul.f32 %v984, %v684
          %v1054 = vmul.f32 %v989, %v684
          %v1055 = vmul.f32 %v994, %v684
          %v1056 = vmul.f32 %v999, %v684
          %v1057 = vmul.f32 %v1004, %v684
          %v1058 = vmul.f32 %v1009, %v684
          %v1059 = vmul.f32 %v1014, %v684
          %v1060 = vmul.f32 %v1019, %v684
          %v1061 = vmul.f32 %v1024, %v684
          %v1062 = vmul.f32 %v1029, %v684
          %v1063 = vmul.f32 %v1038, %v684
          %v1064 = vadd.f32 %v1039, 1e-05
          %v1065 = vadd.f32 %v1040, 1e-05
          %v1066 = vadd.f32 %v1041, 1e-05
          %v1067 = vadd.f32 %v1042, 1e-05
          %v1068 = vadd.f32 %v1043, 1e-05
          %v1069 = vadd.f32 %v1044, 1e-05
          %v1070 = vadd.f32 %v1045, 1e-05
          %v1071 = vadd.f32 %v1046, 1e-05
          %v1072 = vadd.f32 %v1047, 1e-05
          %v1073 = vadd.f32 %v1048, 1e-05
          %v1074 = vadd.f32 %v1049, 1e-05
          %v1075 = vadd.f32 %v1050, 1e-05
          %v1076 = vadd.f32 %v1051, 1e-05
          %v1077 = vadd.f32 %v1052, 1e-05
          %v1078 = vadd.f32 %v1053, 1e-05
          %v1079 = vadd.f32 %v1054, 1e-05
          %v1080 = vadd.f32 %v1055, 1e-05
          %v1081 = vadd.f32 %v1056, 1e-05
          %v1082 = vadd.f32 %v1057, 1e-05
          %v1083 = vadd.f32 %v1058, 1e-05
          %v1084 = vadd.f32 %v1059, 1e-05
          %v1085 = vadd.f32 %v1060, 1e-05
          %v1086 = vadd.f32 %v1061, 1e-05
          %v1087 = vadd.f32 %v1062, 1e-05
          %v1088 = vadd.f32 %v1063, 1e-05
          %v1089 = vrsqrt.pop %v1064
          %v1090 = vrsqrt.pop %v1065
          %v1091 = vrsqrt.pop %v1066
          %v1092 = vrsqrt.pop %v1067
          %v1093 = vrsqrt.pop %v1068
          %v1094 = vrsqrt.pop %v1069
          %v1095 = vrsqrt.pop %v1070
          %v1096 = vrsqrt.pop %v1071
          %v1097 = vrsqrt.pop %v1072
          %v1098 = vrsqrt.pop %v1073
          %v1099 = vrsqrt.pop %v1074
          %v1100 = vrsqrt.pop %v1075
          %v1101 = vrsqrt.pop %v1076
          %v1102 = vrsqrt.pop %v1077
          %v1103 = vrsqrt.pop %v1078
          %v1104 = vrsqrt.pop %v1079
          %v1105 = vrsqrt.pop %v1080
          %v1106 = vrsqrt.pop %v1081
          %v1107 = vrsqrt.pop %v1082
          %v1108 = vrsqrt.pop %v1083
          %v1109 = vrsqrt.pop %v1084
          %v1110 = vrsqrt.pop %v1085
          %v1111 = vrsqrt.pop %v1086
          %v1112 = vrsqrt.pop %v1087
          %v1113 = vrsqrt.pop %v1088
          %v1114 = vmul.f32 %v710, %v1089
          %v1115 = vmul.f32 %v711, %v1089
          %v1116 = vmul.f32 %v712, %v1089
          %v1117 = vmul.f32 %v713, %v1089
          %v1118 = vmul.f32 %v714, %v1090
          %v1119 = vmul.f32 %v715, %v1090
          %v1120 = vmul.f32 %v716, %v1090
          %v1121 = vmul.f32 %v717, %v1090
          %v1122 = vmul.f32 %v718, %v1091
          %v1123 = vmul.f32 %v719, %v1091
          %v1124 = vmul.f32 %v720, %v1091
          %v1125 = vmul.f32 %v721, %v1091
          %v1126 = vmul.f32 %v722, %v1092
          %v1127 = vmul.f32 %v723, %v1092
          %v1128 = vmul.f32 %v724, %v1092
          %v1129 = vmul.f32 %v725, %v1092
          %v1130 = vmul.f32 %v726, %v1093
          %v1131 = vmul.f32 %v727, %v1093
          %v1132 = vmul.f32 %v728, %v1093
          %v1133 = vmul.f32 %v729, %v1093
          %v1134 = vmul.f32 %v730, %v1094
          %v1135 = vmul.f32 %v731, %v1094
          %v1136 = vmul.f32 %v732, %v1094
          %v1137 = vmul.f32 %v733, %v1094
          %v1138 = vmul.f32 %v734, %v1095
          %v1139 = vmul.f32 %v735, %v1095
          %v1140 = vmul.f32 %v736, %v1095
          %v1141 = vmul.f32 %v737, %v1095
          %v1142 = vmul.f32 %v738, %v1096
          %v1143 = vmul.f32 %v739, %v1096
          %v1144 = vmul.f32 %v740, %v1096
          %v1145 = vmul.f32 %v741, %v1096
          %v1146 = vmul.f32 %v742, %v1097
          %v1147 = vmul.f32 %v743, %v1097
          %v1148 = vmul.f32 %v744, %v1097
          %v1149 = vmul.f32 %v745, %v1097
          %v1150 = vmul.f32 %v746, %v1098
          %v1151 = vmul.f32 %v747, %v1098
          %v1152 = vmul.f32 %v748, %v1098
          %v1153 = vmul.f32 %v749, %v1098
          %v1154 = vmul.f32 %v750, %v1099
          %v1155 = vmul.f32 %v751, %v1099
          %v1156 = vmul.f32 %v752, %v1099
          %v1157 = vmul.f32 %v753, %v1099
          %v1158 = vmul.f32 %v754, %v1100
          %v1159 = vmul.f32 %v755, %v1100
          %v1160 = vmul.f32 %v756, %v1100
          %v1161 = vmul.f32 %v757, %v1100
          %v1162 = vmul.f32 %v758, %v1101
          %v1163 = vmul.f32 %v759, %v1101
          %v1164 = vmul.f32 %v760, %v1101
          %v1165 = vmul.f32 %v761, %v1101
          %v1166 = vmul.f32 %v762, %v1102
          %v1167 = vmul.f32 %v763, %v1102
          %v1168 = vmul.f32 %v764, %v1102
          %v1169 = vmul.f32 %v765, %v1102
          %v1170 = vmul.f32 %v766, %v1103
          %v1171 = vmul.f32 %v767, %v1103
          %v1172 = vmul.f32 %v768, %v1103
          %v1173 = vmul.f32 %v769, %v1103
          %v1174 = vmul.f32 %v770, %v1104
          %v1175 = vmul.f32 %v771, %v1104
          %v1176 = vmul.f32 %v772, %v1104
          %v1177 = vmul.f32 %v773, %v1104
          %v1178 = vmul.f32 %v774, %v1105
          %v1179 = vmul.f32 %v775, %v1105
          %v1180 = vmul.f32 %v776, %v1105
          %v1181 = vmul.f32 %v777, %v1105
          %v1182 = vmul.f32 %v778, %v1106
          %v1183 = vmul.f32 %v779, %v1106
          %v1184 = vmul.f32 %v780, %v1106
          %v1185 = vmul.f32 %v781, %v1106
          %v1186 = vmul.f32 %v782, %v1107
          %v1187 = vmul.f32 %v783, %v1107
          %v1188 = vmul.f32 %v784, %v1107
          %v1189 = vmul.f32 %v785, %v1107
          %v1190 = vmul.f32 %v786, %v1108
          %v1191 = vmul.f32 %v787, %v1108
          %v1192 = vmul.f32 %v788, %v1108
          %v1193 = vmul.f32 %v789, %v1108
          %v1194 = vmul.f32 %v790, %v1109
          %v1195 = vmul.f32 %v791, %v1109
          %v1196 = vmul.f32 %v792, %v1109
          %v1197 = vmul.f32 %v793, %v1109
          %v1198 = vmul.f32 %v794, %v1110
          %v1199 = vmul.f32 %v795, %v1110
          %v1200 = vmul.f32 %v796, %v1110
          %v1201 = vmul.f32 %v797, %v1110
          %v1202 = vmul.f32 %v798, %v1111
          %v1203 = vmul.f32 %v799, %v1111
          %v1204 = vmul.f32 %v800, %v1111
          %v1205 = vmul.f32 %v801, %v1111
          %v1206 = vmul.f32 %v802, %v1112
          %v1207 = vmul.f32 %v803, %v1112
          %v1208 = vmul.f32 %v804, %v1112
          %v1209 = vmul.f32 %v805, %v1112
          %v1210 = vmul.f32 %v806, %v1113
          %v1211 = vmul.f32 %v807, %v1113
          %v1212 = vmul.f32 %v808, %v1113
          %v1213 = vmul.f32 %v809, %v1113
          %v1214 = vld [vmem:[#allocation4] sm:$0xf]
          %v1216 = vlaneseq
          %v1217 = vshrl.u32 %v1216, 7
          %v1218 = vsub.s32 0, %v1217
          %v1219 = vrot.slane %v1214, %v1218
          %v1220 = vlaneseq
          %v1221 = vshrl.u32 %v1220, 7
          %v1222 = vsub.s32 1, %v1221
          %v1223 = vrot.slane %v1214, %v1222
          %v1224 = vlaneseq
          %v1225 = vshrl.u32 %v1224, 7
          %v1226 = vsub.s32 2, %v1225
          %v1227 = vrot.slane %v1214, %v1226
          %v1228 = vlaneseq
          %v1229 = vshrl.u32 %v1228, 7
          %v1230 = vsub.s32 3, %v1229
          %v1231 = vrot.slane %v1214, %v1230
          %v1236 = vmul.f32 %v1114, %v1219
          %v1237 = vmul.f32 %v1115, %v1223
          %v1238 = vmul.f32 %v1116, %v1227
          %v1239 = vmul.f32 %v1117, %v1231
          %v1240 = vmul.f32 %v1118, %v1219
          %v1241 = vmul.f32 %v1119, %v1223
          %v1242 = vmul.f32 %v1120, %v1227
          %v1243 = vmul.f32 %v1121, %v1231
          %v1244 = vmul.f32 %v1122, %v1219
          %v1245 = vmul.f32 %v1123, %v1223
          %v1246 = vmul.f32 %v1124, %v1227
          %v1247 = vmul.f32 %v1125, %v1231
          %v1248 = vmul.f32 %v1126, %v1219
          %v1249 = vmul.f32 %v1127, %v1223
          %v1250 = vmul.f32 %v1128, %v1227
          %v1251 = vmul.f32 %v1129, %v1231
          %v1252 = vmul.f32 %v1130, %v1219
          %v1253 = vmul.f32 %v1131, %v1223
          %v1254 = vmul.f32 %v1132, %v1227
          %v1255 = vmul.f32 %v1133, %v1231
          %v1256 = vmul.f32 %v1134, %v1219
          %v1257 = vmul.f32 %v1135, %v1223
          %v1258 = vmul.f32 %v1136, %v1227
          %v1259 = vmul.f32 %v1137, %v1231
          %v1260 = vmul.f32 %v1138, %v1219
          %v1261 = vmul.f32 %v1139, %v1223
          %v1262 = vmul.f32 %v1140, %v1227
          %v1263 = vmul.f32 %v1141, %v1231
          %v1264 = vmul.f32 %v1142, %v1219
          %v1265 = vmul.f32 %v1143, %v1223
          %v1266 = vmul.f32 %v1144, %v1227
          %v1267 = vmul.f32 %v1145, %v1231
          %v1268 = vmul.f32 %v1146, %v1219
          %v1269 = vmul.f32 %v1147, %v1223
          %v1270 = vmul.f32 %v1148, %v1227
          %v1271 = vmul.f32 %v1149, %v1231
          %v1272 = vmul.f32 %v1150, %v1219
          %v1273 = vmul.f32 %v1151, %v1223
          %v1274 = vmul.f32 %v1152, %v1227
          %v1275 = vmul.f32 %v1153, %v1231
          %v1276 = vmul.f32 %v1154, %v1219
          %v1277 = vmul.f32 %v1155, %v1223
          %v1278 = vmul.f32 %v1156, %v1227
          %v1279 = vmul.f32 %v1157, %v1231
          %v1280 = vmul.f32 %v1158, %v1219
          %v1281 = vmul.f32 %v1159, %v1223
          %v1282 = vmul.f32 %v1160, %v1227
          %v1283 = vmul.f32 %v1161, %v1231
          %v1284 = vmul.f32 %v1162, %v1219
          %v1285 = vmul.f32 %v1163, %v1223
          %v1286 = vmul.f32 %v1164, %v1227
          %v1287 = vmul.f32 %v1165, %v1231
          %v1288 = vmul.f32 %v1166, %v1219
          %v1289 = vmul.f32 %v1167, %v1223
          %v1290 = vmul.f32 %v1168, %v1227
          %v1291 = vmul.f32 %v1169, %v1231
          %v1292 = vmul.f32 %v1170, %v1219
          %v1293 = vmul.f32 %v1171, %v1223
          %v1294 = vmul.f32 %v1172, %v1227
          %v1295 = vmul.f32 %v1173, %v1231
          %v1296 = vmul.f32 %v1174, %v1219
          %v1297 = vmul.f32 %v1175, %v1223
          %v1298 = vmul.f32 %v1176, %v1227
          %v1299 = vmul.f32 %v1177, %v1231
          %v1300 = vmul.f32 %v1178, %v1219
          %v1301 = vmul.f32 %v1179, %v1223
          %v1302 = vmul.f32 %v1180, %v1227
          %v1303 = vmul.f32 %v1181, %v1231
          %v1304 = vmul.f32 %v1182, %v1219
          %v1305 = vmul.f32 %v1183, %v1223
          %v1306 = vmul.f32 %v1184, %v1227
          %v1307 = vmul.f32 %v1185, %v1231
          %v1308 = vmul.f32 %v1186, %v1219
          %v1309 = vmul.f32 %v1187, %v1223
          %v1310 = vmul.f32 %v1188, %v1227
          %v1311 = vmul.f32 %v1189, %v1231
          %v1312 = vmul.f32 %v1190, %v1219
          %v1313 = vmul.f32 %v1191, %v1223
          %v1314 = vmul.f32 %v1192, %v1227
          %v1315 = vmul.f32 %v1193, %v1231
          %v1316 = vmul.f32 %v1194, %v1219
          %v1317 = vmul.f32 %v1195, %v1223
          %v1318 = vmul.f32 %v1196, %v1227
          %v1319 = vmul.f32 %v1197, %v1231
          %v1320 = vmul.f32 %v1198, %v1219
          %v1321 = vmul.f32 %v1199, %v1223
          %v1322 = vmul.f32 %v1200, %v1227
          %v1323 = vmul.f32 %v1201, %v1231
          %v1324 = vmul.f32 %v1202, %v1219
          %v1325 = vmul.f32 %v1203, %v1223
          %v1326 = vmul.f32 %v1204, %v1227
          %v1327 = vmul.f32 %v1205, %v1231
          %v1328 = vmul.f32 %v1206, %v1219
          %v1329 = vmul.f32 %v1207, %v1223
          %v1330 = vmul.f32 %v1208, %v1227
          %v1331 = vmul.f32 %v1209, %v1231
          %v1332 = vmul.f32 %v1210, %v1219
          %v1333 = vmul.f32 %v1211, %v1223
          %v1334 = vmul.f32 %v1212, %v1227
          %v1335 = vmul.f32 %v1213, %v1231
          %v1336 = vld [vmem:[#allocation6] sm:$0xf]
          %v1338 = vlaneseq
          %v1339 = vshrl.u32 %v1338, 7
          %v1340 = vsub.s32 0, %v1339
          %v1341 = vrot.slane %v1336, %v1340
          %v1342 = vlaneseq
          %v1343 = vshrl.u32 %v1342, 7
          %v1344 = vsub.s32 1, %v1343
          %v1345 = vrot.slane %v1336, %v1344
          %v1346 = vlaneseq
          %v1347 = vshrl.u32 %v1346, 7
          %v1348 = vsub.s32 2, %v1347
          %v1349 = vrot.slane %v1336, %v1348
          %v1350 = vlaneseq
          %v1351 = vshrl.u32 %v1350, 7
          %v1352 = vsub.s32 3, %v1351
          %v1353 = vrot.slane %v1336, %v1352
          %v1358 = vadd.f32 %v1236, %v1341
          %v1359 = vadd.f32 %v1237, %v1345
          %v1360 = vadd.f32 %v1238, %v1349
          %v1361 = vadd.f32 %v1239, %v1353
          %v1362 = vadd.f32 %v1240, %v1341
          %v1363 = vadd.f32 %v1241, %v1345
          %v1364 = vadd.f32 %v1242, %v1349
          %v1365 = vadd.f32 %v1243, %v1353
          %v1366 = vadd.f32 %v1244, %v1341
          %v1367 = vadd.f32 %v1245, %v1345
          %v1368 = vadd.f32 %v1246, %v1349
          %v1369 = vadd.f32 %v1247, %v1353
          %v1370 = vadd.f32 %v1248, %v1341
          %v1371 = vadd.f32 %v1249, %v1345
          %v1372 = vadd.f32 %v1250, %v1349
          %v1373 = vadd.f32 %v1251, %v1353
          %v1374 = vadd.f32 %v1252, %v1341
          %v1375 = vadd.f32 %v1253, %v1345
          %v1376 = vadd.f32 %v1254, %v1349
          %v1377 = vadd.f32 %v1255, %v1353
          %v1378 = vadd.f32 %v1256, %v1341
          %v1379 = vadd.f32 %v1257, %v1345
          %v1380 = vadd.f32 %v1258, %v1349
          %v1381 = vadd.f32 %v1259, %v1353
          %v1382 = vadd.f32 %v1260, %v1341
          %v1383 = vadd.f32 %v1261, %v1345
          %v1384 = vadd.f32 %v1262, %v1349
          %v1385 = vadd.f32 %v1263, %v1353
          %v1386 = vadd.f32 %v1264, %v1341
          %v1387 = vadd.f32 %v1265, %v1345
          %v1388 = vadd.f32 %v1266, %v1349
          %v1389 = vadd.f32 %v1267, %v1353
          %v1390 = vadd.f32 %v1268, %v1341
          %v1391 = vadd.f32 %v1269, %v1345
          %v1392 = vadd.f32 %v1270, %v1349
          %v1393 = vadd.f32 %v1271, %v1353
          %v1394 = vadd.f32 %v1272, %v1341
          %v1395 = vadd.f32 %v1273, %v1345
          %v1396 = vadd.f32 %v1274, %v1349
          %v1397 = vadd.f32 %v1275, %v1353
          %v1398 = vadd.f32 %v1276, %v1341
          %v1399 = vadd.f32 %v1277, %v1345
          %v1400 = vadd.f32 %v1278, %v1349
          %v1401 = vadd.f32 %v1279, %v1353
          %v1402 = vadd.f32 %v1280, %v1341
          %v1403 = vadd.f32 %v1281, %v1345
          %v1404 = vadd.f32 %v1282, %v1349
          %v1405 = vadd.f32 %v1283, %v1353
          %v1406 = vadd.f32 %v1284, %v1341
          %v1407 = vadd.f32 %v1285, %v1345
          %v1408 = vadd.f32 %v1286, %v1349
          %v1409 = vadd.f32 %v1287, %v1353
          %v1410 = vadd.f32 %v1288, %v1341
          %v1411 = vadd.f32 %v1289, %v1345
          %v1412 = vadd.f32 %v1290, %v1349
          %v1413 = vadd.f32 %v1291, %v1353
          %v1414 = vadd.f32 %v1292, %v1341
          %v1415 = vadd.f32 %v1293, %v1345
          %v1416 = vadd.f32 %v1294, %v1349
          %v1417 = vadd.f32 %v1295, %v1353
          %v1418 = vadd.f32 %v1296, %v1341
          %v1419 = vadd.f32 %v1297, %v1345
          %v1420 = vadd.f32 %v1298, %v1349
          %v1421 = vadd.f32 %v1299, %v1353
          %v1422 = vadd.f32 %v1300, %v1341
          %v1423 = vadd.f32 %v1301, %v1345
          %v1424 = vadd.f32 %v1302, %v1349
          %v1425 = vadd.f32 %v1303, %v1353
          %v1426 = vadd.f32 %v1304, %v1341
          %v1427 = vadd.f32 %v1305, %v1345
          %v1428 = vadd.f32 %v1306, %v1349
          %v1429 = vadd.f32 %v1307, %v1353
          %v1430 = vadd.f32 %v1308, %v1341
          %v1431 = vadd.f32 %v1309, %v1345
          %v1432 = vadd.f32 %v1310, %v1349
          %v1433 = vadd.f32 %v1311, %v1353
          %v1434 = vadd.f32 %v1312, %v1341
          %v1435 = vadd.f32 %v1313, %v1345
          %v1436 = vadd.f32 %v1314, %v1349
          %v1437 = vadd.f32 %v1315, %v1353
          %v1438 = vadd.f32 %v1316, %v1341
          %v1439 = vadd.f32 %v1317, %v1345
          %v1440 = vadd.f32 %v1318, %v1349
          %v1441 = vadd.f32 %v1319, %v1353
          %v1442 = vadd.f32 %v1320, %v1341
          %v1443 = vadd.f32 %v1321, %v1345
          %v1444 = vadd.f32 %v1322, %v1349
          %v1445 = vadd.f32 %v1323, %v1353
          %v1446 = vadd.f32 %v1324, %v1341
          %v1447 = vadd.f32 %v1325, %v1345
          %v1448 = vadd.f32 %v1326, %v1349
          %v1449 = vadd.f32 %v1327, %v1353
          %v1450 = vadd.f32 %v1328, %v1341
          %v1451 = vadd.f32 %v1329, %v1345
          %v1452 = vadd.f32 %v1330, %v1349
          %v1453 = vadd.f32 %v1331, %v1353
          %v1454 = vadd.f32 %v1332, %v1341
          %v1455 = vadd.f32 %v1333, %v1345
          %v1456 = vadd.f32 %v1334, %v1349
          %v1457 = vadd.f32 %v1335, %v1353
          %v1458 = vpack.c.bf16 %v1362, %v1358
          %v1459 = vpack.c.bf16 %v1363, %v1359
          %v1460 = vpack.c.bf16 %v1364, %v1360
          %v1461 = vpack.c.bf16 %v1365, %v1361
          %v1462 = vpack.c.bf16 %v1370, %v1366
          %v1463 = vpack.c.bf16 %v1371, %v1367
          %v1464 = vpack.c.bf16 %v1372, %v1368
          %v1465 = vpack.c.bf16 %v1373, %v1369
          %v1466 = vpack.c.bf16 %v1378, %v1374
          %v1467 = vpack.c.bf16 %v1379, %v1375
          %v1468 = vpack.c.bf16 %v1380, %v1376
          %v1469 = vpack.c.bf16 %v1381, %v1377
          %v1470 = vpack.c.bf16 %v1386, %v1382
          %v1471 = vpack.c.bf16 %v1387, %v1383
          %v1472 = vpack.c.bf16 %v1388, %v1384
          %v1473 = vpack.c.bf16 %v1389, %v1385
          %v1474 = vpack.c.bf16 %v1394, %v1390
          %v1475 = vpack.c.bf16 %v1395, %v1391
          %v1476 = vpack.c.bf16 %v1396, %v1392
          %v1477 = vpack.c.bf16 %v1397, %v1393
          %v1478 = vpack.c.bf16 %v1402, %v1398
          %v1479 = vpack.c.bf16 %v1403, %v1399
          %v1480 = vpack.c.bf16 %v1404, %v1400
          %v1481 = vpack.c.bf16 %v1405, %v1401
          %v1482 = vpack.c.bf16 %v1410, %v1406
          %v1483 = vpack.c.bf16 %v1411, %v1407
          %v1484 = vpack.c.bf16 %v1412, %v1408
          %v1485 = vpack.c.bf16 %v1413, %v1409
          %v1486 = vpack.c.bf16 %v1418, %v1414
          %v1487 = vpack.c.bf16 %v1419, %v1415
          %v1488 = vpack.c.bf16 %v1420, %v1416
          %v1489 = vpack.c.bf16 %v1421, %v1417
          %v1490 = vpack.c.bf16 %v1426, %v1422
          %v1491 = vpack.c.bf16 %v1427, %v1423
          %v1492 = vpack.c.bf16 %v1428, %v1424
          %v1493 = vpack.c.bf16 %v1429, %v1425
          %v1494 = vpack.c.bf16 %v1434, %v1430
          %v1495 = vpack.c.bf16 %v1435, %v1431
          %v1496 = vpack.c.bf16 %v1436, %v1432
          %v1497 = vpack.c.bf16 %v1437, %v1433
          %v1498 = vpack.c.bf16 %v1442, %v1438
          %v1499 = vpack.c.bf16 %v1443, %v1439
          %v1500 = vpack.c.bf16 %v1444, %v1440
          %v1501 = vpack.c.bf16 %v1445, %v1441
          %v1502 = vpack.c.bf16 %v1450, %v1446
          %v1503 = vpack.c.bf16 %v1451, %v1447
          %v1504 = vpack.c.bf16 %v1452, %v1448
          %v1505 = vpack.c.bf16 %v1453, %v1449
          %v1506 = vpack.c.bf16 %v1454, %v1454
          %v1507 = vpack.c.bf16 %v1455, %v1455
          %v1508 = vpack.c.bf16 %v1456, %v1456
          %v1509 = vpack.c.bf16 %v1457, %v1457
          %v1562 = vunpack.c.l.b16 %v1458
          %v1563 = vunpack.c.l.b16 %v1459
          %v1564 = vunpack.c.l.b16 %v1460
          %v1565 = vunpack.c.l.b16 %v1461
          %v1566 = vunpack.c.h.b16 %v1458
          %v1567 = vunpack.c.h.b16 %v1459
          %v1568 = vunpack.c.h.b16 %v1460
          %v1569 = vunpack.c.h.b16 %v1461
          %v1570 = vunpack.c.l.b16 %v1462
          %v1571 = vunpack.c.l.b16 %v1463
          %v1572 = vunpack.c.l.b16 %v1464
          %v1573 = vunpack.c.l.b16 %v1465
          %v1574 = vunpack.c.h.b16 %v1462
          %v1575 = vunpack.c.h.b16 %v1463
          %v1576 = vunpack.c.h.b16 %v1464
          %v1577 = vunpack.c.h.b16 %v1465
          %v1578 = vunpack.c.l.b16 %v1466
          %v1579 = vunpack.c.l.b16 %v1467
          %v1580 = vunpack.c.l.b16 %v1468
          %v1581 = vunpack.c.l.b16 %v1469
          %v1582 = vunpack.c.h.b16 %v1466
          %v1583 = vunpack.c.h.b16 %v1467
          %v1584 = vunpack.c.h.b16 %v1468
          %v1585 = vunpack.c.h.b16 %v1469
          %v1586 = vunpack.c.l.b16 %v1470
          %v1587 = vunpack.c.l.b16 %v1471
          %v1588 = vunpack.c.l.b16 %v1472
          %v1589 = vunpack.c.l.b16 %v1473
          %v1590 = vunpack.c.h.b16 %v1470
          %v1591 = vunpack.c.h.b16 %v1471
          %v1592 = vunpack.c.h.b16 %v1472
          %v1593 = vunpack.c.h.b16 %v1473
          %v1594 = vunpack.c.l.b16 %v1474
          %v1595 = vunpack.c.l.b16 %v1475
          %v1596 = vunpack.c.l.b16 %v1476
          %v1597 = vunpack.c.l.b16 %v1477
          %v1598 = vunpack.c.h.b16 %v1474
          %v1599 = vunpack.c.h.b16 %v1475
          %v1600 = vunpack.c.h.b16 %v1476
          %v1601 = vunpack.c.h.b16 %v1477
          %v1602 = vunpack.c.l.b16 %v1478
          %v1603 = vunpack.c.l.b16 %v1479
          %v1604 = vunpack.c.l.b16 %v1480
          %v1605 = vunpack.c.l.b16 %v1481
          %v1606 = vunpack.c.h.b16 %v1478
          %v1607 = vunpack.c.h.b16 %v1479
          %v1608 = vunpack.c.h.b16 %v1480
          %v1609 = vunpack.c.h.b16 %v1481
          %v1610 = vunpack.c.l.b16 %v1482
          %v1611 = vunpack.c.l.b16 %v1483
          %v1612 = vunpack.c.l.b16 %v1484
          %v1613 = vunpack.c.l.b16 %v1485
          %v1614 = vunpack.c.h.b16 %v1482
          %v1615 = vunpack.c.h.b16 %v1483
          %v1616 = vunpack.c.h.b16 %v1484
          %v1617 = vunpack.c.h.b16 %v1485
          %v1618 = vunpack.c.l.b16 %v1486
          %v1619 = vunpack.c.l.b16 %v1487
          %v1620 = vunpack.c.l.b16 %v1488
          %v1621 = vunpack.c.l.b16 %v1489
          %v1622 = vunpack.c.h.b16 %v1486
          %v1623 = vunpack.c.h.b16 %v1487
          %v1624 = vunpack.c.h.b16 %v1488
          %v1625 = vunpack.c.h.b16 %v1489
          %v1626 = vunpack.c.l.b16 %v1490
          %v1627 = vunpack.c.l.b16 %v1491
          %v1628 = vunpack.c.l.b16 %v1492
          %v1629 = vunpack.c.l.b16 %v1493
          %v1630 = vunpack.c.h.b16 %v1490
          %v1631 = vunpack.c.h.b16 %v1491
          %v1632 = vunpack.c.h.b16 %v1492
          %v1633 = vunpack.c.h.b16 %v1493
          %v1634 = vunpack.c.l.b16 %v1494
          %v1635 = vunpack.c.l.b16 %v1495
          %v1636 = vunpack.c.l.b16 %v1496
          %v1637 = vunpack.c.l.b16 %v1497
          %v1638 = vunpack.c.h.b16 %v1494
          %v1639 = vunpack.c.h.b16 %v1495
          %v1640 = vunpack.c.h.b16 %v1496
          %v1641 = vunpack.c.h.b16 %v1497
          %v1642 = vunpack.c.l.b16 %v1498
          %v1643 = vunpack.c.l.b16 %v1499
          %v1644 = vunpack.c.l.b16 %v1500
          %v1645 = vunpack.c.l.b16 %v1501
          %v1646 = vunpack.c.h.b16 %v1498
          %v1647 = vunpack.c.h.b16 %v1499
          %v1648 = vunpack.c.h.b16 %v1500
          %v1649 = vunpack.c.h.b16 %v1501
          %v1650 = vunpack.c.l.b16 %v1502
          %v1651 = vunpack.c.l.b16 %v1503
          %v1652 = vunpack.c.l.b16 %v1504
          %v1653 = vunpack.c.l.b16 %v1505
          %v1654 = vunpack.c.h.b16 %v1502
          %v1655 = vunpack.c.h.b16 %v1503
          %v1656 = vunpack.c.h.b16 %v1504
          %v1657 = vunpack.c.h.b16 %v1505
          %v1658 = vunpack.c.l.b16 %v1506
          %v1659 = vunpack.c.l.b16 %v1507
          %v1660 = vunpack.c.l.b16 %v1508
          %v1661 = vunpack.c.l.b16 %v1509
          %v1662 = vpack.c.b16 %v1563, %v1562
          %v1663 = vpack.c.b16 %v1565, %v1564
          %v1664 = vpack.c.b16 %v1567, %v1566
          %v1665 = vpack.c.b16 %v1569, %v1568
          %v1666 = vpack.c.b16 %v1571, %v1570
          %v1667 = vpack.c.b16 %v1573, %v1572
          %v1668 = vpack.c.b16 %v1575, %v1574
          %v1669 = vpack.c.b16 %v1577, %v1576
          %v1670 = vpack.c.b16 %v1579, %v1578
          %v1671 = vpack.c.b16 %v1581, %v1580
          %v1672 = vpack.c.b16 %v1583, %v1582
          %v1673 = vpack.c.b16 %v1585, %v1584
          %v1674 = vpack.c.b16 %v1587, %v1586
          %v1675 = vpack.c.b16 %v1589, %v1588
          %v1676 = vpack.c.b16 %v1591, %v1590
          %v1677 = vpack.c.b16 %v1593, %v1592
          %v1678 = vpack.c.b16 %v1595, %v1594
          %v1679 = vpack.c.b16 %v1597, %v1596
          %v1680 = vpack.c.b16 %v1599, %v1598
          %v1681 = vpack.c.b16 %v1601, %v1600
          %v1682 = vpack.c.b16 %v1603, %v1602
          %v1683 = vpack.c.b16 %v1605, %v1604
          %v1684 = vpack.c.b16 %v1607, %v1606
          %v1685 = vpack.c.b16 %v1609, %v1608
          %v1686 = vpack.c.b16 %v1611, %v1610
          %v1687 = vpack.c.b16 %v1613, %v1612
          %v1688 = vpack.c.b16 %v1615, %v1614
          %v1689 = vpack.c.b16 %v1617, %v1616
          %v1690 = vpack.c.b16 %v1619, %v1618
          %v1691 = vpack.c.b16 %v1621, %v1620
          %v1692 = vpack.c.b16 %v1623, %v1622
          %v1693 = vpack.c.b16 %v1625, %v1624
          %v1694 = vpack.c.b16 %v1627, %v1626
          %v1695 = vpack.c.b16 %v1629, %v1628
          %v1696 = vpack.c.b16 %v1631, %v1630
          %v1697 = vpack.c.b16 %v1633, %v1632
          %v1698 = vpack.c.b16 %v1635, %v1634
          %v1699 = vpack.c.b16 %v1637, %v1636
          %v1700 = vpack.c.b16 %v1639, %v1638
          %v1701 = vpack.c.b16 %v1641, %v1640
          %v1702 = vpack.c.b16 %v1643, %v1642
          %v1703 = vpack.c.b16 %v1645, %v1644
          %v1704 = vpack.c.b16 %v1647, %v1646
          %v1705 = vpack.c.b16 %v1649, %v1648
          %v1706 = vpack.c.b16 %v1651, %v1650
          %v1707 = vpack.c.b16 %v1653, %v1652
          %v1708 = vpack.c.b16 %v1655, %v1654
          %v1709 = vpack.c.b16 %v1657, %v1656
          %v1710 = vpack.c.b16 %v1659, %v1658
          %v1711 = vpack.c.b16 %v1661, %v1660
          %1762 = vst [vmem:[#allocation2] sm:$0xff] %v1662
          %1763 = vst [vmem:[#allocation2 + $0x8] sm:$0xff] %v1663
          %1764 = vst [vmem:[#allocation2 + $0x10] sm:$0xff] %v1664
          %1765 = vst [vmem:[#allocation2 + $0x18] sm:$0xff] %v1665
          %1766 = vst [vmem:[#allocation2 + $0x20] sm:$0xff] %v1666
          %1767 = vst [vmem:[#allocation2 + $0x28] sm:$0xff] %v1667
          %1768 = vst [vmem:[#allocation2 + $0x30] sm:$0xff] %v1668
          %1769 = vst [vmem:[#allocation2 + $0x38] sm:$0xff] %v1669
          %1770 = vst [vmem:[#allocation2 + $0x40] sm:$0xff] %v1670
          %1771 = vst [vmem:[#allocation2 + $0x48] sm:$0xff] %v1671
          %1772 = vst [vmem:[#allocation2 + $0x50] sm:$0xff] %v1672
          %1773 = vst [vmem:[#allocation2 + $0x58] sm:$0xff] %v1673
          %1774 = vst [vmem:[#allocation2 + $0x60] sm:$0xff] %v1674
          %1775 = vst [vmem:[#allocation2 + $0x68] sm:$0xff] %v1675
          %1776 = vst [vmem:[#allocation2 + $0x70] sm:$0xff] %v1676
          %1777 = vst [vmem:[#allocation2 + $0x78] sm:$0xff] %v1677
          %1778 = vst [vmem:[#allocation2 + $0x80] sm:$0xff] %v1678
          %1779 = vst [vmem:[#allocation2 + $0x88] sm:$0xff] %v1679
          %1780 = vst [vmem:[#allocation2 + $0x90] sm:$0xff] %v1680
          %1781 = vst [vmem:[#allocation2 + $0x98] sm:$0xff] %v1681
          %1782 = vst [vmem:[#allocation2 + $0xa0] sm:$0xff] %v1682
          %1783 = vst [vmem:[#allocation2 + $0xa8] sm:$0xff] %v1683
          %1784 = vst [vmem:[#allocation2 + $0xb0] sm:$0xff] %v1684
          %1785 = vst [vmem:[#allocation2 + $0xb8] sm:$0xff] %v1685
          %1786 = vst [vmem:[#allocation2 + $0xc0] sm:$0xff] %v1686
          %1787 = vst [vmem:[#allocation2 + $0xc8] sm:$0xff] %v1687
          %1788 = vst [vmem:[#allocation2 + $0xd0] sm:$0xff] %v1688
          %1789 = vst [vmem:[#allocation2 + $0xd8] sm:$0xff] %v1689
          %1790 = vst [vmem:[#allocation2 + $0xe0] sm:$0xff] %v1690
          %1791 = vst [vmem:[#allocation2 + $0xe8] sm:$0xff] %v1691
          %1792 = vst [vmem:[#allocation2 + $0xf0] sm:$0xff] %v1692
          %1793 = vst [vmem:[#allocation2 + $0xf8] sm:$0xff] %v1693
          %1794 = vst [vmem:[#allocation2 + $0x100] sm:$0xff] %v1694
          %1795 = vst [vmem:[#allocation2 + $0x108] sm:$0xff] %v1695
          %1796 = vst [vmem:[#allocation2 + $0x110] sm:$0xff] %v1696
          %1797 = vst [vmem:[#allocation2 + $0x118] sm:$0xff] %v1697
          %1798 = vst [vmem:[#allocation2 + $0x120] sm:$0xff] %v1698
          %1799 = vst [vmem:[#allocation2 + $0x128] sm:$0xff] %v1699
          %1800 = vst [vmem:[#allocation2 + $0x130] sm:$0xff] %v1700
          %1801 = vst [vmem:[#allocation2 + $0x138] sm:$0xff] %v1701
          %1802 = vst [vmem:[#allocation2 + $0x140] sm:$0xff] %v1702
          %1803 = vst [vmem:[#allocation2 + $0x148] sm:$0xff] %v1703
          %1804 = vst [vmem:[#allocation2 + $0x150] sm:$0xff] %v1704
          %1805 = vst [vmem:[#allocation2 + $0x158] sm:$0xff] %v1705
          %1806 = vst [vmem:[#allocation2 + $0x160] sm:$0xff] %v1706
          %1807 = vst [vmem:[#allocation2 + $0x168] sm:$0xff] %v1707
          %1808 = vst [vmem:[#allocation2 + $0x170] sm:$0xff] %v1708
          %1809 = vst [vmem:[#allocation2 + $0x178] sm:$0xff] %v1709
          %1810 = vst [vmem:[#allocation2 + $0x180] sm:$0x33] %v1710
          %1811 = vst [vmem:[#allocation2 + $0x188] sm:$0x33] %v1711
          %1812 = vst [vmem:[#allocation3] sm:$0xff] 0.0
          %1813 = vst [vmem:[#allocation3 + $0x8] sm:$0xff] 0.0
          %1814 = vst [vmem:[#allocation3 + $0x10] sm:$0xff] 0.0
          %1815 = vst [vmem:[#allocation3 + $0x18] sm:$0xff] 0.0
          %1816 = vst [vmem:[#allocation3 + $0x20] sm:$0xff] 0.0
          %1817 = vst [vmem:[#allocation3 + $0x28] sm:$0xff] 0.0
          %1818 = vst [vmem:[#allocation3 + $0x30] sm:$0xff] 0.0
          %1819 = vst [vmem:[#allocation3 + $0x38] sm:$0xff] 0.0
          %1820 = vst [vmem:[#allocation3 + $0x40] sm:$0xff] 0.0
          %1821 = vst [vmem:[#allocation3 + $0x48] sm:$0xff] 0.0
          %1822 = vst [vmem:[#allocation3 + $0x50] sm:$0xff] 0.0
          %1823 = vst [vmem:[#allocation3 + $0x58] sm:$0xff] 0.0
          %1824 = vst [vmem:[#allocation3 + $0x60] sm:$0xff] 0.0
          %1825 = vst [vmem:[#allocation3 + $0x68] sm:$0xff] 0.0
          %1826 = vst [vmem:[#allocation3 + $0x70] sm:$0xff] 0.0
          %1827 = vst [vmem:[#allocation3 + $0x78] sm:$0xff] 0.0
          %1828 = vst [vmem:[#allocation3 + $0x80] sm:$0xff] 0.0
          %1829 = vst [vmem:[#allocation3 + $0x88] sm:$0xff] 0.0
          %1830 = vst [vmem:[#allocation3 + $0x90] sm:$0xff] 0.0
          %1831 = vst [vmem:[#allocation3 + $0x98] sm:$0xff] 0.0
          %1832 = vst [vmem:[#allocation3 + $0xa0] sm:$0xff] 0.0
          %1833 = vst [vmem:[#allocation3 + $0xa8] sm:$0xff] 0.0
          %1834 = vst [vmem:[#allocation3 + $0xb0] sm:$0xff] 0.0
          %1835 = vst [vmem:[#allocation3 + $0xb8] sm:$0xff] 0.0
          %1836 = vst [vmem:[#allocation3 + $0xc0] sm:$0xff] 0.0
          %1837 = vst [vmem:[#allocation3 + $0xc8] sm:$0xff] 0.0
          %1838 = vst [vmem:[#allocation3 + $0xd0] sm:$0xff] 0.0
          %1839 = vst [vmem:[#allocation3 + $0xd8] sm:$0xff] 0.0
          %1840 = vst [vmem:[#allocation3 + $0xe0] sm:$0xff] 0.0
          %1841 = vst [vmem:[#allocation3 + $0xe8] sm:$0xff] 0.0
          %1842 = vst [vmem:[#allocation3 + $0xf0] sm:$0xff] 0.0
          %1843 = vst [vmem:[#allocation3 + $0xf8] sm:$0xff] 0.0
          %1844 = vst [vmem:[#allocation3 + $0x100] sm:$0xff] 0.0
          %1845 = vst [vmem:[#allocation3 + $0x108] sm:$0xff] 0.0
          %1846 = vst [vmem:[#allocation3 + $0x110] sm:$0xff] 0.0
          %1847 = vst [vmem:[#allocation3 + $0x118] sm:$0xff] 0.0
          %1848 = vst [vmem:[#allocation3 + $0x120] sm:$0xff] 0.0
          %1849 = vst [vmem:[#allocation3 + $0x128] sm:$0xff] 0.0
          %1850 = vst [vmem:[#allocation3 + $0x130] sm:$0xff] 0.0
          %1851 = vst [vmem:[#allocation3 + $0x138] sm:$0xff] 0.0
          %1852 = vst [vmem:[#allocation3 + $0x140] sm:$0xff] 0.0
          %1853 = vst [vmem:[#allocation3 + $0x148] sm:$0xff] 0.0
          %1854 = vst [vmem:[#allocation3 + $0x150] sm:$0xff] 0.0
          %1855 = vst [vmem:[#allocation3 + $0x158] sm:$0xff] 0.0
          %1856 = vst [vmem:[#allocation3 + $0x160] sm:$0xff] 0.0
          %1857 = vst [vmem:[#allocation3 + $0x168] sm:$0xff] 0.0
          %1858 = vst [vmem:[#allocation3 + $0x170] sm:$0xff] 0.0
          %1859 = vst [vmem:[#allocation3 + $0x178] sm:$0xff] 0.0
          %1860 = vst [vmem:[#allocation3 + $0x180] sm:$0xff] 0.0
          %1861 = vst [vmem:[#allocation3 + $0x188] sm:$0xff] 0.0
          %1862 = vst [vmem:[#allocation3 + $0x190] sm:$0xff] 0.0
          %1863 = vst [vmem:[#allocation3 + $0x198] sm:$0xff] 0.0
          %1864 = vst [vmem:[#allocation3 + $0x1a0] sm:$0xff] 0.0
          %1865 = vst [vmem:[#allocation3 + $0x1a8] sm:$0xff] 0.0
          %1866 = vst [vmem:[#allocation3 + $0x1b0] sm:$0xff] 0.0
          %1867 = vst [vmem:[#allocation3 + $0x1b8] sm:$0xff] 0.0
          %1868 = vst [vmem:[#allocation3 + $0x1c0] sm:$0xff] 0.0
          %1869 = vst [vmem:[#allocation3 + $0x1c8] sm:$0xff] 0.0
          %1870 = vst [vmem:[#allocation3 + $0x1d0] sm:$0xff] 0.0
          %1871 = vst [vmem:[#allocation3 + $0x1d8] sm:$0xff] 0.0
          %1872 = vst [vmem:[#allocation3 + $0x1e0] sm:$0xff] 0.0
          %1873 = vst [vmem:[#allocation3 + $0x1e8] sm:$0xff] 0.0
          %1874 = vst [vmem:[#allocation3 + $0x1f0] sm:$0xff] 0.0
          %1875 = vst [vmem:[#allocation3 + $0x1f8] sm:$0xff] 0.0
          %1876 = vst [vmem:[#allocation3 + $0x200] sm:$0xff] 0.0
          %1877 = vst [vmem:[#allocation3 + $0x208] sm:$0xff] 0.0
          %1878 = vst [vmem:[#allocation3 + $0x210] sm:$0xff] 0.0
          %1879 = vst [vmem:[#allocation3 + $0x218] sm:$0xff] 0.0
          %1880 = vst [vmem:[#allocation3 + $0x220] sm:$0xff] 0.0
          %1881 = vst [vmem:[#allocation3 + $0x228] sm:$0xff] 0.0
          %1882 = vst [vmem:[#allocation3 + $0x230] sm:$0xff] 0.0
          %1883 = vst [vmem:[#allocation3 + $0x238] sm:$0xff] 0.0
          %1884 = vst [vmem:[#allocation3 + $0x240] sm:$0xff] 0.0
          %1885 = vst [vmem:[#allocation3 + $0x248] sm:$0xff] 0.0
          %1886 = vst [vmem:[#allocation3 + $0x250] sm:$0xff] 0.0
          %1887 = vst [vmem:[#allocation3 + $0x258] sm:$0xff] 0.0
          %1888 = vst [vmem:[#allocation3 + $0x260] sm:$0xff] 0.0
          %1889 = vst [vmem:[#allocation3 + $0x268] sm:$0xff] 0.0
          %1890 = vst [vmem:[#allocation3 + $0x270] sm:$0xff] 0.0
          %1891 = vst [vmem:[#allocation3 + $0x278] sm:$0xff] 0.0
          %1892 = vst [vmem:[#allocation3 + $0x280] sm:$0xff] 0.0
          %1893 = vst [vmem:[#allocation3 + $0x288] sm:$0xff] 0.0
          %1894 = vst [vmem:[#allocation3 + $0x290] sm:$0xff] 0.0
          %1895 = vst [vmem:[#allocation3 + $0x298] sm:$0xff] 0.0
          %1896 = vst [vmem:[#allocation3 + $0x2a0] sm:$0xff] 0.0
          %1897 = vst [vmem:[#allocation3 + $0x2a8] sm:$0xff] 0.0
          %1898 = vst [vmem:[#allocation3 + $0x2b0] sm:$0xff] 0.0
          %1899 = vst [vmem:[#allocation3 + $0x2b8] sm:$0xff] 0.0
          %1900 = vst [vmem:[#allocation3 + $0x2c0] sm:$0xff] 0.0
          %1901 = vst [vmem:[#allocation3 + $0x2c8] sm:$0xff] 0.0
          %1902 = vst [vmem:[#allocation3 + $0x2d0] sm:$0xff] 0.0
          %1903 = vst [vmem:[#allocation3 + $0x2d8] sm:$0xff] 0.0
          %1904 = vst [vmem:[#allocation3 + $0x2e0] sm:$0xff] 0.0
          %1905 = vst [vmem:[#allocation3 + $0x2e8] sm:$0xff] 0.0
          %1906 = vst [vmem:[#allocation3 + $0x2f0] sm:$0xff] 0.0
          %1907 = vst [vmem:[#allocation3 + $0x2f8] sm:$0xff] 0.0
          %1908 = vst [vmem:[#allocation3 + $0x300] sm:$0xf] 0.0
          %1909 = vst [vmem:[#allocation3 + $0x308] sm:$0xf] 0.0
          %1910 = vst [vmem:[#allocation3 + $0x310] sm:$0xf] 0.0
          %1911 = vst [vmem:[#allocation3 + $0x318] sm:$0xf] 0.0
        $region76: #{ln_linear_gelu_linear.1} parent=47 // pred_fallthru
          _
        %v1912 = vld [vmem:[#allocation2] sm:$0xff]
        %v1913 = vld [vmem:[#allocation2 + $0x8] sm:$0xff]
        %v1914 = vld [vmem:[#allocation2 + $0x10] sm:$0xff]
        %v1915 = vld [vmem:[#allocation2 + $0x18] sm:$0xff]
        %v1916 = vld [vmem:[#allocation2 + $0x20] sm:$0xff]
        %v1917 = vld [vmem:[#allocation2 + $0x28] sm:$0xff]
        %v1918 = vld [vmem:[#allocation2 + $0x30] sm:$0xff]
        %v1919 = vld [vmem:[#allocation2 + $0x38] sm:$0xff]
        %v1920 = vld [vmem:[#allocation2 + $0x40] sm:$0xff]
        %v1921 = vld [vmem:[#allocation2 + $0x48] sm:$0xff]
        %v1922 = vld [vmem:[#allocation2 + $0x50] sm:$0xff]
        %v1923 = vld [vmem:[#allocation2 + $0x58] sm:$0xff]
        %v1924 = vld [vmem:[#allocation2 + $0x60] sm:$0xff]
        %v1925 = vld [vmem:[#allocation2 + $0x68] sm:$0xff]
        %v1926 = vld [vmem:[#allocation2 + $0x70] sm:$0xff]
        %v1927 = vld [vmem:[#allocation2 + $0x78] sm:$0xff]
        %v1928 = vld [vmem:[#allocation2 + $0x80] sm:$0xff]
        %v1929 = vld [vmem:[#allocation2 + $0x88] sm:$0xff]
        %v1930 = vld [vmem:[#allocation2 + $0x90] sm:$0xff]
        %v1931 = vld [vmem:[#allocation2 + $0x98] sm:$0xff]
        %v1932 = vld [vmem:[#allocation2 + $0xa0] sm:$0xff]
        %v1933 = vld [vmem:[#allocation2 + $0xa8] sm:$0xff]
        %v1934 = vld [vmem:[#allocation2 + $0xb0] sm:$0xff]
        %v1935 = vld [vmem:[#allocation2 + $0xb8] sm:$0xff]
        %v1936 = vld [vmem:[#allocation2 + $0xc0] sm:$0xff]
        %v1937 = vld [vmem:[#allocation2 + $0xc8] sm:$0xff]
        %v1938 = vld [vmem:[#allocation2 + $0xd0] sm:$0xff]
        %v1939 = vld [vmem:[#allocation2 + $0xd8] sm:$0xff]
        %v1940 = vld [vmem:[#allocation2 + $0xe0] sm:$0xff]
        %v1941 = vld [vmem:[#allocation2 + $0xe8] sm:$0xff]
        %v1942 = vld [vmem:[#allocation2 + $0xf0] sm:$0xff]
        %v1943 = vld [vmem:[#allocation2 + $0xf8] sm:$0xff]
        %v1944 = vld [vmem:[#allocation2 + $0x100] sm:$0xff]
        %v1945 = vld [vmem:[#allocation2 + $0x108] sm:$0xff]
        %v1946 = vld [vmem:[#allocation2 + $0x110] sm:$0xff]
        %v1947 = vld [vmem:[#allocation2 + $0x118] sm:$0xff]
        %v1948 = vld [vmem:[#allocation2 + $0x120] sm:$0xff]
        %v1949 = vld [vmem:[#allocation2 + $0x128] sm:$0xff]
        %v1950 = vld [vmem:[#allocation2 + $0x130] sm:$0xff]
        %v1951 = vld [vmem:[#allocation2 + $0x138] sm:$0xff]
        %v1952 = vld [vmem:[#allocation2 + $0x140] sm:$0xff]
        %v1953 = vld [vmem:[#allocation2 + $0x148] sm:$0xff]
        %v1954 = vld [vmem:[#allocation2 + $0x150] sm:$0xff]
        %v1955 = vld [vmem:[#allocation2 + $0x158] sm:$0xff]
        %v1956 = vld [vmem:[#allocation2 + $0x160] sm:$0xff]
        %v1957 = vld [vmem:[#allocation2 + $0x168] sm:$0xff]
        %v1958 = vld [vmem:[#allocation2 + $0x170] sm:$0xff]
        %v1959 = vld [vmem:[#allocation2 + $0x178] sm:$0xff]
        %v1960 = vld [vmem:[#allocation2 + $0x180] sm:$0x33]
        %v1961 = vld [vmem:[#allocation2 + $0x188] sm:$0x33]
        %v1962 = vld [vmem:[%s363] sm:$0xff]
        %v1963 = vld [vmem:[%s363 + $0x8] sm:$0xff]
        %v1964 = vld [vmem:[%s363 + $0x10] sm:$0xff]
        %v1965 = vld [vmem:[%s363 + $0x18] sm:$0xff]
        %v1966 = vld [vmem:[%s363 + $0x20] sm:$0xff]
        %v1967 = vld [vmem:[%s363 + $0x28] sm:$0xff]
        %v1968 = vld [vmem:[%s363 + $0x30] sm:$0xff]
        %v1969 = vld [vmem:[%s363 + $0x38] sm:$0xff]
        %v1970 = vld [vmem:[%s363 + $0x40] sm:$0xff]
        %v1971 = vld [vmem:[%s363 + $0x48] sm:$0xff]
        %v1972 = vld [vmem:[%s363 + $0x50] sm:$0xff]
        %v1973 = vld [vmem:[%s363 + $0x58] sm:$0xff]
        %v1974 = vld [vmem:[%s363 + $0x60] sm:$0xff]
        %v1975 = vld [vmem:[%s363 + $0x68] sm:$0xff]
        %v1976 = vld [vmem:[%s363 + $0x70] sm:$0xff]
        %v1977 = vld [vmem:[%s363 + $0x78] sm:$0xff]
        %v1978 = vld [vmem:[%s363 + $0x80] sm:$0xff]
        %v1979 = vld [vmem:[%s363 + $0x88] sm:$0xff]
        %v1980 = vld [vmem:[%s363 + $0x90] sm:$0xff]
        %v1981 = vld [vmem:[%s363 + $0x98] sm:$0xff]
        %v1982 = vld [vmem:[%s363 + $0xa0] sm:$0xff]
        %v1983 = vld [vmem:[%s363 + $0xa8] sm:$0xff]
        %v1984 = vld [vmem:[%s363 + $0xb0] sm:$0xff]
        %v1985 = vld [vmem:[%s363 + $0xb8] sm:$0xff]
        %v1986 = vld [vmem:[%s363 + $0xc0] sm:$0xff]
        %v1987 = vld [vmem:[%s363 + $0xc8] sm:$0xff]
        %v1988 = vld [vmem:[%s363 + $0xd0] sm:$0xff]
        %v1989 = vld [vmem:[%s363 + $0xd8] sm:$0xff]
        %v1990 = vld [vmem:[%s363 + $0xe0] sm:$0xff]
        %v1991 = vld [vmem:[%s363 + $0xe8] sm:$0xff]
        %v1992 = vld [vmem:[%s363 + $0xf0] sm:$0xff]
        %v1993 = vld [vmem:[%s363 + $0xf8] sm:$0xff]
        %v1994 = vld [vmem:[%s363 + $0x100] sm:$0xff]
        %v1995 = vld [vmem:[%s363 + $0x108] sm:$0xff]
        %v1996 = vld [vmem:[%s363 + $0x110] sm:$0xff]
        %v1997 = vld [vmem:[%s363 + $0x118] sm:$0xff]
        %v1998 = vld [vmem:[%s363 + $0x120] sm:$0xff]
        %v1999 = vld [vmem:[%s363 + $0x128] sm:$0xff]
        %v2000 = vld [vmem:[%s363 + $0x130] sm:$0xff]
        %v2001 = vld [vmem:[%s363 + $0x138] sm:$0xff]
        %v2002 = vld [vmem:[%s363 + $0x140] sm:$0xff]
        %v2003 = vld [vmem:[%s363 + $0x148] sm:$0xff]
        %v2004 = vld [vmem:[%s363 + $0x150] sm:$0xff]
        %v2005 = vld [vmem:[%s363 + $0x158] sm:$0xff]
        %v2006 = vld [vmem:[%s363 + $0x160] sm:$0xff]
        %v2007 = vld [vmem:[%s363 + $0x168] sm:$0xff]
        %v2008 = vld [vmem:[%s363 + $0x170] sm:$0xff]
        %v2009 = vld [vmem:[%s363 + $0x178] sm:$0xff]
        %v2010 = vld [vmem:[%s363 + $0x180] sm:$0xff]
        %v2011 = vld [vmem:[%s363 + $0x188] sm:$0xff]
        %v2012 = vld [vmem:[%s363 + $0x190] sm:$0xff]
        %v2013 = vld [vmem:[%s363 + $0x198] sm:$0xff]
        %v2014 = vld [vmem:[%s363 + $0x1a0] sm:$0xff]
        %v2015 = vld [vmem:[%s363 + $0x1a8] sm:$0xff]
        %v2016 = vld [vmem:[%s363 + $0x1b0] sm:$0xff]
        %v2017 = vld [vmem:[%s363 + $0x1b8] sm:$0xff]
        %v2018 = vld [vmem:[%s363 + $0x1c0] sm:$0xff]
        %v2019 = vld [vmem:[%s363 + $0x1c8] sm:$0xff]
        %v2020 = vld [vmem:[%s363 + $0x1d0] sm:$0xff]
        %v2021 = vld [vmem:[%s363 + $0x1d8] sm:$0xff]
        %v2022 = vld [vmem:[%s363 + $0x1e0] sm:$0xff]
        %v2023 = vld [vmem:[%s363 + $0x1e8] sm:$0xff]
        %v2024 = vld [vmem:[%s363 + $0x1f0] sm:$0xff]
        %v2025 = vld [vmem:[%s363 + $0x1f8] sm:$0xff]
        %v2026 = vld [vmem:[%s363 + $0x200] sm:$0xff]
        %v2027 = vld [vmem:[%s363 + $0x208] sm:$0xff]
        %v2028 = vld [vmem:[%s363 + $0x210] sm:$0xff]
        %v2029 = vld [vmem:[%s363 + $0x218] sm:$0xff]
        %v2030 = vld [vmem:[%s363 + $0x220] sm:$0xff]
        %v2031 = vld [vmem:[%s363 + $0x228] sm:$0xff]
        %v2032 = vld [vmem:[%s363 + $0x230] sm:$0xff]
        %v2033 = vld [vmem:[%s363 + $0x238] sm:$0xff]
        %v2034 = vld [vmem:[%s363 + $0x240] sm:$0xff]
        %v2035 = vld [vmem:[%s363 + $0x248] sm:$0xff]
        %v2036 = vld [vmem:[%s363 + $0x250] sm:$0xff]
        %v2037 = vld [vmem:[%s363 + $0x258] sm:$0xff]
        %v2038 = vld [vmem:[%s363 + $0x260] sm:$0xff]
        %v2039 = vld [vmem:[%s363 + $0x268] sm:$0xff]
        %v2040 = vld [vmem:[%s363 + $0x270] sm:$0xff]
        %v2041 = vld [vmem:[%s363 + $0x278] sm:$0xff]
        %v2042 = vld [vmem:[%s363 + $0x280] sm:$0xff]
        %v2043 = vld [vmem:[%s363 + $0x288] sm:$0xff]
        %v2044 = vld [vmem:[%s363 + $0x290] sm:$0xff]
        %v2045 = vld [vmem:[%s363 + $0x298] sm:$0xff]
        %v2046 = vld [vmem:[%s363 + $0x2a0] sm:$0xff]
        %v2047 = vld [vmem:[%s363 + $0x2a8] sm:$0xff]
        %v2048 = vld [vmem:[%s363 + $0x2b0] sm:$0xff]
        %v2049 = vld [vmem:[%s363 + $0x2b8] sm:$0xff]
        %v2050 = vld [vmem:[%s363 + $0x2c0] sm:$0xff]
        %v2051 = vld [vmem:[%s363 + $0x2c8] sm:$0xff]
        %v2052 = vld [vmem:[%s363 + $0x2d0] sm:$0xff]
        %v2053 = vld [vmem:[%s363 + $0x2d8] sm:$0xff]
        %v2054 = vld [vmem:[%s363 + $0x2e0] sm:$0xff]
        %v2055 = vld [vmem:[%s363 + $0x2e8] sm:$0xff]
        %v2056 = vld [vmem:[%s363 + $0x2f0] sm:$0xff]
        %v2057 = vld [vmem:[%s363 + $0x2f8] sm:$0xff]
        %v2058 = vld [vmem:[%s363 + $0x300] sm:$0xff]
        %v2059 = vld [vmem:[%s363 + $0x308] sm:$0xff]
        %v2060 = vld [vmem:[%s363 + $0x310] sm:$0xff]
        %v2061 = vld [vmem:[%s363 + $0x318] sm:$0xff]
        %v2062 = vld [vmem:[%s363 + $0x320] sm:$0xff]
        %v2063 = vld [vmem:[%s363 + $0x328] sm:$0xff]
        %v2064 = vld [vmem:[%s363 + $0x330] sm:$0xff]
        %v2065 = vld [vmem:[%s363 + $0x338] sm:$0xff]
        %v2066 = vld [vmem:[%s363 + $0x340] sm:$0xff]
        %v2067 = vld [vmem:[%s363 + $0x348] sm:$0xff]
        %v2068 = vld [vmem:[%s363 + $0x350] sm:$0xff]
        %v2069 = vld [vmem:[%s363 + $0x358] sm:$0xff]
        %v2070 = vld [vmem:[%s363 + $0x360] sm:$0xff]
        %v2071 = vld [vmem:[%s363 + $0x368] sm:$0xff]
        %v2072 = vld [vmem:[%s363 + $0x370] sm:$0xff]
        %v2073 = vld [vmem:[%s363 + $0x378] sm:$0xff]
        %v2074 = vld [vmem:[%s363 + $0x380] sm:$0xff]
        %v2075 = vld [vmem:[%s363 + $0x388] sm:$0xff]
        %v2076 = vld [vmem:[%s363 + $0x390] sm:$0xff]
        %v2077 = vld [vmem:[%s363 + $0x398] sm:$0xff]
        %v2078 = vld [vmem:[%s363 + $0x3a0] sm:$0xff]
        %v2079 = vld [vmem:[%s363 + $0x3a8] sm:$0xff]
        %v2080 = vld [vmem:[%s363 + $0x3b0] sm:$0xff]
        %v2081 = vld [vmem:[%s363 + $0x3b8] sm:$0xff]
        %v2082 = vld [vmem:[%s363 + $0x3c0] sm:$0xff]
        %v2083 = vld [vmem:[%s363 + $0x3c8] sm:$0xff]
        %v2084 = vld [vmem:[%s363 + $0x3d0] sm:$0xff]
        %v2085 = vld [vmem:[%s363 + $0x3d8] sm:$0xff]
        %v2086 = vld [vmem:[%s363 + $0x3e0] sm:$0xff]
        %v2087 = vld [vmem:[%s363 + $0x3e8] sm:$0xff]
        %v2088 = vld [vmem:[%s363 + $0x3f0] sm:$0xff]
        %v2089 = vld [vmem:[%s363 + $0x3f8] sm:$0xff]
        %v2090 = vld [vmem:[%s363 + $0x400] sm:$0xff]
        %v2091 = vld [vmem:[%s363 + $0x408] sm:$0xff]
        %v2092 = vld [vmem:[%s363 + $0x410] sm:$0xff]
        %v2093 = vld [vmem:[%s363 + $0x418] sm:$0xff]
        %v2094 = vld [vmem:[%s363 + $0x420] sm:$0xff]
        %v2095 = vld [vmem:[%s363 + $0x428] sm:$0xff]
        %v2096 = vld [vmem:[%s363 + $0x430] sm:$0xff]
        %v2097 = vld [vmem:[%s363 + $0x438] sm:$0xff]
        %v2098 = vld [vmem:[%s363 + $0x440] sm:$0xff]
        %v2099 = vld [vmem:[%s363 + $0x448] sm:$0xff]
        %v2100 = vld [vmem:[%s363 + $0x450] sm:$0xff]
        %v2101 = vld [vmem:[%s363 + $0x458] sm:$0xff]
        %v2102 = vld [vmem:[%s363 + $0x460] sm:$0xff]
        %v2103 = vld [vmem:[%s363 + $0x468] sm:$0xff]
        %v2104 = vld [vmem:[%s363 + $0x470] sm:$0xff]
        %v2105 = vld [vmem:[%s363 + $0x478] sm:$0xff]
        %v2106 = vld [vmem:[%s363 + $0x480] sm:$0xff]
        %v2107 = vld [vmem:[%s363 + $0x488] sm:$0xff]
        %v2108 = vld [vmem:[%s363 + $0x490] sm:$0xff]
        %v2109 = vld [vmem:[%s363 + $0x498] sm:$0xff]
        %v2110 = vld [vmem:[%s363 + $0x4a0] sm:$0xff]
        %v2111 = vld [vmem:[%s363 + $0x4a8] sm:$0xff]
        %v2112 = vld [vmem:[%s363 + $0x4b0] sm:$0xff]
        %v2113 = vld [vmem:[%s363 + $0x4b8] sm:$0xff]
        %v2114 = vld [vmem:[%s363 + $0x4c0] sm:$0xff]
        %v2115 = vld [vmem:[%s363 + $0x4c8] sm:$0xff]
        %v2116 = vld [vmem:[%s363 + $0x4d0] sm:$0xff]
        %v2117 = vld [vmem:[%s363 + $0x4d8] sm:$0xff]
        %v2118 = vld [vmem:[%s363 + $0x4e0] sm:$0xff]
        %v2119 = vld [vmem:[%s363 + $0x4e8] sm:$0xff]
        %v2120 = vld [vmem:[%s363 + $0x4f0] sm:$0xff]
        %v2121 = vld [vmem:[%s363 + $0x4f8] sm:$0xff]
        %v2122 = vld [vmem:[%s363 + $0x500] sm:$0xff]
        %v2123 = vld [vmem:[%s363 + $0x508] sm:$0xff]
        %v2124 = vld [vmem:[%s363 + $0x510] sm:$0xff]
        %v2125 = vld [vmem:[%s363 + $0x518] sm:$0xff]
        %v2126 = vld [vmem:[%s363 + $0x520] sm:$0xff]
        %v2127 = vld [vmem:[%s363 + $0x528] sm:$0xff]
        %v2128 = vld [vmem:[%s363 + $0x530] sm:$0xff]
        %v2129 = vld [vmem:[%s363 + $0x538] sm:$0xff]
        %v2130 = vld [vmem:[%s363 + $0x540] sm:$0xff]
        %v2131 = vld [vmem:[%s363 + $0x548] sm:$0xff]
        %v2132 = vld [vmem:[%s363 + $0x550] sm:$0xff]
        %v2133 = vld [vmem:[%s363 + $0x558] sm:$0xff]
        %v2134 = vld [vmem:[%s363 + $0x560] sm:$0xff]
        %v2135 = vld [vmem:[%s363 + $0x568] sm:$0xff]
        %v2136 = vld [vmem:[%s363 + $0x570] sm:$0xff]
        %v2137 = vld [vmem:[%s363 + $0x578] sm:$0xff]
        %v2138 = vld [vmem:[%s363 + $0x580] sm:$0xff]
        %v2139 = vld [vmem:[%s363 + $0x588] sm:$0xff]
        %v2140 = vld [vmem:[%s363 + $0x590] sm:$0xff]
        %v2141 = vld [vmem:[%s363 + $0x598] sm:$0xff]
        %v2142 = vld [vmem:[%s363 + $0x5a0] sm:$0xff]
        %v2143 = vld [vmem:[%s363 + $0x5a8] sm:$0xff]
        %v2144 = vld [vmem:[%s363 + $0x5b0] sm:$0xff]
        %v2145 = vld [vmem:[%s363 + $0x5b8] sm:$0xff]
        %v2146 = vld [vmem:[%s363 + $0x5c0] sm:$0xff]
        %v2147 = vld [vmem:[%s363 + $0x5c8] sm:$0xff]
        %v2148 = vld [vmem:[%s363 + $0x5d0] sm:$0xff]
        %v2149 = vld [vmem:[%s363 + $0x5d8] sm:$0xff]
        %v2150 = vld [vmem:[%s363 + $0x5e0] sm:$0xff]
        %v2151 = vld [vmem:[%s363 + $0x5e8] sm:$0xff]
        %v2152 = vld [vmem:[%s363 + $0x5f0] sm:$0xff]
        %v2153 = vld [vmem:[%s363 + $0x5f8] sm:$0xff]
        %v2154 = vld [vmem:[%s363 + $0x600] sm:$0xff]
        %v2155 = vld [vmem:[%s363 + $0x608] sm:$0xff]
        %v2156 = vld [vmem:[%s363 + $0x610] sm:$0xff]
        %v2157 = vld [vmem:[%s363 + $0x618] sm:$0xff]
        %v2158 = vld [vmem:[%s363 + $0x620] sm:$0xff]
        %v2159 = vld [vmem:[%s363 + $0x628] sm:$0xff]
        %v2160 = vld [vmem:[%s363 + $0x630] sm:$0xff]
        %v2161 = vld [vmem:[%s363 + $0x638] sm:$0xff]
        %v2162 = vld [vmem:[%s363 + $0x640] sm:$0xff]
        %v2163 = vld [vmem:[%s363 + $0x648] sm:$0xff]
        %v2164 = vld [vmem:[%s363 + $0x650] sm:$0xff]
        %v2165 = vld [vmem:[%s363 + $0x658] sm:$0xff]
        %v2166 = vld [vmem:[%s363 + $0x660] sm:$0xff]
        %v2167 = vld [vmem:[%s363 + $0x668] sm:$0xff]
        %v2168 = vld [vmem:[%s363 + $0x670] sm:$0xff]
        %v2169 = vld [vmem:[%s363 + $0x678] sm:$0xff]
        %v2170 = vld [vmem:[%s363 + $0x680] sm:$0xff]
        %v2171 = vld [vmem:[%s363 + $0x688] sm:$0xff]
        %v2172 = vld [vmem:[%s363 + $0x690] sm:$0xff]
        %v2173 = vld [vmem:[%s363 + $0x698] sm:$0xff]
        %v2174 = vld [vmem:[%s363 + $0x6a0] sm:$0xff]
        %v2175 = vld [vmem:[%s363 + $0x6a8] sm:$0xff]
        %v2176 = vld [vmem:[%s363 + $0x6b0] sm:$0xff]
        %v2177 = vld [vmem:[%s363 + $0x6b8] sm:$0xff]
        %v2178 = vld [vmem:[%s363 + $0x6c0] sm:$0xff]
        %v2179 = vld [vmem:[%s363 + $0x6c8] sm:$0xff]
        %v2180 = vld [vmem:[%s363 + $0x6d0] sm:$0xff]
        %v2181 = vld [vmem:[%s363 + $0x6d8] sm:$0xff]
        %v2182 = vld [vmem:[%s363 + $0x6e0] sm:$0xff]
        %v2183 = vld [vmem:[%s363 + $0x6e8] sm:$0xff]
        %v2184 = vld [vmem:[%s363 + $0x6f0] sm:$0xff]
        %v2185 = vld [vmem:[%s363 + $0x6f8] sm:$0xff]
        %v2186 = vld [vmem:[%s363 + $0x700] sm:$0xff]
        %v2187 = vld [vmem:[%s363 + $0x708] sm:$0xff]
        %v2188 = vld [vmem:[%s363 + $0x710] sm:$0xff]
        %v2189 = vld [vmem:[%s363 + $0x718] sm:$0xff]
        %v2190 = vld [vmem:[%s363 + $0x720] sm:$0xff]
        %v2191 = vld [vmem:[%s363 + $0x728] sm:$0xff]
        %v2192 = vld [vmem:[%s363 + $0x730] sm:$0xff]
        %v2193 = vld [vmem:[%s363 + $0x738] sm:$0xff]
        %v2194 = vld [vmem:[%s363 + $0x740] sm:$0xff]
        %v2195 = vld [vmem:[%s363 + $0x748] sm:$0xff]
        %v2196 = vld [vmem:[%s363 + $0x750] sm:$0xff]
        %v2197 = vld [vmem:[%s363 + $0x758] sm:$0xff]
        %v2198 = vld [vmem:[%s363 + $0x760] sm:$0xff]
        %v2199 = vld [vmem:[%s363 + $0x768] sm:$0xff]
        %v2200 = vld [vmem:[%s363 + $0x770] sm:$0xff]
        %v2201 = vld [vmem:[%s363 + $0x778] sm:$0xff]
        %v2202 = vld [vmem:[%s363 + $0x780] sm:$0xff]
        %v2203 = vld [vmem:[%s363 + $0x788] sm:$0xff]
        %v2204 = vld [vmem:[%s363 + $0x790] sm:$0xff]
        %v2205 = vld [vmem:[%s363 + $0x798] sm:$0xff]
        %v2206 = vld [vmem:[%s363 + $0x7a0] sm:$0xff]
        %v2207 = vld [vmem:[%s363 + $0x7a8] sm:$0xff]
        %v2208 = vld [vmem:[%s363 + $0x7b0] sm:$0xff]
        %v2209 = vld [vmem:[%s363 + $0x7b8] sm:$0xff]
        %v2210 = vld [vmem:[%s363 + $0x7c0] sm:$0xff]
        %v2211 = vld [vmem:[%s363 + $0x7c8] sm:$0xff]
        %v2212 = vld [vmem:[%s363 + $0x7d0] sm:$0xff]
        %v2213 = vld [vmem:[%s363 + $0x7d8] sm:$0xff]
        %v2214 = vld [vmem:[%s363 + $0x7e0] sm:$0xff]
        %v2215 = vld [vmem:[%s363 + $0x7e8] sm:$0xff]
        %v2216 = vld [vmem:[%s363 + $0x7f0] sm:$0xff]
        %v2217 = vld [vmem:[%s363 + $0x7f8] sm:$0xff]
        %v2218 = vld [vmem:[%s372] sm:$0xff]
        %v2220 = vlaneseq
        %v2221 = vshrl.u32 %v2220, 7
        %v2222 = vsub.s32 0, %v2221
        %v2223 = vrot.slane %v2218, %v2222
        %v2224 = vlaneseq
        %v2225 = vshrl.u32 %v2224, 7
        %v2226 = vsub.s32 1, %v2225
        %v2227 = vrot.slane %v2218, %v2226
        %v2228 = vlaneseq
        %v2229 = vshrl.u32 %v2228, 7
        %v2230 = vsub.s32 2, %v2229
        %v2231 = vrot.slane %v2218, %v2230
        %v2232 = vlaneseq
        %v2233 = vshrl.u32 %v2232, 7
        %v2234 = vsub.s32 3, %v2233
        %v2235 = vrot.slane %v2218, %v2234
        %v2236 = vlaneseq
        %v2237 = vshrl.u32 %v2236, 7
        %v2238 = vsub.s32 4, %v2237
        %v2239 = vrot.slane %v2218, %v2238
        %v2240 = vlaneseq
        %v2241 = vshrl.u32 %v2240, 7
        %v2242 = vsub.s32 5, %v2241
        %v2243 = vrot.slane %v2218, %v2242
        %v2244 = vlaneseq
        %v2245 = vshrl.u32 %v2244, 7
        %v2246 = vsub.s32 6, %v2245
        %v2247 = vrot.slane %v2218, %v2246
        %v2248 = vlaneseq
        %v2249 = vshrl.u32 %v2248, 7
        %v2250 = vsub.s32 7, %v2249
        %v2251 = vrot.slane %v2218, %v2250
        %v2310 = vunpack.c.l.b16 %v1912
        %v2311 = vunpack.c.h.b16 %v1912
        %v2312 = vunpack.c.l.b16 %v1913
        %v2313 = vunpack.c.h.b16 %v1913
        %v2314 = vunpack.c.l.b16 %v1914
        %v2315 = vunpack.c.h.b16 %v1914
        %v2316 = vunpack.c.l.b16 %v1915
        %v2317 = vunpack.c.h.b16 %v1915
        %v2318 = vunpack.c.l.b16 %v1916
        %v2319 = vunpack.c.h.b16 %v1916
        %v2320 = vunpack.c.l.b16 %v1917
        %v2321 = vunpack.c.h.b16 %v1917
        %v2322 = vunpack.c.l.b16 %v1918
        %v2323 = vunpack.c.h.b16 %v1918
        %v2324 = vunpack.c.l.b16 %v1919
        %v2325 = vunpack.c.h.b16 %v1919
        %v2326 = vunpack.c.l.b16 %v1920
        %v2327 = vunpack.c.h.b16 %v1920
        %v2328 = vunpack.c.l.b16 %v1921
        %v2329 = vunpack.c.h.b16 %v1921
        %v2330 = vunpack.c.l.b16 %v1922
        %v2331 = vunpack.c.h.b16 %v1922
        %v2332 = vunpack.c.l.b16 %v1923
        %v2333 = vunpack.c.h.b16 %v1923
        %v2334 = vunpack.c.l.b16 %v1924
        %v2335 = vunpack.c.h.b16 %v1924
        %v2336 = vunpack.c.l.b16 %v1925
        %v2337 = vunpack.c.h.b16 %v1925
        %v2338 = vunpack.c.l.b16 %v1926
        %v2339 = vunpack.c.h.b16 %v1926
        %v2340 = vunpack.c.l.b16 %v1927
        %v2341 = vunpack.c.h.b16 %v1927
        %v2342 = vunpack.c.l.b16 %v1928
        %v2343 = vunpack.c.h.b16 %v1928
        %v2344 = vunpack.c.l.b16 %v1929
        %v2345 = vunpack.c.h.b16 %v1929
        %v2346 = vunpack.c.l.b16 %v1930
        %v2347 = vunpack.c.h.b16 %v1930
        %v2348 = vunpack.c.l.b16 %v1931
        %v2349 = vunpack.c.h.b16 %v1931
        %v2350 = vunpack.c.l.b16 %v1932
        %v2351 = vunpack.c.h.b16 %v1932
        %v2352 = vunpack.c.l.b16 %v1933
        %v2353 = vunpack.c.h.b16 %v1933
        %v2354 = vunpack.c.l.b16 %v1934
        %v2355 = vunpack.c.h.b16 %v1934
        %v2356 = vunpack.c.l.b16 %v1935
        %v2357 = vunpack.c.h.b16 %v1935
        %v2358 = vunpack.c.l.b16 %v1936
        %v2359 = vunpack.c.h.b16 %v1936
        %v2360 = vunpack.c.l.b16 %v1937
        %v2361 = vunpack.c.h.b16 %v1937
        %v2362 = vunpack.c.l.b16 %v1938
        %v2363 = vunpack.c.h.b16 %v1938
        %v2364 = vunpack.c.l.b16 %v1939
        %v2365 = vunpack.c.h.b16 %v1939
        %v2366 = vunpack.c.l.b16 %v1940
        %v2367 = vunpack.c.h.b16 %v1940
        %v2368 = vunpack.c.l.b16 %v1941
        %v2369 = vunpack.c.h.b16 %v1941
        %v2370 = vunpack.c.l.b16 %v1942
        %v2371 = vunpack.c.h.b16 %v1942
        %v2372 = vunpack.c.l.b16 %v1943
        %v2373 = vunpack.c.h.b16 %v1943
        %v2374 = vunpack.c.l.b16 %v1944
        %v2375 = vunpack.c.h.b16 %v1944
        %v2376 = vunpack.c.l.b16 %v1945
        %v2377 = vunpack.c.h.b16 %v1945
        %v2378 = vunpack.c.l.b16 %v1946
        %v2379 = vunpack.c.h.b16 %v1946
        %v2380 = vunpack.c.l.b16 %v1947
        %v2381 = vunpack.c.h.b16 %v1947
        %v2382 = vunpack.c.l.b16 %v1948
        %v2383 = vunpack.c.h.b16 %v1948
        %v2384 = vunpack.c.l.b16 %v1949
        %v2385 = vunpack.c.h.b16 %v1949
        %v2386 = vunpack.c.l.b16 %v1950
        %v2387 = vunpack.c.h.b16 %v1950
        %v2388 = vunpack.c.l.b16 %v1951
        %v2389 = vunpack.c.h.b16 %v1951
        %v2390 = vunpack.c.l.b16 %v1952
        %v2391 = vunpack.c.h.b16 %v1952
        %v2392 = vunpack.c.l.b16 %v1953
        %v2393 = vunpack.c.h.b16 %v1953
        %v2394 = vunpack.c.l.b16 %v1954
        %v2395 = vunpack.c.h.b16 %v1954
        %v2396 = vunpack.c.l.b16 %v1955
        %v2397 = vunpack.c.h.b16 %v1955
        %v2398 = vunpack.c.l.b16 %v1956
        %v2399 = vunpack.c.h.b16 %v1956
        %v2400 = vunpack.c.l.b16 %v1957
        %v2401 = vunpack.c.h.b16 %v1957
        %v2402 = vunpack.c.l.b16 %v1958
        %v2403 = vunpack.c.h.b16 %v1958
        %v2404 = vunpack.c.l.b16 %v1959
        %v2405 = vunpack.c.h.b16 %v1959
        %v2406 = vunpack.c.l.b16 %v1960
        %v2407 = vunpack.c.h.b16 %v1960
        %v2408 = vunpack.c.l.b16 %v1961
        %v2409 = vunpack.c.h.b16 %v1961
        %v2410 = vpack.c.b16 %v2314, %v2310
        %v2411 = vpack.c.b16 %v2315, %v2311
        %v2412 = vpack.c.b16 %v2316, %v2312
        %v2413 = vpack.c.b16 %v2317, %v2313
        %v2414 = vpack.c.b16 %v2322, %v2318
        %v2415 = vpack.c.b16 %v2323, %v2319
        %v2416 = vpack.c.b16 %v2324, %v2320
        %v2417 = vpack.c.b16 %v2325, %v2321
        %v2418 = vpack.c.b16 %v2330, %v2326
        %v2419 = vpack.c.b16 %v2331, %v2327
        %v2420 = vpack.c.b16 %v2332, %v2328
        %v2421 = vpack.c.b16 %v2333, %v2329
        %v2422 = vpack.c.b16 %v2338, %v2334
        %v2423 = vpack.c.b16 %v2339, %v2335
        %v2424 = vpack.c.b16 %v2340, %v2336
        %v2425 = vpack.c.b16 %v2341, %v2337
        %v2426 = vpack.c.b16 %v2346, %v2342
        %v2427 = vpack.c.b16 %v2347, %v2343
        %v2428 = vpack.c.b16 %v2348, %v2344
        %v2429 = vpack.c.b16 %v2349, %v2345
        %v2430 = vpack.c.b16 %v2354, %v2350
        %v2431 = vpack.c.b16 %v2355, %v2351
        %v2432 = vpack.c.b16 %v2356, %v2352
        %v2433 = vpack.c.b16 %v2357, %v2353
        %v2434 = vpack.c.b16 %v2362, %v2358
        %v2435 = vpack.c.b16 %v2363, %v2359
        %v2436 = vpack.c.b16 %v2364, %v2360
        %v2437 = vpack.c.b16 %v2365, %v2361
        %v2438 = vpack.c.b16 %v2370, %v2366
        %v2439 = vpack.c.b16 %v2371, %v2367
        %v2440 = vpack.c.b16 %v2372, %v2368
        %v2441 = vpack.c.b16 %v2373, %v2369
        %v2442 = vpack.c.b16 %v2378, %v2374
        %v2443 = vpack.c.b16 %v2379, %v2375
        %v2444 = vpack.c.b16 %v2380, %v2376
        %v2445 = vpack.c.b16 %v2381, %v2377
        %v2446 = vpack.c.b16 %v2386, %v2382
        %v2447 = vpack.c.b16 %v2387, %v2383
        %v2448 = vpack.c.b16 %v2388, %v2384
        %v2449 = vpack.c.b16 %v2389, %v2385
        %v2450 = vpack.c.b16 %v2394, %v2390
        %v2451 = vpack.c.b16 %v2395, %v2391
        %v2452 = vpack.c.b16 %v2396, %v2392
        %v2453 = vpack.c.b16 %v2397, %v2393
        %v2454 = vpack.c.b16 %v2402, %v2398
        %v2455 = vpack.c.b16 %v2403, %v2399
        %v2456 = vpack.c.b16 %v2404, %v2400
        %v2457 = vpack.c.b16 %v2405, %v2401
        %v2458 = vpack.c.b16 %v2406, %v2406
        %v2459 = vpack.c.b16 %v2407, %v2407
        %v2460 = vpack.c.b16 %v2408, %v2408
        %v2461 = vpack.c.b16 %v2409, %v2409
        %v2770 = vunpack.c.l.b16 %v1962
        %v2771 = vunpack.c.h.b16 %v1962
        %v2772 = vunpack.c.l.b16 %v1963
        %v2773 = vunpack.c.h.b16 %v1963
        %v2774 = vunpack.c.l.b16 %v1964
        %v2775 = vunpack.c.h.b16 %v1964
        %v2776 = vunpack.c.l.b16 %v1965
        %v2777 = vunpack.c.h.b16 %v1965
        %v2778 = vunpack.c.l.b16 %v1966
        %v2779 = vunpack.c.h.b16 %v1966
        %v2780 = vunpack.c.l.b16 %v1967
        %v2781 = vunpack.c.h.b16 %v1967
        %v2782 = vunpack.c.l.b16 %v1968
        %v2783 = vunpack.c.h.b16 %v1968
        %v2784 = vunpack.c.l.b16 %v1969
        %v2785 = vunpack.c.h.b16 %v1969
        %v2786 = vunpack.c.l.b16 %v1970
        %v2787 = vunpack.c.h.b16 %v1970
        %v2788 = vunpack.c.l.b16 %v1971
        %v2789 = vunpack.c.h.b16 %v1971
        %v2790 = vunpack.c.l.b16 %v1972
        %v2791 = vunpack.c.h.b16 %v1972
        %v2792 = vunpack.c.l.b16 %v1973
        %v2793 = vunpack.c.h.b16 %v1973
        %v2794 = vunpack.c.l.b16 %v1974
        %v2795 = vunpack.c.h.b16 %v1974
        %v2796 = vunpack.c.l.b16 %v1975
        %v2797 = vunpack.c.h.b16 %v1975
        %v2798 = vunpack.c.l.b16 %v1976
        %v2799 = vunpack.c.h.b16 %v1976
        %v2800 = vunpack.c.l.b16 %v1977
        %v2801 = vunpack.c.h.b16 %v1977
        %v2802 = vunpack.c.l.b16 %v1978
        %v2803 = vunpack.c.h.b16 %v1978
        %v2804 = vunpack.c.l.b16 %v1979
        %v2805 = vunpack.c.h.b16 %v1979
        %v2806 = vunpack.c.l.b16 %v1980
        %v2807 = vunpack.c.h.b16 %v1980
        %v2808 = vunpack.c.l.b16 %v1981
        %v2809 = vunpack.c.h.b16 %v1981
        %v2810 = vunpack.c.l.b16 %v1982
        %v2811 = vunpack.c.h.b16 %v1982
        %v2812 = vunpack.c.l.b16 %v1983
        %v2813 = vunpack.c.h.b16 %v1983
        %v2814 = vunpack.c.l.b16 %v1984
        %v2815 = vunpack.c.h.b16 %v1984
        %v2816 = vunpack.c.l.b16 %v1985
        %v2817 = vunpack.c.h.b16 %v1985
        %v2818 = vunpack.c.l.b16 %v1986
        %v2819 = vunpack.c.h.b16 %v1986
        %v2820 = vunpack.c.l.b16 %v1987
        %v2821 = vunpack.c.h.b16 %v1987
        %v2822 = vunpack.c.l.b16 %v1988
        %v2823 = vunpack.c.h.b16 %v1988
        %v2824 = vunpack.c.l.b16 %v1989
        %v2825 = vunpack.c.h.b16 %v1989
        %v2826 = vunpack.c.l.b16 %v1990
        %v2827 = vunpack.c.h.b16 %v1990
        %v2828 = vunpack.c.l.b16 %v1991
        %v2829 = vunpack.c.h.b16 %v1991
        %v2830 = vunpack.c.l.b16 %v1992
        %v2831 = vunpack.c.h.b16 %v1992
        %v2832 = vunpack.c.l.b16 %v1993
        %v2833 = vunpack.c.h.b16 %v1993
        %v2834 = vunpack.c.l.b16 %v1994
        %v2835 = vunpack.c.h.b16 %v1994
        %v2836 = vunpack.c.l.b16 %v1995
        %v2837 = vunpack.c.h.b16 %v1995
        %v2838 = vunpack.c.l.b16 %v1996
        %v2839 = vunpack.c.h.b16 %v1996
        %v2840 = vunpack.c.l.b16 %v1997
        %v2841 = vunpack.c.h.b16 %v1997
        %v2842 = vunpack.c.l.b16 %v1998
        %v2843 = vunpack.c.h.b16 %v1998
        %v2844 = vunpack.c.l.b16 %v1999
        %v2845 = vunpack.c.h.b16 %v1999
        %v2846 = vunpack.c.l.b16 %v2000
        %v2847 = vunpack.c.h.b16 %v2000
        %v2848 = vunpack.c.l.b16 %v2001
        %v2849 = vunpack.c.h.b16 %v2001
        %v2850 = vunpack.c.l.b16 %v2002
        %v2851 = vunpack.c.h.b16 %v2002
        %v2852 = vunpack.c.l.b16 %v2003
        %v2853 = vunpack.c.h.b16 %v2003
        %v2854 = vunpack.c.l.b16 %v2004
        %v2855 = vunpack.c.h.b16 %v2004
        %v2856 = vunpack.c.l.b16 %v2005
        %v2857 = vunpack.c.h.b16 %v2005
        %v2858 = vunpack.c.l.b16 %v2006
        %v2859 = vunpack.c.h.b16 %v2006
        %v2860 = vunpack.c.l.b16 %v2007
        %v2861 = vunpack.c.h.b16 %v2007
        %v2862 = vunpack.c.l.b16 %v2008
        %v2863 = vunpack.c.h.b16 %v2008
        %v2864 = vunpack.c.l.b16 %v2009
        %v2865 = vunpack.c.h.b16 %v2009
        %v2866 = vunpack.c.l.b16 %v2010
        %v2867 = vunpack.c.h.b16 %v2010
        %v2868 = vunpack.c.l.b16 %v2011
        %v2869 = vunpack.c.h.b16 %v2011
        %v2870 = vunpack.c.l.b16 %v2012
        %v2871 = vunpack.c.h.b16 %v2012
        %v2872 = vunpack.c.l.b16 %v2013
        %v2873 = vunpack.c.h.b16 %v2013
        %v2874 = vunpack.c.l.b16 %v2014
        %v2875 = vunpack.c.h.b16 %v2014
        %v2876 = vunpack.c.l.b16 %v2015
        %v2877 = vunpack.c.h.b16 %v2015
        %v2878 = vunpack.c.l.b16 %v2016
        %v2879 = vunpack.c.h.b16 %v2016
        %v2880 = vunpack.c.l.b16 %v2017
        %v2881 = vunpack.c.h.b16 %v2017
        %v2882 = vunpack.c.l.b16 %v2018
        %v2883 = vunpack.c.h.b16 %v2018
        %v2884 = vunpack.c.l.b16 %v2019
        %v2885 = vunpack.c.h.b16 %v2019
        %v2886 = vunpack.c.l.b16 %v2020
        %v2887 = vunpack.c.h.b16 %v2020
        %v2888 = vunpack.c.l.b16 %v2021
        %v2889 = vunpack.c.h.b16 %v2021
        %v2890 = vunpack.c.l.b16 %v2022
        %v2891 = vunpack.c.h.b16 %v2022
        %v2892 = vunpack.c.l.b16 %v2023
        %v2893 = vunpack.c.h.b16 %v2023
        %v2894 = vunpack.c.l.b16 %v2024
        %v2895 = vunpack.c.h.b16 %v2024
        %v2896 = vunpack.c.l.b16 %v2025
        %v2897 = vunpack.c.h.b16 %v2025
        %v2898 = vunpack.c.l.b16 %v2026
        %v2899 = vunpack.c.h.b16 %v2026
        %v2900 = vunpack.c.l.b16 %v2027
        %v2901 = vunpack.c.h.b16 %v2027
        %v2902 = vunpack.c.l.b16 %v2028
        %v2903 = vunpack.c.h.b16 %v2028
        %v2904 = vunpack.c.l.b16 %v2029
        %v2905 = vunpack.c.h.b16 %v2029
        %v2906 = vunpack.c.l.b16 %v2030
        %v2907 = vunpack.c.h.b16 %v2030
        %v2908 = vunpack.c.l.b16 %v2031
        %v2909 = vunpack.c.h.b16 %v2031
        %v2910 = vunpack.c.l.b16 %v2032
        %v2911 = vunpack.c.h.b16 %v2032
        %v2912 = vunpack.c.l.b16 %v2033
        %v2913 = vunpack.c.h.b16 %v2033
        %v2914 = vunpack.c.l.b16 %v2034
        %v2915 = vunpack.c.h.b16 %v2034
        %v2916 = vunpack.c.l.b16 %v2035
        %v2917 = vunpack.c.h.b16 %v2035
        %v2918 = vunpack.c.l.b16 %v2036
        %v2919 = vunpack.c.h.b16 %v2036
        %v2920 = vunpack.c.l.b16 %v2037
        %v2921 = vunpack.c.h.b16 %v2037
        %v2922 = vunpack.c.l.b16 %v2038
        %v2923 = vunpack.c.h.b16 %v2038
        %v2924 = vunpack.c.l.b16 %v2039
        %v2925 = vunpack.c.h.b16 %v2039
        %v2926 = vunpack.c.l.b16 %v2040
        %v2927 = vunpack.c.h.b16 %v2040
        %v2928 = vunpack.c.l.b16 %v2041
        %v2929 = vunpack.c.h.b16 %v2041
        %v2930 = vunpack.c.l.b16 %v2042
        %v2931 = vunpack.c.h.b16 %v2042
        %v2932 = vunpack.c.l.b16 %v2043
        %v2933 = vunpack.c.h.b16 %v2043
        %v2934 = vunpack.c.l.b16 %v2044
        %v2935 = vunpack.c.h.b16 %v2044
        %v2936 = vunpack.c.l.b16 %v2045
        %v2937 = vunpack.c.h.b16 %v2045
        %v2938 = vunpack.c.l.b16 %v2046
        %v2939 = vunpack.c.h.b16 %v2046
        %v2940 = vunpack.c.l.b16 %v2047
        %v2941 = vunpack.c.h.b16 %v2047
        %v2942 = vunpack.c.l.b16 %v2048
        %v2943 = vunpack.c.h.b16 %v2048
        %v2944 = vunpack.c.l.b16 %v2049
        %v2945 = vunpack.c.h.b16 %v2049
        %v2946 = vunpack.c.l.b16 %v2050
        %v2947 = vunpack.c.h.b16 %v2050
        %v2948 = vunpack.c.l.b16 %v2051
        %v2949 = vunpack.c.h.b16 %v2051
        %v2950 = vunpack.c.l.b16 %v2052
        %v2951 = vunpack.c.h.b16 %v2052
        %v2952 = vunpack.c.l.b16 %v2053
        %v2953 = vunpack.c.h.b16 %v2053
        %v2954 = vunpack.c.l.b16 %v2054
        %v2955 = vunpack.c.h.b16 %v2054
        %v2956 = vunpack.c.l.b16 %v2055
        %v2957 = vunpack.c.h.b16 %v2055
        %v2958 = vunpack.c.l.b16 %v2056
        %v2959 = vunpack.c.h.b16 %v2056
        %v2960 = vunpack.c.l.b16 %v2057
        %v2961 = vunpack.c.h.b16 %v2057
        %v2962 = vunpack.c.l.b16 %v2058
        %v2963 = vunpack.c.h.b16 %v2058
        %v2964 = vunpack.c.l.b16 %v2059
        %v2965 = vunpack.c.h.b16 %v2059
        %v2966 = vunpack.c.l.b16 %v2060
        %v2967 = vunpack.c.h.b16 %v2060
        %v2968 = vunpack.c.l.b16 %v2061
        %v2969 = vunpack.c.h.b16 %v2061
        %v2970 = vunpack.c.l.b16 %v2062
        %v2971 = vunpack.c.h.b16 %v2062
        %v2972 = vunpack.c.l.b16 %v2063
        %v2973 = vunpack.c.h.b16 %v2063
        %v2974 = vunpack.c.l.b16 %v2064
        %v2975 = vunpack.c.h.b16 %v2064
        %v2976 = vunpack.c.l.b16 %v2065
        %v2977 = vunpack.c.h.b16 %v2065
        %v2978 = vunpack.c.l.b16 %v2066
        %v2979 = vunpack.c.h.b16 %v2066
        %v2980 = vunpack.c.l.b16 %v2067
        %v2981 = vunpack.c.h.b16 %v2067
        %v2982 = vunpack.c.l.b16 %v2068
        %v2983 = vunpack.c.h.b16 %v2068
        %v2984 = vunpack.c.l.b16 %v2069
        %v2985 = vunpack.c.h.b16 %v2069
        %v2986 = vunpack.c.l.b16 %v2070
        %v2987 = vunpack.c.h.b16 %v2070
        %v2988 = vunpack.c.l.b16 %v2071
        %v2989 = vunpack.c.h.b16 %v2071
        %v2990 = vunpack.c.l.b16 %v2072
        %v2991 = vunpack.c.h.b16 %v2072
        %v2992 = vunpack.c.l.b16 %v2073
        %v2993 = vunpack.c.h.b16 %v2073
        %v2994 = vunpack.c.l.b16 %v2074
        %v2995 = vunpack.c.h.b16 %v2074
        %v2996 = vunpack.c.l.b16 %v2075
        %v2997 = vunpack.c.h.b16 %v2075
        %v2998 = vunpack.c.l.b16 %v2076
        %v2999 = vunpack.c.h.b16 %v2076
        %v3000 = vunpack.c.l.b16 %v2077
        %v3001 = vunpack.c.h.b16 %v2077
        %v3002 = vunpack.c.l.b16 %v2078
        %v3003 = vunpack.c.h.b16 %v2078
        %v3004 = vunpack.c.l.b16 %v2079
        %v3005 = vunpack.c.h.b16 %v2079
        %v3006 = vunpack.c.l.b16 %v2080
        %v3007 = vunpack.c.h.b16 %v2080
        %v3008 = vunpack.c.l.b16 %v2081
        %v3009 = vunpack.c.h.b16 %v2081
        %v3010 = vunpack.c.l.b16 %v2082
        %v3011 = vunpack.c.h.b16 %v2082
        %v3012 = vunpack.c.l.b16 %v2083
        %v3013 = vunpack.c.h.b16 %v2083
        %v3014 = vunpack.c.l.b16 %v2084
        %v3015 = vunpack.c.h.b16 %v2084
        %v3016 = vunpack.c.l.b16 %v2085
        %v3017 = vunpack.c.h.b16 %v2085
        %v3018 = vunpack.c.l.b16 %v2086
        %v3019 = vunpack.c.h.b16 %v2086
        %v3020 = vunpack.c.l.b16 %v2087
        %v3021 = vunpack.c.h.b16 %v2087
        %v3022 = vunpack.c.l.b16 %v2088
        %v3023 = vunpack.c.h.b16 %v2088
        %v3024 = vunpack.c.l.b16 %v2089
        %v3025 = vunpack.c.h.b16 %v2089
        %v3026 = vunpack.c.l.b16 %v2090
        %v3027 = vunpack.c.h.b16 %v2090
        %v3028 = vunpack.c.l.b16 %v2091
        %v3029 = vunpack.c.h.b16 %v2091
        %v3030 = vunpack.c.l.b16 %v2092
        %v3031 = vunpack.c.h.b16 %v2092
        %v3032 = vunpack.c.l.b16 %v2093
        %v3033 = vunpack.c.h.b16 %v2093
        %v3034 = vunpack.c.l.b16 %v2094
        %v3035 = vunpack.c.h.b16 %v2094
        %v3036 = vunpack.c.l.b16 %v2095
        %v3037 = vunpack.c.h.b16 %v2095
        %v3038 = vunpack.c.l.b16 %v2096
        %v3039 = vunpack.c.h.b16 %v2096
        %v3040 = vunpack.c.l.b16 %v2097
        %v3041 = vunpack.c.h.b16 %v2097
        %v3042 = vunpack.c.l.b16 %v2098
        %v3043 = vunpack.c.h.b16 %v2098
        %v3044 = vunpack.c.l.b16 %v2099
        %v3045 = vunpack.c.h.b16 %v2099
        %v3046 = vunpack.c.l.b16 %v2100
        %v3047 = vunpack.c.h.b16 %v2100
        %v3048 = vunpack.c.l.b16 %v2101
        %v3049 = vunpack.c.h.b16 %v2101
        %v3050 = vunpack.c.l.b16 %v2102
        %v3051 = vunpack.c.h.b16 %v2102
        %v3052 = vunpack.c.l.b16 %v2103
        %v3053 = vunpack.c.h.b16 %v2103
        %v3054 = vunpack.c.l.b16 %v2104
        %v3055 = vunpack.c.h.b16 %v2104
        %v3056 = vunpack.c.l.b16 %v2105
        %v3057 = vunpack.c.h.b16 %v2105
        %v3058 = vunpack.c.l.b16 %v2106
        %v3059 = vunpack.c.h.b16 %v2106
        %v3060 = vunpack.c.l.b16 %v2107
        %v3061 = vunpack.c.h.b16 %v2107
        %v3062 = vunpack.c.l.b16 %v2108
        %v3063 = vunpack.c.h.b16 %v2108
        %v3064 = vunpack.c.l.b16 %v2109
        %v3065 = vunpack.c.h.b16 %v2109
        %v3066 = vunpack.c.l.b16 %v2110
        %v3067 = vunpack.c.h.b16 %v2110
        %v3068 = vunpack.c.l.b16 %v2111
        %v3069 = vunpack.c.h.b16 %v2111
        %v3070 = vunpack.c.l.b16 %v2112
        %v3071 = vunpack.c.h.b16 %v2112
        %v3072 = vunpack.c.l.b16 %v2113
        %v3073 = vunpack.c.h.b16 %v2113
        %v3074 = vunpack.c.l.b16 %v2114
        %v3075 = vunpack.c.h.b16 %v2114
        %v3076 = vunpack.c.l.b16 %v2115
        %v3077 = vunpack.c.h.b16 %v2115
        %v3078 = vunpack.c.l.b16 %v2116
        %v3079 = vunpack.c.h.b16 %v2116
        %v3080 = vunpack.c.l.b16 %v2117
        %v3081 = vunpack.c.h.b16 %v2117
        %v3082 = vunpack.c.l.b16 %v2118
        %v3083 = vunpack.c.h.b16 %v2118
        %v3084 = vunpack.c.l.b16 %v2119
        %v3085 = vunpack.c.h.b16 %v2119
        %v3086 = vunpack.c.l.b16 %v2120
        %v3087 = vunpack.c.h.b16 %v2120
        %v3088 = vunpack.c.l.b16 %v2121
        %v3089 = vunpack.c.h.b16 %v2121
        %v3090 = vunpack.c.l.b16 %v2122
        %v3091 = vunpack.c.h.b16 %v2122
        %v3092 = vunpack.c.l.b16 %v2123
        %v3093 = vunpack.c.h.b16 %v2123
        %v3094 = vunpack.c.l.b16 %v2124
        %v3095 = vunpack.c.h.b16 %v2124
        %v3096 = vunpack.c.l.b16 %v2125
        %v3097 = vunpack.c.h.b16 %v2125
        %v3098 = vunpack.c.l.b16 %v2126
        %v3099 = vunpack.c.h.b16 %v2126
        %v3100 = vunpack.c.l.b16 %v2127
        %v3101 = vunpack.c.h.b16 %v2127
        %v3102 = vunpack.c.l.b16 %v2128
        %v3103 = vunpack.c.h.b16 %v2128
        %v3104 = vunpack.c.l.b16 %v2129
        %v3105 = vunpack.c.h.b16 %v2129
        %v3106 = vunpack.c.l.b16 %v2130
        %v3107 = vunpack.c.h.b16 %v2130
        %v3108 = vunpack.c.l.b16 %v2131
        %v3109 = vunpack.c.h.b16 %v2131
        %v3110 = vunpack.c.l.b16 %v2132
        %v3111 = vunpack.c.h.b16 %v2132
        %v3112 = vunpack.c.l.b16 %v2133
        %v3113 = vunpack.c.h.b16 %v2133
        %v3114 = vunpack.c.l.b16 %v2134
        %v3115 = vunpack.c.h.b16 %v2134
        %v3116 = vunpack.c.l.b16 %v2135
        %v3117 = vunpack.c.h.b16 %v2135
        %v3118 = vunpack.c.l.b16 %v2136
        %v3119 = vunpack.c.h.b16 %v2136
        %v3120 = vunpack.c.l.b16 %v2137
        %v3121 = vunpack.c.h.b16 %v2137
        %v3122 = vunpack.c.l.b16 %v2138
        %v3123 = vunpack.c.h.b16 %v2138
        %v3124 = vunpack.c.l.b16 %v2139
        %v3125 = vunpack.c.h.b16 %v2139
        %v3126 = vunpack.c.l.b16 %v2140
        %v3127 = vunpack.c.h.b16 %v2140
        %v3128 = vunpack.c.l.b16 %v2141
        %v3129 = vunpack.c.h.b16 %v2141
        %v3130 = vunpack.c.l.b16 %v2142
        %v3131 = vunpack.c.h.b16 %v2142
        %v3132 = vunpack.c.l.b16 %v2143
        %v3133 = vunpack.c.h.b16 %v2143
        %v3134 = vunpack.c.l.b16 %v2144
        %v3135 = vunpack.c.h.b16 %v2144
        %v3136 = vunpack.c.l.b16 %v2145
        %v3137 = vunpack.c.h.b16 %v2145
        %v3138 = vunpack.c.l.b16 %v2146
        %v3139 = vunpack.c.h.b16 %v2146
        %v3140 = vunpack.c.l.b16 %v2147
        %v3141 = vunpack.c.h.b16 %v2147
        %v3142 = vunpack.c.l.b16 %v2148
        %v3143 = vunpack.c.h.b16 %v2148
        %v3144 = vunpack.c.l.b16 %v2149
        %v3145 = vunpack.c.h.b16 %v2149
        %v3146 = vunpack.c.l.b16 %v2150
        %v3147 = vunpack.c.h.b16 %v2150
        %v3148 = vunpack.c.l.b16 %v2151
        %v3149 = vunpack.c.h.b16 %v2151
        %v3150 = vunpack.c.l.b16 %v2152
        %v3151 = vunpack.c.h.b16 %v2152
        %v3152 = vunpack.c.l.b16 %v2153
        %v3153 = vunpack.c.h.b16 %v2153
        %v3154 = vunpack.c.l.b16 %v2154
        %v3155 = vunpack.c.h.b16 %v2154
        %v3156 = vunpack.c.l.b16 %v2155
        %v3157 = vunpack.c.h.b16 %v2155
        %v3158 = vunpack.c.l.b16 %v2156
        %v3159 = vunpack.c.h.b16 %v2156
        %v3160 = vunpack.c.l.b16 %v2157
        %v3161 = vunpack.c.h.b16 %v2157
        %v3162 = vunpack.c.l.b16 %v2158
        %v3163 = vunpack.c.h.b16 %v2158
        %v3164 = vunpack.c.l.b16 %v2159
        %v3165 = vunpack.c.h.b16 %v2159
        %v3166 = vunpack.c.l.b16 %v2160
        %v3167 = vunpack.c.h.b16 %v2160
        %v3168 = vunpack.c.l.b16 %v2161
        %v3169 = vunpack.c.h.b16 %v2161
        %v3170 = vunpack.c.l.b16 %v2162
        %v3171 = vunpack.c.h.b16 %v2162
        %v3172 = vunpack.c.l.b16 %v2163
        %v3173 = vunpack.c.h.b16 %v2163
        %v3174 = vunpack.c.l.b16 %v2164
        %v3175 = vunpack.c.h.b16 %v2164
        %v3176 = vunpack.c.l.b16 %v2165
        %v3177 = vunpack.c.h.b16 %v2165
        %v3178 = vunpack.c.l.b16 %v2166
        %v3179 = vunpack.c.h.b16 %v2166
        %v3180 = vunpack.c.l.b16 %v2167
        %v3181 = vunpack.c.h.b16 %v2167
        %v3182 = vunpack.c.l.b16 %v2168
        %v3183 = vunpack.c.h.b16 %v2168
        %v3184 = vunpack.c.l.b16 %v2169
        %v3185 = vunpack.c.h.b16 %v2169
        %v3186 = vunpack.c.l.b16 %v2170
        %v3187 = vunpack.c.h.b16 %v2170
        %v3188 = vunpack.c.l.b16 %v2171
        %v3189 = vunpack.c.h.b16 %v2171
        %v3190 = vunpack.c.l.b16 %v2172
        %v3191 = vunpack.c.h.b16 %v2172
        %v3192 = vunpack.c.l.b16 %v2173
        %v3193 = vunpack.c.h.b16 %v2173
        %v3194 = vunpack.c.l.b16 %v2174
        %v3195 = vunpack.c.h.b16 %v2174
        %v3196 = vunpack.c.l.b16 %v2175
        %v3197 = vunpack.c.h.b16 %v2175
        %v3198 = vunpack.c.l.b16 %v2176
        %v3199 = vunpack.c.h.b16 %v2176
        %v3200 = vunpack.c.l.b16 %v2177
        %v3201 = vunpack.c.h.b16 %v2177
        %v3202 = vunpack.c.l.b16 %v2178
        %v3203 = vunpack.c.h.b16 %v2178
        %v3204 = vunpack.c.l.b16 %v2179
        %v3205 = vunpack.c.h.b16 %v2179
        %v3206 = vunpack.c.l.b16 %v2180
        %v3207 = vunpack.c.h.b16 %v2180
        %v3208 = vunpack.c.l.b16 %v2181
        %v3209 = vunpack.c.h.b16 %v2181
        %v3210 = vunpack.c.l.b16 %v2182
        %v3211 = vunpack.c.h.b16 %v2182
        %v3212 = vunpack.c.l.b16 %v2183
        %v3213 = vunpack.c.h.b16 %v2183
        %v3214 = vunpack.c.l.b16 %v2184
        %v3215 = vunpack.c.h.b16 %v2184
        %v3216 = vunpack.c.l.b16 %v2185
        %v3217 = vunpack.c.h.b16 %v2185
        %v3218 = vunpack.c.l.b16 %v2186
        %v3219 = vunpack.c.h.b16 %v2186
        %v3220 = vunpack.c.l.b16 %v2187
        %v3221 = vunpack.c.h.b16 %v2187
        %v3222 = vunpack.c.l.b16 %v2188
        %v3223 = vunpack.c.h.b16 %v2188
        %v3224 = vunpack.c.l.b16 %v2189
        %v3225 = vunpack.c.h.b16 %v2189
        %v3226 = vunpack.c.l.b16 %v2190
        %v3227 = vunpack.c.h.b16 %v2190
        %v3228 = vunpack.c.l.b16 %v2191
        %v3229 = vunpack.c.h.b16 %v2191
        %v3230 = vunpack.c.l.b16 %v2192
        %v3231 = vunpack.c.h.b16 %v2192
        %v3232 = vunpack.c.l.b16 %v2193
        %v3233 = vunpack.c.h.b16 %v2193
        %v3234 = vunpack.c.l.b16 %v2194
        %v3235 = vunpack.c.h.b16 %v2194
        %v3236 = vunpack.c.l.b16 %v2195
        %v3237 = vunpack.c.h.b16 %v2195
        %v3238 = vunpack.c.l.b16 %v2196
        %v3239 = vunpack.c.h.b16 %v2196
        %v3240 = vunpack.c.l.b16 %v2197
        %v3241 = vunpack.c.h.b16 %v2197
        %v3242 = vunpack.c.l.b16 %v2198
        %v3243 = vunpack.c.h.b16 %v2198
        %v3244 = vunpack.c.l.b16 %v2199
        %v3245 = vunpack.c.h.b16 %v2199
        %v3246 = vunpack.c.l.b16 %v2200
        %v3247 = vunpack.c.h.b16 %v2200
        %v3248 = vunpack.c.l.b16 %v2201
        %v3249 = vunpack.c.h.b16 %v2201
        %v3250 = vunpack.c.l.b16 %v2202
        %v3251 = vunpack.c.h.b16 %v2202
        %v3252 = vunpack.c.l.b16 %v2203
        %v3253 = vunpack.c.h.b16 %v2203
        %v3254 = vunpack.c.l.b16 %v2204
        %v3255 = vunpack.c.h.b16 %v2204
        %v3256 = vunpack.c.l.b16 %v2205
        %v3257 = vunpack.c.h.b16 %v2205
        %v3258 = vunpack.c.l.b16 %v2206
        %v3259 = vunpack.c.h.b16 %v2206
        %v3260 = vunpack.c.l.b16 %v2207
        %v3261 = vunpack.c.h.b16 %v2207
        %v3262 = vunpack.c.l.b16 %v2208
        %v3263 = vunpack.c.h.b16 %v2208
        %v3264 = vunpack.c.l.b16 %v2209
        %v3265 = vunpack.c.h.b16 %v2209
        %v3266 = vunpack.c.l.b16 %v2210
        %v3267 = vunpack.c.h.b16 %v2210
        %v3268 = vunpack.c.l.b16 %v2211
        %v3269 = vunpack.c.h.b16 %v2211
        %v3270 = vunpack.c.l.b16 %v2212
        %v3271 = vunpack.c.h.b16 %v2212
        %v3272 = vunpack.c.l.b16 %v2213
        %v3273 = vunpack.c.h.b16 %v2213
        %v3274 = vunpack.c.l.b16 %v2214
        %v3275 = vunpack.c.h.b16 %v2214
        %v3276 = vunpack.c.l.b16 %v2215
        %v3277 = vunpack.c.h.b16 %v2215
        %v3278 = vunpack.c.l.b16 %v2216
        %v3279 = vunpack.c.h.b16 %v2216
        %v3280 = vunpack.c.l.b16 %v2217
        %v3281 = vunpack.c.h.b16 %v2217
        %v3282 = vpack.c.b16 %v2778, %v2770
        %v3283 = vpack.c.b16 %v2779, %v2771
        %v3284 = vpack.c.b16 %v2780, %v2772
        %v3285 = vpack.c.b16 %v2781, %v2773
        %v3286 = vpack.c.b16 %v2782, %v2774
        %v3287 = vpack.c.b16 %v2783, %v2775
        %v3288 = vpack.c.b16 %v2784, %v2776
        %v3289 = vpack.c.b16 %v2785, %v2777
        %v3290 = vpack.c.b16 %v2794, %v2786
        %v3291 = vpack.c.b16 %v2795, %v2787
        %v3292 = vpack.c.b16 %v2796, %v2788
        %v3293 = vpack.c.b16 %v2797, %v2789
        %v3294 = vpack.c.b16 %v2798, %v2790
        %v3295 = vpack.c.b16 %v2799, %v2791
        %v3296 = vpack.c.b16 %v2800, %v2792
        %v3297 = vpack.c.b16 %v2801, %v2793
        %v3298 = vpack.c.b16 %v2810, %v2802
        %v3299 = vpack.c.b16 %v2811, %v2803
        %v3300 = vpack.c.b16 %v2812, %v2804
        %v3301 = vpack.c.b16 %v2813, %v2805
        %v3302 = vpack.c.b16 %v2814, %v2806
        %v3303 = vpack.c.b16 %v2815, %v2807
        %v3304 = vpack.c.b16 %v2816, %v2808
        %v3305 = vpack.c.b16 %v2817, %v2809
        %v3306 = vpack.c.b16 %v2826, %v2818
        %v3307 = vpack.c.b16 %v2827, %v2819
        %v3308 = vpack.c.b16 %v2828, %v2820
        %v3309 = vpack.c.b16 %v2829, %v2821
        %v3310 = vpack.c.b16 %v2830, %v2822
        %v3311 = vpack.c.b16 %v2831, %v2823
        %v3312 = vpack.c.b16 %v2832, %v2824
        %v3313 = vpack.c.b16 %v2833, %v2825
        %v3314 = vpack.c.b16 %v2842, %v2834
        %v3315 = vpack.c.b16 %v2843, %v2835
        %v3316 = vpack.c.b16 %v2844, %v2836
        %v3317 = vpack.c.b16 %v2845, %v2837
        %v3318 = vpack.c.b16 %v2846, %v2838
        %v3319 = vpack.c.b16 %v2847, %v2839
        %v3320 = vpack.c.b16 %v2848, %v2840
        %v3321 = vpack.c.b16 %v2849, %v2841
        %v3322 = vpack.c.b16 %v2858, %v2850
        %v3323 = vpack.c.b16 %v2859, %v2851
        %v3324 = vpack.c.b16 %v2860, %v2852
        %v3325 = vpack.c.b16 %v2861, %v2853
        %v3326 = vpack.c.b16 %v2862, %v2854
        %v3327 = vpack.c.b16 %v2863, %v2855
        %v3328 = vpack.c.b16 %v2864, %v2856
        %v3329 = vpack.c.b16 %v2865, %v2857
        %v3330 = vpack.c.b16 %v2874, %v2866
        %v3331 = vpack.c.b16 %v2875, %v2867
        %v3332 = vpack.c.b16 %v2876, %v2868
        %v3333 = vpack.c.b16 %v2877, %v2869
        %v3334 = vpack.c.b16 %v2878, %v2870
        %v3335 = vpack.c.b16 %v2879, %v2871
        %v3336 = vpack.c.b16 %v2880, %v2872
        %v3337 = vpack.c.b16 %v2881, %v2873
        %v3338 = vpack.c.b16 %v2890, %v2882
        %v3339 = vpack.c.b16 %v2891, %v2883
        %v3340 = vpack.c.b16 %v2892, %v2884
        %v3341 = vpack.c.b16 %v2893, %v2885
        %v3342 = vpack.c.b16 %v2894, %v2886
        %v3343 = vpack.c.b16 %v2895, %v2887
        %v3344 = vpack.c.b16 %v2896, %v2888
        %v3345 = vpack.c.b16 %v2897, %v2889
        %v3346 = vpack.c.b16 %v2906, %v2898
        %v3347 = vpack.c.b16 %v2907, %v2899
        %v3348 = vpack.c.b16 %v2908, %v2900
        %v3349 = vpack.c.b16 %v2909, %v2901
        %v3350 = vpack.c.b16 %v2910, %v2902
        %v3351 = vpack.c.b16 %v2911, %v2903
        %v3352 = vpack.c.b16 %v2912, %v2904
        %v3353 = vpack.c.b16 %v2913, %v2905
        %v3354 = vpack.c.b16 %v2922, %v2914
        %v3355 = vpack.c.b16 %v2923, %v2915
        %v3356 = vpack.c.b16 %v2924, %v2916
        %v3357 = vpack.c.b16 %v2925, %v2917
        %v3358 = vpack.c.b16 %v2926, %v2918
        %v3359 = vpack.c.b16 %v2927, %v2919
        %v3360 = vpack.c.b16 %v2928, %v2920
        %v3361 = vpack.c.b16 %v2929, %v2921
        %v3362 = vpack.c.b16 %v2938, %v2930
        %v3363 = vpack.c.b16 %v2939, %v2931
        %v3364 = vpack.c.b16 %v2940, %v2932
        %v3365 = vpack.c.b16 %v2941, %v2933
        %v3366 = vpack.c.b16 %v2942, %v2934
        %v3367 = vpack.c.b16 %v2943, %v2935
        %v3368 = vpack.c.b16 %v2944, %v2936
        %v3369 = vpack.c.b16 %v2945, %v2937
        %v3370 = vpack.c.b16 %v2954, %v2946
        %v3371 = vpack.c.b16 %v2955, %v2947
        %v3372 = vpack.c.b16 %v2956, %v2948
        %v3373 = vpack.c.b16 %v2957, %v2949
        %v3374 = vpack.c.b16 %v2958, %v2950
        %v3375 = vpack.c.b16 %v2959, %v2951
        %v3376 = vpack.c.b16 %v2960, %v2952
        %v3377 = vpack.c.b16 %v2961, %v2953
        %v3378 = vpack.c.b16 %v2970, %v2962
        %v3379 = vpack.c.b16 %v2971, %v2963
        %v3380 = vpack.c.b16 %v2972, %v2964
        %v3381 = vpack.c.b16 %v2973, %v2965
        %v3382 = vpack.c.b16 %v2974, %v2966
        %v3383 = vpack.c.b16 %v2975, %v2967
        %v3384 = vpack.c.b16 %v2976, %v2968
        %v3385 = vpack.c.b16 %v2977, %v2969
        %v3386 = vpack.c.b16 %v2986, %v2978
        %v3387 = vpack.c.b16 %v2987, %v2979
        %v3388 = vpack.c.b16 %v2988, %v2980
        %v3389 = vpack.c.b16 %v2989, %v2981
        %v3390 = vpack.c.b16 %v2990, %v2982
        %v3391 = vpack.c.b16 %v2991, %v2983
        %v3392 = vpack.c.b16 %v2992, %v2984
        %v3393 = vpack.c.b16 %v2993, %v2985
        %v3394 = vpack.c.b16 %v3002, %v2994
        %v3395 = vpack.c.b16 %v3003, %v2995
        %v3396 = vpack.c.b16 %v3004, %v2996
        %v3397 = vpack.c.b16 %v3005, %v2997
        %v3398 = vpack.c.b16 %v3006, %v2998
        %v3399 = vpack.c.b16 %v3007, %v2999
        %v3400 = vpack.c.b16 %v3008, %v3000
        %v3401 = vpack.c.b16 %v3009, %v3001
        %v3402 = vpack.c.b16 %v3018, %v3010
        %v3403 = vpack.c.b16 %v3019, %v3011
        %v3404 = vpack.c.b16 %v3020, %v3012
        %v3405 = vpack.c.b16 %v3021, %v3013
        %v3406 = vpack.c.b16 %v3022, %v3014
        %v3407 = vpack.c.b16 %v3023, %v3015
        %v3408 = vpack.c.b16 %v3024, %v3016
        %v3409 = vpack.c.b16 %v3025, %v3017
        %v3410 = vpack.c.b16 %v3034, %v3026
        %v3411 = vpack.c.b16 %v3035, %v3027
        %v3412 = vpack.c.b16 %v3036, %v3028
        %v3413 = vpack.c.b16 %v3037, %v3029
        %v3414 = vpack.c.b16 %v3038, %v3030
        %v3415 = vpack.c.b16 %v3039, %v3031
        %v3416 = vpack.c.b16 %v3040, %v3032
        %v3417 = vpack.c.b16 %v3041, %v3033
        %v3418 = vpack.c.b16 %v3050, %v3042
        %v3419 = vpack.c.b16 %v3051, %v3043
        %v3420 = vpack.c.b16 %v3052, %v3044
        %v3421 = vpack.c.b16 %v3053, %v3045
        %v3422 = vpack.c.b16 %v3054, %v3046
        %v3423 = vpack.c.b16 %v3055, %v3047
        %v3424 = vpack.c.b16 %v3056, %v3048
        %v3425 = vpack.c.b16 %v3057, %v3049
        %v3426 = vpack.c.b16 %v3066, %v3058
        %v3427 = vpack.c.b16 %v3067, %v3059
        %v3428 = vpack.c.b16 %v3068, %v3060
        %v3429 = vpack.c.b16 %v3069, %v3061
        %v3430 = vpack.c.b16 %v3070, %v3062
        %v3431 = vpack.c.b16 %v3071, %v3063
        %v3432 = vpack.c.b16 %v3072, %v3064
        %v3433 = vpack.c.b16 %v3073, %v3065
        %v3434 = vpack.c.b16 %v3082, %v3074
        %v3435 = vpack.c.b16 %v3083, %v3075
        %v3436 = vpack.c.b16 %v3084, %v3076
        %v3437 = vpack.c.b16 %v3085, %v3077
        %v3438 = vpack.c.b16 %v3086, %v3078
        %v3439 = vpack.c.b16 %v3087, %v3079
        %v3440 = vpack.c.b16 %v3088, %v3080
        %v3441 = vpack.c.b16 %v3089, %v3081
        %v3442 = vpack.c.b16 %v3098, %v3090
        %v3443 = vpack.c.b16 %v3099, %v3091
        %v3444 = vpack.c.b16 %v3100, %v3092
        %v3445 = vpack.c.b16 %v3101, %v3093
        %v3446 = vpack.c.b16 %v3102, %v3094
        %v3447 = vpack.c.b16 %v3103, %v3095
        %v3448 = vpack.c.b16 %v3104, %v3096
        %v3449 = vpack.c.b16 %v3105, %v3097
        %v3450 = vpack.c.b16 %v3114, %v3106
        %v3451 = vpack.c.b16 %v3115, %v3107
        %v3452 = vpack.c.b16 %v3116, %v3108
        %v3453 = vpack.c.b16 %v3117, %v3109
        %v3454 = vpack.c.b16 %v3118, %v3110
        %v3455 = vpack.c.b16 %v3119, %v3111
        %v3456 = vpack.c.b16 %v3120, %v3112
        %v3457 = vpack.c.b16 %v3121, %v3113
        %v3458 = vpack.c.b16 %v3130, %v3122
        %v3459 = vpack.c.b16 %v3131, %v3123
        %v3460 = vpack.c.b16 %v3132, %v3124
        %v3461 = vpack.c.b16 %v3133, %v3125
        %v3462 = vpack.c.b16 %v3134, %v3126
        %v3463 = vpack.c.b16 %v3135, %v3127
        %v3464 = vpack.c.b16 %v3136, %v3128
        %v3465 = vpack.c.b16 %v3137, %v3129
        %v3466 = vpack.c.b16 %v3146, %v3138
        %v3467 = vpack.c.b16 %v3147, %v3139
        %v3468 = vpack.c.b16 %v3148, %v3140
        %v3469 = vpack.c.b16 %v3149, %v3141
        %v3470 = vpack.c.b16 %v3150, %v3142
        %v3471 = vpack.c.b16 %v3151, %v3143
        %v3472 = vpack.c.b16 %v3152, %v3144
        %v3473 = vpack.c.b16 %v3153, %v3145
        %v3474 = vpack.c.b16 %v3162, %v3154
        %v3475 = vpack.c.b16 %v3163, %v3155
        %v3476 = vpack.c.b16 %v3164, %v3156
        %v3477 = vpack.c.b16 %v3165, %v3157
        %v3478 = vpack.c.b16 %v3166, %v3158
        %v3479 = vpack.c.b16 %v3167, %v3159
        %v3480 = vpack.c.b16 %v3168, %v3160
        %v3481 = vpack.c.b16 %v3169, %v3161
        %v3482 = vpack.c.b16 %v3178, %v3170
        %v3483 = vpack.c.b16 %v3179, %v3171
        %v3484 = vpack.c.b16 %v3180, %v3172
        %v3485 = vpack.c.b16 %v3181, %v3173
        %v3486 = vpack.c.b16 %v3182, %v3174
        %v3487 = vpack.c.b16 %v3183, %v3175
        %v3488 = vpack.c.b16 %v3184, %v3176
        %v3489 = vpack.c.b16 %v3185, %v3177
        %v3490 = vpack.c.b16 %v3194, %v3186
        %v3491 = vpack.c.b16 %v3195, %v3187
        %v3492 = vpack.c.b16 %v3196, %v3188
        %v3493 = vpack.c.b16 %v3197, %v3189
        %v3494 = vpack.c.b16 %v3198, %v3190
        %v3495 = vpack.c.b16 %v3199, %v3191
        %v3496 = vpack.c.b16 %v3200, %v3192
        %v3497 = vpack.c.b16 %v3201, %v3193
        %v3498 = vpack.c.b16 %v3210, %v3202
        %v3499 = vpack.c.b16 %v3211, %v3203
        %v3500 = vpack.c.b16 %v3212, %v3204
        %v3501 = vpack.c.b16 %v3213, %v3205
        %v3502 = vpack.c.b16 %v3214, %v3206
        %v3503 = vpack.c.b16 %v3215, %v3207
        %v3504 = vpack.c.b16 %v3216, %v3208
        %v3505 = vpack.c.b16 %v3217, %v3209
        %v3506 = vpack.c.b16 %v3226, %v3218
        %v3507 = vpack.c.b16 %v3227, %v3219
        %v3508 = vpack.c.b16 %v3228, %v3220
        %v3509 = vpack.c.b16 %v3229, %v3221
        %v3510 = vpack.c.b16 %v3230, %v3222
        %v3511 = vpack.c.b16 %v3231, %v3223
        %v3512 = vpack.c.b16 %v3232, %v3224
        %v3513 = vpack.c.b16 %v3233, %v3225
        %v3514 = vpack.c.b16 %v3242, %v3234
        %v3515 = vpack.c.b16 %v3243, %v3235
        %v3516 = vpack.c.b16 %v3244, %v3236
        %v3517 = vpack.c.b16 %v3245, %v3237
        %v3518 = vpack.c.b16 %v3246, %v3238
        %v3519 = vpack.c.b16 %v3247, %v3239
        %v3520 = vpack.c.b16 %v3248, %v3240
        %v3521 = vpack.c.b16 %v3249, %v3241
        %v3522 = vpack.c.b16 %v3258, %v3250
        %v3523 = vpack.c.b16 %v3259, %v3251
        %v3524 = vpack.c.b16 %v3260, %v3252
        %v3525 = vpack.c.b16 %v3261, %v3253
        %v3526 = vpack.c.b16 %v3262, %v3254
        %v3527 = vpack.c.b16 %v3263, %v3255
        %v3528 = vpack.c.b16 %v3264, %v3256
        %v3529 = vpack.c.b16 %v3265, %v3257
        %v3530 = vpack.c.b16 %v3274, %v3266
        %v3531 = vpack.c.b16 %v3275, %v3267
        %v3532 = vpack.c.b16 %v3276, %v3268
        %v3533 = vpack.c.b16 %v3277, %v3269
        %v3534 = vpack.c.b16 %v3278, %v3270
        %v3535 = vpack.c.b16 %v3279, %v3271
        %v3536 = vpack.c.b16 %v3280, %v3272
        %v3537 = vpack.c.b16 %v3281, %v3273
        %3794 = vmatprep.subr.bf16.mxu0 %v3283
        %3795 = vmatpush1.bf16.msra.mxu0 %v3282
        %3796 = vmatprep.subr.bf16.mxu0 %v3291
        %3797 = vmatpush1.bf16.msra.mxu0 %v3290
        %3798 = vmatprep.subr.bf16.mxu0 %v3299
        %3799 = vmatpush1.bf16.msra.mxu0 %v3298
        %3800 = vmatprep.subr.bf16.mxu0 %v3307
        %3801 = vmatpush1.bf16.msra.mxu0 %v3306
        %3802 = vmatprep.subr.bf16.mxu0 %v3315
        %3803 = vmatpush1.bf16.msra.mxu0 %v3314
        %3804 = vmatprep.subr.bf16.mxu0 %v3323
        %3805 = vmatpush1.bf16.msra.mxu0 %v3322
        %3806 = vmatprep.subr.bf16.mxu0 %v3331
        %3807 = vmatpush1.bf16.msra.mxu0 %v3330
        %3808 = vmatprep.subr.bf16.mxu0 %v3339
        %3809 = vmatpush1.bf16.msra.mxu0 %v3338
        %3810 = vmatprep.subr.bf16.mxu0 %v3347
        %3811 = vmatpush1.bf16.msra.mxu0 %v3346
        %3812 = vmatprep.subr.bf16.mxu0 %v3355
        %3813 = vmatpush1.bf16.msra.mxu0 %v3354
        %3814 = vmatprep.subr.bf16.mxu0 %v3363
        %3815 = vmatpush1.bf16.msra.mxu0 %v3362
        %3816 = vmatprep.subr.bf16.mxu0 %v3371
        %3817 = vmatpush1.bf16.msra.mxu0 %v3370
        %3818 = vmatprep.subr.bf16.mxu0 %v3379
        %3819 = vmatpush1.bf16.msra.mxu0 %v3378
        %3820 = vmatprep.subr.bf16.mxu0 %v3387
        %3821 = vmatpush1.bf16.msra.mxu0 %v3386
        %3822 = vmatprep.subr.bf16.mxu0 %v3395
        %3823 = vmatpush1.bf16.msra.mxu0 %v3394
        %3824 = vmatprep.subr.bf16.mxu0 %v3403
        %3825 = vmatpush1.bf16.msra.mxu0 %v3402
        %3826 = vmatprep.mubr.bf16.mxu0 %v2411
        %3827 = vmatmul.mubr.bf16.gmra.mrb[0].mxu0 %v2410
        %v3828 = vpop.f32.mrb[0].mxu0
        %v3829 = vadd.f32 %v2223, %v3828
        %v3830 = vpop.f32.mrb[0].mxu0
        %v3831 = vadd.f32 %v2227, %v3830
        %v3832 = vpop.f32.mrb[0].mxu0
        %v3833 = vadd.f32 %v2223, %v3832
        %v3834 = vpop.f32.mrb[0].mxu0
        %v3835 = vadd.f32 %v2227, %v3834
        %3836 = vmatprep.mubr.bf16.mxu0 %v2415
        %3837 = vmatmul.mubr.bf16.gmra.mrb[0].mxu0 %v2414
        %v3838 = vpop.f32.mrb[0].mxu0
        %v3839 = vadd.f32 %v2223, %v3838
        %v3840 = vpop.f32.mrb[0].mxu0
        %v3841 = vadd.f32 %v2227, %v3840
        %v3842 = vpop.f32.mrb[0].mxu0
        %v3843 = vadd.f32 %v2223, %v3842
        %v3844 = vpop.f32.mrb[0].mxu0
        %v3845 = vadd.f32 %v2227, %v3844
        %3846 = vmatprep.mubr.bf16.mxu0 %v2419
        %3847 = vmatmul.mubr.bf16.gmra.mrb[0].mxu0 %v2418
        %v3848 = vpop.f32.mrb[0].mxu0
        %v3849 = vadd.f32 %v2223, %v3848
        %v3850 = vpop.f32.mrb[0].mxu0
        %v3851 = vadd.f32 %v2227, %v3850
        %v3852 = vpop.f32.mrb[0].mxu0
        %v3853 = vadd.f32 %v2223, %v3852
        %v3854 = vpop.f32.mrb[0].mxu0
        %v3855 = vadd.f32 %v2227, %v3854
        %3856 = vmatprep.mubr.bf16.mxu0 %v2423
        %3857 = vmatmul.mubr.bf16.gmra.mrb[0].mxu0 %v2422
        %v3858 = vpop.f32.mrb[0].mxu0
        %v3859 = vadd.f32 %v2223, %v3858
        %v3860 = vpop.f32.mrb[0].mxu0
        %v3861 = vadd.f32 %v2227, %v3860
        %v3862 = vpop.f32.mrb[0].mxu0
        %v3863 = vadd.f32 %v2223, %v3862
        %v3864 = vpop.f32.mrb[0].mxu0
        %v3865 = vadd.f32 %v2227, %v3864
        %3866 = vmatprep.mubr.bf16.mxu0 %v2427
        %3867 = vmatmul.mubr.bf16.gmra.mrb[0].mxu0 %v2426
        %v3868 = vpop.f32.mrb[0].mxu0
        %v3869 = vadd.f32 %v2223, %v3868
        %v3870 = vpop.f32.mrb[0].mxu0
        %v3871 = vadd.f32 %v2227, %v3870
        %v3872 = vpop.f32.mrb[0].mxu0
        %v3873 = vadd.f32 %v2223, %v3872
        %v3874 = vpop.f32.mrb[0].mxu0
        %v3875 = vadd.f32 %v2227, %v3874
        %3876 = vmatprep.mubr.bf16.mxu0 %v2431
        %3877 = vmatmul.mubr.bf16.gmra.mrb[0].mxu0 %v2430
        %v3878 = vpop.f32.mrb[0].mxu0
        %v3879 = vadd.f32 %v2223, %v3878
        %v3880 = vpop.f32.mrb[0].mxu0
        %v3881 = vadd.f32 %v2227, %v3880
        %v3882 = vpop.f32.mrb[0].mxu0
        %v3883 = vadd.f32 %v2223, %v3882
        %v3884 = vpop.f32.mrb[0].mxu0
        %v3885 = vadd.f32 %v2227, %v3884
        %3886 = vmatprep.mubr.bf16.mxu0 %v2435
        %3887 = vmatmul.mubr.bf16.gmra.mrb[0].mxu0 %v2434
        %v3888 = vpop.f32.mrb[0].mxu0
        %v3889 = vadd.f32 %v2223, %v3888
        %v3890 = vpop.f32.mrb[0].mxu0
        %v3891 = vadd.f32 %v2227, %v3890
        %v3892 = vpop.f32.mrb[0].mxu0
        %v3893 = vadd.f32 %v2223, %v3892
        %v3894 = vpop.f32.mrb[0].mxu0
        %v3895 = vadd.f32 %v2227, %v3894
        %3896 = vmatprep.mubr.bf16.mxu0 %v2439
        %3897 = vmatmul.mubr.bf16.gmra.mrb[0].mxu0 %v2438
        %v3898 = vpop.f32.mrb[0].mxu0
        %v3899 = vadd.f32 %v2223, %v3898
        %v3900 = vpop.f32.mrb[0].mxu0
        %v3901 = vadd.f32 %v2227, %v3900
        %v3902 = vpop.f32.mrb[0].mxu0
        %v3903 = vadd.f32 %v2223, %v3902
        %v3904 = vpop.f32.mrb[0].mxu0
        %v3905 = vadd.f32 %v2227, %v3904
        %3906 = vmatprep.mubr.bf16.mxu0 %v2443
        %3907 = vmatmul.mubr.bf16.gmra.mrb[0].mxu0 %v2442
        %v3908 = vpop.f32.mrb[0].mxu0
        %v3909 = vadd.f32 %v2223, %v3908
        %v3910 = vpop.f32.mrb[0].mxu0
        %v3911 = vadd.f32 %v2227, %v3910
        %v3912 = vpop.f32.mrb[0].mxu0
        %v3913 = vadd.f32 %v2223, %v3912
        %v3914 = vpop.f32.mrb[0].mxu0
        %v3915 = vadd.f32 %v2227, %v3914
        %3916 = vmatprep.mubr.bf16.mxu0 %v2447
        %3917 = vmatmul.mubr.bf16.gmra.mrb[0].mxu0 %v2446
        %v3918 = vpop.f32.mrb[0].mxu0
        %v3919 = vadd.f32 %v2223, %v3918
        %v3920 = vpop.f32.mrb[0].mxu0
        %v3921 = vadd.f32 %v2227, %v3920
        %v3922 = vpop.f32.mrb[0].mxu0
        %v3923 = vadd.f32 %v2223, %v3922
        %v3924 = vpop.f32.mrb[0].mxu0
        %v3925 = vadd.f32 %v2227, %v3924
        %3926 = vmatprep.mubr.bf16.mxu0 %v2451
        %3927 = vmatmul.mubr.bf16.gmra.mrb[0].mxu0 %v2450
        %v3928 = vpop.f32.mrb[0].mxu0
        %v3929 = vadd.f32 %v2223, %v3928
        %v3930 = vpop.f32.mrb[0].mxu0
        %v3931 = vadd.f32 %v2227, %v3930
        %v3932 = vpop.f32.mrb[0].mxu0
        %v3933 = vadd.f32 %v2223, %v3932
        %v3934 = vpop.f32.mrb[0].mxu0
        %v3935 = vadd.f32 %v2227, %v3934
        %3936 = vmatprep.mubr.bf16.mxu0 %v2455
        %3937 = vmatmul.mubr.bf16.gmra.mrb[0].mxu0 %v2454
        %v3938 = vpop.f32.mrb[0].mxu0
        %v3939 = vadd.f32 %v2223, %v3938
        %v3940 = vpop.f32.mrb[0].mxu0
        %v3941 = vadd.f32 %v2227, %v3940
        %v3942 = vpop.f32.mrb[0].mxu0
        %v3943 = vadd.f32 %v2223, %v3942
        %v3944 = vpop.f32.mrb[0].mxu0
        %v3945 = vadd.f32 %v2227, %v3944
        %3946 = vmatprep.mubr.bf16.mxu0 %v2459
        %3947 = vmatmul.mubr.bf16.gmra.mrb[0].mxu0 %v2458
        %v3948 = vpop.f32.mrb[0].mxu0
        %v3949 = vadd.f32 %v2223, %v3948
        %v3950 = vpop.f32.mrb[0].mxu0
        %v3951 = vadd.f32 %v2227, %v3950
        %v3952 = vpop.f32.mrb[0].mxu0
        %v3953 = vpop.f32.mrb[0].mxu0
        %3954 = vdwg.mxu0
        %3955 = vmatprep.subr.bf16.mxu0 %v3411
        %3956 = vmatpush1.bf16.msra.mxu0 %v3410
        %3957 = vmatprep.subr.bf16.mxu0 %v3419
        %3958 = vmatpush1.bf16.msra.mxu0 %v3418
        %3959 = vmatprep.subr.bf16.mxu0 %v3427
        %3960 = vmatpush1.bf16.msra.mxu0 %v3426
        %3961 = vmatprep.subr.bf16.mxu0 %v3435
        %3962 = vmatpush1.bf16.msra.mxu0 %v3434
        %3963 = vmatprep.subr.bf16.mxu0 %v3443
        %3964 = vmatpush1.bf16.msra.mxu0 %v3442
        %3965 = vmatprep.subr.bf16.mxu0 %v3451
        %3966 = vmatpush1.bf16.msra.mxu0 %v3450
        %3967 = vmatprep.subr.bf16.mxu0 %v3459
        %3968 = vmatpush1.bf16.msra.mxu0 %v3458
        %3969 = vmatprep.subr.bf16.mxu0 %v3467
        %3970 = vmatpush1.bf16.msra.mxu0 %v3466
        %3971 = vmatprep.subr.bf16.mxu0 %v3475
        %3972 = vmatpush1.bf16.msra.mxu0 %v3474
        %3973 = vmatprep.subr.bf16.mxu0 %v3483
        %3974 = vmatpush1.bf16.msra.mxu0 %v3482
        %3975 = vmatprep.subr.bf16.mxu0 %v3491
        %3976 = vmatpush1.bf16.msra.mxu0 %v3490
        %3977 = vmatprep.subr.bf16.mxu0 %v3499
        %3978 = vmatpush1.bf16.msra.mxu0 %v3498
        %3979 = vmatprep.subr.bf16.mxu0 %v3507
        %3980 = vmatpush1.bf16.msra.mxu0 %v3506
        %3981 = vmatprep.subr.bf16.mxu0 %v3515
        %3982 = vmatpush1.bf16.msra.mxu0 %v3514
        %3983 = vmatprep.subr.bf16.mxu0 %v3523
        %3984 = vmatpush1.bf16.msra.mxu0 %v3522
        %3985 = vmatprep.subr.bf16.mxu0 %v3531
        %3986 = vmatpush1.bf16.msra.mxu0 %v3530
        %3987 = vmatprep.mubr.bf16.mxu0 %v2413
        %3988 = vmatmul.mubr.bf16.gmra.mrb[0].mxu0 %v2412
        %v3989 = vpop.f32.mrb[0].mxu0
        %v3990 = vadd.f32 %v3829, %v3989
        %v3991 = vpop.f32.mrb[0].mxu0
        %v3992 = vadd.f32 %v3831, %v3991
        %v3993 = vpop.f32.mrb[0].mxu0
        %v3994 = vadd.f32 %v3833, %v3993
        %v3995 = vpop.f32.mrb[0].mxu0
        %v3996 = vadd.f32 %v3835, %v3995
        %3997 = vmatprep.mubr.bf16.mxu0 %v2417
        %3998 = vmatmul.mubr.bf16.gmra.mrb[0].mxu0 %v2416
        %v3999 = vpop.f32.mrb[0].mxu0
        %v4000 = vadd.f32 %v3839, %v3999
        %v4001 = vpop.f32.mrb[0].mxu0
        %v4002 = vadd.f32 %v3841, %v4001
        %v4003 = vpop.f32.mrb[0].mxu0
        %v4004 = vadd.f32 %v3843, %v4003
        %v4005 = vpop.f32.mrb[0].mxu0
        %v4006 = vadd.f32 %v3845, %v4005
        %4007 = vmatprep.mubr.bf16.mxu0 %v2421
        %4008 = vmatmul.mubr.bf16.gmra.mrb[0].mxu0 %v2420
        %v4009 = vpop.f32.mrb[0].mxu0
        %v4010 = vadd.f32 %v3849, %v4009
        %v4011 = vpop.f32.mrb[0].mxu0
        %v4012 = vadd.f32 %v3851, %v4011
        %v4013 = vpop.f32.mrb[0].mxu0
        %v4014 = vadd.f32 %v3853, %v4013
        %v4015 = vpop.f32.mrb[0].mxu0
        %v4016 = vadd.f32 %v3855, %v4015
        %4017 = vmatprep.mubr.bf16.mxu0 %v2425
        %4018 = vmatmul.mubr.bf16.gmra.mrb[0].mxu0 %v2424
        %v4019 = vpop.f32.mrb[0].mxu0
        %v4020 = vadd.f32 %v3859, %v4019
        %v4021 = vpop.f32.mrb[0].mxu0
        %v4022 = vadd.f32 %v3861, %v4021
        %v4023 = vpop.f32.mrb[0].mxu0
        %v4024 = vadd.f32 %v3863, %v4023
        %v4025 = vpop.f32.mrb[0].mxu0
        %v4026 = vadd.f32 %v3865, %v4025
        %4027 = vmatprep.mubr.bf16.mxu0 %v2429
        %4028 = vmatmul.mubr.bf16.gmra.mrb[0].mxu0 %v2428
        %v4029 = vpop.f32.mrb[0].mxu0
        %v4030 = vadd.f32 %v3869, %v4029
        %v4031 = vpop.f32.mrb[0].mxu0
        %v4032 = vadd.f32 %v3871, %v4031
        %v4033 = vpop.f32.mrb[0].mxu0
        %v4034 = vadd.f32 %v3873, %v4033
        %v4035 = vpop.f32.mrb[0].mxu0
        %v4036 = vadd.f32 %v3875, %v4035
        %4037 = vmatprep.mubr.bf16.mxu0 %v2433
        %4038 = vmatmul.mubr.bf16.gmra.mrb[0].mxu0 %v2432
        %v4039 = vpop.f32.mrb[0].mxu0
        %v4040 = vadd.f32 %v3879, %v4039
        %v4041 = vpop.f32.mrb[0].mxu0
        %v4042 = vadd.f32 %v3881, %v4041
        %v4043 = vpop.f32.mrb[0].mxu0
        %v4044 = vadd.f32 %v3883, %v4043
        %v4045 = vpop.f32.mrb[0].mxu0
        %v4046 = vadd.f32 %v3885, %v4045
        %4047 = vmatprep.mubr.bf16.mxu0 %v2437
        %4048 = vmatmul.mubr.bf16.gmra.mrb[0].mxu0 %v2436
        %v4049 = vpop.f32.mrb[0].mxu0
        %v4050 = vadd.f32 %v3889, %v4049
        %v4051 = vpop.f32.mrb[0].mxu0
        %v4052 = vadd.f32 %v3891, %v4051
        %v4053 = vpop.f32.mrb[0].mxu0
        %v4054 = vadd.f32 %v3893, %v4053
        %v4055 = vpop.f32.mrb[0].mxu0
        %v4056 = vadd.f32 %v3895, %v4055
        %4057 = vmatprep.mubr.bf16.mxu0 %v2441
        %4058 = vmatmul.mubr.bf16.gmra.mrb[0].mxu0 %v2440
        %v4059 = vpop.f32.mrb[0].mxu0
        %v4060 = vadd.f32 %v3899, %v4059
        %v4061 = vpop.f32.mrb[0].mxu0
        %v4062 = vadd.f32 %v3901, %v4061
        %v4063 = vpop.f32.mrb[0].mxu0
        %v4064 = vadd.f32 %v3903, %v4063
        %v4065 = vpop.f32.mrb[0].mxu0
        %v4066 = vadd.f32 %v3905, %v4065
        %4067 = vmatprep.mubr.bf16.mxu0 %v2445
        %4068 = vmatmul.mubr.bf16.gmra.mrb[0].mxu0 %v2444
        %v4069 = vpop.f32.mrb[0].mxu0
        %v4070 = vadd.f32 %v3909, %v4069
        %v4071 = vpop.f32.mrb[0].mxu0
        %v4072 = vadd.f32 %v3911, %v4071
        %v4073 = vpop.f32.mrb[0].mxu0
        %v4074 = vadd.f32 %v3913, %v4073
        %v4075 = vpop.f32.mrb[0].mxu0
        %v4076 = vadd.f32 %v3915, %v4075
        %4077 = vmatprep.mubr.bf16.mxu0 %v2449
        %4078 = vmatmul.mubr.bf16.gmra.mrb[0].mxu0 %v2448
        %v4079 = vpop.f32.mrb[0].mxu0
        %v4080 = vadd.f32 %v3919, %v4079
        %v4081 = vpop.f32.mrb[0].mxu0
        %v4082 = vadd.f32 %v3921, %v4081
        %v4083 = vpop.f32.mrb[0].mxu0
        %v4084 = vadd.f32 %v3923, %v4083
        %v4085 = vpop.f32.mrb[0].mxu0
        %v4086 = vadd.f32 %v3925, %v4085
        %4087 = vmatprep.mubr.bf16.mxu0 %v2453
        %4088 = vmatmul.mubr.bf16.gmra.mrb[0].mxu0 %v2452
        %v4089 = vpop.f32.mrb[0].mxu0
        %v4090 = vadd.f32 %v3929, %v4089
        %v4091 = vpop.f32.mrb[0].mxu0
        %v4092 = vadd.f32 %v3931, %v4091
        %v4093 = vpop.f32.mrb[0].mxu0
        %v4094 = vadd.f32 %v3933, %v4093
        %v4095 = vpop.f32.mrb[0].mxu0
        %v4096 = vadd.f32 %v3935, %v4095
        %4097 = vmatprep.mubr.bf16.mxu0 %v2457
        %4098 = vmatmul.mubr.bf16.gmra.mrb[0].mxu0 %v2456
        %v4099 = vpop.f32.mrb[0].mxu0
        %v4100 = vadd.f32 %v3939, %v4099
        %v4101 = vpop.f32.mrb[0].mxu0
        %v4102 = vadd.f32 %v3941, %v4101
        %v4103 = vpop.f32.mrb[0].mxu0
        %v4104 = vadd.f32 %v3943, %v4103
        %v4105 = vpop.f32.mrb[0].mxu0
        %v4106 = vadd.f32 %v3945, %v4105
        %4107 = vmatprep.mubr.bf16.mxu0 %v2461
        %4108 = vmatmul.mubr.bf16.gmra.mrb[0].mxu0 %v2460
        %v4109 = vpop.f32.mrb[0].mxu0
        %v4110 = vadd.f32 %v3949, %v4109
        %v4111 = vpop.f32.mrb[0].mxu0
        %v4112 = vadd.f32 %v3951, %v4111
        %v4113 = vpop.f32.mrb[0].mxu0
        %v4114 = vpop.f32.mrb[0].mxu0
        %4115 = vdwg.mxu0
        %4116 = vmatprep.subr.bf16.mxu0 %v3285
        %4117 = vmatpush1.bf16.msra.mxu0 %v3284
        %4118 = vmatprep.subr.bf16.mxu0 %v3293
        %4119 = vmatpush1.bf16.msra.mxu0 %v3292
        %4120 = vmatprep.subr.bf16.mxu0 %v3301
        %4121 = vmatpush1.bf16.msra.mxu0 %v3300
        %4122 = vmatprep.subr.bf16.mxu0 %v3309
        %4123 = vmatpush1.bf16.msra.mxu0 %v3308
        %4124 = vmatprep.subr.bf16.mxu0 %v3317
        %4125 = vmatpush1.bf16.msra.mxu0 %v3316
        %4126 = vmatprep.subr.bf16.mxu0 %v3325
        %4127 = vmatpush1.bf16.msra.mxu0 %v3324
        %4128 = vmatprep.subr.bf16.mxu0 %v3333
        %4129 = vmatpush1.bf16.msra.mxu0 %v3332
        %4130 = vmatprep.subr.bf16.mxu0 %v3341
        %4131 = vmatpush1.bf16.msra.mxu0 %v3340
        %4132 = vmatprep.subr.bf16.mxu0 %v3349
        %4133 = vmatpush1.bf16.msra.mxu0 %v3348
        %4134 = vmatprep.subr.bf16.mxu0 %v3357
        %4135 = vmatpush1.bf16.msra.mxu0 %v3356
        %4136 = vmatprep.subr.bf16.mxu0 %v3365
        %4137 = vmatpush1.bf16.msra.mxu0 %v3364
        %4138 = vmatprep.subr.bf16.mxu0 %v3373
        %4139 = vmatpush1.bf16.msra.mxu0 %v3372
        %4140 = vmatprep.subr.bf16.mxu0 %v3381
        %4141 = vmatpush1.bf16.msra.mxu0 %v3380
        %4142 = vmatprep.subr.bf16.mxu0 %v3389
        %4143 = vmatpush1.bf16.msra.mxu0 %v3388
        %4144 = vmatprep.subr.bf16.mxu0 %v3397
        %4145 = vmatpush1.bf16.msra.mxu0 %v3396
        %4146 = vmatprep.subr.bf16.mxu0 %v3405
        %4147 = vmatpush1.bf16.msra.mxu0 %v3404
        %4148 = vmatprep.mubr.bf16.mxu0 %v2411
        %4149 = vmatmul.mubr.bf16.gmra.mrb[0].mxu0 %v2410
        %v4150 = vpop.f32.mrb[0].mxu0
        %v4151 = vadd.f32 %v2231, %v4150
        %v4152 = vpop.f32.mrb[0].mxu0
        %v4153 = vadd.f32 %v2235, %v4152
        %v4154 = vpop.f32.mrb[0].mxu0
        %v4155 = vadd.f32 %v2231, %v4154
        %v4156 = vpop.f32.mrb[0].mxu0
        %v4157 = vadd.f32 %v2235, %v4156
        %4158 = vmatprep.mubr.bf16.mxu0 %v2415
        %4159 = vmatmul.mubr.bf16.gmra.mrb[0].mxu0 %v2414
        %v4160 = vpop.f32.mrb[0].mxu0
        %v4161 = vadd.f32 %v2231, %v4160
        %v4162 = vpop.f32.mrb[0].mxu0
        %v4163 = vadd.f32 %v2235, %v4162
        %v4164 = vpop.f32.mrb[0].mxu0
        %v4165 = vadd.f32 %v2231, %v4164
        %v4166 = vpop.f32.mrb[0].mxu0
        %v4167 = vadd.f32 %v2235, %v4166
        %4168 = vmatprep.mubr.bf16.mxu0 %v2419
        %4169 = vmatmul.mubr.bf16.gmra.mrb[0].mxu0 %v2418
        %v4170 = vpop.f32.mrb[0].mxu0
        %v4171 = vadd.f32 %v2231, %v4170
        %v4172 = vpop.f32.mrb[0].mxu0
        %v4173 = vadd.f32 %v2235, %v4172
        %v4174 = vpop.f32.mrb[0].mxu0
        %v4175 = vadd.f32 %v2231, %v4174
        %v4176 = vpop.f32.mrb[0].mxu0
        %v4177 = vadd.f32 %v2235, %v4176
        %4178 = vmatprep.mubr.bf16.mxu0 %v2423
        %4179 = vmatmul.mubr.bf16.gmra.mrb[0].mxu0 %v2422
        %v4180 = vpop.f32.mrb[0].mxu0
        %v4181 = vadd.f32 %v2231, %v4180
        %v4182 = vpop.f32.mrb[0].mxu0
        %v4183 = vadd.f32 %v2235, %v4182
        %v4184 = vpop.f32.mrb[0].mxu0
        %v4185 = vadd.f32 %v2231, %v4184
        %v4186 = vpop.f32.mrb[0].mxu0
        %v4187 = vadd.f32 %v2235, %v4186
        %4188 = vmatprep.mubr.bf16.mxu0 %v2427
        %4189 = vmatmul.mubr.bf16.gmra.mrb[0].mxu0 %v2426
        %v4190 = vpop.f32.mrb[0].mxu0
        %v4191 = vadd.f32 %v2231, %v4190
        %v4192 = vpop.f32.mrb[0].mxu0
        %v4193 = vadd.f32 %v2235, %v4192
        %v4194 = vpop.f32.mrb[0].mxu0
        %v4195 = vadd.f32 %v2231, %v4194
        %v4196 = vpop.f32.mrb[0].mxu0
        %v4197 = vadd.f32 %v2235, %v4196
        %4198 = vmatprep.mubr.bf16.mxu0 %v2431
        %4199 = vmatmul.mubr.bf16.gmra.mrb[0].mxu0 %v2430
        %v4200 = vpop.f32.mrb[0].mxu0
        %v4201 = vadd.f32 %v2231, %v4200
        %v4202 = vpop.f32.mrb[0].mxu0
        %v4203 = vadd.f32 %v2235, %v4202
        %v4204 = vpop.f32.mrb[0].mxu0
        %v4205 = vadd.f32 %v2231, %v4204
        %v4206 = vpop.f32.mrb[0].mxu0
        %v4207 = vadd.f32 %v2235, %v4206
        %4208 = vmatprep.mubr.bf16.mxu0 %v2435
        %4209 = vmatmul.mubr.bf16.gmra.mrb[0].mxu0 %v2434
        %v4210 = vpop.f32.mrb[0].mxu0
        %v4211 = vadd.f32 %v2231, %v4210
        %v4212 = vpop.f32.mrb[0].mxu0
        %v4213 = vadd.f32 %v2235, %v4212
        %v4214 = vpop.f32.mrb[0].mxu0
        %v4215 = vadd.f32 %v2231, %v4214
        %v4216 = vpop.f32.mrb[0].mxu0
        %v4217 = vadd.f32 %v2235, %v4216
        %4218 = vmatprep.mubr.bf16.mxu0 %v2439
        %4219 = vmatmul.mubr.bf16.gmra.mrb[0].mxu0 %v2438
        %v4220 = vpop.f32.mrb[0].mxu0
        %v4221 = vadd.f32 %v2231, %v4220
        %v4222 = vpop.f32.mrb[0].mxu0
        %v4223 = vadd.f32 %v2235, %v4222
        %v4224 = vpop.f32.mrb[0].mxu0
        %v4225 = vadd.f32 %v2231, %v4224
        %v4226 = vpop.f32.mrb[0].mxu0
        %v4227 = vadd.f32 %v2235, %v4226
        %4228 = vmatprep.mubr.bf16.mxu0 %v2443
        %4229 = vmatmul.mubr.bf16.gmra.mrb[0].mxu0 %v2442
        %v4230 = vpop.f32.mrb[0].mxu0
        %v4231 = vadd.f32 %v2231, %v4230
        %v4232 = vpop.f32.mrb[0].mxu0
        %v4233 = vadd.f32 %v2235, %v4232
        %v4234 = vpop.f32.mrb[0].mxu0
        %v4235 = vadd.f32 %v2231, %v4234
        %v4236 = vpop.f32.mrb[0].mxu0
        %v4237 = vadd.f32 %v2235, %v4236
        %4238 = vmatprep.mubr.bf16.mxu0 %v2447
        %4239 = vmatmul.mubr.bf16.gmra.mrb[0].mxu0 %v2446
        %v4240 = vpop.f32.mrb[0].mxu0
        %v4241 = vadd.f32 %v2231, %v4240
        %v4242 = vpop.f32.mrb[0].mxu0
        %v4243 = vadd.f32 %v2235, %v4242
        %v4244 = vpop.f32.mrb[0].mxu0
        %v4245 = vadd.f32 %v2231, %v4244
        %v4246 = vpop.f32.mrb[0].mxu0
        %v4247 = vadd.f32 %v2235, %v4246
        %4248 = vmatprep.mubr.bf16.mxu0 %v2451
        %4249 = vmatmul.mubr.bf16.gmra.mrb[0].mxu0 %v2450
        %v4250 = vpop.f32.mrb[0].mxu0
        %v4251 = vadd.f32 %v2231, %v4250
        %v4252 = vpop.f32.mrb[0].mxu0
        %v4253 = vadd.f32 %v2235, %v4252
        %v4254 = vpop.f32.mrb[0].mxu0
        %v4255 = vadd.f32 %v2231, %v4254
        %v4256 = vpop.f32.mrb[0].mxu0
        %v4257 = vadd.f32 %v2235, %v4256
        %4258 = vmatprep.mubr.bf16.mxu0 %v2455
        %4259 = vmatmul.mubr.bf16.gmra.mrb[0].mxu0 %v2454
        %v4260 = vpop.f32.mrb[0].mxu0
        %v4261 = vadd.f32 %v2231, %v4260
        %v4262 = vpop.f32.mrb[0].mxu0
        %v4263 = vadd.f32 %v2235, %v4262
        %v4264 = vpop.f32.mrb[0].mxu0
        %v4265 = vadd.f32 %v2231, %v4264
        %v4266 = vpop.f32.mrb[0].mxu0
        %v4267 = vadd.f32 %v2235, %v4266
        %4268 = vmatprep.mubr.bf16.mxu0 %v2459
        %4269 = vmatmul.mubr.bf16.gmra.mrb[0].mxu0 %v2458
        %v4270 = vpop.f32.mrb[0].mxu0
        %v4271 = vadd.f32 %v2231, %v4270
        %v4272 = vpop.f32.mrb[0].mxu0
        %v4273 = vadd.f32 %v2235, %v4272
        %v4274 = vpop.f32.mrb[0].mxu0
        %v4275 = vpop.f32.mrb[0].mxu0
        %4276 = vdwg.mxu0
        %4277 = vmatprep.subr.bf16.mxu0 %v3413
        %4278 = vmatpush1.bf16.msra.mxu0 %v3412
        %4279 = vmatprep.subr.bf16.mxu0 %v3421
        %4280 = vmatpush1.bf16.msra.mxu0 %v3420
        %4281 = vmatprep.subr.bf16.mxu0 %v3429
        %4282 = vmatpush1.bf16.msra.mxu0 %v3428
        %4283 = vmatprep.subr.bf16.mxu0 %v3437
        %4284 = vmatpush1.bf16.msra.mxu0 %v3436
        %4285 = vmatprep.subr.bf16.mxu0 %v3445
        %4286 = vmatpush1.bf16.msra.mxu0 %v3444
        %4287 = vmatprep.subr.bf16.mxu0 %v3453
        %4288 = vmatpush1.bf16.msra.mxu0 %v3452
        %4289 = vmatprep.subr.bf16.mxu0 %v3461
        %4290 = vmatpush1.bf16.msra.mxu0 %v3460
        %4291 = vmatprep.subr.bf16.mxu0 %v3469
        %4292 = vmatpush1.bf16.msra.mxu0 %v3468
        %4293 = vmatprep.subr.bf16.mxu0 %v3477
        %4294 = vmatpush1.bf16.msra.mxu0 %v3476
        %4295 = vmatprep.subr.bf16.mxu0 %v3485
        %4296 = vmatpush1.bf16.msra.mxu0 %v3484
        %4297 = vmatprep.subr.bf16.mxu0 %v3493
        %4298 = vmatpush1.bf16.msra.mxu0 %v3492
        %4299 = vmatprep.subr.bf16.mxu0 %v3501
        %4300 = vmatpush1.bf16.msra.mxu0 %v3500
        %4301 = vmatprep.subr.bf16.mxu0 %v3509
        %4302 = vmatpush1.bf16.msra.mxu0 %v3508
        %4303 = vmatprep.subr.bf16.mxu0 %v3517
        %4304 = vmatpush1.bf16.msra.mxu0 %v3516
        %4305 = vmatprep.subr.bf16.mxu0 %v3525
        %4306 = vmatpush1.bf16.msra.mxu0 %v3524
        %4307 = vmatprep.subr.bf16.mxu0 %v3533
        %4308 = vmatpush1.bf16.msra.mxu0 %v3532
        %4309 = vmatprep.mubr.bf16.mxu0 %v2413
        %4310 = vmatmul.mubr.bf16.gmra.mrb[0].mxu0 %v2412
        %v4311 = vpop.f32.mrb[0].mxu0
        %v4312 = vadd.f32 %v4151, %v4311
        %v4313 = vpop.f32.mrb[0].mxu0
        %v4314 = vadd.f32 %v4153, %v4313
        %v4315 = vpop.f32.mrb[0].mxu0
        %v4316 = vadd.f32 %v4155, %v4315
        %v4317 = vpop.f32.mrb[0].mxu0
        %v4318 = vadd.f32 %v4157, %v4317
        %4319 = vmatprep.mubr.bf16.mxu0 %v2417
        %4320 = vmatmul.mubr.bf16.gmra.mrb[0].mxu0 %v2416
        %v4321 = vpop.f32.mrb[0].mxu0
        %v4322 = vadd.f32 %v4161, %v4321
        %v4323 = vpop.f32.mrb[0].mxu0
        %v4324 = vadd.f32 %v4163, %v4323
        %v4325 = vpop.f32.mrb[0].mxu0
        %v4326 = vadd.f32 %v4165, %v4325
        %v4327 = vpop.f32.mrb[0].mxu0
        %v4328 = vadd.f32 %v4167, %v4327
        %4329 = vmatprep.mubr.bf16.mxu0 %v2421
        %4330 = vmatmul.mubr.bf16.gmra.mrb[0].mxu0 %v2420
        %v4331 = vpop.f32.mrb[0].mxu0
        %v4332 = vadd.f32 %v4171, %v4331
        %v4333 = vpop.f32.mrb[0].mxu0
        %v4334 = vadd.f32 %v4173, %v4333
        %v4335 = vpop.f32.mrb[0].mxu0
        %v4336 = vadd.f32 %v4175, %v4335
        %v4337 = vpop.f32.mrb[0].mxu0
        %v4338 = vadd.f32 %v4177, %v4337
        %4339 = vmatprep.mubr.bf16.mxu0 %v2425
        %4340 = vmatmul.mubr.bf16.gmra.mrb[0].mxu0 %v2424
        %v4341 = vpop.f32.mrb[0].mxu0
        %v4342 = vadd.f32 %v4181, %v4341
        %v4343 = vpop.f32.mrb[0].mxu0
        %v4344 = vadd.f32 %v4183, %v4343
        %v4345 = vpop.f32.mrb[0].mxu0
        %v4346 = vadd.f32 %v4185, %v4345
        %v4347 = vpop.f32.mrb[0].mxu0
        %v4348 = vadd.f32 %v4187, %v4347
        %4349 = vmatprep.mubr.bf16.mxu0 %v2429
        %4350 = vmatmul.mubr.bf16.gmra.mrb[0].mxu0 %v2428
        %v4351 = vpop.f32.mrb[0].mxu0
        %v4352 = vadd.f32 %v4191, %v4351
        %v4353 = vpop.f32.mrb[0].mxu0
        %v4354 = vadd.f32 %v4193, %v4353
        %v4355 = vpop.f32.mrb[0].mxu0
        %v4356 = vadd.f32 %v4195, %v4355
        %v4357 = vpop.f32.mrb[0].mxu0
        %v4358 = vadd.f32 %v4197, %v4357
        %4359 = vmatprep.mubr.bf16.mxu0 %v2433
        %4360 = vmatmul.mubr.bf16.gmra.mrb[0].mxu0 %v2432
        %v4361 = vpop.f32.mrb[0].mxu0
        %v4362 = vadd.f32 %v4201, %v4361
        %v4363 = vpop.f32.mrb[0].mxu0
        %v4364 = vadd.f32 %v4203, %v4363
        %v4365 = vpop.f32.mrb[0].mxu0
        %v4366 = vadd.f32 %v4205, %v4365
        %v4367 = vpop.f32.mrb[0].mxu0
        %v4368 = vadd.f32 %v4207, %v4367
        %4369 = vmatprep.mubr.bf16.mxu0 %v2437
        %4370 = vmatmul.mubr.bf16.gmra.mrb[0].mxu0 %v2436
        %v4371 = vpop.f32.mrb[0].mxu0
        %v4372 = vadd.f32 %v4211, %v4371
        %v4373 = vpop.f32.mrb[0].mxu0
        %v4374 = vadd.f32 %v4213, %v4373
        %v4375 = vpop.f32.mrb[0].mxu0
        %v4376 = vadd.f32 %v4215, %v4375
        %v4377 = vpop.f32.mrb[0].mxu0
        %v4378 = vadd.f32 %v4217, %v4377
        %4379 = vmatprep.mubr.bf16.mxu0 %v2441
        %4380 = vmatmul.mubr.bf16.gmra.mrb[0].mxu0 %v2440
        %v4381 = vpop.f32.mrb[0].mxu0
        %v4382 = vadd.f32 %v4221, %v4381
        %v4383 = vpop.f32.mrb[0].mxu0
        %v4384 = vadd.f32 %v4223, %v4383
        %v4385 = vpop.f32.mrb[0].mxu0
        %v4386 = vadd.f32 %v4225, %v4385
        %v4387 = vpop.f32.mrb[0].mxu0
        %v4388 = vadd.f32 %v4227, %v4387
        %4389 = vmatprep.mubr.bf16.mxu0 %v2445
        %4390 = vmatmul.mubr.bf16.gmra.mrb[0].mxu0 %v2444
        %v4391 = vpop.f32.mrb[0].mxu0
        %v4392 = vadd.f32 %v4231, %v4391
        %v4393 = vpop.f32.mrb[0].mxu0
        %v4394 = vadd.f32 %v4233, %v4393
        %v4395 = vpop.f32.mrb[0].mxu0
        %v4396 = vadd.f32 %v4235, %v4395
        %v4397 = vpop.f32.mrb[0].mxu0
        %v4398 = vadd.f32 %v4237, %v4397
        %4399 = vmatprep.mubr.bf16.mxu0 %v2449
        %4400 = vmatmul.mubr.bf16.gmra.mrb[0].mxu0 %v2448
        %v4401 = vpop.f32.mrb[0].mxu0
        %v4402 = vadd.f32 %v4241, %v4401
        %v4403 = vpop.f32.mrb[0].mxu0
        %v4404 = vadd.f32 %v4243, %v4403
        %v4405 = vpop.f32.mrb[0].mxu0
        %v4406 = vadd.f32 %v4245, %v4405
        %v4407 = vpop.f32.mrb[0].mxu0
        %v4408 = vadd.f32 %v4247, %v4407
        %4409 = vmatprep.mubr.bf16.mxu0 %v2453
        %4410 = vmatmul.mubr.bf16.gmra.mrb[0].mxu0 %v2452
        %v4411 = vpop.f32.mrb[0].mxu0
        %v4412 = vadd.f32 %v4251, %v4411
        %v4413 = vpop.f32.mrb[0].mxu0
        %v4414 = vadd.f32 %v4253, %v4413
        %v4415 = vpop.f32.mrb[0].mxu0
        %v4416 = vadd.f32 %v4255, %v4415
        %v4417 = vpop.f32.mrb[0].mxu0
        %v4418 = vadd.f32 %v4257, %v4417
        %4419 = vmatprep.mubr.bf16.mxu0 %v2457
        %4420 = vmatmul.mubr.bf16.gmra.mrb[0].mxu0 %v2456
        %v4421 = vpop.f32.mrb[0].mxu0
        %v4422 = vadd.f32 %v4261, %v4421
        %v4423 = vpop.f32.mrb[0].mxu0
        %v4424 = vadd.f32 %v4263, %v4423
        %v4425 = vpop.f32.mrb[0].mxu0
        %v4426 = vadd.f32 %v4265, %v4425
        %v4427 = vpop.f32.mrb[0].mxu0
        %v4428 = vadd.f32 %v4267, %v4427
        %4429 = vmatprep.mubr.bf16.mxu0 %v2461
        %4430 = vmatmul.mubr.bf16.gmra.mrb[0].mxu0 %v2460
        %v4431 = vpop.f32.mrb[0].mxu0
        %v4432 = vadd.f32 %v4271, %v4431
        %v4433 = vpop.f32.mrb[0].mxu0
        %v4434 = vadd.f32 %v4273, %v4433
        %v4435 = vpop.f32.mrb[0].mxu0
        %v4436 = vpop.f32.mrb[0].mxu0
        %4437 = vdwg.mxu0
        %4438 = vmatprep.subr.bf16.mxu0 %v3287
        %4439 = vmatpush1.bf16.msra.mxu0 %v3286
        %4440 = vmatprep.subr.bf16.mxu0 %v3295
        %4441 = vmatpush1.bf16.msra.mxu0 %v3294
        %4442 = vmatprep.subr.bf16.mxu0 %v3303
        %4443 = vmatpush1.bf16.msra.mxu0 %v3302
        %4444 = vmatprep.subr.bf16.mxu0 %v3311
        %4445 = vmatpush1.bf16.msra.mxu0 %v3310
        %4446 = vmatprep.subr.bf16.mxu0 %v3319
        %4447 = vmatpush1.bf16.msra.mxu0 %v3318
        %4448 = vmatprep.subr.bf16.mxu0 %v3327
        %4449 = vmatpush1.bf16.msra.mxu0 %v3326
        %4450 = vmatprep.subr.bf16.mxu0 %v3335
        %4451 = vmatpush1.bf16.msra.mxu0 %v3334
        %4452 = vmatprep.subr.bf16.mxu0 %v3343
        %4453 = vmatpush1.bf16.msra.mxu0 %v3342
        %4454 = vmatprep.subr.bf16.mxu0 %v3351
        %4455 = vmatpush1.bf16.msra.mxu0 %v3350
        %4456 = vmatprep.subr.bf16.mxu0 %v3359
        %4457 = vmatpush1.bf16.msra.mxu0 %v3358
        %4458 = vmatprep.subr.bf16.mxu0 %v3367
        %4459 = vmatpush1.bf16.msra.mxu0 %v3366
        %4460 = vmatprep.subr.bf16.mxu0 %v3375
        %4461 = vmatpush1.bf16.msra.mxu0 %v3374
        %4462 = vmatprep.subr.bf16.mxu0 %v3383
        %4463 = vmatpush1.bf16.msra.mxu0 %v3382
        %4464 = vmatprep.subr.bf16.mxu0 %v3391
        %4465 = vmatpush1.bf16.msra.mxu0 %v3390
        %4466 = vmatprep.subr.bf16.mxu0 %v3399
        %4467 = vmatpush1.bf16.msra.mxu0 %v3398
        %4468 = vmatprep.subr.bf16.mxu0 %v3407
        %4469 = vmatpush1.bf16.msra.mxu0 %v3406
        %4470 = vmatprep.mubr.bf16.mxu0 %v2411
        %4471 = vmatmul.mubr.bf16.gmra.mrb[0].mxu0 %v2410
        %v4472 = vpop.f32.mrb[0].mxu0
        %v4473 = vadd.f32 %v2239, %v4472
        %v4474 = vpop.f32.mrb[0].mxu0
        %v4475 = vadd.f32 %v2243, %v4474
        %v4476 = vpop.f32.mrb[0].mxu0
        %v4477 = vadd.f32 %v2239, %v4476
        %v4478 = vpop.f32.mrb[0].mxu0
        %v4479 = vadd.f32 %v2243, %v4478
        %4480 = vmatprep.mubr.bf16.mxu0 %v2415
        %4481 = vmatmul.mubr.bf16.gmra.mrb[0].mxu0 %v2414
        %v4482 = vpop.f32.mrb[0].mxu0
        %v4483 = vadd.f32 %v2239, %v4482
        %v4484 = vpop.f32.mrb[0].mxu0
        %v4485 = vadd.f32 %v2243, %v4484
        %v4486 = vpop.f32.mrb[0].mxu0
        %v4487 = vadd.f32 %v2239, %v4486
        %v4488 = vpop.f32.mrb[0].mxu0
        %v4489 = vadd.f32 %v2243, %v4488
        %4490 = vmatprep.mubr.bf16.mxu0 %v2419
        %4491 = vmatmul.mubr.bf16.gmra.mrb[0].mxu0 %v2418
        %v4492 = vpop.f32.mrb[0].mxu0
        %v4493 = vadd.f32 %v2239, %v4492
        %v4494 = vpop.f32.mrb[0].mxu0
        %v4495 = vadd.f32 %v2243, %v4494
        %v4496 = vpop.f32.mrb[0].mxu0
        %v4497 = vadd.f32 %v2239, %v4496
        %v4498 = vpop.f32.mrb[0].mxu0
        %v4499 = vadd.f32 %v2243, %v4498
        %4500 = vmatprep.mubr.bf16.mxu0 %v2423
        %4501 = vmatmul.mubr.bf16.gmra.mrb[0].mxu0 %v2422
        %v4502 = vpop.f32.mrb[0].mxu0
        %v4503 = vadd.f32 %v2239, %v4502
        %v4504 = vpop.f32.mrb[0].mxu0
        %v4505 = vadd.f32 %v2243, %v4504
        %v4506 = vpop.f32.mrb[0].mxu0
        %v4507 = vadd.f32 %v2239, %v4506
        %v4508 = vpop.f32.mrb[0].mxu0
        %v4509 = vadd.f32 %v2243, %v4508
        %4510 = vmatprep.mubr.bf16.mxu0 %v2427
        %4511 = vmatmul.mubr.bf16.gmra.mrb[0].mxu0 %v2426
        %v4512 = vpop.f32.mrb[0].mxu0
        %v4513 = vadd.f32 %v2239, %v4512
        %v4514 = vpop.f32.mrb[0].mxu0
        %v4515 = vadd.f32 %v2243, %v4514
        %v4516 = vpop.f32.mrb[0].mxu0
        %v4517 = vadd.f32 %v2239, %v4516
        %v4518 = vpop.f32.mrb[0].mxu0
        %v4519 = vadd.f32 %v2243, %v4518
        %4520 = vmatprep.mubr.bf16.mxu0 %v2431
        %4521 = vmatmul.mubr.bf16.gmra.mrb[0].mxu0 %v2430
        %v4522 = vpop.f32.mrb[0].mxu0
        %v4523 = vadd.f32 %v2239, %v4522
        %v4524 = vpop.f32.mrb[0].mxu0
        %v4525 = vadd.f32 %v2243, %v4524
        %v4526 = vpop.f32.mrb[0].mxu0
        %v4527 = vadd.f32 %v2239, %v4526
        %v4528 = vpop.f32.mrb[0].mxu0
        %v4529 = vadd.f32 %v2243, %v4528
        %4530 = vmatprep.mubr.bf16.mxu0 %v2435
        %4531 = vmatmul.mubr.bf16.gmra.mrb[0].mxu0 %v2434
        %v4532 = vpop.f32.mrb[0].mxu0
        %v4533 = vadd.f32 %v2239, %v4532
        %v4534 = vpop.f32.mrb[0].mxu0
        %v4535 = vadd.f32 %v2243, %v4534
        %v4536 = vpop.f32.mrb[0].mxu0
        %v4537 = vadd.f32 %v2239, %v4536
        %v4538 = vpop.f32.mrb[0].mxu0
        %v4539 = vadd.f32 %v2243, %v4538
        %4540 = vmatprep.mubr.bf16.mxu0 %v2439
        %4541 = vmatmul.mubr.bf16.gmra.mrb[0].mxu0 %v2438
        %v4542 = vpop.f32.mrb[0].mxu0
        %v4543 = vadd.f32 %v2239, %v4542
        %v4544 = vpop.f32.mrb[0].mxu0
        %v4545 = vadd.f32 %v2243, %v4544
        %v4546 = vpop.f32.mrb[0].mxu0
        %v4547 = vadd.f32 %v2239, %v4546
        %v4548 = vpop.f32.mrb[0].mxu0
        %v4549 = vadd.f32 %v2243, %v4548
        %4550 = vmatprep.mubr.bf16.mxu0 %v2443
        %4551 = vmatmul.mubr.bf16.gmra.mrb[0].mxu0 %v2442
        %v4552 = vpop.f32.mrb[0].mxu0
        %v4553 = vadd.f32 %v2239, %v4552
        %v4554 = vpop.f32.mrb[0].mxu0
        %v4555 = vadd.f32 %v2243, %v4554
        %v4556 = vpop.f32.mrb[0].mxu0
        %v4557 = vadd.f32 %v2239, %v4556
        %v4558 = vpop.f32.mrb[0].mxu0
        %v4559 = vadd.f32 %v2243, %v4558
        %4560 = vmatprep.mubr.bf16.mxu0 %v2447
        %4561 = vmatmul.mubr.bf16.gmra.mrb[0].mxu0 %v2446
        %v4562 = vpop.f32.mrb[0].mxu0
        %v4563 = vadd.f32 %v2239, %v4562
        %v4564 = vpop.f32.mrb[0].mxu0
        %v4565 = vadd.f32 %v2243, %v4564
        %v4566 = vpop.f32.mrb[0].mxu0
        %v4567 = vadd.f32 %v2239, %v4566
        %v4568 = vpop.f32.mrb[0].mxu0
        %v4569 = vadd.f32 %v2243, %v4568
        %4570 = vmatprep.mubr.bf16.mxu0 %v2451
        %4571 = vmatmul.mubr.bf16.gmra.mrb[0].mxu0 %v2450
        %v4572 = vpop.f32.mrb[0].mxu0
        %v4573 = vadd.f32 %v2239, %v4572
        %v4574 = vpop.f32.mrb[0].mxu0
        %v4575 = vadd.f32 %v2243, %v4574
        %v4576 = vpop.f32.mrb[0].mxu0
        %v4577 = vadd.f32 %v2239, %v4576
        %v4578 = vpop.f32.mrb[0].mxu0
        %v4579 = vadd.f32 %v2243, %v4578
        %4580 = vmatprep.mubr.bf16.mxu0 %v2455
        %4581 = vmatmul.mubr.bf16.gmra.mrb[0].mxu0 %v2454
        %v4582 = vpop.f32.mrb[0].mxu0
        %v4583 = vadd.f32 %v2239, %v4582
        %v4584 = vpop.f32.mrb[0].mxu0
        %v4585 = vadd.f32 %v2243, %v4584
        %v4586 = vpop.f32.mrb[0].mxu0
        %v4587 = vadd.f32 %v2239, %v4586
        %v4588 = vpop.f32.mrb[0].mxu0
        %v4589 = vadd.f32 %v2243, %v4588
        %4590 = vmatprep.mubr.bf16.mxu0 %v2459
        %4591 = vmatmul.mubr.bf16.gmra.mrb[0].mxu0 %v2458
        %v4592 = vpop.f32.mrb[0].mxu0
        %v4593 = vadd.f32 %v2239, %v4592
        %v4594 = vpop.f32.mrb[0].mxu0
        %v4595 = vadd.f32 %v2243, %v4594
        %v4596 = vpop.f32.mrb[0].mxu0
        %v4597 = vpop.f32.mrb[0].mxu0
        %4598 = vdwg.mxu0
        %4599 = vmatprep.subr.bf16.mxu0 %v3415
        %4600 = vmatpush1.bf16.msra.mxu0 %v3414
        %4601 = vmatprep.subr.bf16.mxu0 %v3423
        %4602 = vmatpush1.bf16.msra.mxu0 %v3422
        %4603 = vmatprep.subr.bf16.mxu0 %v3431
        %4604 = vmatpush1.bf16.msra.mxu0 %v3430
        %4605 = vmatprep.subr.bf16.mxu0 %v3439
        %4606 = vmatpush1.bf16.msra.mxu0 %v3438
        %4607 = vmatprep.subr.bf16.mxu0 %v3447
        %4608 = vmatpush1.bf16.msra.mxu0 %v3446
        %4609 = vmatprep.subr.bf16.mxu0 %v3455
        %4610 = vmatpush1.bf16.msra.mxu0 %v3454
        %4611 = vmatprep.subr.bf16.mxu0 %v3463
        %4612 = vmatpush1.bf16.msra.mxu0 %v3462
        %4613 = vmatprep.subr.bf16.mxu0 %v3471
        %4614 = vmatpush1.bf16.msra.mxu0 %v3470
        %4615 = vmatprep.subr.bf16.mxu0 %v3479
        %4616 = vmatpush1.bf16.msra.mxu0 %v3478
        %4617 = vmatprep.subr.bf16.mxu0 %v3487
        %4618 = vmatpush1.bf16.msra.mxu0 %v3486
        %4619 = vmatprep.subr.bf16.mxu0 %v3495
        %4620 = vmatpush1.bf16.msra.mxu0 %v3494
        %4621 = vmatprep.subr.bf16.mxu0 %v3503
        %4622 = vmatpush1.bf16.msra.mxu0 %v3502
        %4623 = vmatprep.subr.bf16.mxu0 %v3511
        %4624 = vmatpush1.bf16.msra.mxu0 %v3510
        %4625 = vmatprep.subr.bf16.mxu0 %v3519
        %4626 = vmatpush1.bf16.msra.mxu0 %v3518
        %4627 = vmatprep.subr.bf16.mxu0 %v3527
        %4628 = vmatpush1.bf16.msra.mxu0 %v3526
        %4629 = vmatprep.subr.bf16.mxu0 %v3535
        %4630 = vmatpush1.bf16.msra.mxu0 %v3534
        %4631 = vmatprep.mubr.bf16.mxu0 %v2413
        %4632 = vmatmul.mubr.bf16.gmra.mrb[0].mxu0 %v2412
        %v4633 = vpop.f32.mrb[0].mxu0
        %v4634 = vadd.f32 %v4473, %v4633
        %v4635 = vpop.f32.mrb[0].mxu0
        %v4636 = vadd.f32 %v4475, %v4635
        %v4637 = vpop.f32.mrb[0].mxu0
        %v4638 = vadd.f32 %v4477, %v4637
        %v4639 = vpop.f32.mrb[0].mxu0
        %v4640 = vadd.f32 %v4479, %v4639
        %4641 = vmatprep.mubr.bf16.mxu0 %v2417
        %4642 = vmatmul.mubr.bf16.gmra.mrb[0].mxu0 %v2416
        %v4643 = vpop.f32.mrb[0].mxu0
        %v4644 = vadd.f32 %v4483, %v4643
        %v4645 = vpop.f32.mrb[0].mxu0
        %v4646 = vadd.f32 %v4485, %v4645
        %v4647 = vpop.f32.mrb[0].mxu0
        %v4648 = vadd.f32 %v4487, %v4647
        %v4649 = vpop.f32.mrb[0].mxu0
        %v4650 = vadd.f32 %v4489, %v4649
        %4651 = vmatprep.mubr.bf16.mxu0 %v2421
        %4652 = vmatmul.mubr.bf16.gmra.mrb[0].mxu0 %v2420
        %v4653 = vpop.f32.mrb[0].mxu0
        %v4654 = vadd.f32 %v4493, %v4653
        %v4655 = vpop.f32.mrb[0].mxu0
        %v4656 = vadd.f32 %v4495, %v4655
        %v4657 = vpop.f32.mrb[0].mxu0
        %v4658 = vadd.f32 %v4497, %v4657
        %v4659 = vpop.f32.mrb[0].mxu0
        %v4660 = vadd.f32 %v4499, %v4659
        %4661 = vmatprep.mubr.bf16.mxu0 %v2425
        %4662 = vmatmul.mubr.bf16.gmra.mrb[0].mxu0 %v2424
        %v4663 = vpop.f32.mrb[0].mxu0
        %v4664 = vadd.f32 %v4503, %v4663
        %v4665 = vpop.f32.mrb[0].mxu0
        %v4666 = vadd.f32 %v4505, %v4665
        %v4667 = vpop.f32.mrb[0].mxu0
        %v4668 = vadd.f32 %v4507, %v4667
        %v4669 = vpop.f32.mrb[0].mxu0
        %v4670 = vadd.f32 %v4509, %v4669
        %4671 = vmatprep.mubr.bf16.mxu0 %v2429
        %4672 = vmatmul.mubr.bf16.gmra.mrb[0].mxu0 %v2428
        %v4673 = vpop.f32.mrb[0].mxu0
        %v4674 = vadd.f32 %v4513, %v4673
        %v4675 = vpop.f32.mrb[0].mxu0
        %v4676 = vadd.f32 %v4515, %v4675
        %v4677 = vpop.f32.mrb[0].mxu0
        %v4678 = vadd.f32 %v4517, %v4677
        %v4679 = vpop.f32.mrb[0].mxu0
        %v4680 = vadd.f32 %v4519, %v4679
        %4681 = vmatprep.mubr.bf16.mxu0 %v2433
        %4682 = vmatmul.mubr.bf16.gmra.mrb[0].mxu0 %v2432
        %v4683 = vpop.f32.mrb[0].mxu0
        %v4684 = vadd.f32 %v4523, %v4683
        %v4685 = vpop.f32.mrb[0].mxu0
        %v4686 = vadd.f32 %v4525, %v4685
        %v4687 = vpop.f32.mrb[0].mxu0
        %v4688 = vadd.f32 %v4527, %v4687
        %v4689 = vpop.f32.mrb[0].mxu0
        %v4690 = vadd.f32 %v4529, %v4689
        %4691 = vmatprep.mubr.bf16.mxu0 %v2437
        %4692 = vmatmul.mubr.bf16.gmra.mrb[0].mxu0 %v2436
        %v4693 = vpop.f32.mrb[0].mxu0
        %v4694 = vadd.f32 %v4533, %v4693
        %v4695 = vpop.f32.mrb[0].mxu0
        %v4696 = vadd.f32 %v4535, %v4695
        %v4697 = vpop.f32.mrb[0].mxu0
        %v4698 = vadd.f32 %v4537, %v4697
        %v4699 = vpop.f32.mrb[0].mxu0
        %v4700 = vadd.f32 %v4539, %v4699
        %4701 = vmatprep.mubr.bf16.mxu0 %v2441
        %4702 = vmatmul.mubr.bf16.gmra.mrb[0].mxu0 %v2440
        %v4703 = vpop.f32.mrb[0].mxu0
        %v4704 = vadd.f32 %v4543, %v4703
        %v4705 = vpop.f32.mrb[0].mxu0
        %v4706 = vadd.f32 %v4545, %v4705
        %v4707 = vpop.f32.mrb[0].mxu0
        %v4708 = vadd.f32 %v4547, %v4707
        %v4709 = vpop.f32.mrb[0].mxu0
        %v4710 = vadd.f32 %v4549, %v4709
        %4711 = vmatprep.mubr.bf16.mxu0 %v2445
        %4712 = vmatmul.mubr.bf16.gmra.mrb[0].mxu0 %v2444
        %v4713 = vpop.f32.mrb[0].mxu0
        %v4714 = vadd.f32 %v4553, %v4713
        %v4715 = vpop.f32.mrb[0].mxu0
        %v4716 = vadd.f32 %v4555, %v4715
        %v4717 = vpop.f32.mrb[0].mxu0
        %v4718 = vadd.f32 %v4557, %v4717
        %v4719 = vpop.f32.mrb[0].mxu0
        %v4720 = vadd.f32 %v4559, %v4719
        %4721 = vmatprep.mubr.bf16.mxu0 %v2449
        %4722 = vmatmul.mubr.bf16.gmra.mrb[0].mxu0 %v2448
        %v4723 = vpop.f32.mrb[0].mxu0
        %v4724 = vadd.f32 %v4563, %v4723
        %v4725 = vpop.f32.mrb[0].mxu0
        %v4726 = vadd.f32 %v4565, %v4725
        %v4727 = vpop.f32.mrb[0].mxu0
        %v4728 = vadd.f32 %v4567, %v4727
        %v4729 = vpop.f32.mrb[0].mxu0
        %v4730 = vadd.f32 %v4569, %v4729
        %4731 = vmatprep.mubr.bf16.mxu0 %v2453
        %4732 = vmatmul.mubr.bf16.gmra.mrb[0].mxu0 %v2452
        %v4733 = vpop.f32.mrb[0].mxu0
        %v4734 = vadd.f32 %v4573, %v4733
        %v4735 = vpop.f32.mrb[0].mxu0
        %v4736 = vadd.f32 %v4575, %v4735
        %v4737 = vpop.f32.mrb[0].mxu0
        %v4738 = vadd.f32 %v4577, %v4737
        %v4739 = vpop.f32.mrb[0].mxu0
        %v4740 = vadd.f32 %v4579, %v4739
        %4741 = vmatprep.mubr.bf16.mxu0 %v2457
        %4742 = vmatmul.mubr.bf16.gmra.mrb[0].mxu0 %v2456
        %v4743 = vpop.f32.mrb[0].mxu0
        %v4744 = vadd.f32 %v4583, %v4743
        %v4745 = vpop.f32.mrb[0].mxu0
        %v4746 = vadd.f32 %v4585, %v4745
        %v4747 = vpop.f32.mrb[0].mxu0
        %v4748 = vadd.f32 %v4587, %v4747
        %v4749 = vpop.f32.mrb[0].mxu0
        %v4750 = vadd.f32 %v4589, %v4749
        %4751 = vmatprep.mubr.bf16.mxu0 %v2461
        %4752 = vmatmul.mubr.bf16.gmra.mrb[0].mxu0 %v2460
        %v4753 = vpop.f32.mrb[0].mxu0
        %v4754 = vadd.f32 %v4593, %v4753
        %v4755 = vpop.f32.mrb[0].mxu0
        %v4756 = vadd.f32 %v4595, %v4755
        %v4757 = vpop.f32.mrb[0].mxu0
        %v4758 = vpop.f32.mrb[0].mxu0
        %4759 = vdwg.mxu0
        %4760 = vmatprep.subr.bf16.mxu0 %v3289
        %4761 = vmatpush1.bf16.msra.mxu0 %v3288
        %4762 = vmatprep.subr.bf16.mxu0 %v3297
        %4763 = vmatpush1.bf16.msra.mxu0 %v3296
        %4764 = vmatprep.subr.bf16.mxu0 %v3305
        %4765 = vmatpush1.bf16.msra.mxu0 %v3304
        %4766 = vmatprep.subr.bf16.mxu0 %v3313
        %4767 = vmatpush1.bf16.msra.mxu0 %v3312
        %4768 = vmatprep.subr.bf16.mxu0 %v3321
        %4769 = vmatpush1.bf16.msra.mxu0 %v3320
        %4770 = vmatprep.subr.bf16.mxu0 %v3329
        %4771 = vmatpush1.bf16.msra.mxu0 %v3328
        %4772 = vmatprep.subr.bf16.mxu0 %v3337
        %4773 = vmatpush1.bf16.msra.mxu0 %v3336
        %4774 = vmatprep.subr.bf16.mxu0 %v3345
        %4775 = vmatpush1.bf16.msra.mxu0 %v3344
        %4776 = vmatprep.subr.bf16.mxu0 %v3353
        %4777 = vmatpush1.bf16.msra.mxu0 %v3352
        %4778 = vmatprep.subr.bf16.mxu0 %v3361
        %4779 = vmatpush1.bf16.msra.mxu0 %v3360
        %4780 = vmatprep.subr.bf16.mxu0 %v3369
        %4781 = vmatpush1.bf16.msra.mxu0 %v3368
        %4782 = vmatprep.subr.bf16.mxu0 %v3377
        %4783 = vmatpush1.bf16.msra.mxu0 %v3376
        %4784 = vmatprep.subr.bf16.mxu0 %v3385
        %4785 = vmatpush1.bf16.msra.mxu0 %v3384
        %4786 = vmatprep.subr.bf16.mxu0 %v3393
        %4787 = vmatpush1.bf16.msra.mxu0 %v3392
        %4788 = vmatprep.subr.bf16.mxu0 %v3401
        %4789 = vmatpush1.bf16.msra.mxu0 %v3400
        %4790 = vmatprep.subr.bf16.mxu0 %v3409
        %4791 = vmatpush1.bf16.msra.mxu0 %v3408
        %4792 = vmatprep.mubr.bf16.mxu0 %v2411
        %4793 = vmatmul.mubr.bf16.gmra.mrb[0].mxu0 %v2410
        %v4794 = vpop.f32.mrb[0].mxu0
        %v4795 = vadd.f32 %v2247, %v4794
        %v4796 = vpop.f32.mrb[0].mxu0
        %v4797 = vadd.f32 %v2251, %v4796
        %v4798 = vpop.f32.mrb[0].mxu0
        %v4799 = vadd.f32 %v2247, %v4798
        %v4800 = vpop.f32.mrb[0].mxu0
        %v4801 = vadd.f32 %v2251, %v4800
        %4802 = vmatprep.mubr.bf16.mxu0 %v2415
        %4803 = vmatmul.mubr.bf16.gmra.mrb[0].mxu0 %v2414
        %v4804 = vpop.f32.mrb[0].mxu0
        %v4805 = vadd.f32 %v2247, %v4804
        %v4806 = vpop.f32.mrb[0].mxu0
        %v4807 = vadd.f32 %v2251, %v4806
        %v4808 = vpop.f32.mrb[0].mxu0
        %v4809 = vadd.f32 %v2247, %v4808
        %v4810 = vpop.f32.mrb[0].mxu0
        %v4811 = vadd.f32 %v2251, %v4810
        %4812 = vmatprep.mubr.bf16.mxu0 %v2419
        %4813 = vmatmul.mubr.bf16.gmra.mrb[0].mxu0 %v2418
        %v4814 = vpop.f32.mrb[0].mxu0
        %v4815 = vadd.f32 %v2247, %v4814
        %v4816 = vpop.f32.mrb[0].mxu0
        %v4817 = vadd.f32 %v2251, %v4816
        %v4818 = vpop.f32.mrb[0].mxu0
        %v4819 = vadd.f32 %v2247, %v4818
        %v4820 = vpop.f32.mrb[0].mxu0
        %v4821 = vadd.f32 %v2251, %v4820
        %4822 = vmatprep.mubr.bf16.mxu0 %v2423
        %4823 = vmatmul.mubr.bf16.gmra.mrb[0].mxu0 %v2422
        %v4824 = vpop.f32.mrb[0].mxu0
        %v4825 = vadd.f32 %v2247, %v4824
        %v4826 = vpop.f32.mrb[0].mxu0
        %v4827 = vadd.f32 %v2251, %v4826
        %v4828 = vpop.f32.mrb[0].mxu0
        %v4829 = vadd.f32 %v2247, %v4828
        %v4830 = vpop.f32.mrb[0].mxu0
        %v4831 = vadd.f32 %v2251, %v4830
        %4832 = vmatprep.mubr.bf16.mxu0 %v2427
        %4833 = vmatmul.mubr.bf16.gmra.mrb[0].mxu0 %v2426
        %v4834 = vpop.f32.mrb[0].mxu0
        %v4835 = vadd.f32 %v2247, %v4834
        %v4836 = vpop.f32.mrb[0].mxu0
        %v4837 = vadd.f32 %v2251, %v4836
        %v4838 = vpop.f32.mrb[0].mxu0
        %v4839 = vadd.f32 %v2247, %v4838
        %v4840 = vpop.f32.mrb[0].mxu0
        %v4841 = vadd.f32 %v2251, %v4840
        %4842 = vmatprep.mubr.bf16.mxu0 %v2431
        %4843 = vmatmul.mubr.bf16.gmra.mrb[0].mxu0 %v2430
        %v4844 = vpop.f32.mrb[0].mxu0
        %v4845 = vadd.f32 %v2247, %v4844
        %v4846 = vpop.f32.mrb[0].mxu0
        %v4847 = vadd.f32 %v2251, %v4846
        %v4848 = vpop.f32.mrb[0].mxu0
        %v4849 = vadd.f32 %v2247, %v4848
        %v4850 = vpop.f32.mrb[0].mxu0
        %v4851 = vadd.f32 %v2251, %v4850
        %4852 = vmatprep.mubr.bf16.mxu0 %v2435
        %4853 = vmatmul.mubr.bf16.gmra.mrb[0].mxu0 %v2434
        %v4854 = vpop.f32.mrb[0].mxu0
        %v4855 = vadd.f32 %v2247, %v4854
        %v4856 = vpop.f32.mrb[0].mxu0
        %v4857 = vadd.f32 %v2251, %v4856
        %v4858 = vpop.f32.mrb[0].mxu0
        %v4859 = vadd.f32 %v2247, %v4858
        %v4860 = vpop.f32.mrb[0].mxu0
        %v4861 = vadd.f32 %v2251, %v4860
        %4862 = vmatprep.mubr.bf16.mxu0 %v2439
        %4863 = vmatmul.mubr.bf16.gmra.mrb[0].mxu0 %v2438
        %v4864 = vpop.f32.mrb[0].mxu0
        %v4865 = vadd.f32 %v2247, %v4864
        %v4866 = vpop.f32.mrb[0].mxu0
        %v4867 = vadd.f32 %v2251, %v4866
        %v4868 = vpop.f32.mrb[0].mxu0
        %v4869 = vadd.f32 %v2247, %v4868
        %v4870 = vpop.f32.mrb[0].mxu0
        %v4871 = vadd.f32 %v2251, %v4870
        %4872 = vmatprep.mubr.bf16.mxu0 %v2443
        %4873 = vmatmul.mubr.bf16.gmra.mrb[0].mxu0 %v2442
        %v4874 = vpop.f32.mrb[0].mxu0
        %v4875 = vadd.f32 %v2247, %v4874
        %v4876 = vpop.f32.mrb[0].mxu0
        %v4877 = vadd.f32 %v2251, %v4876
        %v4878 = vpop.f32.mrb[0].mxu0
        %v4879 = vadd.f32 %v2247, %v4878
        %v4880 = vpop.f32.mrb[0].mxu0
        %v4881 = vadd.f32 %v2251, %v4880
        %4882 = vmatprep.mubr.bf16.mxu0 %v2447
        %4883 = vmatmul.mubr.bf16.gmra.mrb[0].mxu0 %v2446
        %v4884 = vpop.f32.mrb[0].mxu0
        %v4885 = vadd.f32 %v2247, %v4884
        %v4886 = vpop.f32.mrb[0].mxu0
        %v4887 = vadd.f32 %v2251, %v4886
        %v4888 = vpop.f32.mrb[0].mxu0
        %v4889 = vadd.f32 %v2247, %v4888
        %v4890 = vpop.f32.mrb[0].mxu0
        %v4891 = vadd.f32 %v2251, %v4890
        %4892 = vmatprep.mubr.bf16.mxu0 %v2451
        %4893 = vmatmul.mubr.bf16.gmra.mrb[0].mxu0 %v2450
        %v4894 = vpop.f32.mrb[0].mxu0
        %v4895 = vadd.f32 %v2247, %v4894
        %v4896 = vpop.f32.mrb[0].mxu0
        %v4897 = vadd.f32 %v2251, %v4896
        %v4898 = vpop.f32.mrb[0].mxu0
        %v4899 = vadd.f32 %v2247, %v4898
        %v4900 = vpop.f32.mrb[0].mxu0
        %v4901 = vadd.f32 %v2251, %v4900
        %4902 = vmatprep.mubr.bf16.mxu0 %v2455
        %4903 = vmatmul.mubr.bf16.gmra.mrb[0].mxu0 %v2454
        %v4904 = vpop.f32.mrb[0].mxu0
        %v4905 = vadd.f32 %v2247, %v4904
        %v4906 = vpop.f32.mrb[0].mxu0
        %v4907 = vadd.f32 %v2251, %v4906
        %v4908 = vpop.f32.mrb[0].mxu0
        %v4909 = vadd.f32 %v2247, %v4908
        %v4910 = vpop.f32.mrb[0].mxu0
        %v4911 = vadd.f32 %v2251, %v4910
        %4912 = vmatprep.mubr.bf16.mxu0 %v2459
        %4913 = vmatmul.mubr.bf16.gmra.mrb[0].mxu0 %v2458
        %v4914 = vpop.f32.mrb[0].mxu0
        %v4915 = vadd.f32 %v2247, %v4914
        %v4916 = vpop.f32.mrb[0].mxu0
        %v4917 = vadd.f32 %v2251, %v4916
        %v4918 = vpop.f32.mrb[0].mxu0
        %v4919 = vpop.f32.mrb[0].mxu0
        %4920 = vdwg.mxu0
        %4921 = vmatprep.subr.bf16.mxu0 %v3417
        %4922 = vmatpush1.bf16.msra.mxu0 %v3416
        %4923 = vmatprep.subr.bf16.mxu0 %v3425
        %4924 = vmatpush1.bf16.msra.mxu0 %v3424
        %4925 = vmatprep.subr.bf16.mxu0 %v3433
        %4926 = vmatpush1.bf16.msra.mxu0 %v3432
        %4927 = vmatprep.subr.bf16.mxu0 %v3441
        %4928 = vmatpush1.bf16.msra.mxu0 %v3440
        %4929 = vmatprep.subr.bf16.mxu0 %v3449
        %4930 = vmatpush1.bf16.msra.mxu0 %v3448
        %4931 = vmatprep.subr.bf16.mxu0 %v3457
        %4932 = vmatpush1.bf16.msra.mxu0 %v3456
        %4933 = vmatprep.subr.bf16.mxu0 %v3465
        %4934 = vmatpush1.bf16.msra.mxu0 %v3464
        %4935 = vmatprep.subr.bf16.mxu0 %v3473
        %4936 = vmatpush1.bf16.msra.mxu0 %v3472
        %4937 = vmatprep.subr.bf16.mxu0 %v3481
        %4938 = vmatpush1.bf16.msra.mxu0 %v3480
        %4939 = vmatprep.subr.bf16.mxu0 %v3489
        %4940 = vmatpush1.bf16.msra.mxu0 %v3488
        %4941 = vmatprep.subr.bf16.mxu0 %v3497
        %4942 = vmatpush1.bf16.msra.mxu0 %v3496
        %4943 = vmatprep.subr.bf16.mxu0 %v3505
        %4944 = vmatpush1.bf16.msra.mxu0 %v3504
        %4945 = vmatprep.subr.bf16.mxu0 %v3513
        %4946 = vmatpush1.bf16.msra.mxu0 %v3512
        %4947 = vmatprep.subr.bf16.mxu0 %v3521
        %4948 = vmatpush1.bf16.msra.mxu0 %v3520
        %4949 = vmatprep.subr.bf16.mxu0 %v3529
        %4950 = vmatpush1.bf16.msra.mxu0 %v3528
        %4951 = vmatprep.subr.bf16.mxu0 %v3537
        %4952 = vmatpush1.bf16.msra.mxu0 %v3536
        %4953 = vmatprep.mubr.bf16.mxu0 %v2413
        %4954 = vmatmul.mubr.bf16.gmra.mrb[0].mxu0 %v2412
        %v4955 = vpop.f32.mrb[0].mxu0
        %v4956 = vadd.f32 %v4795, %v4955
        %v4957 = vpop.f32.mrb[0].mxu0
        %v4958 = vadd.f32 %v4797, %v4957
        %v4959 = vpop.f32.mrb[0].mxu0
        %v4960 = vadd.f32 %v4799, %v4959
        %v4961 = vpop.f32.mrb[0].mxu0
        %v4962 = vadd.f32 %v4801, %v4961
        %4963 = vmatprep.mubr.bf16.mxu0 %v2417
        %4964 = vmatmul.mubr.bf16.gmra.mrb[0].mxu0 %v2416
        %v4965 = vpop.f32.mrb[0].mxu0
        %v4966 = vadd.f32 %v4805, %v4965
        %v4967 = vpop.f32.mrb[0].mxu0
        %v4968 = vadd.f32 %v4807, %v4967
        %v4969 = vpop.f32.mrb[0].mxu0
        %v4970 = vadd.f32 %v4809, %v4969
        %v4971 = vpop.f32.mrb[0].mxu0
        %v4972 = vadd.f32 %v4811, %v4971
        %4973 = vmatprep.mubr.bf16.mxu0 %v2421
        %4974 = vmatmul.mubr.bf16.gmra.mrb[0].mxu0 %v2420
        %v4975 = vpop.f32.mrb[0].mxu0
        %v4976 = vadd.f32 %v4815, %v4975
        %v4977 = vpop.f32.mrb[0].mxu0
        %v4978 = vadd.f32 %v4817, %v4977
        %v4979 = vpop.f32.mrb[0].mxu0
        %v4980 = vadd.f32 %v4819, %v4979
        %v4981 = vpop.f32.mrb[0].mxu0
        %v4982 = vadd.f32 %v4821, %v4981
        %4983 = vmatprep.mubr.bf16.mxu0 %v2425
        %4984 = vmatmul.mubr.bf16.gmra.mrb[0].mxu0 %v2424
        %v4985 = vpop.f32.mrb[0].mxu0
        %v4986 = vadd.f32 %v4825, %v4985
        %v4987 = vpop.f32.mrb[0].mxu0
        %v4988 = vadd.f32 %v4827, %v4987
        %v4989 = vpop.f32.mrb[0].mxu0
        %v4990 = vadd.f32 %v4829, %v4989
        %v4991 = vpop.f32.mrb[0].mxu0
        %v4992 = vadd.f32 %v4831, %v4991
        %4993 = vmatprep.mubr.bf16.mxu0 %v2429
        %4994 = vmatmul.mubr.bf16.gmra.mrb[0].mxu0 %v2428
        %v4995 = vpop.f32.mrb[0].mxu0
        %v4996 = vadd.f32 %v4835, %v4995
        %v4997 = vpop.f32.mrb[0].mxu0
        %v4998 = vadd.f32 %v4837, %v4997
        %v4999 = vpop.f32.mrb[0].mxu0
        %v5000 = vadd.f32 %v4839, %v4999
        %v5001 = vpop.f32.mrb[0].mxu0
        %v5002 = vadd.f32 %v4841, %v5001
        %5003 = vmatprep.mubr.bf16.mxu0 %v2433
        %5004 = vmatmul.mubr.bf16.gmra.mrb[0].mxu0 %v2432
        %v5005 = vpop.f32.mrb[0].mxu0
        %v5006 = vadd.f32 %v4845, %v5005
        %v5007 = vpop.f32.mrb[0].mxu0
        %v5008 = vadd.f32 %v4847, %v5007
        %v5009 = vpop.f32.mrb[0].mxu0
        %v5010 = vadd.f32 %v4849, %v5009
        %v5011 = vpop.f32.mrb[0].mxu0
        %v5012 = vadd.f32 %v4851, %v5011
        %5013 = vmatprep.mubr.bf16.mxu0 %v2437
        %5014 = vmatmul.mubr.bf16.gmra.mrb[0].mxu0 %v2436
        %v5015 = vpop.f32.mrb[0].mxu0
        %v5016 = vadd.f32 %v4855, %v5015
        %v5017 = vpop.f32.mrb[0].mxu0
        %v5018 = vadd.f32 %v4857, %v5017
        %v5019 = vpop.f32.mrb[0].mxu0
        %v5020 = vadd.f32 %v4859, %v5019
        %v5021 = vpop.f32.mrb[0].mxu0
        %v5022 = vadd.f32 %v4861, %v5021
        %5023 = vmatprep.mubr.bf16.mxu0 %v2441
        %5024 = vmatmul.mubr.bf16.gmra.mrb[0].mxu0 %v2440
        %v5025 = vpop.f32.mrb[0].mxu0
        %v5026 = vadd.f32 %v4865, %v5025
        %v5027 = vpop.f32.mrb[0].mxu0
        %v5028 = vadd.f32 %v4867, %v5027
        %v5029 = vpop.f32.mrb[0].mxu0
        %v5030 = vadd.f32 %v4869, %v5029
        %v5031 = vpop.f32.mrb[0].mxu0
        %v5032 = vadd.f32 %v4871, %v5031
        %5033 = vmatprep.mubr.bf16.mxu0 %v2445
        %5034 = vmatmul.mubr.bf16.gmra.mrb[0].mxu0 %v2444
        %v5035 = vpop.f32.mrb[0].mxu0
        %v5036 = vadd.f32 %v4875, %v5035
        %v5037 = vpop.f32.mrb[0].mxu0
        %v5038 = vadd.f32 %v4877, %v5037
        %v5039 = vpop.f32.mrb[0].mxu0
        %v5040 = vadd.f32 %v4879, %v5039
        %v5041 = vpop.f32.mrb[0].mxu0
        %v5042 = vadd.f32 %v4881, %v5041
        %5043 = vmatprep.mubr.bf16.mxu0 %v2449
        %5044 = vmatmul.mubr.bf16.gmra.mrb[0].mxu0 %v2448
        %v5045 = vpop.f32.mrb[0].mxu0
        %v5046 = vadd.f32 %v4885, %v5045
        %v5047 = vpop.f32.mrb[0].mxu0
        %v5048 = vadd.f32 %v4887, %v5047
        %v5049 = vpop.f32.mrb[0].mxu0
        %v5050 = vadd.f32 %v4889, %v5049
        %v5051 = vpop.f32.mrb[0].mxu0
        %v5052 = vadd.f32 %v4891, %v5051
        %5053 = vmatprep.mubr.bf16.mxu0 %v2453
        %5054 = vmatmul.mubr.bf16.gmra.mrb[0].mxu0 %v2452
        %v5055 = vpop.f32.mrb[0].mxu0
        %v5056 = vadd.f32 %v4895, %v5055
        %v5057 = vpop.f32.mrb[0].mxu0
        %v5058 = vadd.f32 %v4897, %v5057
        %v5059 = vpop.f32.mrb[0].mxu0
        %v5060 = vadd.f32 %v4899, %v5059
        %v5061 = vpop.f32.mrb[0].mxu0
        %v5062 = vadd.f32 %v4901, %v5061
        %5063 = vmatprep.mubr.bf16.mxu0 %v2457
        %5064 = vmatmul.mubr.bf16.gmra.mrb[0].mxu0 %v2456
        %v5065 = vpop.f32.mrb[0].mxu0
        %v5066 = vadd.f32 %v4905, %v5065
        %v5067 = vpop.f32.mrb[0].mxu0
        %v5068 = vadd.f32 %v4907, %v5067
        %v5069 = vpop.f32.mrb[0].mxu0
        %v5070 = vadd.f32 %v4909, %v5069
        %v5071 = vpop.f32.mrb[0].mxu0
        %v5072 = vadd.f32 %v4911, %v5071
        %5073 = vmatprep.mubr.bf16.mxu0 %v2461
        %5074 = vmatmul.mubr.bf16.gmra.mrb[0].mxu0 %v2460
        %v5075 = vpop.f32.mrb[0].mxu0
        %v5076 = vadd.f32 %v4915, %v5075
        %v5077 = vpop.f32.mrb[0].mxu0
        %v5078 = vadd.f32 %v4917, %v5077
        %v5079 = vpop.f32.mrb[0].mxu0
        %v5080 = vpop.f32.mrb[0].mxu0
        %5081 = vdwg.mxu0
        %v5082 = vmul.f32 %v3990, 0.5
        %v5083 = vmul.f32 %v3992, 0.5
        %v5084 = vmul.f32 %v4312, 0.5
        %v5085 = vmul.f32 %v4314, 0.5
        %v5086 = vmul.f32 %v4634, 0.5
        %v5087 = vmul.f32 %v4636, 0.5
        %v5088 = vmul.f32 %v4956, 0.5
        %v5089 = vmul.f32 %v4958, 0.5
        %v5090 = vmul.f32 %v3994, 0.5
        %v5091 = vmul.f32 %v3996, 0.5
        %v5092 = vmul.f32 %v4316, 0.5
        %v5093 = vmul.f32 %v4318, 0.5
        %v5094 = vmul.f32 %v4638, 0.5
        %v5095 = vmul.f32 %v4640, 0.5
        %v5096 = vmul.f32 %v4960, 0.5
        %v5097 = vmul.f32 %v4962, 0.5
        %v5098 = vmul.f32 %v4000, 0.5
        %v5099 = vmul.f32 %v4002, 0.5
        %v5100 = vmul.f32 %v4322, 0.5
        %v5101 = vmul.f32 %v4324, 0.5
        %v5102 = vmul.f32 %v4644, 0.5
        %v5103 = vmul.f32 %v4646, 0.5
        %v5104 = vmul.f32 %v4966, 0.5
        %v5105 = vmul.f32 %v4968, 0.5
        %v5106 = vmul.f32 %v4004, 0.5
        %v5107 = vmul.f32 %v4006, 0.5
        %v5108 = vmul.f32 %v4326, 0.5
        %v5109 = vmul.f32 %v4328, 0.5
        %v5110 = vmul.f32 %v4648, 0.5
        %v5111 = vmul.f32 %v4650, 0.5
        %v5112 = vmul.f32 %v4970, 0.5
        %v5113 = vmul.f32 %v4972, 0.5
        %v5114 = vmul.f32 %v4010, 0.5
        %v5115 = vmul.f32 %v4012, 0.5
        %v5116 = vmul.f32 %v4332, 0.5
        %v5117 = vmul.f32 %v4334, 0.5
        %v5118 = vmul.f32 %v4654, 0.5
        %v5119 = vmul.f32 %v4656, 0.5
        %v5120 = vmul.f32 %v4976, 0.5
        %v5121 = vmul.f32 %v4978, 0.5
        %v5122 = vmul.f32 %v4014, 0.5
        %v5123 = vmul.f32 %v4016, 0.5
        %v5124 = vmul.f32 %v4336, 0.5
        %v5125 = vmul.f32 %v4338, 0.5
        %v5126 = vmul.f32 %v4658, 0.5
        %v5127 = vmul.f32 %v4660, 0.5
        %v5128 = vmul.f32 %v4980, 0.5
        %v5129 = vmul.f32 %v4982, 0.5
        %v5130 = vmul.f32 %v4020, 0.5
        %v5131 = vmul.f32 %v4022, 0.5
        %v5132 = vmul.f32 %v4342, 0.5
        %v5133 = vmul.f32 %v4344, 0.5
        %v5134 = vmul.f32 %v4664, 0.5
        %v5135 = vmul.f32 %v4666, 0.5
        %v5136 = vmul.f32 %v4986, 0.5
        %v5137 = vmul.f32 %v4988, 0.5
        %v5138 = vmul.f32 %v4024, 0.5
        %v5139 = vmul.f32 %v4026, 0.5
        %v5140 = vmul.f32 %v4346, 0.5
        %v5141 = vmul.f32 %v4348, 0.5
        %v5142 = vmul.f32 %v4668, 0.5
        %v5143 = vmul.f32 %v4670, 0.5
        %v5144 = vmul.f32 %v4990, 0.5
        %v5145 = vmul.f32 %v4992, 0.5
        %v5146 = vmul.f32 %v4030, 0.5
        %v5147 = vmul.f32 %v4032, 0.5
        %v5148 = vmul.f32 %v4352, 0.5
        %v5149 = vmul.f32 %v4354, 0.5
        %v5150 = vmul.f32 %v4674, 0.5
        %v5151 = vmul.f32 %v4676, 0.5
        %v5152 = vmul.f32 %v4996, 0.5
        %v5153 = vmul.f32 %v4998, 0.5
        %v5154 = vmul.f32 %v4034, 0.5
        %v5155 = vmul.f32 %v4036, 0.5
        %v5156 = vmul.f32 %v4356, 0.5
        %v5157 = vmul.f32 %v4358, 0.5
        %v5158 = vmul.f32 %v4678, 0.5
        %v5159 = vmul.f32 %v4680, 0.5
        %v5160 = vmul.f32 %v5000, 0.5
        %v5161 = vmul.f32 %v5002, 0.5
        %v5162 = vmul.f32 %v4040, 0.5
        %v5163 = vmul.f32 %v4042, 0.5
        %v5164 = vmul.f32 %v4362, 0.5
        %v5165 = vmul.f32 %v4364, 0.5
        %v5166 = vmul.f32 %v4684, 0.5
        %v5167 = vmul.f32 %v4686, 0.5
        %v5168 = vmul.f32 %v5006, 0.5
        %v5169 = vmul.f32 %v5008, 0.5
        %v5170 = vmul.f32 %v4044, 0.5
        %v5171 = vmul.f32 %v4046, 0.5
        %v5172 = vmul.f32 %v4366, 0.5
        %v5173 = vmul.f32 %v4368, 0.5
        %v5174 = vmul.f32 %v4688, 0.5
        %v5175 = vmul.f32 %v4690, 0.5
        %v5176 = vmul.f32 %v5010, 0.5
        %v5177 = vmul.f32 %v5012, 0.5
        %v5178 = vmul.f32 %v4050, 0.5
        %v5179 = vmul.f32 %v4052, 0.5
        %v5180 = vmul.f32 %v4372, 0.5
        %v5181 = vmul.f32 %v4374, 0.5
        %v5182 = vmul.f32 %v4694, 0.5
        %v5183 = vmul.f32 %v4696, 0.5
        %v5184 = vmul.f32 %v5016, 0.5
        %v5185 = vmul.f32 %v5018, 0.5
        %v5186 = vmul.f32 %v4054, 0.5
        %v5187 = vmul.f32 %v4056, 0.5
        %v5188 = vmul.f32 %v4376, 0.5
        %v5189 = vmul.f32 %v4378, 0.5
        %v5190 = vmul.f32 %v4698, 0.5
        %v5191 = vmul.f32 %v4700, 0.5
        %v5192 = vmul.f32 %v5020, 0.5
        %v5193 = vmul.f32 %v5022, 0.5
        %v5194 = vmul.f32 %v4060, 0.5
        %v5195 = vmul.f32 %v4062, 0.5
        %v5196 = vmul.f32 %v4382, 0.5
        %v5197 = vmul.f32 %v4384, 0.5
        %v5198 = vmul.f32 %v4704, 0.5
        %v5199 = vmul.f32 %v4706, 0.5
        %v5200 = vmul.f32 %v5026, 0.5
        %v5201 = vmul.f32 %v5028, 0.5
        %v5202 = vmul.f32 %v4064, 0.5
        %v5203 = vmul.f32 %v4066, 0.5
        %v5204 = vmul.f32 %v4386, 0.5
        %v5205 = vmul.f32 %v4388, 0.5
        %v5206 = vmul.f32 %v4708, 0.5
        %v5207 = vmul.f32 %v4710, 0.5
        %v5208 = vmul.f32 %v5030, 0.5
        %v5209 = vmul.f32 %v5032, 0.5
        %v5210 = vmul.f32 %v4070, 0.5
        %v5211 = vmul.f32 %v4072, 0.5
        %v5212 = vmul.f32 %v4392, 0.5
        %v5213 = vmul.f32 %v4394, 0.5
        %v5214 = vmul.f32 %v4714, 0.5
        %v5215 = vmul.f32 %v4716, 0.5
        %v5216 = vmul.f32 %v5036, 0.5
        %v5217 = vmul.f32 %v5038, 0.5
        %v5218 = vmul.f32 %v4074, 0.5
        %v5219 = vmul.f32 %v4076, 0.5
        %v5220 = vmul.f32 %v4396, 0.5
        %v5221 = vmul.f32 %v4398, 0.5
        %v5222 = vmul.f32 %v4718, 0.5
        %v5223 = vmul.f32 %v4720, 0.5
        %v5224 = vmul.f32 %v5040, 0.5
        %v5225 = vmul.f32 %v5042, 0.5
        %v5226 = vmul.f32 %v4080, 0.5
        %v5227 = vmul.f32 %v4082, 0.5
        %v5228 = vmul.f32 %v4402, 0.5
        %v5229 = vmul.f32 %v4404, 0.5
        %v5230 = vmul.f32 %v4724, 0.5
        %v5231 = vmul.f32 %v4726, 0.5
        %v5232 = vmul.f32 %v5046, 0.5
        %v5233 = vmul.f32 %v5048, 0.5
        %v5234 = vmul.f32 %v4084, 0.5
        %v5235 = vmul.f32 %v4086, 0.5
        %v5236 = vmul.f32 %v4406, 0.5
        %v5237 = vmul.f32 %v4408, 0.5
        %v5238 = vmul.f32 %v4728, 0.5
        %v5239 = vmul.f32 %v4730, 0.5
        %v5240 = vmul.f32 %v5050, 0.5
        %v5241 = vmul.f32 %v5052, 0.5
        %v5242 = vmul.f32 %v4090, 0.5
        %v5243 = vmul.f32 %v4092, 0.5
        %v5244 = vmul.f32 %v4412, 0.5
        %v5245 = vmul.f32 %v4414, 0.5
        %v5246 = vmul.f32 %v4734, 0.5
        %v5247 = vmul.f32 %v4736, 0.5
        %v5248 = vmul.f32 %v5056, 0.5
        %v5249 = vmul.f32 %v5058, 0.5
        %v5250 = vmul.f32 %v4094, 0.5
        %v5251 = vmul.f32 %v4096, 0.5
        %v5252 = vmul.f32 %v4416, 0.5
        %v5253 = vmul.f32 %v4418, 0.5
        %v5254 = vmul.f32 %v4738, 0.5
        %v5255 = vmul.f32 %v4740, 0.5
        %v5256 = vmul.f32 %v5060, 0.5
        %v5257 = vmul.f32 %v5062, 0.5
        %v5258 = vmul.f32 %v4100, 0.5
        %v5259 = vmul.f32 %v4102, 0.5
        %v5260 = vmul.f32 %v4422, 0.5
        %v5261 = vmul.f32 %v4424, 0.5
        %v5262 = vmul.f32 %v4744, 0.5
        %v5263 = vmul.f32 %v4746, 0.5
        %v5264 = vmul.f32 %v5066, 0.5
        %v5265 = vmul.f32 %v5068, 0.5
        %v5266 = vmul.f32 %v4104, 0.5
        %v5267 = vmul.f32 %v4106, 0.5
        %v5268 = vmul.f32 %v4426, 0.5
        %v5269 = vmul.f32 %v4428, 0.5
        %v5270 = vmul.f32 %v4748, 0.5
        %v5271 = vmul.f32 %v4750, 0.5
        %v5272 = vmul.f32 %v5070, 0.5
        %v5273 = vmul.f32 %v5072, 0.5
        %v5274 = vmul.f32 %v4110, 0.5
        %v5275 = vmul.f32 %v4112, 0.5
        %v5276 = vmul.f32 %v4432, 0.5
        %v5277 = vmul.f32 %v4434, 0.5
        %v5278 = vmul.f32 %v4754, 0.5
        %v5279 = vmul.f32 %v4756, 0.5
        %v5280 = vmul.f32 %v5076, 0.5
        %v5281 = vmul.f32 %v5078, 0.5
        %v5282 = vmul.f32 %v3990, 0.70710677
        %v5283 = vmul.f32 %v3992, 0.70710677
        %v5284 = vmul.f32 %v4312, 0.70710677
        %v5285 = vmul.f32 %v4314, 0.70710677
        %v5286 = vmul.f32 %v4634, 0.70710677
        %v5287 = vmul.f32 %v4636, 0.70710677
        %v5288 = vmul.f32 %v4956, 0.70710677
        %v5289 = vmul.f32 %v4958, 0.70710677
        %v5290 = vmul.f32 %v3994, 0.70710677
        %v5291 = vmul.f32 %v3996, 0.70710677
        %v5292 = vmul.f32 %v4316, 0.70710677
        %v5293 = vmul.f32 %v4318, 0.70710677
        %v5294 = vmul.f32 %v4638, 0.70710677
        %v5295 = vmul.f32 %v4640, 0.70710677
        %v5296 = vmul.f32 %v4960, 0.70710677
        %v5297 = vmul.f32 %v4962, 0.70710677
        %v5298 = vmul.f32 %v4000, 0.70710677
        %v5299 = vmul.f32 %v4002, 0.70710677
        %v5300 = vmul.f32 %v4322, 0.70710677
        %v5301 = vmul.f32 %v4324, 0.70710677
        %v5302 = vmul.f32 %v4644, 0.70710677
        %v5303 = vmul.f32 %v4646, 0.70710677
        %v5304 = vmul.f32 %v4966, 0.70710677
        %v5305 = vmul.f32 %v4968, 0.70710677
        %v5306 = vmul.f32 %v4004, 0.70710677
        %v5307 = vmul.f32 %v4006, 0.70710677
        %v5308 = vmul.f32 %v4326, 0.70710677
        %v5309 = vmul.f32 %v4328, 0.70710677
        %v5310 = vmul.f32 %v4648, 0.70710677
        %v5311 = vmul.f32 %v4650, 0.70710677
        %v5312 = vmul.f32 %v4970, 0.70710677
        %v5313 = vmul.f32 %v4972, 0.70710677
        %v5314 = vmul.f32 %v4010, 0.70710677
        %v5315 = vmul.f32 %v4012, 0.70710677
        %v5316 = vmul.f32 %v4332, 0.70710677
        %v5317 = vmul.f32 %v4334, 0.70710677
        %v5318 = vmul.f32 %v4654, 0.70710677
        %v5319 = vmul.f32 %v4656, 0.70710677
        %v5320 = vmul.f32 %v4976, 0.70710677
        %v5321 = vmul.f32 %v4978, 0.70710677
        %v5322 = vmul.f32 %v4014, 0.70710677
        %v5323 = vmul.f32 %v4016, 0.70710677
        %v5324 = vmul.f32 %v4336, 0.70710677
        %v5325 = vmul.f32 %v4338, 0.70710677
        %v5326 = vmul.f32 %v4658, 0.70710677
        %v5327 = vmul.f32 %v4660, 0.70710677
        %v5328 = vmul.f32 %v4980, 0.70710677
        %v5329 = vmul.f32 %v4982, 0.70710677
        %v5330 = vmul.f32 %v4020, 0.70710677
        %v5331 = vmul.f32 %v4022, 0.70710677
        %v5332 = vmul.f32 %v4342, 0.70710677
        %v5333 = vmul.f32 %v4344, 0.70710677
        %v5334 = vmul.f32 %v4664, 0.70710677
        %v5335 = vmul.f32 %v4666, 0.70710677
        %v5336 = vmul.f32 %v4986, 0.70710677
        %v5337 = vmul.f32 %v4988, 0.70710677
        %v5338 = vmul.f32 %v4024, 0.70710677
        %v5339 = vmul.f32 %v4026, 0.70710677
        %v5340 = vmul.f32 %v4346, 0.70710677
        %v5341 = vmul.f32 %v4348, 0.70710677
        %v5342 = vmul.f32 %v4668, 0.70710677
        %v5343 = vmul.f32 %v4670, 0.70710677
        %v5344 = vmul.f32 %v4990, 0.70710677
        %v5345 = vmul.f32 %v4992, 0.70710677
        %v5346 = vmul.f32 %v4030, 0.70710677
        %v5347 = vmul.f32 %v4032, 0.70710677
        %v5348 = vmul.f32 %v4352, 0.70710677
        %v5349 = vmul.f32 %v4354, 0.70710677
        %v5350 = vmul.f32 %v4674, 0.70710677
        %v5351 = vmul.f32 %v4676, 0.70710677
        %v5352 = vmul.f32 %v4996, 0.70710677
        %v5353 = vmul.f32 %v4998, 0.70710677
        %v5354 = vmul.f32 %v4034, 0.70710677
        %v5355 = vmul.f32 %v4036, 0.70710677
        %v5356 = vmul.f32 %v4356, 0.70710677
        %v5357 = vmul.f32 %v4358, 0.70710677
        %v5358 = vmul.f32 %v4678, 0.70710677
        %v5359 = vmul.f32 %v4680, 0.70710677
        %v5360 = vmul.f32 %v5000, 0.70710677
        %v5361 = vmul.f32 %v5002, 0.70710677
        %v5362 = vmul.f32 %v4040, 0.70710677
        %v5363 = vmul.f32 %v4042, 0.70710677
        %v5364 = vmul.f32 %v4362, 0.70710677
        %v5365 = vmul.f32 %v4364, 0.70710677
        %v5366 = vmul.f32 %v4684, 0.70710677
        %v5367 = vmul.f32 %v4686, 0.70710677
        %v5368 = vmul.f32 %v5006, 0.70710677
        %v5369 = vmul.f32 %v5008, 0.70710677
        %v5370 = vmul.f32 %v4044, 0.70710677
        %v5371 = vmul.f32 %v4046, 0.70710677
        %v5372 = vmul.f32 %v4366, 0.70710677
        %v5373 = vmul.f32 %v4368, 0.70710677
        %v5374 = vmul.f32 %v4688, 0.70710677
        %v5375 = vmul.f32 %v4690, 0.70710677
        %v5376 = vmul.f32 %v5010, 0.70710677
        %v5377 = vmul.f32 %v5012, 0.70710677
        %v5378 = vmul.f32 %v4050, 0.70710677
        %v5379 = vmul.f32 %v4052, 0.70710677
        %v5380 = vmul.f32 %v4372, 0.70710677
        %v5381 = vmul.f32 %v4374, 0.70710677
        %v5382 = vmul.f32 %v4694, 0.70710677
        %v5383 = vmul.f32 %v4696, 0.70710677
        %v5384 = vmul.f32 %v5016, 0.70710677
        %v5385 = vmul.f32 %v5018, 0.70710677
        %v5386 = vmul.f32 %v4054, 0.70710677
        %v5387 = vmul.f32 %v4056, 0.70710677
        %v5388 = vmul.f32 %v4376, 0.70710677
        %v5389 = vmul.f32 %v4378, 0.70710677
        %v5390 = vmul.f32 %v4698, 0.70710677
        %v5391 = vmul.f32 %v4700, 0.70710677
        %v5392 = vmul.f32 %v5020, 0.70710677
        %v5393 = vmul.f32 %v5022, 0.70710677
        %v5394 = vmul.f32 %v4060, 0.70710677
        %v5395 = vmul.f32 %v4062, 0.70710677
        %v5396 = vmul.f32 %v4382, 0.70710677
        %v5397 = vmul.f32 %v4384, 0.70710677
        %v5398 = vmul.f32 %v4704, 0.70710677
        %v5399 = vmul.f32 %v4706, 0.70710677
        %v5400 = vmul.f32 %v5026, 0.70710677
        %v5401 = vmul.f32 %v5028, 0.70710677
        %v5402 = vmul.f32 %v4064, 0.70710677
        %v5403 = vmul.f32 %v4066, 0.70710677
        %v5404 = vmul.f32 %v4386, 0.70710677
        %v5405 = vmul.f32 %v4388, 0.70710677
        %v5406 = vmul.f32 %v4708, 0.70710677
        %v5407 = vmul.f32 %v4710, 0.70710677
        %v5408 = vmul.f32 %v5030, 0.70710677
        %v5409 = vmul.f32 %v5032, 0.70710677
        %v5410 = vmul.f32 %v4070, 0.70710677
        %v5411 = vmul.f32 %v4072, 0.70710677
        %v5412 = vmul.f32 %v4392, 0.70710677
        %v5413 = vmul.f32 %v4394, 0.70710677
        %v5414 = vmul.f32 %v4714, 0.70710677
        %v5415 = vmul.f32 %v4716, 0.70710677
        %v5416 = vmul.f32 %v5036, 0.70710677
        %v5417 = vmul.f32 %v5038, 0.70710677
        %v5418 = vmul.f32 %v4074, 0.70710677
        %v5419 = vmul.f32 %v4076, 0.70710677
        %v5420 = vmul.f32 %v4396, 0.70710677
        %v5421 = vmul.f32 %v4398, 0.70710677
        %v5422 = vmul.f32 %v4718, 0.70710677
        %v5423 = vmul.f32 %v4720, 0.70710677
        %v5424 = vmul.f32 %v5040, 0.70710677
        %v5425 = vmul.f32 %v5042, 0.70710677
        %v5426 = vmul.f32 %v4080, 0.70710677
        %v5427 = vmul.f32 %v4082, 0.70710677
        %v5428 = vmul.f32 %v4402, 0.70710677
        %v5429 = vmul.f32 %v4404, 0.70710677
        %v5430 = vmul.f32 %v4724, 0.70710677
        %v5431 = vmul.f32 %v4726, 0.70710677
        %v5432 = vmul.f32 %v5046, 0.70710677
        %v5433 = vmul.f32 %v5048, 0.70710677
        %v5434 = vmul.f32 %v4084, 0.70710677
        %v5435 = vmul.f32 %v4086, 0.70710677
        %v5436 = vmul.f32 %v4406, 0.70710677
        %v5437 = vmul.f32 %v4408, 0.70710677
        %v5438 = vmul.f32 %v4728, 0.70710677
        %v5439 = vmul.f32 %v4730, 0.70710677
        %v5440 = vmul.f32 %v5050, 0.70710677
        %v5441 = vmul.f32 %v5052, 0.70710677
        %v5442 = vmul.f32 %v4090, 0.70710677
        %v5443 = vmul.f32 %v4092, 0.70710677
        %v5444 = vmul.f32 %v4412, 0.70710677
        %v5445 = vmul.f32 %v4414, 0.70710677
        %v5446 = vmul.f32 %v4734, 0.70710677
        %v5447 = vmul.f32 %v4736, 0.70710677
        %v5448 = vmul.f32 %v5056, 0.70710677
        %v5449 = vmul.f32 %v5058, 0.70710677
        %v5450 = vmul.f32 %v4094, 0.70710677
        %v5451 = vmul.f32 %v4096, 0.70710677
        %v5452 = vmul.f32 %v4416, 0.70710677
        %v5453 = vmul.f32 %v4418, 0.70710677
        %v5454 = vmul.f32 %v4738, 0.70710677
        %v5455 = vmul.f32 %v4740, 0.70710677
        %v5456 = vmul.f32 %v5060, 0.70710677
        %v5457 = vmul.f32 %v5062, 0.70710677
        %v5458 = vmul.f32 %v4100, 0.70710677
        %v5459 = vmul.f32 %v4102, 0.70710677
        %v5460 = vmul.f32 %v4422, 0.70710677
        %v5461 = vmul.f32 %v4424, 0.70710677
        %v5462 = vmul.f32 %v4744, 0.70710677
        %v5463 = vmul.f32 %v4746, 0.70710677
        %v5464 = vmul.f32 %v5066, 0.70710677
        %v5465 = vmul.f32 %v5068, 0.70710677
        %v5466 = vmul.f32 %v4104, 0.70710677
        %v5467 = vmul.f32 %v4106, 0.70710677
        %v5468 = vmul.f32 %v4426, 0.70710677
        %v5469 = vmul.f32 %v4428, 0.70710677
        %v5470 = vmul.f32 %v4748, 0.70710677
        %v5471 = vmul.f32 %v4750, 0.70710677
        %v5472 = vmul.f32 %v5070, 0.70710677
        %v5473 = vmul.f32 %v5072, 0.70710677
        %v5474 = vmul.f32 %v4110, 0.70710677
        %v5475 = vmul.f32 %v4112, 0.70710677
        %v5476 = vmul.f32 %v4432, 0.70710677
        %v5477 = vmul.f32 %v4434, 0.70710677
        %v5478 = vmul.f32 %v4754, 0.70710677
        %v5479 = vmul.f32 %v4756, 0.70710677
        %v5480 = vmul.f32 %v5076, 0.70710677
        %v5481 = vmul.f32 %v5078, 0.70710677
        %v5482 = verf.f32.pop %v5282
        %v5483 = verf.f32.pop %v5283
        %v5484 = verf.f32.pop %v5284
        %v5485 = verf.f32.pop %v5285
        %v5486 = verf.f32.pop %v5286
        %v5487 = verf.f32.pop %v5287
        %v5488 = verf.f32.pop %v5288
        %v5489 = verf.f32.pop %v5289
        %v5490 = verf.f32.pop %v5290
        %v5491 = verf.f32.pop %v5291
        %v5492 = verf.f32.pop %v5292
        %v5493 = verf.f32.pop %v5293
        %v5494 = verf.f32.pop %v5294
        %v5495 = verf.f32.pop %v5295
        %v5496 = verf.f32.pop %v5296
        %v5497 = verf.f32.pop %v5297
        %v5498 = verf.f32.pop %v5298
        %v5499 = verf.f32.pop %v5299
        %v5500 = verf.f32.pop %v5300
        %v5501 = verf.f32.pop %v5301
        %v5502 = verf.f32.pop %v5302
        %v5503 = verf.f32.pop %v5303
        %v5504 = verf.f32.pop %v5304
        %v5505 = verf.f32.pop %v5305
        %v5506 = verf.f32.pop %v5306
        %v5507 = verf.f32.pop %v5307
        %v5508 = verf.f32.pop %v5308
        %v5509 = verf.f32.pop %v5309
        %v5510 = verf.f32.pop %v5310
        %v5511 = verf.f32.pop %v5311
        %v5512 = verf.f32.pop %v5312
        %v5513 = verf.f32.pop %v5313
        %v5514 = verf.f32.pop %v5314
        %v5515 = verf.f32.pop %v5315
        %v5516 = verf.f32.pop %v5316
        %v5517 = verf.f32.pop %v5317
        %v5518 = verf.f32.pop %v5318
        %v5519 = verf.f32.pop %v5319
        %v5520 = verf.f32.pop %v5320
        %v5521 = verf.f32.pop %v5321
        %v5522 = verf.f32.pop %v5322
        %v5523 = verf.f32.pop %v5323
        %v5524 = verf.f32.pop %v5324
        %v5525 = verf.f32.pop %v5325
        %v5526 = verf.f32.pop %v5326
        %v5527 = verf.f32.pop %v5327
        %v5528 = verf.f32.pop %v5328
        %v5529 = verf.f32.pop %v5329
        %v5530 = verf.f32.pop %v5330
        %v5531 = verf.f32.pop %v5331
        %v5532 = verf.f32.pop %v5332
        %v5533 = verf.f32.pop %v5333
        %v5534 = verf.f32.pop %v5334
        %v5535 = verf.f32.pop %v5335
        %v5536 = verf.f32.pop %v5336
        %v5537 = verf.f32.pop %v5337
        %v5538 = verf.f32.pop %v5338
        %v5539 = verf.f32.pop %v5339
        %v5540 = verf.f32.pop %v5340
        %v5541 = verf.f32.pop %v5341
        %v5542 = verf.f32.pop %v5342
        %v5543 = verf.f32.pop %v5343
        %v5544 = verf.f32.pop %v5344
        %v5545 = verf.f32.pop %v5345
        %v5546 = verf.f32.pop %v5346
        %v5547 = verf.f32.pop %v5347
        %v5548 = verf.f32.pop %v5348
        %v5549 = verf.f32.pop %v5349
        %v5550 = verf.f32.pop %v5350
        %v5551 = verf.f32.pop %v5351
        %v5552 = verf.f32.pop %v5352
        %v5553 = verf.f32.pop %v5353
        %v5554 = verf.f32.pop %v5354
        %v5555 = verf.f32.pop %v5355
        %v5556 = verf.f32.pop %v5356
        %v5557 = verf.f32.pop %v5357
        %v5558 = verf.f32.pop %v5358
        %v5559 = verf.f32.pop %v5359
        %v5560 = verf.f32.pop %v5360
        %v5561 = verf.f32.pop %v5361
        %v5562 = verf.f32.pop %v5362
        %v5563 = verf.f32.pop %v5363
        %v5564 = verf.f32.pop %v5364
        %v5565 = verf.f32.pop %v5365
        %v5566 = verf.f32.pop %v5366
        %v5567 = verf.f32.pop %v5367
        %v5568 = verf.f32.pop %v5368
        %v5569 = verf.f32.pop %v5369
        %v5570 = verf.f32.pop %v5370
        %v5571 = verf.f32.pop %v5371
        %v5572 = verf.f32.pop %v5372
        %v5573 = verf.f32.pop %v5373
        %v5574 = verf.f32.pop %v5374
        %v5575 = verf.f32.pop %v5375
        %v5576 = verf.f32.pop %v5376
        %v5577 = verf.f32.pop %v5377
        %v5578 = verf.f32.pop %v5378
        %v5579 = verf.f32.pop %v5379
        %v5580 = verf.f32.pop %v5380
        %v5581 = verf.f32.pop %v5381
        %v5582 = verf.f32.pop %v5382
        %v5583 = verf.f32.pop %v5383
        %v5584 = verf.f32.pop %v5384
        %v5585 = verf.f32.pop %v5385
        %v5586 = verf.f32.pop %v5386
        %v5587 = verf.f32.pop %v5387
        %v5588 = verf.f32.pop %v5388
        %v5589 = verf.f32.pop %v5389
        %v5590 = verf.f32.pop %v5390
        %v5591 = verf.f32.pop %v5391
        %v5592 = verf.f32.pop %v5392
        %v5593 = verf.f32.pop %v5393
        %v5594 = verf.f32.pop %v5394
        %v5595 = verf.f32.pop %v5395
        %v5596 = verf.f32.pop %v5396
        %v5597 = verf.f32.pop %v5397
        %v5598 = verf.f32.pop %v5398
        %v5599 = verf.f32.pop %v5399
        %v5600 = verf.f32.pop %v5400
        %v5601 = verf.f32.pop %v5401
        %v5602 = verf.f32.pop %v5402
        %v5603 = verf.f32.pop %v5403
        %v5604 = verf.f32.pop %v5404
        %v5605 = verf.f32.pop %v5405
        %v5606 = verf.f32.pop %v5406
        %v5607 = verf.f32.pop %v5407
        %v5608 = verf.f32.pop %v5408
        %v5609 = verf.f32.pop %v5409
        %v5610 = verf.f32.pop %v5410
        %v5611 = verf.f32.pop %v5411
        %v5612 = verf.f32.pop %v5412
        %v5613 = verf.f32.pop %v5413
        %v5614 = verf.f32.pop %v5414
        %v5615 = verf.f32.pop %v5415
        %v5616 = verf.f32.pop %v5416
        %v5617 = verf.f32.pop %v5417
        %v5618 = verf.f32.pop %v5418
        %v5619 = verf.f32.pop %v5419
        %v5620 = verf.f32.pop %v5420
        %v5621 = verf.f32.pop %v5421
        %v5622 = verf.f32.pop %v5422
        %v5623 = verf.f32.pop %v5423
        %v5624 = verf.f32.pop %v5424
        %v5625 = verf.f32.pop %v5425
        %v5626 = verf.f32.pop %v5426
        %v5627 = verf.f32.pop %v5427
        %v5628 = verf.f32.pop %v5428
        %v5629 = verf.f32.pop %v5429
        %v5630 = verf.f32.pop %v5430
        %v5631 = verf.f32.pop %v5431
        %v5632 = verf.f32.pop %v5432
        %v5633 = verf.f32.pop %v5433
        %v5634 = verf.f32.pop %v5434
        %v5635 = verf.f32.pop %v5435
        %v5636 = verf.f32.pop %v5436
        %v5637 = verf.f32.pop %v5437
        %v5638 = verf.f32.pop %v5438
        %v5639 = verf.f32.pop %v5439
        %v5640 = verf.f32.pop %v5440
        %v5641 = verf.f32.pop %v5441
        %v5642 = verf.f32.pop %v5442
        %v5643 = verf.f32.pop %v5443
        %v5644 = verf.f32.pop %v5444
        %v5645 = verf.f32.pop %v5445
        %v5646 = verf.f32.pop %v5446
        %v5647 = verf.f32.pop %v5447
        %v5648 = verf.f32.pop %v5448
        %v5649 = verf.f32.pop %v5449
        %v5650 = verf.f32.pop %v5450
        %v5651 = verf.f32.pop %v5451
        %v5652 = verf.f32.pop %v5452
        %v5653 = verf.f32.pop %v5453
        %v5654 = verf.f32.pop %v5454
        %v5655 = verf.f32.pop %v5455
        %v5656 = verf.f32.pop %v5456
        %v5657 = verf.f32.pop %v5457
        %v5658 = verf.f32.pop %v5458
        %v5659 = verf.f32.pop %v5459
        %v5660 = verf.f32.pop %v5460
        %v5661 = verf.f32.pop %v5461
        %v5662 = verf.f32.pop %v5462
        %v5663 = verf.f32.pop %v5463
        %v5664 = verf.f32.pop %v5464
        %v5665 = verf.f32.pop %v5465
        %v5666 = verf.f32.pop %v5466
        %v5667 = verf.f32.pop %v5467
        %v5668 = verf.f32.pop %v5468
        %v5669 = verf.f32.pop %v5469
        %v5670 = verf.f32.pop %v5470
        %v5671 = verf.f32.pop %v5471
        %v5672 = verf.f32.pop %v5472
        %v5673 = verf.f32.pop %v5473
        %v5674 = verf.f32.pop %v5474
        %v5675 = verf.f32.pop %v5475
        %v5676 = verf.f32.pop %v5476
        %v5677 = verf.f32.pop %v5477
        %v5678 = verf.f32.pop %v5478
        %v5679 = verf.f32.pop %v5479
        %v5680 = verf.f32.pop %v5480
        %v5681 = verf.f32.pop %v5481
        %v5682 = vadd.f32 %v5482, 1.0
        %v5683 = vadd.f32 %v5483, 1.0
        %v5684 = vadd.f32 %v5484, 1.0
        %v5685 = vadd.f32 %v5485, 1.0
        %v5686 = vadd.f32 %v5486, 1.0
        %v5687 = vadd.f32 %v5487, 1.0
        %v5688 = vadd.f32 %v5488, 1.0
        %v5689 = vadd.f32 %v5489, 1.0
        %v5690 = vadd.f32 %v5490, 1.0
        %v5691 = vadd.f32 %v5491, 1.0
        %v5692 = vadd.f32 %v5492, 1.0
        %v5693 = vadd.f32 %v5493, 1.0
        %v5694 = vadd.f32 %v5494, 1.0
        %v5695 = vadd.f32 %v5495, 1.0
        %v5696 = vadd.f32 %v5496, 1.0
        %v5697 = vadd.f32 %v5497, 1.0
        %v5698 = vadd.f32 %v5498, 1.0
        %v5699 = vadd.f32 %v5499, 1.0
        %v5700 = vadd.f32 %v5500, 1.0
        %v5701 = vadd.f32 %v5501, 1.0
        %v5702 = vadd.f32 %v5502, 1.0
        %v5703 = vadd.f32 %v5503, 1.0
        %v5704 = vadd.f32 %v5504, 1.0
        %v5705 = vadd.f32 %v5505, 1.0
        %v5706 = vadd.f32 %v5506, 1.0
        %v5707 = vadd.f32 %v5507, 1.0
        %v5708 = vadd.f32 %v5508, 1.0
        %v5709 = vadd.f32 %v5509, 1.0
        %v5710 = vadd.f32 %v5510, 1.0
        %v5711 = vadd.f32 %v5511, 1.0
        %v5712 = vadd.f32 %v5512, 1.0
        %v5713 = vadd.f32 %v5513, 1.0
        %v5714 = vadd.f32 %v5514, 1.0
        %v5715 = vadd.f32 %v5515, 1.0
        %v5716 = vadd.f32 %v5516, 1.0
        %v5717 = vadd.f32 %v5517, 1.0
        %v5718 = vadd.f32 %v5518, 1.0
        %v5719 = vadd.f32 %v5519, 1.0
        %v5720 = vadd.f32 %v5520, 1.0
        %v5721 = vadd.f32 %v5521, 1.0
        %v5722 = vadd.f32 %v5522, 1.0
        %v5723 = vadd.f32 %v5523, 1.0
        %v5724 = vadd.f32 %v5524, 1.0
        %v5725 = vadd.f32 %v5525, 1.0
        %v5726 = vadd.f32 %v5526, 1.0
        %v5727 = vadd.f32 %v5527, 1.0
        %v5728 = vadd.f32 %v5528, 1.0
        %v5729 = vadd.f32 %v5529, 1.0
        %v5730 = vadd.f32 %v5530, 1.0
        %v5731 = vadd.f32 %v5531, 1.0
        %v5732 = vadd.f32 %v5532, 1.0
        %v5733 = vadd.f32 %v5533, 1.0
        %v5734 = vadd.f32 %v5534, 1.0
        %v5735 = vadd.f32 %v5535, 1.0
        %v5736 = vadd.f32 %v5536, 1.0
        %v5737 = vadd.f32 %v5537, 1.0
        %v5738 = vadd.f32 %v5538, 1.0
        %v5739 = vadd.f32 %v5539, 1.0
        %v5740 = vadd.f32 %v5540, 1.0
        %v5741 = vadd.f32 %v5541, 1.0
        %v5742 = vadd.f32 %v5542, 1.0
        %v5743 = vadd.f32 %v5543, 1.0
        %v5744 = vadd.f32 %v5544, 1.0
        %v5745 = vadd.f32 %v5545, 1.0
        %v5746 = vadd.f32 %v5546, 1.0
        %v5747 = vadd.f32 %v5547, 1.0
        %v5748 = vadd.f32 %v5548, 1.0
        %v5749 = vadd.f32 %v5549, 1.0
        %v5750 = vadd.f32 %v5550, 1.0
        %v5751 = vadd.f32 %v5551, 1.0
        %v5752 = vadd.f32 %v5552, 1.0
        %v5753 = vadd.f32 %v5553, 1.0
        %v5754 = vadd.f32 %v5554, 1.0
        %v5755 = vadd.f32 %v5555, 1.0
        %v5756 = vadd.f32 %v5556, 1.0
        %v5757 = vadd.f32 %v5557, 1.0
        %v5758 = vadd.f32 %v5558, 1.0
        %v5759 = vadd.f32 %v5559, 1.0
        %v5760 = vadd.f32 %v5560, 1.0
        %v5761 = vadd.f32 %v5561, 1.0
        %v5762 = vadd.f32 %v5562, 1.0
        %v5763 = vadd.f32 %v5563, 1.0
        %v5764 = vadd.f32 %v5564, 1.0
        %v5765 = vadd.f32 %v5565, 1.0
        %v5766 = vadd.f32 %v5566, 1.0
        %v5767 = vadd.f32 %v5567, 1.0
        %v5768 = vadd.f32 %v5568, 1.0
        %v5769 = vadd.f32 %v5569, 1.0
        %v5770 = vadd.f32 %v5570, 1.0
        %v5771 = vadd.f32 %v5571, 1.0
        %v5772 = vadd.f32 %v5572, 1.0
        %v5773 = vadd.f32 %v5573, 1.0
        %v5774 = vadd.f32 %v5574, 1.0
        %v5775 = vadd.f32 %v5575, 1.0
        %v5776 = vadd.f32 %v5576, 1.0
        %v5777 = vadd.f32 %v5577, 1.0
        %v5778 = vadd.f32 %v5578, 1.0
        %v5779 = vadd.f32 %v5579, 1.0
        %v5780 = vadd.f32 %v5580, 1.0
        %v5781 = vadd.f32 %v5581, 1.0
        %v5782 = vadd.f32 %v5582, 1.0
        %v5783 = vadd.f32 %v5583, 1.0
        %v5784 = vadd.f32 %v5584, 1.0
        %v5785 = vadd.f32 %v5585, 1.0
        %v5786 = vadd.f32 %v5586, 1.0
        %v5787 = vadd.f32 %v5587, 1.0
        %v5788 = vadd.f32 %v5588, 1.0
        %v5789 = vadd.f32 %v5589, 1.0
        %v5790 = vadd.f32 %v5590, 1.0
        %v5791 = vadd.f32 %v5591, 1.0
        %v5792 = vadd.f32 %v5592, 1.0
        %v5793 = vadd.f32 %v5593, 1.0
        %v5794 = vadd.f32 %v5594, 1.0
        %v5795 = vadd.f32 %v5595, 1.0
        %v5796 = vadd.f32 %v5596, 1.0
        %v5797 = vadd.f32 %v5597, 1.0
        %v5798 = vadd.f32 %v5598, 1.0
        %v5799 = vadd.f32 %v5599, 1.0
        %v5800 = vadd.f32 %v5600, 1.0
        %v5801 = vadd.f32 %v5601, 1.0
        %v5802 = vadd.f32 %v5602, 1.0
        %v5803 = vadd.f32 %v5603, 1.0
        %v5804 = vadd.f32 %v5604, 1.0
        %v5805 = vadd.f32 %v5605, 1.0
        %v5806 = vadd.f32 %v5606, 1.0
        %v5807 = vadd.f32 %v5607, 1.0
        %v5808 = vadd.f32 %v5608, 1.0
        %v5809 = vadd.f32 %v5609, 1.0
        %v5810 = vadd.f32 %v5610, 1.0
        %v5811 = vadd.f32 %v5611, 1.0
        %v5812 = vadd.f32 %v5612, 1.0
        %v5813 = vadd.f32 %v5613, 1.0
        %v5814 = vadd.f32 %v5614, 1.0
        %v5815 = vadd.f32 %v5615, 1.0
        %v5816 = vadd.f32 %v5616, 1.0
        %v5817 = vadd.f32 %v5617, 1.0
        %v5818 = vadd.f32 %v5618, 1.0
        %v5819 = vadd.f32 %v5619, 1.0
        %v5820 = vadd.f32 %v5620, 1.0
        %v5821 = vadd.f32 %v5621, 1.0
        %v5822 = vadd.f32 %v5622, 1.0
        %v5823 = vadd.f32 %v5623, 1.0
        %v5824 = vadd.f32 %v5624, 1.0
        %v5825 = vadd.f32 %v5625, 1.0
        %v5826 = vadd.f32 %v5626, 1.0
        %v5827 = vadd.f32 %v5627, 1.0
        %v5828 = vadd.f32 %v5628, 1.0
        %v5829 = vadd.f32 %v5629, 1.0
        %v5830 = vadd.f32 %v5630, 1.0
        %v5831 = vadd.f32 %v5631, 1.0
        %v5832 = vadd.f32 %v5632, 1.0
        %v5833 = vadd.f32 %v5633, 1.0
        %v5834 = vadd.f32 %v5634, 1.0
        %v5835 = vadd.f32 %v5635, 1.0
        %v5836 = vadd.f32 %v5636, 1.0
        %v5837 = vadd.f32 %v5637, 1.0
        %v5838 = vadd.f32 %v5638, 1.0
        %v5839 = vadd.f32 %v5639, 1.0
        %v5840 = vadd.f32 %v5640, 1.0
        %v5841 = vadd.f32 %v5641, 1.0
        %v5842 = vadd.f32 %v5642, 1.0
        %v5843 = vadd.f32 %v5643, 1.0
        %v5844 = vadd.f32 %v5644, 1.0
        %v5845 = vadd.f32 %v5645, 1.0
        %v5846 = vadd.f32 %v5646, 1.0
        %v5847 = vadd.f32 %v5647, 1.0
        %v5848 = vadd.f32 %v5648, 1.0
        %v5849 = vadd.f32 %v5649, 1.0
        %v5850 = vadd.f32 %v5650, 1.0
        %v5851 = vadd.f32 %v5651, 1.0
        %v5852 = vadd.f32 %v5652, 1.0
        %v5853 = vadd.f32 %v5653, 1.0
        %v5854 = vadd.f32 %v5654, 1.0
        %v5855 = vadd.f32 %v5655, 1.0
        %v5856 = vadd.f32 %v5656, 1.0
        %v5857 = vadd.f32 %v5657, 1.0
        %v5858 = vadd.f32 %v5658, 1.0
        %v5859 = vadd.f32 %v5659, 1.0
        %v5860 = vadd.f32 %v5660, 1.0
        %v5861 = vadd.f32 %v5661, 1.0
        %v5862 = vadd.f32 %v5662, 1.0
        %v5863 = vadd.f32 %v5663, 1.0
        %v5864 = vadd.f32 %v5664, 1.0
        %v5865 = vadd.f32 %v5665, 1.0
        %v5866 = vadd.f32 %v5666, 1.0
        %v5867 = vadd.f32 %v5667, 1.0
        %v5868 = vadd.f32 %v5668, 1.0
        %v5869 = vadd.f32 %v5669, 1.0
        %v5870 = vadd.f32 %v5670, 1.0
        %v5871 = vadd.f32 %v5671, 1.0
        %v5872 = vadd.f32 %v5672, 1.0
        %v5873 = vadd.f32 %v5673, 1.0
        %v5874 = vadd.f32 %v5674, 1.0
        %v5875 = vadd.f32 %v5675, 1.0
        %v5876 = vadd.f32 %v5676, 1.0
        %v5877 = vadd.f32 %v5677, 1.0
        %v5878 = vadd.f32 %v5678, 1.0
        %v5879 = vadd.f32 %v5679, 1.0
        %v5880 = vadd.f32 %v5680, 1.0
        %v5881 = vadd.f32 %v5681, 1.0
        %v5882 = vmul.f32 %v5082, %v5682
        %v5883 = vmul.f32 %v5083, %v5683
        %v5884 = vmul.f32 %v5084, %v5684
        %v5885 = vmul.f32 %v5085, %v5685
        %v5886 = vmul.f32 %v5086, %v5686
        %v5887 = vmul.f32 %v5087, %v5687
        %v5888 = vmul.f32 %v5088, %v5688
        %v5889 = vmul.f32 %v5089, %v5689
        %v5890 = vmul.f32 %v5090, %v5690
        %v5891 = vmul.f32 %v5091, %v5691
        %v5892 = vmul.f32 %v5092, %v5692
        %v5893 = vmul.f32 %v5093, %v5693
        %v5894 = vmul.f32 %v5094, %v5694
        %v5895 = vmul.f32 %v5095, %v5695
        %v5896 = vmul.f32 %v5096, %v5696
        %v5897 = vmul.f32 %v5097, %v5697
        %v5898 = vmul.f32 %v5098, %v5698
        %v5899 = vmul.f32 %v5099, %v5699
        %v5900 = vmul.f32 %v5100, %v5700
        %v5901 = vmul.f32 %v5101, %v5701
        %v5902 = vmul.f32 %v5102, %v5702
        %v5903 = vmul.f32 %v5103, %v5703
        %v5904 = vmul.f32 %v5104, %v5704
        %v5905 = vmul.f32 %v5105, %v5705
        %v5906 = vmul.f32 %v5106, %v5706
        %v5907 = vmul.f32 %v5107, %v5707
        %v5908 = vmul.f32 %v5108, %v5708
        %v5909 = vmul.f32 %v5109, %v5709
        %v5910 = vmul.f32 %v5110, %v5710
        %v5911 = vmul.f32 %v5111, %v5711
        %v5912 = vmul.f32 %v5112, %v5712
        %v5913 = vmul.f32 %v5113, %v5713
        %v5914 = vmul.f32 %v5114, %v5714
        %v5915 = vmul.f32 %v5115, %v5715
        %v5916 = vmul.f32 %v5116, %v5716
        %v5917 = vmul.f32 %v5117, %v5717
        %v5918 = vmul.f32 %v5118, %v5718
        %v5919 = vmul.f32 %v5119, %v5719
        %v5920 = vmul.f32 %v5120, %v5720
        %v5921 = vmul.f32 %v5121, %v5721
        %v5922 = vmul.f32 %v5122, %v5722
        %v5923 = vmul.f32 %v5123, %v5723
        %v5924 = vmul.f32 %v5124, %v5724
        %v5925 = vmul.f32 %v5125, %v5725
        %v5926 = vmul.f32 %v5126, %v5726
        %v5927 = vmul.f32 %v5127, %v5727
        %v5928 = vmul.f32 %v5128, %v5728
        %v5929 = vmul.f32 %v5129, %v5729
        %v5930 = vmul.f32 %v5130, %v5730
        %v5931 = vmul.f32 %v5131, %v5731
        %v5932 = vmul.f32 %v5132, %v5732
        %v5933 = vmul.f32 %v5133, %v5733
        %v5934 = vmul.f32 %v5134, %v5734
        %v5935 = vmul.f32 %v5135, %v5735
        %v5936 = vmul.f32 %v5136, %v5736
        %v5937 = vmul.f32 %v5137, %v5737
        %v5938 = vmul.f32 %v5138, %v5738
        %v5939 = vmul.f32 %v5139, %v5739
        %v5940 = vmul.f32 %v5140, %v5740
        %v5941 = vmul.f32 %v5141, %v5741
        %v5942 = vmul.f32 %v5142, %v5742
        %v5943 = vmul.f32 %v5143, %v5743
        %v5944 = vmul.f32 %v5144, %v5744
        %v5945 = vmul.f32 %v5145, %v5745
        %v5946 = vmul.f32 %v5146, %v5746
        %v5947 = vmul.f32 %v5147, %v5747
        %v5948 = vmul.f32 %v5148, %v5748
        %v5949 = vmul.f32 %v5149, %v5749
        %v5950 = vmul.f32 %v5150, %v5750
        %v5951 = vmul.f32 %v5151, %v5751
        %v5952 = vmul.f32 %v5152, %v5752
        %v5953 = vmul.f32 %v5153, %v5753
        %v5954 = vmul.f32 %v5154, %v5754
        %v5955 = vmul.f32 %v5155, %v5755
        %v5956 = vmul.f32 %v5156, %v5756
        %v5957 = vmul.f32 %v5157, %v5757
        %v5958 = vmul.f32 %v5158, %v5758
        %v5959 = vmul.f32 %v5159, %v5759
        %v5960 = vmul.f32 %v5160, %v5760
        %v5961 = vmul.f32 %v5161, %v5761
        %v5962 = vmul.f32 %v5162, %v5762
        %v5963 = vmul.f32 %v5163, %v5763
        %v5964 = vmul.f32 %v5164, %v5764
        %v5965 = vmul.f32 %v5165, %v5765
        %v5966 = vmul.f32 %v5166, %v5766
        %v5967 = vmul.f32 %v5167, %v5767
        %v5968 = vmul.f32 %v5168, %v5768
        %v5969 = vmul.f32 %v5169, %v5769
        %v5970 = vmul.f32 %v5170, %v5770
        %v5971 = vmul.f32 %v5171, %v5771
        %v5972 = vmul.f32 %v5172, %v5772
        %v5973 = vmul.f32 %v5173, %v5773
        %v5974 = vmul.f32 %v5174, %v5774
        %v5975 = vmul.f32 %v5175, %v5775
        %v5976 = vmul.f32 %v5176, %v5776
        %v5977 = vmul.f32 %v5177, %v5777
        %v5978 = vmul.f32 %v5178, %v5778
        %v5979 = vmul.f32 %v5179, %v5779
        %v5980 = vmul.f32 %v5180, %v5780
        %v5981 = vmul.f32 %v5181, %v5781
        %v5982 = vmul.f32 %v5182, %v5782
        %v5983 = vmul.f32 %v5183, %v5783
        %v5984 = vmul.f32 %v5184, %v5784
        %v5985 = vmul.f32 %v5185, %v5785
        %v5986 = vmul.f32 %v5186, %v5786
        %v5987 = vmul.f32 %v5187, %v5787
        %v5988 = vmul.f32 %v5188, %v5788
        %v5989 = vmul.f32 %v5189, %v5789
        %v5990 = vmul.f32 %v5190, %v5790
        %v5991 = vmul.f32 %v5191, %v5791
        %v5992 = vmul.f32 %v5192, %v5792
        %v5993 = vmul.f32 %v5193, %v5793
        %v5994 = vmul.f32 %v5194, %v5794
        %v5995 = vmul.f32 %v5195, %v5795
        %v5996 = vmul.f32 %v5196, %v5796
        %v5997 = vmul.f32 %v5197, %v5797
        %v5998 = vmul.f32 %v5198, %v5798
        %v5999 = vmul.f32 %v5199, %v5799
        %v6000 = vmul.f32 %v5200, %v5800
        %v6001 = vmul.f32 %v5201, %v5801
        %v6002 = vmul.f32 %v5202, %v5802
        %v6003 = vmul.f32 %v5203, %v5803
        %v6004 = vmul.f32 %v5204, %v5804
        %v6005 = vmul.f32 %v5205, %v5805
        %v6006 = vmul.f32 %v5206, %v5806
        %v6007 = vmul.f32 %v5207, %v5807
        %v6008 = vmul.f32 %v5208, %v5808
        %v6009 = vmul.f32 %v5209, %v5809
        %v6010 = vmul.f32 %v5210, %v5810
        %v6011 = vmul.f32 %v5211, %v5811
        %v6012 = vmul.f32 %v5212, %v5812
        %v6013 = vmul.f32 %v5213, %v5813
        %v6014 = vmul.f32 %v5214, %v5814
        %v6015 = vmul.f32 %v5215, %v5815
        %v6016 = vmul.f32 %v5216, %v5816
        %v6017 = vmul.f32 %v5217, %v5817
        %v6018 = vmul.f32 %v5218, %v5818
        %v6019 = vmul.f32 %v5219, %v5819
        %v6020 = vmul.f32 %v5220, %v5820
        %v6021 = vmul.f32 %v5221, %v5821
        %v6022 = vmul.f32 %v5222, %v5822
        %v6023 = vmul.f32 %v5223, %v5823
        %v6024 = vmul.f32 %v5224, %v5824
        %v6025 = vmul.f32 %v5225, %v5825
        %v6026 = vmul.f32 %v5226, %v5826
        %v6027 = vmul.f32 %v5227, %v5827
        %v6028 = vmul.f32 %v5228, %v5828
        %v6029 = vmul.f32 %v5229, %v5829
        %v6030 = vmul.f32 %v5230, %v5830
        %v6031 = vmul.f32 %v5231, %v5831
        %v6032 = vmul.f32 %v5232, %v5832
        %v6033 = vmul.f32 %v5233, %v5833
        %v6034 = vmul.f32 %v5234, %v5834
        %v6035 = vmul.f32 %v5235, %v5835
        %v6036 = vmul.f32 %v5236, %v5836
        %v6037 = vmul.f32 %v5237, %v5837
        %v6038 = vmul.f32 %v5238, %v5838
        %v6039 = vmul.f32 %v5239, %v5839
        %v6040 = vmul.f32 %v5240, %v5840
        %v6041 = vmul.f32 %v5241, %v5841
        %v6042 = vmul.f32 %v5242, %v5842
        %v6043 = vmul.f32 %v5243, %v5843
        %v6044 = vmul.f32 %v5244, %v5844
        %v6045 = vmul.f32 %v5245, %v5845
        %v6046 = vmul.f32 %v5246, %v5846
        %v6047 = vmul.f32 %v5247, %v5847
        %v6048 = vmul.f32 %v5248, %v5848
        %v6049 = vmul.f32 %v5249, %v5849
        %v6050 = vmul.f32 %v5250, %v5850
        %v6051 = vmul.f32 %v5251, %v5851
        %v6052 = vmul.f32 %v5252, %v5852
        %v6053 = vmul.f32 %v5253, %v5853
        %v6054 = vmul.f32 %v5254, %v5854
        %v6055 = vmul.f32 %v5255, %v5855
        %v6056 = vmul.f32 %v5256, %v5856
        %v6057 = vmul.f32 %v5257, %v5857
        %v6058 = vmul.f32 %v5258, %v5858
        %v6059 = vmul.f32 %v5259, %v5859
        %v6060 = vmul.f32 %v5260, %v5860
        %v6061 = vmul.f32 %v5261, %v5861
        %v6062 = vmul.f32 %v5262, %v5862
        %v6063 = vmul.f32 %v5263, %v5863
        %v6064 = vmul.f32 %v5264, %v5864
        %v6065 = vmul.f32 %v5265, %v5865
        %v6066 = vmul.f32 %v5266, %v5866
        %v6067 = vmul.f32 %v5267, %v5867
        %v6068 = vmul.f32 %v5268, %v5868
        %v6069 = vmul.f32 %v5269, %v5869
        %v6070 = vmul.f32 %v5270, %v5870
        %v6071 = vmul.f32 %v5271, %v5871
        %v6072 = vmul.f32 %v5272, %v5872
        %v6073 = vmul.f32 %v5273, %v5873
        %v6074 = vmul.f32 %v5274, %v5874
        %v6075 = vmul.f32 %v5275, %v5875
        %v6076 = vmul.f32 %v5276, %v5876
        %v6077 = vmul.f32 %v5277, %v5877
        %v6078 = vmul.f32 %v5278, %v5878
        %v6079 = vmul.f32 %v5279, %v5879
        %v6080 = vmul.f32 %v5280, %v5880
        %v6081 = vmul.f32 %v5281, %v5881
        %v6082 = vld [vmem:[#allocation3] sm:$0xff]
        %v6083 = vld [vmem:[#allocation3 + $0x8] sm:$0xff]
        %v6084 = vld [vmem:[#allocation3 + $0x10] sm:$0xff]
        %v6085 = vld [vmem:[#allocation3 + $0x18] sm:$0xff]
        %v6086 = vld [vmem:[#allocation3 + $0x20] sm:$0xff]
        %v6087 = vld [vmem:[#allocation3 + $0x28] sm:$0xff]
        %v6088 = vld [vmem:[#allocation3 + $0x30] sm:$0xff]
        %v6089 = vld [vmem:[#allocation3 + $0x38] sm:$0xff]
        %v6090 = vld [vmem:[#allocation3 + $0x40] sm:$0xff]
        %v6091 = vld [vmem:[#allocation3 + $0x48] sm:$0xff]
        %v6092 = vld [vmem:[#allocation3 + $0x50] sm:$0xff]
        %v6093 = vld [vmem:[#allocation3 + $0x58] sm:$0xff]
        %v6094 = vld [vmem:[#allocation3 + $0x60] sm:$0xff]
        %v6095 = vld [vmem:[#allocation3 + $0x68] sm:$0xff]
        %v6096 = vld [vmem:[#allocation3 + $0x70] sm:$0xff]
        %v6097 = vld [vmem:[#allocation3 + $0x78] sm:$0xff]
        %v6098 = vld [vmem:[#allocation3 + $0x80] sm:$0xff]
        %v6099 = vld [vmem:[#allocation3 + $0x88] sm:$0xff]
        %v6100 = vld [vmem:[#allocation3 + $0x90] sm:$0xff]
        %v6101 = vld [vmem:[#allocation3 + $0x98] sm:$0xff]
        %v6102 = vld [vmem:[#allocation3 + $0xa0] sm:$0xff]
        %v6103 = vld [vmem:[#allocation3 + $0xa8] sm:$0xff]
        %v6104 = vld [vmem:[#allocation3 + $0xb0] sm:$0xff]
        %v6105 = vld [vmem:[#allocation3 + $0xb8] sm:$0xff]
        %v6106 = vld [vmem:[#allocation3 + $0xc0] sm:$0xff]
        %v6107 = vld [vmem:[#allocation3 + $0xc8] sm:$0xff]
        %v6108 = vld [vmem:[#allocation3 + $0xd0] sm:$0xff]
        %v6109 = vld [vmem:[#allocation3 + $0xd8] sm:$0xff]
        %v6110 = vld [vmem:[#allocation3 + $0xe0] sm:$0xff]
        %v6111 = vld [vmem:[#allocation3 + $0xe8] sm:$0xff]
        %v6112 = vld [vmem:[#allocation3 + $0xf0] sm:$0xff]
        %v6113 = vld [vmem:[#allocation3 + $0xf8] sm:$0xff]
        %v6114 = vld [vmem:[#allocation3 + $0x100] sm:$0xff]
        %v6115 = vld [vmem:[#allocation3 + $0x108] sm:$0xff]
        %v6116 = vld [vmem:[#allocation3 + $0x110] sm:$0xff]
        %v6117 = vld [vmem:[#allocation3 + $0x118] sm:$0xff]
        %v6118 = vld [vmem:[#allocation3 + $0x120] sm:$0xff]
        %v6119 = vld [vmem:[#allocation3 + $0x128] sm:$0xff]
        %v6120 = vld [vmem:[#allocation3 + $0x130] sm:$0xff]
        %v6121 = vld [vmem:[#allocation3 + $0x138] sm:$0xff]
        %v6122 = vld [vmem:[#allocation3 + $0x140] sm:$0xff]
        %v6123 = vld [vmem:[#allocation3 + $0x148] sm:$0xff]
        %v6124 = vld [vmem:[#allocation3 + $0x150] sm:$0xff]
        %v6125 = vld [vmem:[#allocation3 + $0x158] sm:$0xff]
        %v6126 = vld [vmem:[#allocation3 + $0x160] sm:$0xff]
        %v6127 = vld [vmem:[#allocation3 + $0x168] sm:$0xff]
        %v6128 = vld [vmem:[#allocation3 + $0x170] sm:$0xff]
        %v6129 = vld [vmem:[#allocation3 + $0x178] sm:$0xff]
        %v6130 = vld [vmem:[#allocation3 + $0x180] sm:$0xff]
        %v6131 = vld [vmem:[#allocation3 + $0x188] sm:$0xff]
        %v6132 = vld [vmem:[#allocation3 + $0x190] sm:$0xff]
        %v6133 = vld [vmem:[#allocation3 + $0x198] sm:$0xff]
        %v6134 = vld [vmem:[#allocation3 + $0x1a0] sm:$0xff]
        %v6135 = vld [vmem:[#allocation3 + $0x1a8] sm:$0xff]
        %v6136 = vld [vmem:[#allocation3 + $0x1b0] sm:$0xff]
        %v6137 = vld [vmem:[#allocation3 + $0x1b8] sm:$0xff]
        %v6138 = vld [vmem:[#allocation3 + $0x1c0] sm:$0xff]
        %v6139 = vld [vmem:[#allocation3 + $0x1c8] sm:$0xff]
        %v6140 = vld [vmem:[#allocation3 + $0x1d0] sm:$0xff]
        %v6141 = vld [vmem:[#allocation3 + $0x1d8] sm:$0xff]
        %v6142 = vld [vmem:[#allocation3 + $0x1e0] sm:$0xff]
        %v6143 = vld [vmem:[#allocation3 + $0x1e8] sm:$0xff]
        %v6144 = vld [vmem:[#allocation3 + $0x1f0] sm:$0xff]
        %v6145 = vld [vmem:[#allocation3 + $0x1f8] sm:$0xff]
        %v6146 = vld [vmem:[#allocation3 + $0x200] sm:$0xff]
        %v6147 = vld [vmem:[#allocation3 + $0x208] sm:$0xff]
        %v6148 = vld [vmem:[#allocation3 + $0x210] sm:$0xff]
        %v6149 = vld [vmem:[#allocation3 + $0x218] sm:$0xff]
        %v6150 = vld [vmem:[#allocation3 + $0x220] sm:$0xff]
        %v6151 = vld [vmem:[#allocation3 + $0x228] sm:$0xff]
        %v6152 = vld [vmem:[#allocation3 + $0x230] sm:$0xff]
        %v6153 = vld [vmem:[#allocation3 + $0x238] sm:$0xff]
        %v6154 = vld [vmem:[#allocation3 + $0x240] sm:$0xff]
        %v6155 = vld [vmem:[#allocation3 + $0x248] sm:$0xff]
        %v6156 = vld [vmem:[#allocation3 + $0x250] sm:$0xff]
        %v6157 = vld [vmem:[#allocation3 + $0x258] sm:$0xff]
        %v6158 = vld [vmem:[#allocation3 + $0x260] sm:$0xff]
        %v6159 = vld [vmem:[#allocation3 + $0x268] sm:$0xff]
        %v6160 = vld [vmem:[#allocation3 + $0x270] sm:$0xff]
        %v6161 = vld [vmem:[#allocation3 + $0x278] sm:$0xff]
        %v6162 = vld [vmem:[#allocation3 + $0x280] sm:$0xff]
        %v6163 = vld [vmem:[#allocation3 + $0x288] sm:$0xff]
        %v6164 = vld [vmem:[#allocation3 + $0x290] sm:$0xff]
        %v6165 = vld [vmem:[#allocation3 + $0x298] sm:$0xff]
        %v6166 = vld [vmem:[#allocation3 + $0x2a0] sm:$0xff]
        %v6167 = vld [vmem:[#allocation3 + $0x2a8] sm:$0xff]
        %v6168 = vld [vmem:[#allocation3 + $0x2b0] sm:$0xff]
        %v6169 = vld [vmem:[#allocation3 + $0x2b8] sm:$0xff]
        %v6170 = vld [vmem:[#allocation3 + $0x2c0] sm:$0xff]
        %v6171 = vld [vmem:[#allocation3 + $0x2c8] sm:$0xff]
        %v6172 = vld [vmem:[#allocation3 + $0x2d0] sm:$0xff]
        %v6173 = vld [vmem:[#allocation3 + $0x2d8] sm:$0xff]
        %v6174 = vld [vmem:[#allocation3 + $0x2e0] sm:$0xff]
        %v6175 = vld [vmem:[#allocation3 + $0x2e8] sm:$0xff]
        %v6176 = vld [vmem:[#allocation3 + $0x2f0] sm:$0xff]
        %v6177 = vld [vmem:[#allocation3 + $0x2f8] sm:$0xff]
        %v6178 = vld [vmem:[#allocation3 + $0x300] sm:$0xf]
        %v6179 = vld [vmem:[#allocation3 + $0x308] sm:$0xf]
        %v6180 = vld [vmem:[#allocation3 + $0x310] sm:$0xf]
        %v6181 = vld [vmem:[#allocation3 + $0x318] sm:$0xf]
        %v6182 = vpack.c.bf16 %v5890, %v5882
        %v6183 = vpack.c.bf16 %v5891, %v5883
        %v6184 = vpack.c.bf16 %v5892, %v5884
        %v6185 = vpack.c.bf16 %v5893, %v5885
        %v6186 = vpack.c.bf16 %v5894, %v5886
        %v6187 = vpack.c.bf16 %v5895, %v5887
        %v6188 = vpack.c.bf16 %v5896, %v5888
        %v6189 = vpack.c.bf16 %v5897, %v5889
        %v6190 = vpack.c.bf16 %v5906, %v5898
        %v6191 = vpack.c.bf16 %v5907, %v5899
        %v6192 = vpack.c.bf16 %v5908, %v5900
        %v6193 = vpack.c.bf16 %v5909, %v5901
        %v6194 = vpack.c.bf16 %v5910, %v5902
        %v6195 = vpack.c.bf16 %v5911, %v5903
        %v6196 = vpack.c.bf16 %v5912, %v5904
        %v6197 = vpack.c.bf16 %v5913, %v5905
        %v6198 = vpack.c.bf16 %v5922, %v5914
        %v6199 = vpack.c.bf16 %v5923, %v5915
        %v6200 = vpack.c.bf16 %v5924, %v5916
        %v6201 = vpack.c.bf16 %v5925, %v5917
        %v6202 = vpack.c.bf16 %v5926, %v5918
        %v6203 = vpack.c.bf16 %v5927, %v5919
        %v6204 = vpack.c.bf16 %v5928, %v5920
        %v6205 = vpack.c.bf16 %v5929, %v5921
        %v6206 = vpack.c.bf16 %v5938, %v5930
        %v6207 = vpack.c.bf16 %v5939, %v5931
        %v6208 = vpack.c.bf16 %v5940, %v5932
        %v6209 = vpack.c.bf16 %v5941, %v5933
        %v6210 = vpack.c.bf16 %v5942, %v5934
        %v6211 = vpack.c.bf16 %v5943, %v5935
        %v6212 = vpack.c.bf16 %v5944, %v5936
        %v6213 = vpack.c.bf16 %v5945, %v5937
        %v6214 = vpack.c.bf16 %v5954, %v5946
        %v6215 = vpack.c.bf16 %v5955, %v5947
        %v6216 = vpack.c.bf16 %v5956, %v5948
        %v6217 = vpack.c.bf16 %v5957, %v5949
        %v6218 = vpack.c.bf16 %v5958, %v5950
        %v6219 = vpack.c.bf16 %v5959, %v5951
        %v6220 = vpack.c.bf16 %v5960, %v5952
        %v6221 = vpack.c.bf16 %v5961, %v5953
        %v6222 = vpack.c.bf16 %v5970, %v5962
        %v6223 = vpack.c.bf16 %v5971, %v5963
        %v6224 = vpack.c.bf16 %v5972, %v5964
        %v6225 = vpack.c.bf16 %v5973, %v5965
        %v6226 = vpack.c.bf16 %v5974, %v5966
        %v6227 = vpack.c.bf16 %v5975, %v5967
        %v6228 = vpack.c.bf16 %v5976, %v5968
        %v6229 = vpack.c.bf16 %v5977, %v5969
        %v6230 = vpack.c.bf16 %v5986, %v5978
        %v6231 = vpack.c.bf16 %v5987, %v5979
        %v6232 = vpack.c.bf16 %v5988, %v5980
        %v6233 = vpack.c.bf16 %v5989, %v5981
        %v6234 = vpack.c.bf16 %v5990, %v5982
        %v6235 = vpack.c.bf16 %v5991, %v5983
        %v6236 = vpack.c.bf16 %v5992, %v5984
        %v6237 = vpack.c.bf16 %v5993, %v5985
        %v6238 = vpack.c.bf16 %v6002, %v5994
        %v6239 = vpack.c.bf16 %v6003, %v5995
        %v6240 = vpack.c.bf16 %v6004, %v5996
        %v6241 = vpack.c.bf16 %v6005, %v5997
        %v6242 = vpack.c.bf16 %v6006, %v5998
        %v6243 = vpack.c.bf16 %v6007, %v5999
        %v6244 = vpack.c.bf16 %v6008, %v6000
        %v6245 = vpack.c.bf16 %v6009, %v6001
        %v6246 = vpack.c.bf16 %v6018, %v6010
        %v6247 = vpack.c.bf16 %v6019, %v6011
        %v6248 = vpack.c.bf16 %v6020, %v6012
        %v6249 = vpack.c.bf16 %v6021, %v6013
        %v6250 = vpack.c.bf16 %v6022, %v6014
        %v6251 = vpack.c.bf16 %v6023, %v6015
        %v6252 = vpack.c.bf16 %v6024, %v6016
        %v6253 = vpack.c.bf16 %v6025, %v6017
        %v6254 = vpack.c.bf16 %v6034, %v6026
        %v6255 = vpack.c.bf16 %v6035, %v6027
        %v6256 = vpack.c.bf16 %v6036, %v6028
        %v6257 = vpack.c.bf16 %v6037, %v6029
        %v6258 = vpack.c.bf16 %v6038, %v6030
        %v6259 = vpack.c.bf16 %v6039, %v6031
        %v6260 = vpack.c.bf16 %v6040, %v6032
        %v6261 = vpack.c.bf16 %v6041, %v6033
        %v6262 = vpack.c.bf16 %v6050, %v6042
        %v6263 = vpack.c.bf16 %v6051, %v6043
        %v6264 = vpack.c.bf16 %v6052, %v6044
        %v6265 = vpack.c.bf16 %v6053, %v6045
        %v6266 = vpack.c.bf16 %v6054, %v6046
        %v6267 = vpack.c.bf16 %v6055, %v6047
        %v6268 = vpack.c.bf16 %v6056, %v6048
        %v6269 = vpack.c.bf16 %v6057, %v6049
        %v6270 = vpack.c.bf16 %v6066, %v6058
        %v6271 = vpack.c.bf16 %v6067, %v6059
        %v6272 = vpack.c.bf16 %v6068, %v6060
        %v6273 = vpack.c.bf16 %v6069, %v6061
        %v6274 = vpack.c.bf16 %v6070, %v6062
        %v6275 = vpack.c.bf16 %v6071, %v6063
        %v6276 = vpack.c.bf16 %v6072, %v6064
        %v6277 = vpack.c.bf16 %v6073, %v6065
        %v6278 = vpack.c.bf16 %v6074, %v6074
        %v6279 = vpack.c.bf16 %v6075, %v6075
        %v6280 = vpack.c.bf16 %v6076, %v6076
        %v6281 = vpack.c.bf16 %v6077, %v6077
        %v6282 = vpack.c.bf16 %v6078, %v6078
        %v6283 = vpack.c.bf16 %v6079, %v6079
        %v6284 = vpack.c.bf16 %v6080, %v6080
        %v6285 = vpack.c.bf16 %v6081, %v6081
        %v6286 = vld [vmem:[%s381] sm:$0xff]
        %v6287 = vld [vmem:[%s381 + $0x8] sm:$0xff]
        %v6288 = vld [vmem:[%s381 + $0x10] sm:$0xff]
        %v6289 = vld [vmem:[%s381 + $0x18] sm:$0xff]
        %v6290 = vld [vmem:[%s381 + $0x20] sm:$0xff]
        %v6291 = vld [vmem:[%s381 + $0x28] sm:$0xff]
        %v6292 = vld [vmem:[%s381 + $0x30] sm:$0xff]
        %v6293 = vld [vmem:[%s381 + $0x38] sm:$0xff]
        %v6294 = vld [vmem:[%s381 + $0x40] sm:$0xff]
        %v6295 = vld [vmem:[%s381 + $0x48] sm:$0xff]
        %v6296 = vld [vmem:[%s381 + $0x50] sm:$0xff]
        %v6297 = vld [vmem:[%s381 + $0x58] sm:$0xff]
        %v6298 = vld [vmem:[%s381 + $0x60] sm:$0xff]
        %v6299 = vld [vmem:[%s381 + $0x68] sm:$0xff]
        %v6300 = vld [vmem:[%s381 + $0x70] sm:$0xff]
        %v6301 = vld [vmem:[%s381 + $0x78] sm:$0xff]
        %v6302 = vld [vmem:[%s381 + $0x80] sm:$0xff]
        %v6303 = vld [vmem:[%s381 + $0x88] sm:$0xff]
        %v6304 = vld [vmem:[%s381 + $0x90] sm:$0xff]
        %v6305 = vld [vmem:[%s381 + $0x98] sm:$0xff]
        %v6306 = vld [vmem:[%s381 + $0xa0] sm:$0xff]
        %v6307 = vld [vmem:[%s381 + $0xa8] sm:$0xff]
        %v6308 = vld [vmem:[%s381 + $0xb0] sm:$0xff]
        %v6309 = vld [vmem:[%s381 + $0xb8] sm:$0xff]
        %v6310 = vld [vmem:[%s381 + $0xc0] sm:$0xff]
        %v6311 = vld [vmem:[%s381 + $0xc8] sm:$0xff]
        %v6312 = vld [vmem:[%s381 + $0xd0] sm:$0xff]
        %v6313 = vld [vmem:[%s381 + $0xd8] sm:$0xff]
        %v6314 = vld [vmem:[%s381 + $0xe0] sm:$0xff]
        %v6315 = vld [vmem:[%s381 + $0xe8] sm:$0xff]
        %v6316 = vld [vmem:[%s381 + $0xf0] sm:$0xff]
        %v6317 = vld [vmem:[%s381 + $0xf8] sm:$0xff]
        %v6318 = vld [vmem:[%s381 + $0x100] sm:$0xff]
        %v6319 = vld [vmem:[%s381 + $0x108] sm:$0xff]
        %v6320 = vld [vmem:[%s381 + $0x110] sm:$0xff]
        %v6321 = vld [vmem:[%s381 + $0x118] sm:$0xff]
        %v6322 = vld [vmem:[%s381 + $0x120] sm:$0xff]
        %v6323 = vld [vmem:[%s381 + $0x128] sm:$0xff]
        %v6324 = vld [vmem:[%s381 + $0x130] sm:$0xff]
        %v6325 = vld [vmem:[%s381 + $0x138] sm:$0xff]
        %v6326 = vld [vmem:[%s381 + $0x140] sm:$0xff]
        %v6327 = vld [vmem:[%s381 + $0x148] sm:$0xff]
        %v6328 = vld [vmem:[%s381 + $0x150] sm:$0xff]
        %v6329 = vld [vmem:[%s381 + $0x158] sm:$0xff]
        %v6330 = vld [vmem:[%s381 + $0x160] sm:$0xff]
        %v6331 = vld [vmem:[%s381 + $0x168] sm:$0xff]
        %v6332 = vld [vmem:[%s381 + $0x170] sm:$0xff]
        %v6333 = vld [vmem:[%s381 + $0x178] sm:$0xff]
        %v6334 = vld [vmem:[%s381 + $0x180] sm:$0xff]
        %v6335 = vld [vmem:[%s381 + $0x188] sm:$0xff]
        %v6336 = vld [vmem:[%s381 + $0x190] sm:$0xff]
        %v6337 = vld [vmem:[%s381 + $0x198] sm:$0xff]
        %v6338 = vld [vmem:[%s381 + $0x1a0] sm:$0xff]
        %v6339 = vld [vmem:[%s381 + $0x1a8] sm:$0xff]
        %v6340 = vld [vmem:[%s381 + $0x1b0] sm:$0xff]
        %v6341 = vld [vmem:[%s381 + $0x1b8] sm:$0xff]
        %v6342 = vld [vmem:[%s381 + $0x1c0] sm:$0xff]
        %v6343 = vld [vmem:[%s381 + $0x1c8] sm:$0xff]
        %v6344 = vld [vmem:[%s381 + $0x1d0] sm:$0xff]
        %v6345 = vld [vmem:[%s381 + $0x1d8] sm:$0xff]
        %v6346 = vld [vmem:[%s381 + $0x1e0] sm:$0xff]
        %v6347 = vld [vmem:[%s381 + $0x1e8] sm:$0xff]
        %v6348 = vld [vmem:[%s381 + $0x1f0] sm:$0xff]
        %v6349 = vld [vmem:[%s381 + $0x1f8] sm:$0xff]
        %v6350 = vld [vmem:[%s381 + $0x200] sm:$0xff]
        %v6351 = vld [vmem:[%s381 + $0x208] sm:$0xff]
        %v6352 = vld [vmem:[%s381 + $0x210] sm:$0xff]
        %v6353 = vld [vmem:[%s381 + $0x218] sm:$0xff]
        %v6354 = vld [vmem:[%s381 + $0x220] sm:$0xff]
        %v6355 = vld [vmem:[%s381 + $0x228] sm:$0xff]
        %v6356 = vld [vmem:[%s381 + $0x230] sm:$0xff]
        %v6357 = vld [vmem:[%s381 + $0x238] sm:$0xff]
        %v6358 = vld [vmem:[%s381 + $0x240] sm:$0xff]
        %v6359 = vld [vmem:[%s381 + $0x248] sm:$0xff]
        %v6360 = vld [vmem:[%s381 + $0x250] sm:$0xff]
        %v6361 = vld [vmem:[%s381 + $0x258] sm:$0xff]
        %v6362 = vld [vmem:[%s381 + $0x260] sm:$0xff]
        %v6363 = vld [vmem:[%s381 + $0x268] sm:$0xff]
        %v6364 = vld [vmem:[%s381 + $0x270] sm:$0xff]
        %v6365 = vld [vmem:[%s381 + $0x278] sm:$0xff]
        %v6366 = vld [vmem:[%s381 + $0x280] sm:$0xff]
        %v6367 = vld [vmem:[%s381 + $0x288] sm:$0xff]
        %v6368 = vld [vmem:[%s381 + $0x290] sm:$0xff]
        %v6369 = vld [vmem:[%s381 + $0x298] sm:$0xff]
        %v6370 = vld [vmem:[%s381 + $0x2a0] sm:$0xff]
        %v6371 = vld [vmem:[%s381 + $0x2a8] sm:$0xff]
        %v6372 = vld [vmem:[%s381 + $0x2b0] sm:$0xff]
        %v6373 = vld [vmem:[%s381 + $0x2b8] sm:$0xff]
        %v6374 = vld [vmem:[%s381 + $0x2c0] sm:$0xff]
        %v6375 = vld [vmem:[%s381 + $0x2c8] sm:$0xff]
        %v6376 = vld [vmem:[%s381 + $0x2d0] sm:$0xff]
        %v6377 = vld [vmem:[%s381 + $0x2d8] sm:$0xff]
        %v6378 = vld [vmem:[%s381 + $0x2e0] sm:$0xff]
        %v6379 = vld [vmem:[%s381 + $0x2e8] sm:$0xff]
        %v6380 = vld [vmem:[%s381 + $0x2f0] sm:$0xff]
        %v6381 = vld [vmem:[%s381 + $0x2f8] sm:$0xff]
        %v6382 = vld [vmem:[%s381 + $0x300] sm:$0xff]
        %v6383 = vld [vmem:[%s381 + $0x308] sm:$0xff]
        %v6384 = vld [vmem:[%s381 + $0x310] sm:$0xff]
        %v6385 = vld [vmem:[%s381 + $0x318] sm:$0xff]
        %v6386 = vld [vmem:[%s381 + $0x320] sm:$0xff]
        %v6387 = vld [vmem:[%s381 + $0x328] sm:$0xff]
        %v6388 = vld [vmem:[%s381 + $0x330] sm:$0xff]
        %v6389 = vld [vmem:[%s381 + $0x338] sm:$0xff]
        %v6390 = vld [vmem:[%s381 + $0x340] sm:$0xff]
        %v6391 = vld [vmem:[%s381 + $0x348] sm:$0xff]
        %v6392 = vld [vmem:[%s381 + $0x350] sm:$0xff]
        %v6393 = vld [vmem:[%s381 + $0x358] sm:$0xff]
        %v6394 = vld [vmem:[%s381 + $0x360] sm:$0xff]
        %v6395 = vld [vmem:[%s381 + $0x368] sm:$0xff]
        %v6396 = vld [vmem:[%s381 + $0x370] sm:$0xff]
        %v6397 = vld [vmem:[%s381 + $0x378] sm:$0xff]
        %v6398 = vld [vmem:[%s381 + $0x380] sm:$0xff]
        %v6399 = vld [vmem:[%s381 + $0x388] sm:$0xff]
        %v6400 = vld [vmem:[%s381 + $0x390] sm:$0xff]
        %v6401 = vld [vmem:[%s381 + $0x398] sm:$0xff]
        %v6402 = vld [vmem:[%s381 + $0x3a0] sm:$0xff]
        %v6403 = vld [vmem:[%s381 + $0x3a8] sm:$0xff]
        %v6404 = vld [vmem:[%s381 + $0x3b0] sm:$0xff]
        %v6405 = vld [vmem:[%s381 + $0x3b8] sm:$0xff]
        %v6406 = vld [vmem:[%s381 + $0x3c0] sm:$0xff]
        %v6407 = vld [vmem:[%s381 + $0x3c8] sm:$0xff]
        %v6408 = vld [vmem:[%s381 + $0x3d0] sm:$0xff]
        %v6409 = vld [vmem:[%s381 + $0x3d8] sm:$0xff]
        %v6410 = vld [vmem:[%s381 + $0x3e0] sm:$0xff]
        %v6411 = vld [vmem:[%s381 + $0x3e8] sm:$0xff]
        %v6412 = vld [vmem:[%s381 + $0x3f0] sm:$0xff]
        %v6413 = vld [vmem:[%s381 + $0x3f8] sm:$0xff]
        %v6414 = vld [vmem:[%s381 + $0x400] sm:$0xff]
        %v6415 = vld [vmem:[%s381 + $0x408] sm:$0xff]
        %v6416 = vld [vmem:[%s381 + $0x410] sm:$0xff]
        %v6417 = vld [vmem:[%s381 + $0x418] sm:$0xff]
        %v6418 = vld [vmem:[%s381 + $0x420] sm:$0xff]
        %v6419 = vld [vmem:[%s381 + $0x428] sm:$0xff]
        %v6420 = vld [vmem:[%s381 + $0x430] sm:$0xff]
        %v6421 = vld [vmem:[%s381 + $0x438] sm:$0xff]
        %v6422 = vld [vmem:[%s381 + $0x440] sm:$0xff]
        %v6423 = vld [vmem:[%s381 + $0x448] sm:$0xff]
        %v6424 = vld [vmem:[%s381 + $0x450] sm:$0xff]
        %v6425 = vld [vmem:[%s381 + $0x458] sm:$0xff]
        %v6426 = vld [vmem:[%s381 + $0x460] sm:$0xff]
        %v6427 = vld [vmem:[%s381 + $0x468] sm:$0xff]
        %v6428 = vld [vmem:[%s381 + $0x470] sm:$0xff]
        %v6429 = vld [vmem:[%s381 + $0x478] sm:$0xff]
        %v6430 = vld [vmem:[%s381 + $0x480] sm:$0xff]
        %v6431 = vld [vmem:[%s381 + $0x488] sm:$0xff]
        %v6432 = vld [vmem:[%s381 + $0x490] sm:$0xff]
        %v6433 = vld [vmem:[%s381 + $0x498] sm:$0xff]
        %v6434 = vld [vmem:[%s381 + $0x4a0] sm:$0xff]
        %v6435 = vld [vmem:[%s381 + $0x4a8] sm:$0xff]
        %v6436 = vld [vmem:[%s381 + $0x4b0] sm:$0xff]
        %v6437 = vld [vmem:[%s381 + $0x4b8] sm:$0xff]
        %v6438 = vld [vmem:[%s381 + $0x4c0] sm:$0xff]
        %v6439 = vld [vmem:[%s381 + $0x4c8] sm:$0xff]
        %v6440 = vld [vmem:[%s381 + $0x4d0] sm:$0xff]
        %v6441 = vld [vmem:[%s381 + $0x4d8] sm:$0xff]
        %v6442 = vld [vmem:[%s381 + $0x4e0] sm:$0xff]
        %v6443 = vld [vmem:[%s381 + $0x4e8] sm:$0xff]
        %v6444 = vld [vmem:[%s381 + $0x4f0] sm:$0xff]
        %v6445 = vld [vmem:[%s381 + $0x4f8] sm:$0xff]
        %v6446 = vld [vmem:[%s381 + $0x500] sm:$0xff]
        %v6447 = vld [vmem:[%s381 + $0x508] sm:$0xff]
        %v6448 = vld [vmem:[%s381 + $0x510] sm:$0xff]
        %v6449 = vld [vmem:[%s381 + $0x518] sm:$0xff]
        %v6450 = vld [vmem:[%s381 + $0x520] sm:$0xff]
        %v6451 = vld [vmem:[%s381 + $0x528] sm:$0xff]
        %v6452 = vld [vmem:[%s381 + $0x530] sm:$0xff]
        %v6453 = vld [vmem:[%s381 + $0x538] sm:$0xff]
        %v6454 = vld [vmem:[%s381 + $0x540] sm:$0xff]
        %v6455 = vld [vmem:[%s381 + $0x548] sm:$0xff]
        %v6456 = vld [vmem:[%s381 + $0x550] sm:$0xff]
        %v6457 = vld [vmem:[%s381 + $0x558] sm:$0xff]
        %v6458 = vld [vmem:[%s381 + $0x560] sm:$0xff]
        %v6459 = vld [vmem:[%s381 + $0x568] sm:$0xff]
        %v6460 = vld [vmem:[%s381 + $0x570] sm:$0xff]
        %v6461 = vld [vmem:[%s381 + $0x578] sm:$0xff]
        %v6462 = vld [vmem:[%s381 + $0x580] sm:$0xff]
        %v6463 = vld [vmem:[%s381 + $0x588] sm:$0xff]
        %v6464 = vld [vmem:[%s381 + $0x590] sm:$0xff]
        %v6465 = vld [vmem:[%s381 + $0x598] sm:$0xff]
        %v6466 = vld [vmem:[%s381 + $0x5a0] sm:$0xff]
        %v6467 = vld [vmem:[%s381 + $0x5a8] sm:$0xff]
        %v6468 = vld [vmem:[%s381 + $0x5b0] sm:$0xff]
        %v6469 = vld [vmem:[%s381 + $0x5b8] sm:$0xff]
        %v6470 = vld [vmem:[%s381 + $0x5c0] sm:$0xff]
        %v6471 = vld [vmem:[%s381 + $0x5c8] sm:$0xff]
        %v6472 = vld [vmem:[%s381 + $0x5d0] sm:$0xff]
        %v6473 = vld [vmem:[%s381 + $0x5d8] sm:$0xff]
        %v6474 = vld [vmem:[%s381 + $0x5e0] sm:$0xff]
        %v6475 = vld [vmem:[%s381 + $0x5e8] sm:$0xff]
        %v6476 = vld [vmem:[%s381 + $0x5f0] sm:$0xff]
        %v6477 = vld [vmem:[%s381 + $0x5f8] sm:$0xff]
        %v6478 = vld [vmem:[%s381 + $0x600] sm:$0xff]
        %v6479 = vld [vmem:[%s381 + $0x608] sm:$0xff]
        %v6480 = vld [vmem:[%s381 + $0x610] sm:$0xff]
        %v6481 = vld [vmem:[%s381 + $0x618] sm:$0xff]
        %v6482 = vld [vmem:[%s381 + $0x620] sm:$0xff]
        %v6483 = vld [vmem:[%s381 + $0x628] sm:$0xff]
        %v6484 = vld [vmem:[%s381 + $0x630] sm:$0xff]
        %v6485 = vld [vmem:[%s381 + $0x638] sm:$0xff]
        %v6486 = vld [vmem:[%s381 + $0x640] sm:$0xff]
        %v6487 = vld [vmem:[%s381 + $0x648] sm:$0xff]
        %v6488 = vld [vmem:[%s381 + $0x650] sm:$0xff]
        %v6489 = vld [vmem:[%s381 + $0x658] sm:$0xff]
        %v6490 = vld [vmem:[%s381 + $0x660] sm:$0xff]
        %v6491 = vld [vmem:[%s381 + $0x668] sm:$0xff]
        %v6492 = vld [vmem:[%s381 + $0x670] sm:$0xff]
        %v6493 = vld [vmem:[%s381 + $0x678] sm:$0xff]
        %v6494 = vld [vmem:[%s381 + $0x680] sm:$0xff]
        %v6495 = vld [vmem:[%s381 + $0x688] sm:$0xff]
        %v6496 = vld [vmem:[%s381 + $0x690] sm:$0xff]
        %v6497 = vld [vmem:[%s381 + $0x698] sm:$0xff]
        %v6498 = vld [vmem:[%s381 + $0x6a0] sm:$0xff]
        %v6499 = vld [vmem:[%s381 + $0x6a8] sm:$0xff]
        %v6500 = vld [vmem:[%s381 + $0x6b0] sm:$0xff]
        %v6501 = vld [vmem:[%s381 + $0x6b8] sm:$0xff]
        %v6502 = vld [vmem:[%s381 + $0x6c0] sm:$0xff]
        %v6503 = vld [vmem:[%s381 + $0x6c8] sm:$0xff]
        %v6504 = vld [vmem:[%s381 + $0x6d0] sm:$0xff]
        %v6505 = vld [vmem:[%s381 + $0x6d8] sm:$0xff]
        %v6506 = vld [vmem:[%s381 + $0x6e0] sm:$0xff]
        %v6507 = vld [vmem:[%s381 + $0x6e8] sm:$0xff]
        %v6508 = vld [vmem:[%s381 + $0x6f0] sm:$0xff]
        %v6509 = vld [vmem:[%s381 + $0x6f8] sm:$0xff]
        %v6510 = vld [vmem:[%s381 + $0x700] sm:$0xff]
        %v6511 = vld [vmem:[%s381 + $0x708] sm:$0xff]
        %v6512 = vld [vmem:[%s381 + $0x710] sm:$0xff]
        %v6513 = vld [vmem:[%s381 + $0x718] sm:$0xff]
        %v6514 = vld [vmem:[%s381 + $0x720] sm:$0xff]
        %v6515 = vld [vmem:[%s381 + $0x728] sm:$0xff]
        %v6516 = vld [vmem:[%s381 + $0x730] sm:$0xff]
        %v6517 = vld [vmem:[%s381 + $0x738] sm:$0xff]
        %v6518 = vld [vmem:[%s381 + $0x740] sm:$0xff]
        %v6519 = vld [vmem:[%s381 + $0x748] sm:$0xff]
        %v6520 = vld [vmem:[%s381 + $0x750] sm:$0xff]
        %v6521 = vld [vmem:[%s381 + $0x758] sm:$0xff]
        %v6522 = vld [vmem:[%s381 + $0x760] sm:$0xff]
        %v6523 = vld [vmem:[%s381 + $0x768] sm:$0xff]
        %v6524 = vld [vmem:[%s381 + $0x770] sm:$0xff]
        %v6525 = vld [vmem:[%s381 + $0x778] sm:$0xff]
        %v6526 = vld [vmem:[%s381 + $0x780] sm:$0xff]
        %v6527 = vld [vmem:[%s381 + $0x788] sm:$0xff]
        %v6528 = vld [vmem:[%s381 + $0x790] sm:$0xff]
        %v6529 = vld [vmem:[%s381 + $0x798] sm:$0xff]
        %v6530 = vld [vmem:[%s381 + $0x7a0] sm:$0xff]
        %v6531 = vld [vmem:[%s381 + $0x7a8] sm:$0xff]
        %v6532 = vld [vmem:[%s381 + $0x7b0] sm:$0xff]
        %v6533 = vld [vmem:[%s381 + $0x7b8] sm:$0xff]
        %v6534 = vld [vmem:[%s381 + $0x7c0] sm:$0xff]
        %v6535 = vld [vmem:[%s381 + $0x7c8] sm:$0xff]
        %v6536 = vld [vmem:[%s381 + $0x7d0] sm:$0xff]
        %v6537 = vld [vmem:[%s381 + $0x7d8] sm:$0xff]
        %v6538 = vld [vmem:[%s381 + $0x7e0] sm:$0xff]
        %v6539 = vld [vmem:[%s381 + $0x7e8] sm:$0xff]
        %v6540 = vld [vmem:[%s381 + $0x7f0] sm:$0xff]
        %v6541 = vld [vmem:[%s381 + $0x7f8] sm:$0xff]
        %v6798 = vunpack.c.l.b16 %v6286
        %v6799 = vunpack.c.h.b16 %v6286
        %v6800 = vunpack.c.l.b16 %v6287
        %v6801 = vunpack.c.h.b16 %v6287
        %v6802 = vunpack.c.l.b16 %v6288
        %v6803 = vunpack.c.h.b16 %v6288
        %v6804 = vunpack.c.l.b16 %v6289
        %v6805 = vunpack.c.h.b16 %v6289
        %v6806 = vunpack.c.l.b16 %v6290
        %v6807 = vunpack.c.h.b16 %v6290
        %v6808 = vunpack.c.l.b16 %v6291
        %v6809 = vunpack.c.h.b16 %v6291
        %v6810 = vunpack.c.l.b16 %v6292
        %v6811 = vunpack.c.h.b16 %v6292
        %v6812 = vunpack.c.l.b16 %v6293
        %v6813 = vunpack.c.h.b16 %v6293
        %v6814 = vunpack.c.l.b16 %v6294
        %v6815 = vunpack.c.h.b16 %v6294
        %v6816 = vunpack.c.l.b16 %v6295
        %v6817 = vunpack.c.h.b16 %v6295
        %v6818 = vunpack.c.l.b16 %v6296
        %v6819 = vunpack.c.h.b16 %v6296
        %v6820 = vunpack.c.l.b16 %v6297
        %v6821 = vunpack.c.h.b16 %v6297
        %v6822 = vunpack.c.l.b16 %v6298
        %v6823 = vunpack.c.h.b16 %v6298
        %v6824 = vunpack.c.l.b16 %v6299
        %v6825 = vunpack.c.h.b16 %v6299
        %v6826 = vunpack.c.l.b16 %v6300
        %v6827 = vunpack.c.h.b16 %v6300
        %v6828 = vunpack.c.l.b16 %v6301
        %v6829 = vunpack.c.h.b16 %v6301
        %v6830 = vunpack.c.l.b16 %v6302
        %v6831 = vunpack.c.h.b16 %v6302
        %v6832 = vunpack.c.l.b16 %v6303
        %v6833 = vunpack.c.h.b16 %v6303
        %v6834 = vunpack.c.l.b16 %v6304
        %v6835 = vunpack.c.h.b16 %v6304
        %v6836 = vunpack.c.l.b16 %v6305
        %v6837 = vunpack.c.h.b16 %v6305
        %v6838 = vunpack.c.l.b16 %v6306
        %v6839 = vunpack.c.h.b16 %v6306
        %v6840 = vunpack.c.l.b16 %v6307
        %v6841 = vunpack.c.h.b16 %v6307
        %v6842 = vunpack.c.l.b16 %v6308
        %v6843 = vunpack.c.h.b16 %v6308
        %v6844 = vunpack.c.l.b16 %v6309
        %v6845 = vunpack.c.h.b16 %v6309
        %v6846 = vunpack.c.l.b16 %v6310
        %v6847 = vunpack.c.h.b16 %v6310
        %v6848 = vunpack.c.l.b16 %v6311
        %v6849 = vunpack.c.h.b16 %v6311
        %v6850 = vunpack.c.l.b16 %v6312
        %v6851 = vunpack.c.h.b16 %v6312
        %v6852 = vunpack.c.l.b16 %v6313
        %v6853 = vunpack.c.h.b16 %v6313
        %v6854 = vunpack.c.l.b16 %v6314
        %v6855 = vunpack.c.h.b16 %v6314
        %v6856 = vunpack.c.l.b16 %v6315
        %v6857 = vunpack.c.h.b16 %v6315
        %v6858 = vunpack.c.l.b16 %v6316
        %v6859 = vunpack.c.h.b16 %v6316
        %v6860 = vunpack.c.l.b16 %v6317
        %v6861 = vunpack.c.h.b16 %v6317
        %v6862 = vunpack.c.l.b16 %v6318
        %v6863 = vunpack.c.h.b16 %v6318
        %v6864 = vunpack.c.l.b16 %v6319
        %v6865 = vunpack.c.h.b16 %v6319
        %v6866 = vunpack.c.l.b16 %v6320
        %v6867 = vunpack.c.h.b16 %v6320
        %v6868 = vunpack.c.l.b16 %v6321
        %v6869 = vunpack.c.h.b16 %v6321
        %v6870 = vunpack.c.l.b16 %v6322
        %v6871 = vunpack.c.h.b16 %v6322
        %v6872 = vunpack.c.l.b16 %v6323
        %v6873 = vunpack.c.h.b16 %v6323
        %v6874 = vunpack.c.l.b16 %v6324
        %v6875 = vunpack.c.h.b16 %v6324
        %v6876 = vunpack.c.l.b16 %v6325
        %v6877 = vunpack.c.h.b16 %v6325
        %v6878 = vunpack.c.l.b16 %v6326
        %v6879 = vunpack.c.h.b16 %v6326
        %v6880 = vunpack.c.l.b16 %v6327
        %v6881 = vunpack.c.h.b16 %v6327
        %v6882 = vunpack.c.l.b16 %v6328
        %v6883 = vunpack.c.h.b16 %v6328
        %v6884 = vunpack.c.l.b16 %v6329
        %v6885 = vunpack.c.h.b16 %v6329
        %v6886 = vunpack.c.l.b16 %v6330
        %v6887 = vunpack.c.h.b16 %v6330
        %v6888 = vunpack.c.l.b16 %v6331
        %v6889 = vunpack.c.h.b16 %v6331
        %v6890 = vunpack.c.l.b16 %v6332
        %v6891 = vunpack.c.h.b16 %v6332
        %v6892 = vunpack.c.l.b16 %v6333
        %v6893 = vunpack.c.h.b16 %v6333
        %v6894 = vunpack.c.l.b16 %v6334
        %v6895 = vunpack.c.h.b16 %v6334
        %v6896 = vunpack.c.l.b16 %v6335
        %v6897 = vunpack.c.h.b16 %v6335
        %v6898 = vunpack.c.l.b16 %v6336
        %v6899 = vunpack.c.h.b16 %v6336
        %v6900 = vunpack.c.l.b16 %v6337
        %v6901 = vunpack.c.h.b16 %v6337
        %v6902 = vunpack.c.l.b16 %v6338
        %v6903 = vunpack.c.h.b16 %v6338
        %v6904 = vunpack.c.l.b16 %v6339
        %v6905 = vunpack.c.h.b16 %v6339
        %v6906 = vunpack.c.l.b16 %v6340
        %v6907 = vunpack.c.h.b16 %v6340
        %v6908 = vunpack.c.l.b16 %v6341
        %v6909 = vunpack.c.h.b16 %v6341
        %v6910 = vunpack.c.l.b16 %v6342
        %v6911 = vunpack.c.h.b16 %v6342
        %v6912 = vunpack.c.l.b16 %v6343
        %v6913 = vunpack.c.h.b16 %v6343
        %v6914 = vunpack.c.l.b16 %v6344
        %v6915 = vunpack.c.h.b16 %v6344
        %v6916 = vunpack.c.l.b16 %v6345
        %v6917 = vunpack.c.h.b16 %v6345
        %v6918 = vunpack.c.l.b16 %v6346
        %v6919 = vunpack.c.h.b16 %v6346
        %v6920 = vunpack.c.l.b16 %v6347
        %v6921 = vunpack.c.h.b16 %v6347
        %v6922 = vunpack.c.l.b16 %v6348
        %v6923 = vunpack.c.h.b16 %v6348
        %v6924 = vunpack.c.l.b16 %v6349
        %v6925 = vunpack.c.h.b16 %v6349
        %v6926 = vunpack.c.l.b16 %v6350
        %v6927 = vunpack.c.h.b16 %v6350
        %v6928 = vunpack.c.l.b16 %v6351
        %v6929 = vunpack.c.h.b16 %v6351
        %v6930 = vunpack.c.l.b16 %v6352
        %v6931 = vunpack.c.h.b16 %v6352
        %v6932 = vunpack.c.l.b16 %v6353
        %v6933 = vunpack.c.h.b16 %v6353
        %v6934 = vunpack.c.l.b16 %v6354
        %v6935 = vunpack.c.h.b16 %v6354
        %v6936 = vunpack.c.l.b16 %v6355
        %v6937 = vunpack.c.h.b16 %v6355
        %v6938 = vunpack.c.l.b16 %v6356
        %v6939 = vunpack.c.h.b16 %v6356
        %v6940 = vunpack.c.l.b16 %v6357
        %v6941 = vunpack.c.h.b16 %v6357
        %v6942 = vunpack.c.l.b16 %v6358
        %v6943 = vunpack.c.h.b16 %v6358
        %v6944 = vunpack.c.l.b16 %v6359
        %v6945 = vunpack.c.h.b16 %v6359
        %v6946 = vunpack.c.l.b16 %v6360
        %v6947 = vunpack.c.h.b16 %v6360
        %v6948 = vunpack.c.l.b16 %v6361
        %v6949 = vunpack.c.h.b16 %v6361
        %v6950 = vunpack.c.l.b16 %v6362
        %v6951 = vunpack.c.h.b16 %v6362
        %v6952 = vunpack.c.l.b16 %v6363
        %v6953 = vunpack.c.h.b16 %v6363
        %v6954 = vunpack.c.l.b16 %v6364
        %v6955 = vunpack.c.h.b16 %v6364
        %v6956 = vunpack.c.l.b16 %v6365
        %v6957 = vunpack.c.h.b16 %v6365
        %v6958 = vunpack.c.l.b16 %v6366
        %v6959 = vunpack.c.h.b16 %v6366
        %v6960 = vunpack.c.l.b16 %v6367
        %v6961 = vunpack.c.h.b16 %v6367
        %v6962 = vunpack.c.l.b16 %v6368
        %v6963 = vunpack.c.h.b16 %v6368
        %v6964 = vunpack.c.l.b16 %v6369
        %v6965 = vunpack.c.h.b16 %v6369
        %v6966 = vunpack.c.l.b16 %v6370
        %v6967 = vunpack.c.h.b16 %v6370
        %v6968 = vunpack.c.l.b16 %v6371
        %v6969 = vunpack.c.h.b16 %v6371
        %v6970 = vunpack.c.l.b16 %v6372
        %v6971 = vunpack.c.h.b16 %v6372
        %v6972 = vunpack.c.l.b16 %v6373
        %v6973 = vunpack.c.h.b16 %v6373
        %v6974 = vunpack.c.l.b16 %v6374
        %v6975 = vunpack.c.h.b16 %v6374
        %v6976 = vunpack.c.l.b16 %v6375
        %v6977 = vunpack.c.h.b16 %v6375
        %v6978 = vunpack.c.l.b16 %v6376
        %v6979 = vunpack.c.h.b16 %v6376
        %v6980 = vunpack.c.l.b16 %v6377
        %v6981 = vunpack.c.h.b16 %v6377
        %v6982 = vunpack.c.l.b16 %v6378
        %v6983 = vunpack.c.h.b16 %v6378
        %v6984 = vunpack.c.l.b16 %v6379
        %v6985 = vunpack.c.h.b16 %v6379
        %v6986 = vunpack.c.l.b16 %v6380
        %v6987 = vunpack.c.h.b16 %v6380
        %v6988 = vunpack.c.l.b16 %v6381
        %v6989 = vunpack.c.h.b16 %v6381
        %v6990 = vunpack.c.l.b16 %v6382
        %v6991 = vunpack.c.h.b16 %v6382
        %v6992 = vunpack.c.l.b16 %v6383
        %v6993 = vunpack.c.h.b16 %v6383
        %v6994 = vunpack.c.l.b16 %v6384
        %v6995 = vunpack.c.h.b16 %v6384
        %v6996 = vunpack.c.l.b16 %v6385
        %v6997 = vunpack.c.h.b16 %v6385
        %v6998 = vunpack.c.l.b16 %v6386
        %v6999 = vunpack.c.h.b16 %v6386
        %v7000 = vunpack.c.l.b16 %v6387
        %v7001 = vunpack.c.h.b16 %v6387
        %v7002 = vunpack.c.l.b16 %v6388
        %v7003 = vunpack.c.h.b16 %v6388
        %v7004 = vunpack.c.l.b16 %v6389
        %v7005 = vunpack.c.h.b16 %v6389
        %v7006 = vunpack.c.l.b16 %v6390
        %v7007 = vunpack.c.h.b16 %v6390
        %v7008 = vunpack.c.l.b16 %v6391
        %v7009 = vunpack.c.h.b16 %v6391
        %v7010 = vunpack.c.l.b16 %v6392
        %v7011 = vunpack.c.h.b16 %v6392
        %v7012 = vunpack.c.l.b16 %v6393
        %v7013 = vunpack.c.h.b16 %v6393
        %v7014 = vunpack.c.l.b16 %v6394
        %v7015 = vunpack.c.h.b16 %v6394
        %v7016 = vunpack.c.l.b16 %v6395
        %v7017 = vunpack.c.h.b16 %v6395
        %v7018 = vunpack.c.l.b16 %v6396
        %v7019 = vunpack.c.h.b16 %v6396
        %v7020 = vunpack.c.l.b16 %v6397
        %v7021 = vunpack.c.h.b16 %v6397
        %v7022 = vunpack.c.l.b16 %v6398
        %v7023 = vunpack.c.h.b16 %v6398
        %v7024 = vunpack.c.l.b16 %v6399
        %v7025 = vunpack.c.h.b16 %v6399
        %v7026 = vunpack.c.l.b16 %v6400
        %v7027 = vunpack.c.h.b16 %v6400
        %v7028 = vunpack.c.l.b16 %v6401
        %v7029 = vunpack.c.h.b16 %v6401
        %v7030 = vunpack.c.l.b16 %v6402
        %v7031 = vunpack.c.h.b16 %v6402
        %v7032 = vunpack.c.l.b16 %v6403
        %v7033 = vunpack.c.h.b16 %v6403
        %v7034 = vunpack.c.l.b16 %v6404
        %v7035 = vunpack.c.h.b16 %v6404
        %v7036 = vunpack.c.l.b16 %v6405
        %v7037 = vunpack.c.h.b16 %v6405
        %v7038 = vunpack.c.l.b16 %v6406
        %v7039 = vunpack.c.h.b16 %v6406
        %v7040 = vunpack.c.l.b16 %v6407
        %v7041 = vunpack.c.h.b16 %v6407
        %v7042 = vunpack.c.l.b16 %v6408
        %v7043 = vunpack.c.h.b16 %v6408
        %v7044 = vunpack.c.l.b16 %v6409
        %v7045 = vunpack.c.h.b16 %v6409
        %v7046 = vunpack.c.l.b16 %v6410
        %v7047 = vunpack.c.h.b16 %v6410
        %v7048 = vunpack.c.l.b16 %v6411
        %v7049 = vunpack.c.h.b16 %v6411
        %v7050 = vunpack.c.l.b16 %v6412
        %v7051 = vunpack.c.h.b16 %v6412
        %v7052 = vunpack.c.l.b16 %v6413
        %v7053 = vunpack.c.h.b16 %v6413
        %v7054 = vunpack.c.l.b16 %v6414
        %v7055 = vunpack.c.h.b16 %v6414
        %v7056 = vunpack.c.l.b16 %v6415
        %v7057 = vunpack.c.h.b16 %v6415
        %v7058 = vunpack.c.l.b16 %v6416
        %v7059 = vunpack.c.h.b16 %v6416
        %v7060 = vunpack.c.l.b16 %v6417
        %v7061 = vunpack.c.h.b16 %v6417
        %v7062 = vunpack.c.l.b16 %v6418
        %v7063 = vunpack.c.h.b16 %v6418
        %v7064 = vunpack.c.l.b16 %v6419
        %v7065 = vunpack.c.h.b16 %v6419
        %v7066 = vunpack.c.l.b16 %v6420
        %v7067 = vunpack.c.h.b16 %v6420
        %v7068 = vunpack.c.l.b16 %v6421
        %v7069 = vunpack.c.h.b16 %v6421
        %v7070 = vunpack.c.l.b16 %v6422
        %v7071 = vunpack.c.h.b16 %v6422
        %v7072 = vunpack.c.l.b16 %v6423
        %v7073 = vunpack.c.h.b16 %v6423
        %v7074 = vunpack.c.l.b16 %v6424
        %v7075 = vunpack.c.h.b16 %v6424
        %v7076 = vunpack.c.l.b16 %v6425
        %v7077 = vunpack.c.h.b16 %v6425
        %v7078 = vunpack.c.l.b16 %v6426
        %v7079 = vunpack.c.h.b16 %v6426
        %v7080 = vunpack.c.l.b16 %v6427
        %v7081 = vunpack.c.h.b16 %v6427
        %v7082 = vunpack.c.l.b16 %v6428
        %v7083 = vunpack.c.h.b16 %v6428
        %v7084 = vunpack.c.l.b16 %v6429
        %v7085 = vunpack.c.h.b16 %v6429
        %v7086 = vunpack.c.l.b16 %v6430
        %v7087 = vunpack.c.h.b16 %v6430
        %v7088 = vunpack.c.l.b16 %v6431
        %v7089 = vunpack.c.h.b16 %v6431
        %v7090 = vunpack.c.l.b16 %v6432
        %v7091 = vunpack.c.h.b16 %v6432
        %v7092 = vunpack.c.l.b16 %v6433
        %v7093 = vunpack.c.h.b16 %v6433
        %v7094 = vunpack.c.l.b16 %v6434
        %v7095 = vunpack.c.h.b16 %v6434
        %v7096 = vunpack.c.l.b16 %v6435
        %v7097 = vunpack.c.h.b16 %v6435
        %v7098 = vunpack.c.l.b16 %v6436
        %v7099 = vunpack.c.h.b16 %v6436
        %v7100 = vunpack.c.l.b16 %v6437
        %v7101 = vunpack.c.h.b16 %v6437
        %v7102 = vunpack.c.l.b16 %v6438
        %v7103 = vunpack.c.h.b16 %v6438
        %v7104 = vunpack.c.l.b16 %v6439
        %v7105 = vunpack.c.h.b16 %v6439
        %v7106 = vunpack.c.l.b16 %v6440
        %v7107 = vunpack.c.h.b16 %v6440
        %v7108 = vunpack.c.l.b16 %v6441
        %v7109 = vunpack.c.h.b16 %v6441
        %v7110 = vunpack.c.l.b16 %v6442
        %v7111 = vunpack.c.h.b16 %v6442
        %v7112 = vunpack.c.l.b16 %v6443
        %v7113 = vunpack.c.h.b16 %v6443
        %v7114 = vunpack.c.l.b16 %v6444
        %v7115 = vunpack.c.h.b16 %v6444
        %v7116 = vunpack.c.l.b16 %v6445
        %v7117 = vunpack.c.h.b16 %v6445
        %v7118 = vunpack.c.l.b16 %v6446
        %v7119 = vunpack.c.h.b16 %v6446
        %v7120 = vunpack.c.l.b16 %v6447
        %v7121 = vunpack.c.h.b16 %v6447
        %v7122 = vunpack.c.l.b16 %v6448
        %v7123 = vunpack.c.h.b16 %v6448
        %v7124 = vunpack.c.l.b16 %v6449
        %v7125 = vunpack.c.h.b16 %v6449
        %v7126 = vunpack.c.l.b16 %v6450
        %v7127 = vunpack.c.h.b16 %v6450
        %v7128 = vunpack.c.l.b16 %v6451
        %v7129 = vunpack.c.h.b16 %v6451
        %v7130 = vunpack.c.l.b16 %v6452
        %v7131 = vunpack.c.h.b16 %v6452
        %v7132 = vunpack.c.l.b16 %v6453
        %v7133 = vunpack.c.h.b16 %v6453
        %v7134 = vunpack.c.l.b16 %v6454
        %v7135 = vunpack.c.h.b16 %v6454
        %v7136 = vunpack.c.l.b16 %v6455
        %v7137 = vunpack.c.h.b16 %v6455
        %v7138 = vunpack.c.l.b16 %v6456
        %v7139 = vunpack.c.h.b16 %v6456
        %v7140 = vunpack.c.l.b16 %v6457
        %v7141 = vunpack.c.h.b16 %v6457
        %v7142 = vunpack.c.l.b16 %v6458
        %v7143 = vunpack.c.h.b16 %v6458
        %v7144 = vunpack.c.l.b16 %v6459
        %v7145 = vunpack.c.h.b16 %v6459
        %v7146 = vunpack.c.l.b16 %v6460
        %v7147 = vunpack.c.h.b16 %v6460
        %v7148 = vunpack.c.l.b16 %v6461
        %v7149 = vunpack.c.h.b16 %v6461
        %v7150 = vunpack.c.l.b16 %v6462
        %v7151 = vunpack.c.h.b16 %v6462
        %v7152 = vunpack.c.l.b16 %v6463
        %v7153 = vunpack.c.h.b16 %v6463
        %v7154 = vunpack.c.l.b16 %v6464
        %v7155 = vunpack.c.h.b16 %v6464
        %v7156 = vunpack.c.l.b16 %v6465
        %v7157 = vunpack.c.h.b16 %v6465
        %v7158 = vunpack.c.l.b16 %v6466
        %v7159 = vunpack.c.h.b16 %v6466
        %v7160 = vunpack.c.l.b16 %v6467
        %v7161 = vunpack.c.h.b16 %v6467
        %v7162 = vunpack.c.l.b16 %v6468
        %v7163 = vunpack.c.h.b16 %v6468
        %v7164 = vunpack.c.l.b16 %v6469
        %v7165 = vunpack.c.h.b16 %v6469
        %v7166 = vunpack.c.l.b16 %v6470
        %v7167 = vunpack.c.h.b16 %v6470
        %v7168 = vunpack.c.l.b16 %v6471
        %v7169 = vunpack.c.h.b16 %v6471
        %v7170 = vunpack.c.l.b16 %v6472
        %v7171 = vunpack.c.h.b16 %v6472
        %v7172 = vunpack.c.l.b16 %v6473
        %v7173 = vunpack.c.h.b16 %v6473
        %v7174 = vunpack.c.l.b16 %v6474
        %v7175 = vunpack.c.h.b16 %v6474
        %v7176 = vunpack.c.l.b16 %v6475
        %v7177 = vunpack.c.h.b16 %v6475
        %v7178 = vunpack.c.l.b16 %v6476
        %v7179 = vunpack.c.h.b16 %v6476
        %v7180 = vunpack.c.l.b16 %v6477
        %v7181 = vunpack.c.h.b16 %v6477
        %v7182 = vunpack.c.l.b16 %v6478
        %v7183 = vunpack.c.h.b16 %v6478
        %v7184 = vunpack.c.l.b16 %v6479
        %v7185 = vunpack.c.h.b16 %v6479
        %v7186 = vunpack.c.l.b16 %v6480
        %v7187 = vunpack.c.h.b16 %v6480
        %v7188 = vunpack.c.l.b16 %v6481
        %v7189 = vunpack.c.h.b16 %v6481
        %v7190 = vunpack.c.l.b16 %v6482
        %v7191 = vunpack.c.h.b16 %v6482
        %v7192 = vunpack.c.l.b16 %v6483
        %v7193 = vunpack.c.h.b16 %v6483
        %v7194 = vunpack.c.l.b16 %v6484
        %v7195 = vunpack.c.h.b16 %v6484
        %v7196 = vunpack.c.l.b16 %v6485
        %v7197 = vunpack.c.h.b16 %v6485
        %v7198 = vunpack.c.l.b16 %v6486
        %v7199 = vunpack.c.h.b16 %v6486
        %v7200 = vunpack.c.l.b16 %v6487
        %v7201 = vunpack.c.h.b16 %v6487
        %v7202 = vunpack.c.l.b16 %v6488
        %v7203 = vunpack.c.h.b16 %v6488
        %v7204 = vunpack.c.l.b16 %v6489
        %v7205 = vunpack.c.h.b16 %v6489
        %v7206 = vunpack.c.l.b16 %v6490
        %v7207 = vunpack.c.h.b16 %v6490
        %v7208 = vunpack.c.l.b16 %v6491
        %v7209 = vunpack.c.h.b16 %v6491
        %v7210 = vunpack.c.l.b16 %v6492
        %v7211 = vunpack.c.h.b16 %v6492
        %v7212 = vunpack.c.l.b16 %v6493
        %v7213 = vunpack.c.h.b16 %v6493
        %v7214 = vunpack.c.l.b16 %v6494
        %v7215 = vunpack.c.h.b16 %v6494
        %v7216 = vunpack.c.l.b16 %v6495
        %v7217 = vunpack.c.h.b16 %v6495
        %v7218 = vunpack.c.l.b16 %v6496
        %v7219 = vunpack.c.h.b16 %v6496
        %v7220 = vunpack.c.l.b16 %v6497
        %v7221 = vunpack.c.h.b16 %v6497
        %v7222 = vunpack.c.l.b16 %v6498
        %v7223 = vunpack.c.h.b16 %v6498
        %v7224 = vunpack.c.l.b16 %v6499
        %v7225 = vunpack.c.h.b16 %v6499
        %v7226 = vunpack.c.l.b16 %v6500
        %v7227 = vunpack.c.h.b16 %v6500
        %v7228 = vunpack.c.l.b16 %v6501
        %v7229 = vunpack.c.h.b16 %v6501
        %v7230 = vunpack.c.l.b16 %v6502
        %v7231 = vunpack.c.h.b16 %v6502
        %v7232 = vunpack.c.l.b16 %v6503
        %v7233 = vunpack.c.h.b16 %v6503
        %v7234 = vunpack.c.l.b16 %v6504
        %v7235 = vunpack.c.h.b16 %v6504
        %v7236 = vunpack.c.l.b16 %v6505
        %v7237 = vunpack.c.h.b16 %v6505
        %v7238 = vunpack.c.l.b16 %v6506
        %v7239 = vunpack.c.h.b16 %v6506
        %v7240 = vunpack.c.l.b16 %v6507
        %v7241 = vunpack.c.h.b16 %v6507
        %v7242 = vunpack.c.l.b16 %v6508
        %v7243 = vunpack.c.h.b16 %v6508
        %v7244 = vunpack.c.l.b16 %v6509
        %v7245 = vunpack.c.h.b16 %v6509
        %v7246 = vunpack.c.l.b16 %v6510
        %v7247 = vunpack.c.h.b16 %v6510
        %v7248 = vunpack.c.l.b16 %v6511
        %v7249 = vunpack.c.h.b16 %v6511
        %v7250 = vunpack.c.l.b16 %v6512
        %v7251 = vunpack.c.h.b16 %v6512
        %v7252 = vunpack.c.l.b16 %v6513
        %v7253 = vunpack.c.h.b16 %v6513
        %v7254 = vunpack.c.l.b16 %v6514
        %v7255 = vunpack.c.h.b16 %v6514
        %v7256 = vunpack.c.l.b16 %v6515
        %v7257 = vunpack.c.h.b16 %v6515
        %v7258 = vunpack.c.l.b16 %v6516
        %v7259 = vunpack.c.h.b16 %v6516
        %v7260 = vunpack.c.l.b16 %v6517
        %v7261 = vunpack.c.h.b16 %v6517
        %v7262 = vunpack.c.l.b16 %v6518
        %v7263 = vunpack.c.h.b16 %v6518
        %v7264 = vunpack.c.l.b16 %v6519
        %v7265 = vunpack.c.h.b16 %v6519
        %v7266 = vunpack.c.l.b16 %v6520
        %v7267 = vunpack.c.h.b16 %v6520
        %v7268 = vunpack.c.l.b16 %v6521
        %v7269 = vunpack.c.h.b16 %v6521
        %v7270 = vunpack.c.l.b16 %v6522
        %v7271 = vunpack.c.h.b16 %v6522
        %v7272 = vunpack.c.l.b16 %v6523
        %v7273 = vunpack.c.h.b16 %v6523
        %v7274 = vunpack.c.l.b16 %v6524
        %v7275 = vunpack.c.h.b16 %v6524
        %v7276 = vunpack.c.l.b16 %v6525
        %v7277 = vunpack.c.h.b16 %v6525
        %v7278 = vunpack.c.l.b16 %v6526
        %v7279 = vunpack.c.h.b16 %v6526
        %v7280 = vunpack.c.l.b16 %v6527
        %v7281 = vunpack.c.h.b16 %v6527
        %v7282 = vunpack.c.l.b16 %v6528
        %v7283 = vunpack.c.h.b16 %v6528
        %v7284 = vunpack.c.l.b16 %v6529
        %v7285 = vunpack.c.h.b16 %v6529
        %v7286 = vunpack.c.l.b16 %v6530
        %v7287 = vunpack.c.h.b16 %v6530
        %v7288 = vunpack.c.l.b16 %v6531
        %v7289 = vunpack.c.h.b16 %v6531
        %v7290 = vunpack.c.l.b16 %v6532
        %v7291 = vunpack.c.h.b16 %v6532
        %v7292 = vunpack.c.l.b16 %v6533
        %v7293 = vunpack.c.h.b16 %v6533
        %v7294 = vunpack.c.l.b16 %v6534
        %v7295 = vunpack.c.h.b16 %v6534
        %v7296 = vunpack.c.l.b16 %v6535
        %v7297 = vunpack.c.h.b16 %v6535
        %v7298 = vunpack.c.l.b16 %v6536
        %v7299 = vunpack.c.h.b16 %v6536
        %v7300 = vunpack.c.l.b16 %v6537
        %v7301 = vunpack.c.h.b16 %v6537
        %v7302 = vunpack.c.l.b16 %v6538
        %v7303 = vunpack.c.h.b16 %v6538
        %v7304 = vunpack.c.l.b16 %v6539
        %v7305 = vunpack.c.h.b16 %v6539
        %v7306 = vunpack.c.l.b16 %v6540
        %v7307 = vunpack.c.h.b16 %v6540
        %v7308 = vunpack.c.l.b16 %v6541
        %v7309 = vunpack.c.h.b16 %v6541
        %v7310 = vpack.c.b16 %v6802, %v6798
        %v7311 = vpack.c.b16 %v6803, %v6799
        %v7312 = vpack.c.b16 %v6804, %v6800
        %v7313 = vpack.c.b16 %v6805, %v6801
        %v7314 = vpack.c.b16 %v6810, %v6806
        %v7315 = vpack.c.b16 %v6811, %v6807
        %v7316 = vpack.c.b16 %v6812, %v6808
        %v7317 = vpack.c.b16 %v6813, %v6809
        %v7318 = vpack.c.b16 %v6818, %v6814
        %v7319 = vpack.c.b16 %v6819, %v6815
        %v7320 = vpack.c.b16 %v6820, %v6816
        %v7321 = vpack.c.b16 %v6821, %v6817
        %v7322 = vpack.c.b16 %v6826, %v6822
        %v7323 = vpack.c.b16 %v6827, %v6823
        %v7324 = vpack.c.b16 %v6828, %v6824
        %v7325 = vpack.c.b16 %v6829, %v6825
        %v7326 = vpack.c.b16 %v6834, %v6830
        %v7327 = vpack.c.b16 %v6835, %v6831
        %v7328 = vpack.c.b16 %v6836, %v6832
        %v7329 = vpack.c.b16 %v6837, %v6833
        %v7330 = vpack.c.b16 %v6842, %v6838
        %v7331 = vpack.c.b16 %v6843, %v6839
        %v7332 = vpack.c.b16 %v6844, %v6840
        %v7333 = vpack.c.b16 %v6845, %v6841
        %v7334 = vpack.c.b16 %v6850, %v6846
        %v7335 = vpack.c.b16 %v6851, %v6847
        %v7336 = vpack.c.b16 %v6852, %v6848
        %v7337 = vpack.c.b16 %v6853, %v6849
        %v7338 = vpack.c.b16 %v6858, %v6854
        %v7339 = vpack.c.b16 %v6859, %v6855
        %v7340 = vpack.c.b16 %v6860, %v6856
        %v7341 = vpack.c.b16 %v6861, %v6857
        %v7342 = vpack.c.b16 %v6866, %v6862
        %v7343 = vpack.c.b16 %v6867, %v6863
        %v7344 = vpack.c.b16 %v6868, %v6864
        %v7345 = vpack.c.b16 %v6869, %v6865
        %v7346 = vpack.c.b16 %v6874, %v6870
        %v7347 = vpack.c.b16 %v6875, %v6871
        %v7348 = vpack.c.b16 %v6876, %v6872
        %v7349 = vpack.c.b16 %v6877, %v6873
        %v7350 = vpack.c.b16 %v6882, %v6878
        %v7351 = vpack.c.b16 %v6883, %v6879
        %v7352 = vpack.c.b16 %v6884, %v6880
        %v7353 = vpack.c.b16 %v6885, %v6881
        %v7354 = vpack.c.b16 %v6890, %v6886
        %v7355 = vpack.c.b16 %v6891, %v6887
        %v7356 = vpack.c.b16 %v6892, %v6888
        %v7357 = vpack.c.b16 %v6893, %v6889
        %v7358 = vpack.c.b16 %v6898, %v6894
        %v7359 = vpack.c.b16 %v6899, %v6895
        %v7360 = vpack.c.b16 %v6900, %v6896
        %v7361 = vpack.c.b16 %v6901, %v6897
        %v7362 = vpack.c.b16 %v6906, %v6902
        %v7363 = vpack.c.b16 %v6907, %v6903
        %v7364 = vpack.c.b16 %v6908, %v6904
        %v7365 = vpack.c.b16 %v6909, %v6905
        %v7366 = vpack.c.b16 %v6914, %v6910
        %v7367 = vpack.c.b16 %v6915, %v6911
        %v7368 = vpack.c.b16 %v6916, %v6912
        %v7369 = vpack.c.b16 %v6917, %v6913
        %v7370 = vpack.c.b16 %v6922, %v6918
        %v7371 = vpack.c.b16 %v6923, %v6919
        %v7372 = vpack.c.b16 %v6924, %v6920
        %v7373 = vpack.c.b16 %v6925, %v6921
        %v7374 = vpack.c.b16 %v6930, %v6926
        %v7375 = vpack.c.b16 %v6931, %v6927
        %v7376 = vpack.c.b16 %v6932, %v6928
        %v7377 = vpack.c.b16 %v6933, %v6929
        %v7378 = vpack.c.b16 %v6938, %v6934
        %v7379 = vpack.c.b16 %v6939, %v6935
        %v7380 = vpack.c.b16 %v6940, %v6936
        %v7381 = vpack.c.b16 %v6941, %v6937
        %v7382 = vpack.c.b16 %v6946, %v6942
        %v7383 = vpack.c.b16 %v6947, %v6943
        %v7384 = vpack.c.b16 %v6948, %v6944
        %v7385 = vpack.c.b16 %v6949, %v6945
        %v7386 = vpack.c.b16 %v6954, %v6950
        %v7387 = vpack.c.b16 %v6955, %v6951
        %v7388 = vpack.c.b16 %v6956, %v6952
        %v7389 = vpack.c.b16 %v6957, %v6953
        %v7390 = vpack.c.b16 %v6962, %v6958
        %v7391 = vpack.c.b16 %v6963, %v6959
        %v7392 = vpack.c.b16 %v6964, %v6960
        %v7393 = vpack.c.b16 %v6965, %v6961
        %v7394 = vpack.c.b16 %v6970, %v6966
        %v7395 = vpack.c.b16 %v6971, %v6967
        %v7396 = vpack.c.b16 %v6972, %v6968
        %v7397 = vpack.c.b16 %v6973, %v6969
        %v7398 = vpack.c.b16 %v6978, %v6974
        %v7399 = vpack.c.b16 %v6979, %v6975
        %v7400 = vpack.c.b16 %v6980, %v6976
        %v7401 = vpack.c.b16 %v6981, %v6977
        %v7402 = vpack.c.b16 %v6986, %v6982
        %v7403 = vpack.c.b16 %v6987, %v6983
        %v7404 = vpack.c.b16 %v6988, %v6984
        %v7405 = vpack.c.b16 %v6989, %v6985
        %v7406 = vpack.c.b16 %v6994, %v6990
        %v7407 = vpack.c.b16 %v6995, %v6991
        %v7408 = vpack.c.b16 %v6996, %v6992
        %v7409 = vpack.c.b16 %v6997, %v6993
        %v7410 = vpack.c.b16 %v7002, %v6998
        %v7411 = vpack.c.b16 %v7003, %v6999
        %v7412 = vpack.c.b16 %v7004, %v7000
        %v7413 = vpack.c.b16 %v7005, %v7001
        %v7414 = vpack.c.b16 %v7010, %v7006
        %v7415 = vpack.c.b16 %v7011, %v7007
        %v7416 = vpack.c.b16 %v7012, %v7008
        %v7417 = vpack.c.b16 %v7013, %v7009
        %v7418 = vpack.c.b16 %v7018, %v7014
        %v7419 = vpack.c.b16 %v7019, %v7015
        %v7420 = vpack.c.b16 %v7020, %v7016
        %v7421 = vpack.c.b16 %v7021, %v7017
        %v7422 = vpack.c.b16 %v7026, %v7022
        %v7423 = vpack.c.b16 %v7027, %v7023
        %v7424 = vpack.c.b16 %v7028, %v7024
        %v7425 = vpack.c.b16 %v7029, %v7025
        %v7426 = vpack.c.b16 %v7034, %v7030
        %v7427 = vpack.c.b16 %v7035, %v7031
        %v7428 = vpack.c.b16 %v7036, %v7032
        %v7429 = vpack.c.b16 %v7037, %v7033
        %v7430 = vpack.c.b16 %v7042, %v7038
        %v7431 = vpack.c.b16 %v7043, %v7039
        %v7432 = vpack.c.b16 %v7044, %v7040
        %v7433 = vpack.c.b16 %v7045, %v7041
        %v7434 = vpack.c.b16 %v7050, %v7046
        %v7435 = vpack.c.b16 %v7051, %v7047
        %v7436 = vpack.c.b16 %v7052, %v7048
        %v7437 = vpack.c.b16 %v7053, %v7049
        %v7438 = vpack.c.b16 %v7058, %v7054
        %v7439 = vpack.c.b16 %v7059, %v7055
        %v7440 = vpack.c.b16 %v7060, %v7056
        %v7441 = vpack.c.b16 %v7061, %v7057
        %v7442 = vpack.c.b16 %v7066, %v7062
        %v7443 = vpack.c.b16 %v7067, %v7063
        %v7444 = vpack.c.b16 %v7068, %v7064
        %v7445 = vpack.c.b16 %v7069, %v7065
        %v7446 = vpack.c.b16 %v7074, %v7070
        %v7447 = vpack.c.b16 %v7075, %v7071
        %v7448 = vpack.c.b16 %v7076, %v7072
        %v7449 = vpack.c.b16 %v7077, %v7073
        %v7450 = vpack.c.b16 %v7082, %v7078
        %v7451 = vpack.c.b16 %v7083, %v7079
        %v7452 = vpack.c.b16 %v7084, %v7080
        %v7453 = vpack.c.b16 %v7085, %v7081
        %v7454 = vpack.c.b16 %v7090, %v7086
        %v7455 = vpack.c.b16 %v7091, %v7087
        %v7456 = vpack.c.b16 %v7092, %v7088
        %v7457 = vpack.c.b16 %v7093, %v7089
        %v7458 = vpack.c.b16 %v7098, %v7094
        %v7459 = vpack.c.b16 %v7099, %v7095
        %v7460 = vpack.c.b16 %v7100, %v7096
        %v7461 = vpack.c.b16 %v7101, %v7097
        %v7462 = vpack.c.b16 %v7106, %v7102
        %v7463 = vpack.c.b16 %v7107, %v7103
        %v7464 = vpack.c.b16 %v7108, %v7104
        %v7465 = vpack.c.b16 %v7109, %v7105
        %v7466 = vpack.c.b16 %v7114, %v7110
        %v7467 = vpack.c.b16 %v7115, %v7111
        %v7468 = vpack.c.b16 %v7116, %v7112
        %v7469 = vpack.c.b16 %v7117, %v7113
        %v7470 = vpack.c.b16 %v7122, %v7118
        %v7471 = vpack.c.b16 %v7123, %v7119
        %v7472 = vpack.c.b16 %v7124, %v7120
        %v7473 = vpack.c.b16 %v7125, %v7121
        %v7474 = vpack.c.b16 %v7130, %v7126
        %v7475 = vpack.c.b16 %v7131, %v7127
        %v7476 = vpack.c.b16 %v7132, %v7128
        %v7477 = vpack.c.b16 %v7133, %v7129
        %v7478 = vpack.c.b16 %v7138, %v7134
        %v7479 = vpack.c.b16 %v7139, %v7135
        %v7480 = vpack.c.b16 %v7140, %v7136
        %v7481 = vpack.c.b16 %v7141, %v7137
        %v7482 = vpack.c.b16 %v7146, %v7142
        %v7483 = vpack.c.b16 %v7147, %v7143
        %v7484 = vpack.c.b16 %v7148, %v7144
        %v7485 = vpack.c.b16 %v7149, %v7145
        %v7486 = vpack.c.b16 %v7154, %v7150
        %v7487 = vpack.c.b16 %v7155, %v7151
        %v7488 = vpack.c.b16 %v7156, %v7152
        %v7489 = vpack.c.b16 %v7157, %v7153
        %v7490 = vpack.c.b16 %v7162, %v7158
        %v7491 = vpack.c.b16 %v7163, %v7159
        %v7492 = vpack.c.b16 %v7164, %v7160
        %v7493 = vpack.c.b16 %v7165, %v7161
        %v7494 = vpack.c.b16 %v7170, %v7166
        %v7495 = vpack.c.b16 %v7171, %v7167
        %v7496 = vpack.c.b16 %v7172, %v7168
        %v7497 = vpack.c.b16 %v7173, %v7169
        %v7498 = vpack.c.b16 %v7178, %v7174
        %v7499 = vpack.c.b16 %v7179, %v7175
        %v7500 = vpack.c.b16 %v7180, %v7176
        %v7501 = vpack.c.b16 %v7181, %v7177
        %v7502 = vpack.c.b16 %v7186, %v7182
        %v7503 = vpack.c.b16 %v7187, %v7183
        %v7504 = vpack.c.b16 %v7188, %v7184
        %v7505 = vpack.c.b16 %v7189, %v7185
        %v7506 = vpack.c.b16 %v7194, %v7190
        %v7507 = vpack.c.b16 %v7195, %v7191
        %v7508 = vpack.c.b16 %v7196, %v7192
        %v7509 = vpack.c.b16 %v7197, %v7193
        %v7510 = vpack.c.b16 %v7202, %v7198
        %v7511 = vpack.c.b16 %v7203, %v7199
        %v7512 = vpack.c.b16 %v7204, %v7200
        %v7513 = vpack.c.b16 %v7205, %v7201
        %v7514 = vpack.c.b16 %v7210, %v7206
        %v7515 = vpack.c.b16 %v7211, %v7207
        %v7516 = vpack.c.b16 %v7212, %v7208
        %v7517 = vpack.c.b16 %v7213, %v7209
        %v7518 = vpack.c.b16 %v7218, %v7214
        %v7519 = vpack.c.b16 %v7219, %v7215
        %v7520 = vpack.c.b16 %v7220, %v7216
        %v7521 = vpack.c.b16 %v7221, %v7217
        %v7522 = vpack.c.b16 %v7226, %v7222
        %v7523 = vpack.c.b16 %v7227, %v7223
        %v7524 = vpack.c.b16 %v7228, %v7224
        %v7525 = vpack.c.b16 %v7229, %v7225
        %v7526 = vpack.c.b16 %v7234, %v7230
        %v7527 = vpack.c.b16 %v7235, %v7231
        %v7528 = vpack.c.b16 %v7236, %v7232
        %v7529 = vpack.c.b16 %v7237, %v7233
        %v7530 = vpack.c.b16 %v7242, %v7238
        %v7531 = vpack.c.b16 %v7243, %v7239
        %v7532 = vpack.c.b16 %v7244, %v7240
        %v7533 = vpack.c.b16 %v7245, %v7241
        %v7534 = vpack.c.b16 %v7250, %v7246
        %v7535 = vpack.c.b16 %v7251, %v7247
        %v7536 = vpack.c.b16 %v7252, %v7248
        %v7537 = vpack.c.b16 %v7253, %v7249
        %v7538 = vpack.c.b16 %v7258, %v7254
        %v7539 = vpack.c.b16 %v7259, %v7255
        %v7540 = vpack.c.b16 %v7260, %v7256
        %v7541 = vpack.c.b16 %v7261, %v7257
        %v7542 = vpack.c.b16 %v7266, %v7262
        %v7543 = vpack.c.b16 %v7267, %v7263
        %v7544 = vpack.c.b16 %v7268, %v7264
        %v7545 = vpack.c.b16 %v7269, %v7265
        %v7546 = vpack.c.b16 %v7274, %v7270
        %v7547 = vpack.c.b16 %v7275, %v7271
        %v7548 = vpack.c.b16 %v7276, %v7272
        %v7549 = vpack.c.b16 %v7277, %v7273
        %v7550 = vpack.c.b16 %v7282, %v7278
        %v7551 = vpack.c.b16 %v7283, %v7279
        %v7552 = vpack.c.b16 %v7284, %v7280
        %v7553 = vpack.c.b16 %v7285, %v7281
        %v7554 = vpack.c.b16 %v7290, %v7286
        %v7555 = vpack.c.b16 %v7291, %v7287
        %v7556 = vpack.c.b16 %v7292, %v7288
        %v7557 = vpack.c.b16 %v7293, %v7289
        %v7558 = vpack.c.b16 %v7298, %v7294
        %v7559 = vpack.c.b16 %v7299, %v7295
        %v7560 = vpack.c.b16 %v7300, %v7296
        %v7561 = vpack.c.b16 %v7301, %v7297
        %v7562 = vpack.c.b16 %v7306, %v7302
        %v7563 = vpack.c.b16 %v7307, %v7303
        %v7564 = vpack.c.b16 %v7308, %v7304
        %v7565 = vpack.c.b16 %v7309, %v7305
        %7822 = vmatprep.subr.bf16.mxu0 %v7311
        %7823 = vmatpush1.bf16.msra.mxu0 %v7310
        %7824 = vmatprep.subr.bf16.mxu0 %v7315
        %7825 = vmatpush1.bf16.msra.mxu0 %v7314
        %7826 = vmatprep.subr.bf16.mxu0 %v7319
        %7827 = vmatpush1.bf16.msra.mxu0 %v7318
        %7828 = vmatprep.subr.bf16.mxu0 %v7323
        %7829 = vmatpush1.bf16.msra.mxu0 %v7322
        %7830 = vmatprep.subr.bf16.mxu0 %v7327
        %7831 = vmatpush1.bf16.msra.mxu0 %v7326
        %7832 = vmatprep.subr.bf16.mxu0 %v7331
        %7833 = vmatpush1.bf16.msra.mxu0 %v7330
        %7834 = vmatprep.subr.bf16.mxu0 %v7335
        %7835 = vmatpush1.bf16.msra.mxu0 %v7334
        %7836 = vmatprep.subr.bf16.mxu0 %v7339
        %7837 = vmatpush1.bf16.msra.mxu0 %v7338
        %7838 = vmatprep.subr.bf16.mxu0 %v7343
        %7839 = vmatpush1.bf16.msra.mxu0 %v7342
        %7840 = vmatprep.subr.bf16.mxu0 %v7347
        %7841 = vmatpush1.bf16.msra.mxu0 %v7346
        %7842 = vmatprep.subr.bf16.mxu0 %v7351
        %7843 = vmatpush1.bf16.msra.mxu0 %v7350
        %7844 = vmatprep.subr.bf16.mxu0 %v7355
        %7845 = vmatpush1.bf16.msra.mxu0 %v7354
        %7846 = vmatprep.subr.bf16.mxu0 %v7359
        %7847 = vmatpush1.bf16.msra.mxu0 %v7358
        %7848 = vmatprep.subr.bf16.mxu0 %v7363
        %7849 = vmatpush1.bf16.msra.mxu0 %v7362
        %7850 = vmatprep.subr.bf16.mxu0 %v7367
        %7851 = vmatpush1.bf16.msra.mxu0 %v7366
        %7852 = vmatprep.subr.bf16.mxu0 %v7371
        %7853 = vmatpush1.bf16.msra.mxu0 %v7370
        %7854 = vmatprep.mubr.bf16.mxu0 %v6183
        %7855 = vmatmul.mubr.bf16.gmra.mrb[0].mxu0 %v6182
        %v7856 = vpop.f32.mrb[0].mxu0
        %v7857 = vadd.f32 0.0, %v7856
        %v7858 = vpop.f32.mrb[0].mxu0
        %v7859 = vadd.f32 0.0, %v7858
        %v7860 = vpop.f32.mrb[0].mxu0
        %v7861 = vadd.f32 0.0, %v7860
        %v7862 = vpop.f32.mrb[0].mxu0
        %v7863 = vadd.f32 0.0, %v7862
        %7864 = vmatprep.mubr.bf16.mxu0 %v6191
        %7865 = vmatmul.mubr.bf16.gmra.mrb[0].mxu0 %v6190
        %v7866 = vpop.f32.mrb[0].mxu0
        %v7867 = vadd.f32 0.0, %v7866
        %v7868 = vpop.f32.mrb[0].mxu0
        %v7869 = vadd.f32 0.0, %v7868
        %v7870 = vpop.f32.mrb[0].mxu0
        %v7871 = vadd.f32 0.0, %v7870
        %v7872 = vpop.f32.mrb[0].mxu0
        %v7873 = vadd.f32 0.0, %v7872
        %7874 = vmatprep.mubr.bf16.mxu0 %v6199
        %7875 = vmatmul.mubr.bf16.gmra.mrb[0].mxu0 %v6198
        %v7876 = vpop.f32.mrb[0].mxu0
        %v7877 = vadd.f32 0.0, %v7876
        %v7878 = vpop.f32.mrb[0].mxu0
        %v7879 = vadd.f32 0.0, %v7878
        %v7880 = vpop.f32.mrb[0].mxu0
        %v7881 = vadd.f32 0.0, %v7880
        %v7882 = vpop.f32.mrb[0].mxu0
        %v7883 = vadd.f32 0.0, %v7882
        %7884 = vmatprep.mubr.bf16.mxu0 %v6207
        %7885 = vmatmul.mubr.bf16.gmra.mrb[0].mxu0 %v6206
        %v7886 = vpop.f32.mrb[0].mxu0
        %v7887 = vadd.f32 0.0, %v7886
        %v7888 = vpop.f32.mrb[0].mxu0
        %v7889 = vadd.f32 0.0, %v7888
        %v7890 = vpop.f32.mrb[0].mxu0
        %v7891 = vadd.f32 0.0, %v7890
        %v7892 = vpop.f32.mrb[0].mxu0
        %v7893 = vadd.f32 0.0, %v7892
        %7894 = vmatprep.mubr.bf16.mxu0 %v6215
        %7895 = vmatmul.mubr.bf16.gmra.mrb[0].mxu0 %v6214
        %v7896 = vpop.f32.mrb[0].mxu0
        %v7897 = vadd.f32 0.0, %v7896
        %v7898 = vpop.f32.mrb[0].mxu0
        %v7899 = vadd.f32 0.0, %v7898
        %v7900 = vpop.f32.mrb[0].mxu0
        %v7901 = vadd.f32 0.0, %v7900
        %v7902 = vpop.f32.mrb[0].mxu0
        %v7903 = vadd.f32 0.0, %v7902
        %7904 = vmatprep.mubr.bf16.mxu0 %v6223
        %7905 = vmatmul.mubr.bf16.gmra.mrb[0].mxu0 %v6222
        %v7906 = vpop.f32.mrb[0].mxu0
        %v7907 = vadd.f32 0.0, %v7906
        %v7908 = vpop.f32.mrb[0].mxu0
        %v7909 = vadd.f32 0.0, %v7908
        %v7910 = vpop.f32.mrb[0].mxu0
        %v7911 = vadd.f32 0.0, %v7910
        %v7912 = vpop.f32.mrb[0].mxu0
        %v7913 = vadd.f32 0.0, %v7912
        %7914 = vmatprep.mubr.bf16.mxu0 %v6231
        %7915 = vmatmul.mubr.bf16.gmra.mrb[0].mxu0 %v6230
        %v7916 = vpop.f32.mrb[0].mxu0
        %v7917 = vadd.f32 0.0, %v7916
        %v7918 = vpop.f32.mrb[0].mxu0
        %v7919 = vadd.f32 0.0, %v7918
        %v7920 = vpop.f32.mrb[0].mxu0
        %v7921 = vadd.f32 0.0, %v7920
        %v7922 = vpop.f32.mrb[0].mxu0
        %v7923 = vadd.f32 0.0, %v7922
        %7924 = vmatprep.mubr.bf16.mxu0 %v6239
        %7925 = vmatmul.mubr.bf16.gmra.mrb[0].mxu0 %v6238
        %v7926 = vpop.f32.mrb[0].mxu0
        %v7927 = vadd.f32 0.0, %v7926
        %v7928 = vpop.f32.mrb[0].mxu0
        %v7929 = vadd.f32 0.0, %v7928
        %v7930 = vpop.f32.mrb[0].mxu0
        %v7931 = vadd.f32 0.0, %v7930
        %v7932 = vpop.f32.mrb[0].mxu0
        %v7933 = vadd.f32 0.0, %v7932
        %7934 = vmatprep.mubr.bf16.mxu0 %v6247
        %7935 = vmatmul.mubr.bf16.gmra.mrb[0].mxu0 %v6246
        %v7936 = vpop.f32.mrb[0].mxu0
        %v7937 = vadd.f32 0.0, %v7936
        %v7938 = vpop.f32.mrb[0].mxu0
        %v7939 = vadd.f32 0.0, %v7938
        %v7940 = vpop.f32.mrb[0].mxu0
        %v7941 = vadd.f32 0.0, %v7940
        %v7942 = vpop.f32.mrb[0].mxu0
        %v7943 = vadd.f32 0.0, %v7942
        %7944 = vmatprep.mubr.bf16.mxu0 %v6255
        %7945 = vmatmul.mubr.bf16.gmra.mrb[0].mxu0 %v6254
        %v7946 = vpop.f32.mrb[0].mxu0
        %v7947 = vadd.f32 0.0, %v7946
        %v7948 = vpop.f32.mrb[0].mxu0
        %v7949 = vadd.f32 0.0, %v7948
        %v7950 = vpop.f32.mrb[0].mxu0
        %v7951 = vadd.f32 0.0, %v7950
        %v7952 = vpop.f32.mrb[0].mxu0
        %v7953 = vadd.f32 0.0, %v7952
        %7954 = vmatprep.mubr.bf16.mxu0 %v6263
        %7955 = vmatmul.mubr.bf16.gmra.mrb[0].mxu0 %v6262
        %v7956 = vpop.f32.mrb[0].mxu0
        %v7957 = vadd.f32 0.0, %v7956
        %v7958 = vpop.f32.mrb[0].mxu0
        %v7959 = vadd.f32 0.0, %v7958
        %v7960 = vpop.f32.mrb[0].mxu0
        %v7961 = vadd.f32 0.0, %v7960
        %v7962 = vpop.f32.mrb[0].mxu0
        %v7963 = vadd.f32 0.0, %v7962
        %7964 = vmatprep.mubr.bf16.mxu0 %v6271
        %7965 = vmatmul.mubr.bf16.gmra.mrb[0].mxu0 %v6270
        %v7966 = vpop.f32.mrb[0].mxu0
        %v7967 = vadd.f32 0.0, %v7966
        %v7968 = vpop.f32.mrb[0].mxu0
        %v7969 = vadd.f32 0.0, %v7968
        %v7970 = vpop.f32.mrb[0].mxu0
        %v7971 = vadd.f32 0.0, %v7970
        %v7972 = vpop.f32.mrb[0].mxu0
        %v7973 = vadd.f32 0.0, %v7972
        %7974 = vmatprep.mubr.bf16.mxu0 %v6279
        %7975 = vmatmul.mubr.bf16.gmra.mrb[0].mxu0 %v6278
        %v7976 = vpop.f32.mrb[0].mxu0
        %v7977 = vadd.f32 0.0, %v7976
        %v7978 = vpop.f32.mrb[0].mxu0
        %v7979 = vadd.f32 0.0, %v7978
        %v7980 = vpop.f32.mrb[0].mxu0
        %v7981 = vpop.f32.mrb[0].mxu0
        %7982 = vdwg.mxu0
        %7983 = vmatprep.subr.bf16.mxu0 %v7375
        %7984 = vmatpush1.bf16.msra.mxu0 %v7374
        %7985 = vmatprep.subr.bf16.mxu0 %v7379
        %7986 = vmatpush1.bf16.msra.mxu0 %v7378
        %7987 = vmatprep.subr.bf16.mxu0 %v7383
        %7988 = vmatpush1.bf16.msra.mxu0 %v7382
        %7989 = vmatprep.subr.bf16.mxu0 %v7387
        %7990 = vmatpush1.bf16.msra.mxu0 %v7386
        %7991 = vmatprep.subr.bf16.mxu0 %v7391
        %7992 = vmatpush1.bf16.msra.mxu0 %v7390
        %7993 = vmatprep.subr.bf16.mxu0 %v7395
        %7994 = vmatpush1.bf16.msra.mxu0 %v7394
        %7995 = vmatprep.subr.bf16.mxu0 %v7399
        %7996 = vmatpush1.bf16.msra.mxu0 %v7398
        %7997 = vmatprep.subr.bf16.mxu0 %v7403
        %7998 = vmatpush1.bf16.msra.mxu0 %v7402
        %7999 = vmatprep.subr.bf16.mxu0 %v7407
        %8000 = vmatpush1.bf16.msra.mxu0 %v7406
        %8001 = vmatprep.subr.bf16.mxu0 %v7411
        %8002 = vmatpush1.bf16.msra.mxu0 %v7410
        %8003 = vmatprep.subr.bf16.mxu0 %v7415
        %8004 = vmatpush1.bf16.msra.mxu0 %v7414
        %8005 = vmatprep.subr.bf16.mxu0 %v7419
        %8006 = vmatpush1.bf16.msra.mxu0 %v7418
        %8007 = vmatprep.subr.bf16.mxu0 %v7423
        %8008 = vmatpush1.bf16.msra.mxu0 %v7422
        %8009 = vmatprep.subr.bf16.mxu0 %v7427
        %8010 = vmatpush1.bf16.msra.mxu0 %v7426
        %8011 = vmatprep.subr.bf16.mxu0 %v7431
        %8012 = vmatpush1.bf16.msra.mxu0 %v7430
        %8013 = vmatprep.subr.bf16.mxu0 %v7435
        %8014 = vmatpush1.bf16.msra.mxu0 %v7434
        %8015 = vmatprep.mubr.bf16.mxu0 %v6185
        %8016 = vmatmul.mubr.bf16.gmra.mrb[0].mxu0 %v6184
        %v8017 = vpop.f32.mrb[0].mxu0
        %v8018 = vadd.f32 %v7857, %v8017
        %v8019 = vpop.f32.mrb[0].mxu0
        %v8020 = vadd.f32 %v7859, %v8019
        %v8021 = vpop.f32.mrb[0].mxu0
        %v8022 = vadd.f32 %v7861, %v8021
        %v8023 = vpop.f32.mrb[0].mxu0
        %v8024 = vadd.f32 %v7863, %v8023
        %8025 = vmatprep.mubr.bf16.mxu0 %v6193
        %8026 = vmatmul.mubr.bf16.gmra.mrb[0].mxu0 %v6192
        %v8027 = vpop.f32.mrb[0].mxu0
        %v8028 = vadd.f32 %v7867, %v8027
        %v8029 = vpop.f32.mrb[0].mxu0
        %v8030 = vadd.f32 %v7869, %v8029
        %v8031 = vpop.f32.mrb[0].mxu0
        %v8032 = vadd.f32 %v7871, %v8031
        %v8033 = vpop.f32.mrb[0].mxu0
        %v8034 = vadd.f32 %v7873, %v8033
        %8035 = vmatprep.mubr.bf16.mxu0 %v6201
        %8036 = vmatmul.mubr.bf16.gmra.mrb[0].mxu0 %v6200
        %v8037 = vpop.f32.mrb[0].mxu0
        %v8038 = vadd.f32 %v7877, %v8037
        %v8039 = vpop.f32.mrb[0].mxu0
        %v8040 = vadd.f32 %v7879, %v8039
        %v8041 = vpop.f32.mrb[0].mxu0
        %v8042 = vadd.f32 %v7881, %v8041
        %v8043 = vpop.f32.mrb[0].mxu0
        %v8044 = vadd.f32 %v7883, %v8043
        %8045 = vmatprep.mubr.bf16.mxu0 %v6209
        %8046 = vmatmul.mubr.bf16.gmra.mrb[0].mxu0 %v6208
        %v8047 = vpop.f32.mrb[0].mxu0
        %v8048 = vadd.f32 %v7887, %v8047
        %v8049 = vpop.f32.mrb[0].mxu0
        %v8050 = vadd.f32 %v7889, %v8049
        %v8051 = vpop.f32.mrb[0].mxu0
        %v8052 = vadd.f32 %v7891, %v8051
        %v8053 = vpop.f32.mrb[0].mxu0
        %v8054 = vadd.f32 %v7893, %v8053
        %8055 = vmatprep.mubr.bf16.mxu0 %v6217
        %8056 = vmatmul.mubr.bf16.gmra.mrb[0].mxu0 %v6216
        %v8057 = vpop.f32.mrb[0].mxu0
        %v8058 = vadd.f32 %v7897, %v8057
        %v8059 = vpop.f32.mrb[0].mxu0
        %v8060 = vadd.f32 %v7899, %v8059
        %v8061 = vpop.f32.mrb[0].mxu0
        %v8062 = vadd.f32 %v7901, %v8061
        %v8063 = vpop.f32.mrb[0].mxu0
        %v8064 = vadd.f32 %v7903, %v8063
        %8065 = vmatprep.mubr.bf16.mxu0 %v6225
        %8066 = vmatmul.mubr.bf16.gmra.mrb[0].mxu0 %v6224
        %v8067 = vpop.f32.mrb[0].mxu0
        %v8068 = vadd.f32 %v7907, %v8067
        %v8069 = vpop.f32.mrb[0].mxu0
        %v8070 = vadd.f32 %v7909, %v8069
        %v8071 = vpop.f32.mrb[0].mxu0
        %v8072 = vadd.f32 %v7911, %v8071
        %v8073 = vpop.f32.mrb[0].mxu0
        %v8074 = vadd.f32 %v7913, %v8073
        %8075 = vmatprep.mubr.bf16.mxu0 %v6233
        %8076 = vmatmul.mubr.bf16.gmra.mrb[0].mxu0 %v6232
        %v8077 = vpop.f32.mrb[0].mxu0
        %v8078 = vadd.f32 %v7917, %v8077
        %v8079 = vpop.f32.mrb[0].mxu0
        %v8080 = vadd.f32 %v7919, %v8079
        %v8081 = vpop.f32.mrb[0].mxu0
        %v8082 = vadd.f32 %v7921, %v8081
        %v8083 = vpop.f32.mrb[0].mxu0
        %v8084 = vadd.f32 %v7923, %v8083
        %8085 = vmatprep.mubr.bf16.mxu0 %v6241
        %8086 = vmatmul.mubr.bf16.gmra.mrb[0].mxu0 %v6240
        %v8087 = vpop.f32.mrb[0].mxu0
        %v8088 = vadd.f32 %v7927, %v8087
        %v8089 = vpop.f32.mrb[0].mxu0
        %v8090 = vadd.f32 %v7929, %v8089
        %v8091 = vpop.f32.mrb[0].mxu0
        %v8092 = vadd.f32 %v7931, %v8091
        %v8093 = vpop.f32.mrb[0].mxu0
        %v8094 = vadd.f32 %v7933, %v8093
        %8095 = vmatprep.mubr.bf16.mxu0 %v6249
        %8096 = vmatmul.mubr.bf16.gmra.mrb[0].mxu0 %v6248
        %v8097 = vpop.f32.mrb[0].mxu0
        %v8098 = vadd.f32 %v7937, %v8097
        %v8099 = vpop.f32.mrb[0].mxu0
        %v8100 = vadd.f32 %v7939, %v8099
        %v8101 = vpop.f32.mrb[0].mxu0
        %v8102 = vadd.f32 %v7941, %v8101
        %v8103 = vpop.f32.mrb[0].mxu0
        %v8104 = vadd.f32 %v7943, %v8103
        %8105 = vmatprep.mubr.bf16.mxu0 %v6257
        %8106 = vmatmul.mubr.bf16.gmra.mrb[0].mxu0 %v6256
        %v8107 = vpop.f32.mrb[0].mxu0
        %v8108 = vadd.f32 %v7947, %v8107
        %v8109 = vpop.f32.mrb[0].mxu0
        %v8110 = vadd.f32 %v7949, %v8109
        %v8111 = vpop.f32.mrb[0].mxu0
        %v8112 = vadd.f32 %v7951, %v8111
        %v8113 = vpop.f32.mrb[0].mxu0
        %v8114 = vadd.f32 %v7953, %v8113
        %8115 = vmatprep.mubr.bf16.mxu0 %v6265
        %8116 = vmatmul.mubr.bf16.gmra.mrb[0].mxu0 %v6264
        %v8117 = vpop.f32.mrb[0].mxu0
        %v8118 = vadd.f32 %v7957, %v8117
        %v8119 = vpop.f32.mrb[0].mxu0
        %v8120 = vadd.f32 %v7959, %v8119
        %v8121 = vpop.f32.mrb[0].mxu0
        %v8122 = vadd.f32 %v7961, %v8121
        %v8123 = vpop.f32.mrb[0].mxu0
        %v8124 = vadd.f32 %v7963, %v8123
        %8125 = vmatprep.mubr.bf16.mxu0 %v6273
        %8126 = vmatmul.mubr.bf16.gmra.mrb[0].mxu0 %v6272
        %v8127 = vpop.f32.mrb[0].mxu0
        %v8128 = vadd.f32 %v7967, %v8127
        %v8129 = vpop.f32.mrb[0].mxu0
        %v8130 = vadd.f32 %v7969, %v8129
        %v8131 = vpop.f32.mrb[0].mxu0
        %v8132 = vadd.f32 %v7971, %v8131
        %v8133 = vpop.f32.mrb[0].mxu0
        %v8134 = vadd.f32 %v7973, %v8133
        %8135 = vmatprep.mubr.bf16.mxu0 %v6281
        %8136 = vmatmul.mubr.bf16.gmra.mrb[0].mxu0 %v6280
        %v8137 = vpop.f32.mrb[0].mxu0
        %v8138 = vadd.f32 %v7977, %v8137
        %v8139 = vpop.f32.mrb[0].mxu0
        %v8140 = vadd.f32 %v7979, %v8139
        %v8141 = vpop.f32.mrb[0].mxu0
        %v8142 = vpop.f32.mrb[0].mxu0
        %8143 = vdwg.mxu0
        %8144 = vmatprep.subr.bf16.mxu0 %v7439
        %8145 = vmatpush1.bf16.msra.mxu0 %v7438
        %8146 = vmatprep.subr.bf16.mxu0 %v7443
        %8147 = vmatpush1.bf16.msra.mxu0 %v7442
        %8148 = vmatprep.subr.bf16.mxu0 %v7447
        %8149 = vmatpush1.bf16.msra.mxu0 %v7446
        %8150 = vmatprep.subr.bf16.mxu0 %v7451
        %8151 = vmatpush1.bf16.msra.mxu0 %v7450
        %8152 = vmatprep.subr.bf16.mxu0 %v7455
        %8153 = vmatpush1.bf16.msra.mxu0 %v7454
        %8154 = vmatprep.subr.bf16.mxu0 %v7459
        %8155 = vmatpush1.bf16.msra.mxu0 %v7458
        %8156 = vmatprep.subr.bf16.mxu0 %v7463
        %8157 = vmatpush1.bf16.msra.mxu0 %v7462
        %8158 = vmatprep.subr.bf16.mxu0 %v7467
        %8159 = vmatpush1.bf16.msra.mxu0 %v7466
        %8160 = vmatprep.subr.bf16.mxu0 %v7471
        %8161 = vmatpush1.bf16.msra.mxu0 %v7470
        %8162 = vmatprep.subr.bf16.mxu0 %v7475
        %8163 = vmatpush1.bf16.msra.mxu0 %v7474
        %8164 = vmatprep.subr.bf16.mxu0 %v7479
        %8165 = vmatpush1.bf16.msra.mxu0 %v7478
        %8166 = vmatprep.subr.bf16.mxu0 %v7483
        %8167 = vmatpush1.bf16.msra.mxu0 %v7482
        %8168 = vmatprep.subr.bf16.mxu0 %v7487
        %8169 = vmatpush1.bf16.msra.mxu0 %v7486
        %8170 = vmatprep.subr.bf16.mxu0 %v7491
        %8171 = vmatpush1.bf16.msra.mxu0 %v7490
        %8172 = vmatprep.subr.bf16.mxu0 %v7495
        %8173 = vmatpush1.bf16.msra.mxu0 %v7494
        %8174 = vmatprep.subr.bf16.mxu0 %v7499
        %8175 = vmatpush1.bf16.msra.mxu0 %v7498
        %8176 = vmatprep.mubr.bf16.mxu0 %v6187
        %8177 = vmatmul.mubr.bf16.gmra.mrb[0].mxu0 %v6186
        %v8178 = vpop.f32.mrb[0].mxu0
        %v8179 = vadd.f32 %v8018, %v8178
        %v8180 = vpop.f32.mrb[0].mxu0
        %v8181 = vadd.f32 %v8020, %v8180
        %v8182 = vpop.f32.mrb[0].mxu0
        %v8183 = vadd.f32 %v8022, %v8182
        %v8184 = vpop.f32.mrb[0].mxu0
        %v8185 = vadd.f32 %v8024, %v8184
        %8186 = vmatprep.mubr.bf16.mxu0 %v6195
        %8187 = vmatmul.mubr.bf16.gmra.mrb[0].mxu0 %v6194
        %v8188 = vpop.f32.mrb[0].mxu0
        %v8189 = vadd.f32 %v8028, %v8188
        %v8190 = vpop.f32.mrb[0].mxu0
        %v8191 = vadd.f32 %v8030, %v8190
        %v8192 = vpop.f32.mrb[0].mxu0
        %v8193 = vadd.f32 %v8032, %v8192
        %v8194 = vpop.f32.mrb[0].mxu0
        %v8195 = vadd.f32 %v8034, %v8194
        %8196 = vmatprep.mubr.bf16.mxu0 %v6203
        %8197 = vmatmul.mubr.bf16.gmra.mrb[0].mxu0 %v6202
        %v8198 = vpop.f32.mrb[0].mxu0
        %v8199 = vadd.f32 %v8038, %v8198
        %v8200 = vpop.f32.mrb[0].mxu0
        %v8201 = vadd.f32 %v8040, %v8200
        %v8202 = vpop.f32.mrb[0].mxu0
        %v8203 = vadd.f32 %v8042, %v8202
        %v8204 = vpop.f32.mrb[0].mxu0
        %v8205 = vadd.f32 %v8044, %v8204
        %8206 = vmatprep.mubr.bf16.mxu0 %v6211
        %8207 = vmatmul.mubr.bf16.gmra.mrb[0].mxu0 %v6210
        %v8208 = vpop.f32.mrb[0].mxu0
        %v8209 = vadd.f32 %v8048, %v8208
        %v8210 = vpop.f32.mrb[0].mxu0
        %v8211 = vadd.f32 %v8050, %v8210
        %v8212 = vpop.f32.mrb[0].mxu0
        %v8213 = vadd.f32 %v8052, %v8212
        %v8214 = vpop.f32.mrb[0].mxu0
        %v8215 = vadd.f32 %v8054, %v8214
        %8216 = vmatprep.mubr.bf16.mxu0 %v6219
        %8217 = vmatmul.mubr.bf16.gmra.mrb[0].mxu0 %v6218
        %v8218 = vpop.f32.mrb[0].mxu0
        %v8219 = vadd.f32 %v8058, %v8218
        %v8220 = vpop.f32.mrb[0].mxu0
        %v8221 = vadd.f32 %v8060, %v8220
        %v8222 = vpop.f32.mrb[0].mxu0
        %v8223 = vadd.f32 %v8062, %v8222
        %v8224 = vpop.f32.mrb[0].mxu0
        %v8225 = vadd.f32 %v8064, %v8224
        %8226 = vmatprep.mubr.bf16.mxu0 %v6227
        %8227 = vmatmul.mubr.bf16.gmra.mrb[0].mxu0 %v6226
        %v8228 = vpop.f32.mrb[0].mxu0
        %v8229 = vadd.f32 %v8068, %v8228
        %v8230 = vpop.f32.mrb[0].mxu0
        %v8231 = vadd.f32 %v8070, %v8230
        %v8232 = vpop.f32.mrb[0].mxu0
        %v8233 = vadd.f32 %v8072, %v8232
        %v8234 = vpop.f32.mrb[0].mxu0
        %v8235 = vadd.f32 %v8074, %v8234
        %8236 = vmatprep.mubr.bf16.mxu0 %v6235
        %8237 = vmatmul.mubr.bf16.gmra.mrb[0].mxu0 %v6234
        %v8238 = vpop.f32.mrb[0].mxu0
        %v8239 = vadd.f32 %v8078, %v8238
        %v8240 = vpop.f32.mrb[0].mxu0
        %v8241 = vadd.f32 %v8080, %v8240
        %v8242 = vpop.f32.mrb[0].mxu0
        %v8243 = vadd.f32 %v8082, %v8242
        %v8244 = vpop.f32.mrb[0].mxu0
        %v8245 = vadd.f32 %v8084, %v8244
        %8246 = vmatprep.mubr.bf16.mxu0 %v6243
        %8247 = vmatmul.mubr.bf16.gmra.mrb[0].mxu0 %v6242
        %v8248 = vpop.f32.mrb[0].mxu0
        %v8249 = vadd.f32 %v8088, %v8248
        %v8250 = vpop.f32.mrb[0].mxu0
        %v8251 = vadd.f32 %v8090, %v8250
        %v8252 = vpop.f32.mrb[0].mxu0
        %v8253 = vadd.f32 %v8092, %v8252
        %v8254 = vpop.f32.mrb[0].mxu0
        %v8255 = vadd.f32 %v8094, %v8254
        %8256 = vmatprep.mubr.bf16.mxu0 %v6251
        %8257 = vmatmul.mubr.bf16.gmra.mrb[0].mxu0 %v6250
        %v8258 = vpop.f32.mrb[0].mxu0
        %v8259 = vadd.f32 %v8098, %v8258
        %v8260 = vpop.f32.mrb[0].mxu0
        %v8261 = vadd.f32 %v8100, %v8260
        %v8262 = vpop.f32.mrb[0].mxu0
        %v8263 = vadd.f32 %v8102, %v8262
        %v8264 = vpop.f32.mrb[0].mxu0
        %v8265 = vadd.f32 %v8104, %v8264
        %8266 = vmatprep.mubr.bf16.mxu0 %v6259
        %8267 = vmatmul.mubr.bf16.gmra.mrb[0].mxu0 %v6258
        %v8268 = vpop.f32.mrb[0].mxu0
        %v8269 = vadd.f32 %v8108, %v8268
        %v8270 = vpop.f32.mrb[0].mxu0
        %v8271 = vadd.f32 %v8110, %v8270
        %v8272 = vpop.f32.mrb[0].mxu0
        %v8273 = vadd.f32 %v8112, %v8272
        %v8274 = vpop.f32.mrb[0].mxu0
        %v8275 = vadd.f32 %v8114, %v8274
        %8276 = vmatprep.mubr.bf16.mxu0 %v6267
        %8277 = vmatmul.mubr.bf16.gmra.mrb[0].mxu0 %v6266
        %v8278 = vpop.f32.mrb[0].mxu0
        %v8279 = vadd.f32 %v8118, %v8278
        %v8280 = vpop.f32.mrb[0].mxu0
        %v8281 = vadd.f32 %v8120, %v8280
        %v8282 = vpop.f32.mrb[0].mxu0
        %v8283 = vadd.f32 %v8122, %v8282
        %v8284 = vpop.f32.mrb[0].mxu0
        %v8285 = vadd.f32 %v8124, %v8284
        %8286 = vmatprep.mubr.bf16.mxu0 %v6275
        %8287 = vmatmul.mubr.bf16.gmra.mrb[0].mxu0 %v6274
        %v8288 = vpop.f32.mrb[0].mxu0
        %v8289 = vadd.f32 %v8128, %v8288
        %v8290 = vpop.f32.mrb[0].mxu0
        %v8291 = vadd.f32 %v8130, %v8290
        %v8292 = vpop.f32.mrb[0].mxu0
        %v8293 = vadd.f32 %v8132, %v8292
        %v8294 = vpop.f32.mrb[0].mxu0
        %v8295 = vadd.f32 %v8134, %v8294
        %8296 = vmatprep.mubr.bf16.mxu0 %v6283
        %8297 = vmatmul.mubr.bf16.gmra.mrb[0].mxu0 %v6282
        %v8298 = vpop.f32.mrb[0].mxu0
        %v8299 = vadd.f32 %v8138, %v8298
        %v8300 = vpop.f32.mrb[0].mxu0
        %v8301 = vadd.f32 %v8140, %v8300
        %v8302 = vpop.f32.mrb[0].mxu0
        %v8303 = vpop.f32.mrb[0].mxu0
        %8304 = vdwg.mxu0
        %8305 = vmatprep.subr.bf16.mxu0 %v7503
        %8306 = vmatpush1.bf16.msra.mxu0 %v7502
        %8307 = vmatprep.subr.bf16.mxu0 %v7507
        %8308 = vmatpush1.bf16.msra.mxu0 %v7506
        %8309 = vmatprep.subr.bf16.mxu0 %v7511
        %8310 = vmatpush1.bf16.msra.mxu0 %v7510
        %8311 = vmatprep.subr.bf16.mxu0 %v7515
        %8312 = vmatpush1.bf16.msra.mxu0 %v7514
        %8313 = vmatprep.subr.bf16.mxu0 %v7519
        %8314 = vmatpush1.bf16.msra.mxu0 %v7518
        %8315 = vmatprep.subr.bf16.mxu0 %v7523
        %8316 = vmatpush1.bf16.msra.mxu0 %v7522
        %8317 = vmatprep.subr.bf16.mxu0 %v7527
        %8318 = vmatpush1.bf16.msra.mxu0 %v7526
        %8319 = vmatprep.subr.bf16.mxu0 %v7531
        %8320 = vmatpush1.bf16.msra.mxu0 %v7530
        %8321 = vmatprep.subr.bf16.mxu0 %v7535
        %8322 = vmatpush1.bf16.msra.mxu0 %v7534
        %8323 = vmatprep.subr.bf16.mxu0 %v7539
        %8324 = vmatpush1.bf16.msra.mxu0 %v7538
        %8325 = vmatprep.subr.bf16.mxu0 %v7543
        %8326 = vmatpush1.bf16.msra.mxu0 %v7542
        %8327 = vmatprep.subr.bf16.mxu0 %v7547
        %8328 = vmatpush1.bf16.msra.mxu0 %v7546
        %8329 = vmatprep.subr.bf16.mxu0 %v7551
        %8330 = vmatpush1.bf16.msra.mxu0 %v7550
        %8331 = vmatprep.subr.bf16.mxu0 %v7555
        %8332 = vmatpush1.bf16.msra.mxu0 %v7554
        %8333 = vmatprep.subr.bf16.mxu0 %v7559
        %8334 = vmatpush1.bf16.msra.mxu0 %v7558
        %8335 = vmatprep.subr.bf16.mxu0 %v7563
        %8336 = vmatpush1.bf16.msra.mxu0 %v7562
        %8337 = vmatprep.mubr.bf16.mxu0 %v6189
        %8338 = vmatmul.mubr.bf16.gmra.mrb[0].mxu0 %v6188
        %v8339 = vpop.f32.mrb[0].mxu0
        %v8340 = vadd.f32 %v8179, %v8339
        %v8341 = vpop.f32.mrb[0].mxu0
        %v8342 = vadd.f32 %v8181, %v8341
        %v8343 = vpop.f32.mrb[0].mxu0
        %v8344 = vadd.f32 %v8183, %v8343
        %v8345 = vpop.f32.mrb[0].mxu0
        %v8346 = vadd.f32 %v8185, %v8345
        %8347 = vmatprep.mubr.bf16.mxu0 %v6197
        %8348 = vmatmul.mubr.bf16.gmra.mrb[0].mxu0 %v6196
        %v8349 = vpop.f32.mrb[0].mxu0
        %v8350 = vadd.f32 %v8189, %v8349
        %v8351 = vpop.f32.mrb[0].mxu0
        %v8352 = vadd.f32 %v8191, %v8351
        %v8353 = vpop.f32.mrb[0].mxu0
        %v8354 = vadd.f32 %v8193, %v8353
        %v8355 = vpop.f32.mrb[0].mxu0
        %v8356 = vadd.f32 %v8195, %v8355
        %8357 = vmatprep.mubr.bf16.mxu0 %v6205
        %8358 = vmatmul.mubr.bf16.gmra.mrb[0].mxu0 %v6204
        %v8359 = vpop.f32.mrb[0].mxu0
        %v8360 = vadd.f32 %v8199, %v8359
        %v8361 = vpop.f32.mrb[0].mxu0
        %v8362 = vadd.f32 %v8201, %v8361
        %v8363 = vpop.f32.mrb[0].mxu0
        %v8364 = vadd.f32 %v8203, %v8363
        %v8365 = vpop.f32.mrb[0].mxu0
        %v8366 = vadd.f32 %v8205, %v8365
        %8367 = vmatprep.mubr.bf16.mxu0 %v6213
        %8368 = vmatmul.mubr.bf16.gmra.mrb[0].mxu0 %v6212
        %v8369 = vpop.f32.mrb[0].mxu0
        %v8370 = vadd.f32 %v8209, %v8369
        %v8371 = vpop.f32.mrb[0].mxu0
        %v8372 = vadd.f32 %v8211, %v8371
        %v8373 = vpop.f32.mrb[0].mxu0
        %v8374 = vadd.f32 %v8213, %v8373
        %v8375 = vpop.f32.mrb[0].mxu0
        %v8376 = vadd.f32 %v8215, %v8375
        %8377 = vmatprep.mubr.bf16.mxu0 %v6221
        %8378 = vmatmul.mubr.bf16.gmra.mrb[0].mxu0 %v6220
        %v8379 = vpop.f32.mrb[0].mxu0
        %v8380 = vadd.f32 %v8219, %v8379
        %v8381 = vpop.f32.mrb[0].mxu0
        %v8382 = vadd.f32 %v8221, %v8381
        %v8383 = vpop.f32.mrb[0].mxu0
        %v8384 = vadd.f32 %v8223, %v8383
        %v8385 = vpop.f32.mrb[0].mxu0
        %v8386 = vadd.f32 %v8225, %v8385
        %8387 = vmatprep.mubr.bf16.mxu0 %v6229
        %8388 = vmatmul.mubr.bf16.gmra.mrb[0].mxu0 %v6228
        %v8389 = vpop.f32.mrb[0].mxu0
        %v8390 = vadd.f32 %v8229, %v8389
        %v8391 = vpop.f32.mrb[0].mxu0
        %v8392 = vadd.f32 %v8231, %v8391
        %v8393 = vpop.f32.mrb[0].mxu0
        %v8394 = vadd.f32 %v8233, %v8393
        %v8395 = vpop.f32.mrb[0].mxu0
        %v8396 = vadd.f32 %v8235, %v8395
        %8397 = vmatprep.mubr.bf16.mxu0 %v6237
        %8398 = vmatmul.mubr.bf16.gmra.mrb[0].mxu0 %v6236
        %v8399 = vpop.f32.mrb[0].mxu0
        %v8400 = vadd.f32 %v8239, %v8399
        %v8401 = vpop.f32.mrb[0].mxu0
        %v8402 = vadd.f32 %v8241, %v8401
        %v8403 = vpop.f32.mrb[0].mxu0
        %v8404 = vadd.f32 %v8243, %v8403
        %v8405 = vpop.f32.mrb[0].mxu0
        %v8406 = vadd.f32 %v8245, %v8405
        %8407 = vmatprep.mubr.bf16.mxu0 %v6245
        %8408 = vmatmul.mubr.bf16.gmra.mrb[0].mxu0 %v6244
        %v8409 = vpop.f32.mrb[0].mxu0
        %v8410 = vadd.f32 %v8249, %v8409
        %v8411 = vpop.f32.mrb[0].mxu0
        %v8412 = vadd.f32 %v8251, %v8411
        %v8413 = vpop.f32.mrb[0].mxu0
        %v8414 = vadd.f32 %v8253, %v8413
        %v8415 = vpop.f32.mrb[0].mxu0
        %v8416 = vadd.f32 %v8255, %v8415
        %8417 = vmatprep.mubr.bf16.mxu0 %v6253
        %8418 = vmatmul.mubr.bf16.gmra.mrb[0].mxu0 %v6252
        %v8419 = vpop.f32.mrb[0].mxu0
        %v8420 = vadd.f32 %v8259, %v8419
        %v8421 = vpop.f32.mrb[0].mxu0
        %v8422 = vadd.f32 %v8261, %v8421
        %v8423 = vpop.f32.mrb[0].mxu0
        %v8424 = vadd.f32 %v8263, %v8423
        %v8425 = vpop.f32.mrb[0].mxu0
        %v8426 = vadd.f32 %v8265, %v8425
        %8427 = vmatprep.mubr.bf16.mxu0 %v6261
        %8428 = vmatmul.mubr.bf16.gmra.mrb[0].mxu0 %v6260
        %v8429 = vpop.f32.mrb[0].mxu0
        %v8430 = vadd.f32 %v8269, %v8429
        %v8431 = vpop.f32.mrb[0].mxu0
        %v8432 = vadd.f32 %v8271, %v8431
        %v8433 = vpop.f32.mrb[0].mxu0
        %v8434 = vadd.f32 %v8273, %v8433
        %v8435 = vpop.f32.mrb[0].mxu0
        %v8436 = vadd.f32 %v8275, %v8435
        %8437 = vmatprep.mubr.bf16.mxu0 %v6269
        %8438 = vmatmul.mubr.bf16.gmra.mrb[0].mxu0 %v6268
        %v8439 = vpop.f32.mrb[0].mxu0
        %v8440 = vadd.f32 %v8279, %v8439
        %v8441 = vpop.f32.mrb[0].mxu0
        %v8442 = vadd.f32 %v8281, %v8441
        %v8443 = vpop.f32.mrb[0].mxu0
        %v8444 = vadd.f32 %v8283, %v8443
        %v8445 = vpop.f32.mrb[0].mxu0
        %v8446 = vadd.f32 %v8285, %v8445
        %8447 = vmatprep.mubr.bf16.mxu0 %v6277
        %8448 = vmatmul.mubr.bf16.gmra.mrb[0].mxu0 %v6276
        %v8449 = vpop.f32.mrb[0].mxu0
        %v8450 = vadd.f32 %v8289, %v8449
        %v8451 = vpop.f32.mrb[0].mxu0
        %v8452 = vadd.f32 %v8291, %v8451
        %v8453 = vpop.f32.mrb[0].mxu0
        %v8454 = vadd.f32 %v8293, %v8453
        %v8455 = vpop.f32.mrb[0].mxu0
        %v8456 = vadd.f32 %v8295, %v8455
        %8457 = vmatprep.mubr.bf16.mxu0 %v6285
        %8458 = vmatmul.mubr.bf16.gmra.mrb[0].mxu0 %v6284
        %v8459 = vpop.f32.mrb[0].mxu0
        %v8460 = vadd.f32 %v8299, %v8459
        %v8461 = vpop.f32.mrb[0].mxu0
        %v8462 = vadd.f32 %v8301, %v8461
        %v8463 = vpop.f32.mrb[0].mxu0
        %v8464 = vpop.f32.mrb[0].mxu0
        %8465 = vdwg.mxu0
        %8466 = vmatprep.subr.bf16.mxu0 %v7313
        %8467 = vmatpush1.bf16.msra.mxu0 %v7312
        %8468 = vmatprep.subr.bf16.mxu0 %v7317
        %8469 = vmatpush1.bf16.msra.mxu0 %v7316
        %8470 = vmatprep.subr.bf16.mxu0 %v7321
        %8471 = vmatpush1.bf16.msra.mxu0 %v7320
        %8472 = vmatprep.subr.bf16.mxu0 %v7325
        %8473 = vmatpush1.bf16.msra.mxu0 %v7324
        %8474 = vmatprep.subr.bf16.mxu0 %v7329
        %8475 = vmatpush1.bf16.msra.mxu0 %v7328
        %8476 = vmatprep.subr.bf16.mxu0 %v7333
        %8477 = vmatpush1.bf16.msra.mxu0 %v7332
        %8478 = vmatprep.subr.bf16.mxu0 %v7337
        %8479 = vmatpush1.bf16.msra.mxu0 %v7336
        %8480 = vmatprep.subr.bf16.mxu0 %v7341
        %8481 = vmatpush1.bf16.msra.mxu0 %v7340
        %8482 = vmatprep.subr.bf16.mxu0 %v7345
        %8483 = vmatpush1.bf16.msra.mxu0 %v7344
        %8484 = vmatprep.subr.bf16.mxu0 %v7349
        %8485 = vmatpush1.bf16.msra.mxu0 %v7348
        %8486 = vmatprep.subr.bf16.mxu0 %v7353
        %8487 = vmatpush1.bf16.msra.mxu0 %v7352
        %8488 = vmatprep.subr.bf16.mxu0 %v7357
        %8489 = vmatpush1.bf16.msra.mxu0 %v7356
        %8490 = vmatprep.subr.bf16.mxu0 %v7361
        %8491 = vmatpush1.bf16.msra.mxu0 %v7360
        %8492 = vmatprep.subr.bf16.mxu0 %v7365
        %8493 = vmatpush1.bf16.msra.mxu0 %v7364
        %8494 = vmatprep.subr.bf16.mxu0 %v7369
        %8495 = vmatpush1.bf16.msra.mxu0 %v7368
        %8496 = vmatprep.subr.bf16.mxu0 %v7373
        %8497 = vmatpush1.bf16.msra.mxu0 %v7372
        %8498 = vmatprep.mubr.bf16.mxu0 %v6183
        %8499 = vmatmul.mubr.bf16.gmra.mrb[0].mxu0 %v6182
        %v8500 = vpop.f32.mrb[0].mxu0
        %v8501 = vadd.f32 0.0, %v8500
        %v8502 = vpop.f32.mrb[0].mxu0
        %v8503 = vadd.f32 0.0, %v8502
        %v8504 = vpop.f32.mrb[0].mxu0
        %v8505 = vadd.f32 0.0, %v8504
        %v8506 = vpop.f32.mrb[0].mxu0
        %v8507 = vadd.f32 0.0, %v8506
        %8508 = vmatprep.mubr.bf16.mxu0 %v6191
        %8509 = vmatmul.mubr.bf16.gmra.mrb[0].mxu0 %v6190
        %v8510 = vpop.f32.mrb[0].mxu0
        %v8511 = vadd.f32 0.0, %v8510
        %v8512 = vpop.f32.mrb[0].mxu0
        %v8513 = vadd.f32 0.0, %v8512
        %v8514 = vpop.f32.mrb[0].mxu0
        %v8515 = vadd.f32 0.0, %v8514
        %v8516 = vpop.f32.mrb[0].mxu0
        %v8517 = vadd.f32 0.0, %v8516
        %8518 = vmatprep.mubr.bf16.mxu0 %v6199
        %8519 = vmatmul.mubr.bf16.gmra.mrb[0].mxu0 %v6198
        %v8520 = vpop.f32.mrb[0].mxu0
        %v8521 = vadd.f32 0.0, %v8520
        %v8522 = vpop.f32.mrb[0].mxu0
        %v8523 = vadd.f32 0.0, %v8522
        %v8524 = vpop.f32.mrb[0].mxu0
        %v8525 = vadd.f32 0.0, %v8524
        %v8526 = vpop.f32.mrb[0].mxu0
        %v8527 = vadd.f32 0.0, %v8526
        %8528 = vmatprep.mubr.bf16.mxu0 %v6207
        %8529 = vmatmul.mubr.bf16.gmra.mrb[0].mxu0 %v6206
        %v8530 = vpop.f32.mrb[0].mxu0
        %v8531 = vadd.f32 0.0, %v8530
        %v8532 = vpop.f32.mrb[0].mxu0
        %v8533 = vadd.f32 0.0, %v8532
        %v8534 = vpop.f32.mrb[0].mxu0
        %v8535 = vadd.f32 0.0, %v8534
        %v8536 = vpop.f32.mrb[0].mxu0
        %v8537 = vadd.f32 0.0, %v8536
        %8538 = vmatprep.mubr.bf16.mxu0 %v6215
        %8539 = vmatmul.mubr.bf16.gmra.mrb[0].mxu0 %v6214
        %v8540 = vpop.f32.mrb[0].mxu0
        %v8541 = vadd.f32 0.0, %v8540
        %v8542 = vpop.f32.mrb[0].mxu0
        %v8543 = vadd.f32 0.0, %v8542
        %v8544 = vpop.f32.mrb[0].mxu0
        %v8545 = vadd.f32 0.0, %v8544
        %v8546 = vpop.f32.mrb[0].mxu0
        %v8547 = vadd.f32 0.0, %v8546
        %8548 = vmatprep.mubr.bf16.mxu0 %v6223
        %8549 = vmatmul.mubr.bf16.gmra.mrb[0].mxu0 %v6222
        %v8550 = vpop.f32.mrb[0].mxu0
        %v8551 = vadd.f32 0.0, %v8550
        %v8552 = vpop.f32.mrb[0].mxu0
        %v8553 = vadd.f32 0.0, %v8552
        %v8554 = vpop.f32.mrb[0].mxu0
        %v8555 = vadd.f32 0.0, %v8554
        %v8556 = vpop.f32.mrb[0].mxu0
        %v8557 = vadd.f32 0.0, %v8556
        %8558 = vmatprep.mubr.bf16.mxu0 %v6231
        %8559 = vmatmul.mubr.bf16.gmra.mrb[0].mxu0 %v6230
        %v8560 = vpop.f32.mrb[0].mxu0
        %v8561 = vadd.f32 0.0, %v8560
        %v8562 = vpop.f32.mrb[0].mxu0
        %v8563 = vadd.f32 0.0, %v8562
        %v8564 = vpop.f32.mrb[0].mxu0
        %v8565 = vadd.f32 0.0, %v8564
        %v8566 = vpop.f32.mrb[0].mxu0
        %v8567 = vadd.f32 0.0, %v8566
        %8568 = vmatprep.mubr.bf16.mxu0 %v6239
        %8569 = vmatmul.mubr.bf16.gmra.mrb[0].mxu0 %v6238
        %v8570 = vpop.f32.mrb[0].mxu0
        %v8571 = vadd.f32 0.0, %v8570
        %v8572 = vpop.f32.mrb[0].mxu0
        %v8573 = vadd.f32 0.0, %v8572
        %v8574 = vpop.f32.mrb[0].mxu0
        %v8575 = vadd.f32 0.0, %v8574
        %v8576 = vpop.f32.mrb[0].mxu0
        %v8577 = vadd.f32 0.0, %v8576
        %8578 = vmatprep.mubr.bf16.mxu0 %v6247
        %8579 = vmatmul.mubr.bf16.gmra.mrb[0].mxu0 %v6246
        %v8580 = vpop.f32.mrb[0].mxu0
        %v8581 = vadd.f32 0.0, %v8580
        %v8582 = vpop.f32.mrb[0].mxu0
        %v8583 = vadd.f32 0.0, %v8582
        %v8584 = vpop.f32.mrb[0].mxu0
        %v8585 = vadd.f32 0.0, %v8584
        %v8586 = vpop.f32.mrb[0].mxu0
        %v8587 = vadd.f32 0.0, %v8586
        %8588 = vmatprep.mubr.bf16.mxu0 %v6255
        %8589 = vmatmul.mubr.bf16.gmra.mrb[0].mxu0 %v6254
        %v8590 = vpop.f32.mrb[0].mxu0
        %v8591 = vadd.f32 0.0, %v8590
        %v8592 = vpop.f32.mrb[0].mxu0
        %v8593 = vadd.f32 0.0, %v8592
        %v8594 = vpop.f32.mrb[0].mxu0
        %v8595 = vadd.f32 0.0, %v8594
        %v8596 = vpop.f32.mrb[0].mxu0
        %v8597 = vadd.f32 0.0, %v8596
        %8598 = vmatprep.mubr.bf16.mxu0 %v6263
        %8599 = vmatmul.mubr.bf16.gmra.mrb[0].mxu0 %v6262
        %v8600 = vpop.f32.mrb[0].mxu0
        %v8601 = vadd.f32 0.0, %v8600
        %v8602 = vpop.f32.mrb[0].mxu0
        %v8603 = vadd.f32 0.0, %v8602
        %v8604 = vpop.f32.mrb[0].mxu0
        %v8605 = vadd.f32 0.0, %v8604
        %v8606 = vpop.f32.mrb[0].mxu0
        %v8607 = vadd.f32 0.0, %v8606
        %8608 = vmatprep.mubr.bf16.mxu0 %v6271
        %8609 = vmatmul.mubr.bf16.gmra.mrb[0].mxu0 %v6270
        %v8610 = vpop.f32.mrb[0].mxu0
        %v8611 = vadd.f32 0.0, %v8610
        %v8612 = vpop.f32.mrb[0].mxu0
        %v8613 = vadd.f32 0.0, %v8612
        %v8614 = vpop.f32.mrb[0].mxu0
        %v8615 = vadd.f32 0.0, %v8614
        %v8616 = vpop.f32.mrb[0].mxu0
        %v8617 = vadd.f32 0.0, %v8616
        %8618 = vmatprep.mubr.bf16.mxu0 %v6279
        %8619 = vmatmul.mubr.bf16.gmra.mrb[0].mxu0 %v6278
        %v8620 = vpop.f32.mrb[0].mxu0
        %v8621 = vadd.f32 0.0, %v8620
        %v8622 = vpop.f32.mrb[0].mxu0
        %v8623 = vadd.f32 0.0, %v8622
        %v8624 = vpop.f32.mrb[0].mxu0
        %v8625 = vpop.f32.mrb[0].mxu0
        %8626 = vdwg.mxu0
        %8627 = vmatprep.subr.bf16.mxu0 %v7377
        %8628 = vmatpush1.bf16.msra.mxu0 %v7376
        %8629 = vmatprep.subr.bf16.mxu0 %v7381
        %8630 = vmatpush1.bf16.msra.mxu0 %v7380
        %8631 = vmatprep.subr.bf16.mxu0 %v7385
        %8632 = vmatpush1.bf16.msra.mxu0 %v7384
        %8633 = vmatprep.subr.bf16.mxu0 %v7389
        %8634 = vmatpush1.bf16.msra.mxu0 %v7388
        %8635 = vmatprep.subr.bf16.mxu0 %v7393
        %8636 = vmatpush1.bf16.msra.mxu0 %v7392
        %8637 = vmatprep.subr.bf16.mxu0 %v7397
        %8638 = vmatpush1.bf16.msra.mxu0 %v7396
        %8639 = vmatprep.subr.bf16.mxu0 %v7401
        %8640 = vmatpush1.bf16.msra.mxu0 %v7400
        %8641 = vmatprep.subr.bf16.mxu0 %v7405
        %8642 = vmatpush1.bf16.msra.mxu0 %v7404
        %8643 = vmatprep.subr.bf16.mxu0 %v7409
        %8644 = vmatpush1.bf16.msra.mxu0 %v7408
        %8645 = vmatprep.subr.bf16.mxu0 %v7413
        %8646 = vmatpush1.bf16.msra.mxu0 %v7412
        %8647 = vmatprep.subr.bf16.mxu0 %v7417
        %8648 = vmatpush1.bf16.msra.mxu0 %v7416
        %8649 = vmatprep.subr.bf16.mxu0 %v7421
        %8650 = vmatpush1.bf16.msra.mxu0 %v7420
        %8651 = vmatprep.subr.bf16.mxu0 %v7425
        %8652 = vmatpush1.bf16.msra.mxu0 %v7424
        %8653 = vmatprep.subr.bf16.mxu0 %v7429
        %8654 = vmatpush1.bf16.msra.mxu0 %v7428
        %8655 = vmatprep.subr.bf16.mxu0 %v7433
        %8656 = vmatpush1.bf16.msra.mxu0 %v7432
        %8657 = vmatprep.subr.bf16.mxu0 %v7437
        %8658 = vmatpush1.bf16.msra.mxu0 %v7436
        %8659 = vmatprep.mubr.bf16.mxu0 %v6185
        %8660 = vmatmul.mubr.bf16.gmra.mrb[0].mxu0 %v6184
        %v8661 = vpop.f32.mrb[0].mxu0
        %v8662 = vadd.f32 %v8501, %v8661
        %v8663 = vpop.f32.mrb[0].mxu0
        %v8664 = vadd.f32 %v8503, %v8663
        %v8665 = vpop.f32.mrb[0].mxu0
        %v8666 = vadd.f32 %v8505, %v8665
        %v8667 = vpop.f32.mrb[0].mxu0
        %v8668 = vadd.f32 %v8507, %v8667
        %8669 = vmatprep.mubr.bf16.mxu0 %v6193
        %8670 = vmatmul.mubr.bf16.gmra.mrb[0].mxu0 %v6192
        %v8671 = vpop.f32.mrb[0].mxu0
        %v8672 = vadd.f32 %v8511, %v8671
        %v8673 = vpop.f32.mrb[0].mxu0
        %v8674 = vadd.f32 %v8513, %v8673
        %v8675 = vpop.f32.mrb[0].mxu0
        %v8676 = vadd.f32 %v8515, %v8675
        %v8677 = vpop.f32.mrb[0].mxu0
        %v8678 = vadd.f32 %v8517, %v8677
        %8679 = vmatprep.mubr.bf16.mxu0 %v6201
        %8680 = vmatmul.mubr.bf16.gmra.mrb[0].mxu0 %v6200
        %v8681 = vpop.f32.mrb[0].mxu0
        %v8682 = vadd.f32 %v8521, %v8681
        %v8683 = vpop.f32.mrb[0].mxu0
        %v8684 = vadd.f32 %v8523, %v8683
        %v8685 = vpop.f32.mrb[0].mxu0
        %v8686 = vadd.f32 %v8525, %v8685
        %v8687 = vpop.f32.mrb[0].mxu0
        %v8688 = vadd.f32 %v8527, %v8687
        %8689 = vmatprep.mubr.bf16.mxu0 %v6209
        %8690 = vmatmul.mubr.bf16.gmra.mrb[0].mxu0 %v6208
        %v8691 = vpop.f32.mrb[0].mxu0
        %v8692 = vadd.f32 %v8531, %v8691
        %v8693 = vpop.f32.mrb[0].mxu0
        %v8694 = vadd.f32 %v8533, %v8693
        %v8695 = vpop.f32.mrb[0].mxu0
        %v8696 = vadd.f32 %v8535, %v8695
        %v8697 = vpop.f32.mrb[0].mxu0
        %v8698 = vadd.f32 %v8537, %v8697
        %8699 = vmatprep.mubr.bf16.mxu0 %v6217
        %8700 = vmatmul.mubr.bf16.gmra.mrb[0].mxu0 %v6216
        %v8701 = vpop.f32.mrb[0].mxu0
        %v8702 = vadd.f32 %v8541, %v8701
        %v8703 = vpop.f32.mrb[0].mxu0
        %v8704 = vadd.f32 %v8543, %v8703
        %v8705 = vpop.f32.mrb[0].mxu0
        %v8706 = vadd.f32 %v8545, %v8705
        %v8707 = vpop.f32.mrb[0].mxu0
        %v8708 = vadd.f32 %v8547, %v8707
        %8709 = vmatprep.mubr.bf16.mxu0 %v6225
        %8710 = vmatmul.mubr.bf16.gmra.mrb[0].mxu0 %v6224
        %v8711 = vpop.f32.mrb[0].mxu0
        %v8712 = vadd.f32 %v8551, %v8711
        %v8713 = vpop.f32.mrb[0].mxu0
        %v8714 = vadd.f32 %v8553, %v8713
        %v8715 = vpop.f32.mrb[0].mxu0
        %v8716 = vadd.f32 %v8555, %v8715
        %v8717 = vpop.f32.mrb[0].mxu0
        %v8718 = vadd.f32 %v8557, %v8717
        %8719 = vmatprep.mubr.bf16.mxu0 %v6233
        %8720 = vmatmul.mubr.bf16.gmra.mrb[0].mxu0 %v6232
        %v8721 = vpop.f32.mrb[0].mxu0
        %v8722 = vadd.f32 %v8561, %v8721
        %v8723 = vpop.f32.mrb[0].mxu0
        %v8724 = vadd.f32 %v8563, %v8723
        %v8725 = vpop.f32.mrb[0].mxu0
        %v8726 = vadd.f32 %v8565, %v8725
        %v8727 = vpop.f32.mrb[0].mxu0
        %v8728 = vadd.f32 %v8567, %v8727
        %8729 = vmatprep.mubr.bf16.mxu0 %v6241
        %8730 = vmatmul.mubr.bf16.gmra.mrb[0].mxu0 %v6240
        %v8731 = vpop.f32.mrb[0].mxu0
        %v8732 = vadd.f32 %v8571, %v8731
        %v8733 = vpop.f32.mrb[0].mxu0
        %v8734 = vadd.f32 %v8573, %v8733
        %v8735 = vpop.f32.mrb[0].mxu0
        %v8736 = vadd.f32 %v8575, %v8735
        %v8737 = vpop.f32.mrb[0].mxu0
        %v8738 = vadd.f32 %v8577, %v8737
        %8739 = vmatprep.mubr.bf16.mxu0 %v6249
        %8740 = vmatmul.mubr.bf16.gmra.mrb[0].mxu0 %v6248
        %v8741 = vpop.f32.mrb[0].mxu0
        %v8742 = vadd.f32 %v8581, %v8741
        %v8743 = vpop.f32.mrb[0].mxu0
        %v8744 = vadd.f32 %v8583, %v8743
        %v8745 = vpop.f32.mrb[0].mxu0
        %v8746 = vadd.f32 %v8585, %v8745
        %v8747 = vpop.f32.mrb[0].mxu0
        %v8748 = vadd.f32 %v8587, %v8747
        %8749 = vmatprep.mubr.bf16.mxu0 %v6257
        %8750 = vmatmul.mubr.bf16.gmra.mrb[0].mxu0 %v6256
        %v8751 = vpop.f32.mrb[0].mxu0
        %v8752 = vadd.f32 %v8591, %v8751
        %v8753 = vpop.f32.mrb[0].mxu0
        %v8754 = vadd.f32 %v8593, %v8753
        %v8755 = vpop.f32.mrb[0].mxu0
        %v8756 = vadd.f32 %v8595, %v8755
        %v8757 = vpop.f32.mrb[0].mxu0
        %v8758 = vadd.f32 %v8597, %v8757
        %8759 = vmatprep.mubr.bf16.mxu0 %v6265
        %8760 = vmatmul.mubr.bf16.gmra.mrb[0].mxu0 %v6264
        %v8761 = vpop.f32.mrb[0].mxu0
        %v8762 = vadd.f32 %v8601, %v8761
        %v8763 = vpop.f32.mrb[0].mxu0
        %v8764 = vadd.f32 %v8603, %v8763
        %v8765 = vpop.f32.mrb[0].mxu0
        %v8766 = vadd.f32 %v8605, %v8765
        %v8767 = vpop.f32.mrb[0].mxu0
        %v8768 = vadd.f32 %v8607, %v8767
        %8769 = vmatprep.mubr.bf16.mxu0 %v6273
        %8770 = vmatmul.mubr.bf16.gmra.mrb[0].mxu0 %v6272
        %v8771 = vpop.f32.mrb[0].mxu0
        %v8772 = vadd.f32 %v8611, %v8771
        %v8773 = vpop.f32.mrb[0].mxu0
        %v8774 = vadd.f32 %v8613, %v8773
        %v8775 = vpop.f32.mrb[0].mxu0
        %v8776 = vadd.f32 %v8615, %v8775
        %v8777 = vpop.f32.mrb[0].mxu0
        %v8778 = vadd.f32 %v8617, %v8777
        %8779 = vmatprep.mubr.bf16.mxu0 %v6281
        %8780 = vmatmul.mubr.bf16.gmra.mrb[0].mxu0 %v6280
        %v8781 = vpop.f32.mrb[0].mxu0
        %v8782 = vadd.f32 %v8621, %v8781
        %v8783 = vpop.f32.mrb[0].mxu0
        %v8784 = vadd.f32 %v8623, %v8783
        %v8785 = vpop.f32.mrb[0].mxu0
        %v8786 = vpop.f32.mrb[0].mxu0
        %8787 = vdwg.mxu0
        %8788 = vmatprep.subr.bf16.mxu0 %v7441
        %8789 = vmatpush1.bf16.msra.mxu0 %v7440
        %8790 = vmatprep.subr.bf16.mxu0 %v7445
        %8791 = vmatpush1.bf16.msra.mxu0 %v7444
        %8792 = vmatprep.subr.bf16.mxu0 %v7449
        %8793 = vmatpush1.bf16.msra.mxu0 %v7448
        %8794 = vmatprep.subr.bf16.mxu0 %v7453
        %8795 = vmatpush1.bf16.msra.mxu0 %v7452
        %8796 = vmatprep.subr.bf16.mxu0 %v7457
        %8797 = vmatpush1.bf16.msra.mxu0 %v7456
        %8798 = vmatprep.subr.bf16.mxu0 %v7461
        %8799 = vmatpush1.bf16.msra.mxu0 %v7460
        %8800 = vmatprep.subr.bf16.mxu0 %v7465
        %8801 = vmatpush1.bf16.msra.mxu0 %v7464
        %8802 = vmatprep.subr.bf16.mxu0 %v7469
        %8803 = vmatpush1.bf16.msra.mxu0 %v7468
        %8804 = vmatprep.subr.bf16.mxu0 %v7473
        %8805 = vmatpush1.bf16.msra.mxu0 %v7472
        %8806 = vmatprep.subr.bf16.mxu0 %v7477
        %8807 = vmatpush1.bf16.msra.mxu0 %v7476
        %8808 = vmatprep.subr.bf16.mxu0 %v7481
        %8809 = vmatpush1.bf16.msra.mxu0 %v7480
        %8810 = vmatprep.subr.bf16.mxu0 %v7485
        %8811 = vmatpush1.bf16.msra.mxu0 %v7484
        %8812 = vmatprep.subr.bf16.mxu0 %v7489
        %8813 = vmatpush1.bf16.msra.mxu0 %v7488
        %8814 = vmatprep.subr.bf16.mxu0 %v7493
        %8815 = vmatpush1.bf16.msra.mxu0 %v7492
        %8816 = vmatprep.subr.bf16.mxu0 %v7497
        %8817 = vmatpush1.bf16.msra.mxu0 %v7496
        %8818 = vmatprep.subr.bf16.mxu0 %v7501
        %8819 = vmatpush1.bf16.msra.mxu0 %v7500
        %8820 = vmatprep.mubr.bf16.mxu0 %v6187
        %8821 = vmatmul.mubr.bf16.gmra.mrb[0].mxu0 %v6186
        %v8822 = vpop.f32.mrb[0].mxu0
        %v8823 = vadd.f32 %v8662, %v8822
        %v8824 = vpop.f32.mrb[0].mxu0
        %v8825 = vadd.f32 %v8664, %v8824
        %v8826 = vpop.f32.mrb[0].mxu0
        %v8827 = vadd.f32 %v8666, %v8826
        %v8828 = vpop.f32.mrb[0].mxu0
        %v8829 = vadd.f32 %v8668, %v8828
        %8830 = vmatprep.mubr.bf16.mxu0 %v6195
        %8831 = vmatmul.mubr.bf16.gmra.mrb[0].mxu0 %v6194
        %v8832 = vpop.f32.mrb[0].mxu0
        %v8833 = vadd.f32 %v8672, %v8832
        %v8834 = vpop.f32.mrb[0].mxu0
        %v8835 = vadd.f32 %v8674, %v8834
        %v8836 = vpop.f32.mrb[0].mxu0
        %v8837 = vadd.f32 %v8676, %v8836
        %v8838 = vpop.f32.mrb[0].mxu0
        %v8839 = vadd.f32 %v8678, %v8838
        %8840 = vmatprep.mubr.bf16.mxu0 %v6203
        %8841 = vmatmul.mubr.bf16.gmra.mrb[0].mxu0 %v6202
        %v8842 = vpop.f32.mrb[0].mxu0
        %v8843 = vadd.f32 %v8682, %v8842
        %v8844 = vpop.f32.mrb[0].mxu0
        %v8845 = vadd.f32 %v8684, %v8844
        %v8846 = vpop.f32.mrb[0].mxu0
        %v8847 = vadd.f32 %v8686, %v8846
        %v8848 = vpop.f32.mrb[0].mxu0
        %v8849 = vadd.f32 %v8688, %v8848
        %8850 = vmatprep.mubr.bf16.mxu0 %v6211
        %8851 = vmatmul.mubr.bf16.gmra.mrb[0].mxu0 %v6210
        %v8852 = vpop.f32.mrb[0].mxu0
        %v8853 = vadd.f32 %v8692, %v8852
        %v8854 = vpop.f32.mrb[0].mxu0
        %v8855 = vadd.f32 %v8694, %v8854
        %v8856 = vpop.f32.mrb[0].mxu0
        %v8857 = vadd.f32 %v8696, %v8856
        %v8858 = vpop.f32.mrb[0].mxu0
        %v8859 = vadd.f32 %v8698, %v8858
        %8860 = vmatprep.mubr.bf16.mxu0 %v6219
        %8861 = vmatmul.mubr.bf16.gmra.mrb[0].mxu0 %v6218
        %v8862 = vpop.f32.mrb[0].mxu0
        %v8863 = vadd.f32 %v8702, %v8862
        %v8864 = vpop.f32.mrb[0].mxu0
        %v8865 = vadd.f32 %v8704, %v8864
        %v8866 = vpop.f32.mrb[0].mxu0
        %v8867 = vadd.f32 %v8706, %v8866
        %v8868 = vpop.f32.mrb[0].mxu0
        %v8869 = vadd.f32 %v8708, %v8868
        %8870 = vmatprep.mubr.bf16.mxu0 %v6227
        %8871 = vmatmul.mubr.bf16.gmra.mrb[0].mxu0 %v6226
        %v8872 = vpop.f32.mrb[0].mxu0
        %v8873 = vadd.f32 %v8712, %v8872
        %v8874 = vpop.f32.mrb[0].mxu0
        %v8875 = vadd.f32 %v8714, %v8874
        %v8876 = vpop.f32.mrb[0].mxu0
        %v8877 = vadd.f32 %v8716, %v8876
        %v8878 = vpop.f32.mrb[0].mxu0
        %v8879 = vadd.f32 %v8718, %v8878
        %8880 = vmatprep.mubr.bf16.mxu0 %v6235
        %8881 = vmatmul.mubr.bf16.gmra.mrb[0].mxu0 %v6234
        %v8882 = vpop.f32.mrb[0].mxu0
        %v8883 = vadd.f32 %v8722, %v8882
        %v8884 = vpop.f32.mrb[0].mxu0
        %v8885 = vadd.f32 %v8724, %v8884
        %v8886 = vpop.f32.mrb[0].mxu0
        %v8887 = vadd.f32 %v8726, %v8886
        %v8888 = vpop.f32.mrb[0].mxu0
        %v8889 = vadd.f32 %v8728, %v8888
        %8890 = vmatprep.mubr.bf16.mxu0 %v6243
        %8891 = vmatmul.mubr.bf16.gmra.mrb[0].mxu0 %v6242
        %v8892 = vpop.f32.mrb[0].mxu0
        %v8893 = vadd.f32 %v8732, %v8892
        %v8894 = vpop.f32.mrb[0].mxu0
        %v8895 = vadd.f32 %v8734, %v8894
        %v8896 = vpop.f32.mrb[0].mxu0
        %v8897 = vadd.f32 %v8736, %v8896
        %v8898 = vpop.f32.mrb[0].mxu0
        %v8899 = vadd.f32 %v8738, %v8898
        %8900 = vmatprep.mubr.bf16.mxu0 %v6251
        %8901 = vmatmul.mubr.bf16.gmra.mrb[0].mxu0 %v6250
        %v8902 = vpop.f32.mrb[0].mxu0
        %v8903 = vadd.f32 %v8742, %v8902
        %v8904 = vpop.f32.mrb[0].mxu0
        %v8905 = vadd.f32 %v8744, %v8904
        %v8906 = vpop.f32.mrb[0].mxu0
        %v8907 = vadd.f32 %v8746, %v8906
        %v8908 = vpop.f32.mrb[0].mxu0
        %v8909 = vadd.f32 %v8748, %v8908
        %8910 = vmatprep.mubr.bf16.mxu0 %v6259
        %8911 = vmatmul.mubr.bf16.gmra.mrb[0].mxu0 %v6258
        %v8912 = vpop.f32.mrb[0].mxu0
        %v8913 = vadd.f32 %v8752, %v8912
        %v8914 = vpop.f32.mrb[0].mxu0
        %v8915 = vadd.f32 %v8754, %v8914
        %v8916 = vpop.f32.mrb[0].mxu0
        %v8917 = vadd.f32 %v8756, %v8916
        %v8918 = vpop.f32.mrb[0].mxu0
        %v8919 = vadd.f32 %v8758, %v8918
        %8920 = vmatprep.mubr.bf16.mxu0 %v6267
        %8921 = vmatmul.mubr.bf16.gmra.mrb[0].mxu0 %v6266
        %v8922 = vpop.f32.mrb[0].mxu0
        %v8923 = vadd.f32 %v8762, %v8922
        %v8924 = vpop.f32.mrb[0].mxu0
        %v8925 = vadd.f32 %v8764, %v8924
        %v8926 = vpop.f32.mrb[0].mxu0
        %v8927 = vadd.f32 %v8766, %v8926
        %v8928 = vpop.f32.mrb[0].mxu0
        %v8929 = vadd.f32 %v8768, %v8928
        %8930 = vmatprep.mubr.bf16.mxu0 %v6275
        %8931 = vmatmul.mubr.bf16.gmra.mrb[0].mxu0 %v6274
        %v8932 = vpop.f32.mrb[0].mxu0
        %v8933 = vadd.f32 %v8772, %v8932
        %v8934 = vpop.f32.mrb[0].mxu0
        %v8935 = vadd.f32 %v8774, %v8934
        %v8936 = vpop.f32.mrb[0].mxu0
        %v8937 = vadd.f32 %v8776, %v8936
        %v8938 = vpop.f32.mrb[0].mxu0
        %v8939 = vadd.f32 %v8778, %v8938
        %8940 = vmatprep.mubr.bf16.mxu0 %v6283
        %8941 = vmatmul.mubr.bf16.gmra.mrb[0].mxu0 %v6282
        %v8942 = vpop.f32.mrb[0].mxu0
        %v8943 = vadd.f32 %v8782, %v8942
        %v8944 = vpop.f32.mrb[0].mxu0
        %v8945 = vadd.f32 %v8784, %v8944
        %v8946 = vpop.f32.mrb[0].mxu0
        %v8947 = vpop.f32.mrb[0].mxu0
        %8948 = vdwg.mxu0
        %8949 = vmatprep.subr.bf16.mxu0 %v7505
        %8950 = vmatpush1.bf16.msra.mxu0 %v7504
        %8951 = vmatprep.subr.bf16.mxu0 %v7509
        %8952 = vmatpush1.bf16.msra.mxu0 %v7508
        %8953 = vmatprep.subr.bf16.mxu0 %v7513
        %8954 = vmatpush1.bf16.msra.mxu0 %v7512
        %8955 = vmatprep.subr.bf16.mxu0 %v7517
        %8956 = vmatpush1.bf16.msra.mxu0 %v7516
        %8957 = vmatprep.subr.bf16.mxu0 %v7521
        %8958 = vmatpush1.bf16.msra.mxu0 %v7520
        %8959 = vmatprep.subr.bf16.mxu0 %v7525
        %8960 = vmatpush1.bf16.msra.mxu0 %v7524
        %8961 = vmatprep.subr.bf16.mxu0 %v7529
        %8962 = vmatpush1.bf16.msra.mxu0 %v7528
        %8963 = vmatprep.subr.bf16.mxu0 %v7533
        %8964 = vmatpush1.bf16.msra.mxu0 %v7532
        %8965 = vmatprep.subr.bf16.mxu0 %v7537
        %8966 = vmatpush1.bf16.msra.mxu0 %v7536
        %8967 = vmatprep.subr.bf16.mxu0 %v7541
        %8968 = vmatpush1.bf16.msra.mxu0 %v7540
        %8969 = vmatprep.subr.bf16.mxu0 %v7545
        %8970 = vmatpush1.bf16.msra.mxu0 %v7544
        %8971 = vmatprep.subr.bf16.mxu0 %v7549
        %8972 = vmatpush1.bf16.msra.mxu0 %v7548
        %8973 = vmatprep.subr.bf16.mxu0 %v7553
        %8974 = vmatpush1.bf16.msra.mxu0 %v7552
        %8975 = vmatprep.subr.bf16.mxu0 %v7557
        %8976 = vmatpush1.bf16.msra.mxu0 %v7556
        %8977 = vmatprep.subr.bf16.mxu0 %v7561
        %8978 = vmatpush1.bf16.msra.mxu0 %v7560
        %8979 = vmatprep.subr.bf16.mxu0 %v7565
        %8980 = vmatpush1.bf16.msra.mxu0 %v7564
        %8981 = vmatprep.mubr.bf16.mxu0 %v6189
        %8982 = vmatmul.mubr.bf16.gmra.mrb[0].mxu0 %v6188
        %v8983 = vpop.f32.mrb[0].mxu0
        %v8984 = vadd.f32 %v8823, %v8983
        %v8985 = vpop.f32.mrb[0].mxu0
        %v8986 = vadd.f32 %v8825, %v8985
        %v8987 = vpop.f32.mrb[0].mxu0
        %v8988 = vadd.f32 %v8827, %v8987
        %v8989 = vpop.f32.mrb[0].mxu0
        %v8990 = vadd.f32 %v8829, %v8989
        %8991 = vmatprep.mubr.bf16.mxu0 %v6197
        %8992 = vmatmul.mubr.bf16.gmra.mrb[0].mxu0 %v6196
        %v8993 = vpop.f32.mrb[0].mxu0
        %v8994 = vadd.f32 %v8833, %v8993
        %v8995 = vpop.f32.mrb[0].mxu0
        %v8996 = vadd.f32 %v8835, %v8995
        %v8997 = vpop.f32.mrb[0].mxu0
        %v8998 = vadd.f32 %v8837, %v8997
        %v8999 = vpop.f32.mrb[0].mxu0
        %v9000 = vadd.f32 %v8839, %v8999
        %9001 = vmatprep.mubr.bf16.mxu0 %v6205
        %9002 = vmatmul.mubr.bf16.gmra.mrb[0].mxu0 %v6204
        %v9003 = vpop.f32.mrb[0].mxu0
        %v9004 = vadd.f32 %v8843, %v9003
        %v9005 = vpop.f32.mrb[0].mxu0
        %v9006 = vadd.f32 %v8845, %v9005
        %v9007 = vpop.f32.mrb[0].mxu0
        %v9008 = vadd.f32 %v8847, %v9007
        %v9009 = vpop.f32.mrb[0].mxu0
        %v9010 = vadd.f32 %v8849, %v9009
        %9011 = vmatprep.mubr.bf16.mxu0 %v6213
        %9012 = vmatmul.mubr.bf16.gmra.mrb[0].mxu0 %v6212
        %v9013 = vpop.f32.mrb[0].mxu0
        %v9014 = vadd.f32 %v8853, %v9013
        %v9015 = vpop.f32.mrb[0].mxu0
        %v9016 = vadd.f32 %v8855, %v9015
        %v9017 = vpop.f32.mrb[0].mxu0
        %v9018 = vadd.f32 %v8857, %v9017
        %v9019 = vpop.f32.mrb[0].mxu0
        %v9020 = vadd.f32 %v8859, %v9019
        %9021 = vmatprep.mubr.bf16.mxu0 %v6221
        %9022 = vmatmul.mubr.bf16.gmra.mrb[0].mxu0 %v6220
        %v9023 = vpop.f32.mrb[0].mxu0
        %v9024 = vadd.f32 %v8863, %v9023
        %v9025 = vpop.f32.mrb[0].mxu0
        %v9026 = vadd.f32 %v8865, %v9025
        %v9027 = vpop.f32.mrb[0].mxu0
        %v9028 = vadd.f32 %v8867, %v9027
        %v9029 = vpop.f32.mrb[0].mxu0
        %v9030 = vadd.f32 %v8869, %v9029
        %9031 = vmatprep.mubr.bf16.mxu0 %v6229
        %9032 = vmatmul.mubr.bf16.gmra.mrb[0].mxu0 %v6228
        %v9033 = vpop.f32.mrb[0].mxu0
        %v9034 = vadd.f32 %v8873, %v9033
        %v9035 = vpop.f32.mrb[0].mxu0
        %v9036 = vadd.f32 %v8875, %v9035
        %v9037 = vpop.f32.mrb[0].mxu0
        %v9038 = vadd.f32 %v8877, %v9037
        %v9039 = vpop.f32.mrb[0].mxu0
        %v9040 = vadd.f32 %v8879, %v9039
        %9041 = vmatprep.mubr.bf16.mxu0 %v6237
        %9042 = vmatmul.mubr.bf16.gmra.mrb[0].mxu0 %v6236
        %v9043 = vpop.f32.mrb[0].mxu0
        %v9044 = vadd.f32 %v8883, %v9043
        %v9045 = vpop.f32.mrb[0].mxu0
        %v9046 = vadd.f32 %v8885, %v9045
        %v9047 = vpop.f32.mrb[0].mxu0
        %v9048 = vadd.f32 %v8887, %v9047
        %v9049 = vpop.f32.mrb[0].mxu0
        %v9050 = vadd.f32 %v8889, %v9049
        %9051 = vmatprep.mubr.bf16.mxu0 %v6245
        %9052 = vmatmul.mubr.bf16.gmra.mrb[0].mxu0 %v6244
        %v9053 = vpop.f32.mrb[0].mxu0
        %v9054 = vadd.f32 %v8893, %v9053
        %v9055 = vpop.f32.mrb[0].mxu0
        %v9056 = vadd.f32 %v8895, %v9055
        %v9057 = vpop.f32.mrb[0].mxu0
        %v9058 = vadd.f32 %v8897, %v9057
        %v9059 = vpop.f32.mrb[0].mxu0
        %v9060 = vadd.f32 %v8899, %v9059
        %9061 = vmatprep.mubr.bf16.mxu0 %v6253
        %9062 = vmatmul.mubr.bf16.gmra.mrb[0].mxu0 %v6252
        %v9063 = vpop.f32.mrb[0].mxu0
        %v9064 = vadd.f32 %v8903, %v9063
        %v9065 = vpop.f32.mrb[0].mxu0
        %v9066 = vadd.f32 %v8905, %v9065
        %v9067 = vpop.f32.mrb[0].mxu0
        %v9068 = vadd.f32 %v8907, %v9067
        %v9069 = vpop.f32.mrb[0].mxu0
        %v9070 = vadd.f32 %v8909, %v9069
        %9071 = vmatprep.mubr.bf16.mxu0 %v6261
        %9072 = vmatmul.mubr.bf16.gmra.mrb[0].mxu0 %v6260
        %v9073 = vpop.f32.mrb[0].mxu0
        %v9074 = vadd.f32 %v8913, %v9073
        %v9075 = vpop.f32.mrb[0].mxu0
        %v9076 = vadd.f32 %v8915, %v9075
        %v9077 = vpop.f32.mrb[0].mxu0
        %v9078 = vadd.f32 %v8917, %v9077
        %v9079 = vpop.f32.mrb[0].mxu0
        %v9080 = vadd.f32 %v8919, %v9079
        %9081 = vmatprep.mubr.bf16.mxu0 %v6269
        %9082 = vmatmul.mubr.bf16.gmra.mrb[0].mxu0 %v6268
        %v9083 = vpop.f32.mrb[0].mxu0
        %v9084 = vadd.f32 %v8923, %v9083
        %v9085 = vpop.f32.mrb[0].mxu0
        %v9086 = vadd.f32 %v8925, %v9085
        %v9087 = vpop.f32.mrb[0].mxu0
        %v9088 = vadd.f32 %v8927, %v9087
        %v9089 = vpop.f32.mrb[0].mxu0
        %v9090 = vadd.f32 %v8929, %v9089
        %9091 = vmatprep.mubr.bf16.mxu0 %v6277
        %9092 = vmatmul.mubr.bf16.gmra.mrb[0].mxu0 %v6276
        %v9093 = vpop.f32.mrb[0].mxu0
        %v9094 = vadd.f32 %v8933, %v9093
        %v9095 = vpop.f32.mrb[0].mxu0
        %v9096 = vadd.f32 %v8935, %v9095
        %v9097 = vpop.f32.mrb[0].mxu0
        %v9098 = vadd.f32 %v8937, %v9097
        %v9099 = vpop.f32.mrb[0].mxu0
        %v9100 = vadd.f32 %v8939, %v9099
        %9101 = vmatprep.mubr.bf16.mxu0 %v6285
        %9102 = vmatmul.mubr.bf16.gmra.mrb[0].mxu0 %v6284
        %v9103 = vpop.f32.mrb[0].mxu0
        %v9104 = vadd.f32 %v8943, %v9103
        %v9105 = vpop.f32.mrb[0].mxu0
        %v9106 = vadd.f32 %v8945, %v9105
        %v9107 = vpop.f32.mrb[0].mxu0
        %v9108 = vpop.f32.mrb[0].mxu0
        %9109 = vdwg.mxu0
        %v9110 = vadd.f32 %v6082, %v8340
        %v9111 = vadd.f32 %v6083, %v8342
        %v9112 = vadd.f32 %v6084, %v8984
        %v9113 = vadd.f32 %v6085, %v8986
        %v9114 = vadd.f32 %v6086, %v8344
        %v9115 = vadd.f32 %v6087, %v8346
        %v9116 = vadd.f32 %v6088, %v8988
        %v9117 = vadd.f32 %v6089, %v8990
        %v9118 = vadd.f32 %v6090, %v8350
        %v9119 = vadd.f32 %v6091, %v8352
        %v9120 = vadd.f32 %v6092, %v8994
        %v9121 = vadd.f32 %v6093, %v8996
        %v9122 = vadd.f32 %v6094, %v8354
        %v9123 = vadd.f32 %v6095, %v8356
        %v9124 = vadd.f32 %v6096, %v8998
        %v9125 = vadd.f32 %v6097, %v9000
        %v9126 = vadd.f32 %v6098, %v8360
        %v9127 = vadd.f32 %v6099, %v8362
        %v9128 = vadd.f32 %v6100, %v9004
        %v9129 = vadd.f32 %v6101, %v9006
        %v9130 = vadd.f32 %v6102, %v8364
        %v9131 = vadd.f32 %v6103, %v8366
        %v9132 = vadd.f32 %v6104, %v9008
        %v9133 = vadd.f32 %v6105, %v9010
        %v9134 = vadd.f32 %v6106, %v8370
        %v9135 = vadd.f32 %v6107, %v8372
        %v9136 = vadd.f32 %v6108, %v9014
        %v9137 = vadd.f32 %v6109, %v9016
        %v9138 = vadd.f32 %v6110, %v8374
        %v9139 = vadd.f32 %v6111, %v8376
        %v9140 = vadd.f32 %v6112, %v9018
        %v9141 = vadd.f32 %v6113, %v9020
        %v9142 = vadd.f32 %v6114, %v8380
        %v9143 = vadd.f32 %v6115, %v8382
        %v9144 = vadd.f32 %v6116, %v9024
        %v9145 = vadd.f32 %v6117, %v9026
        %v9146 = vadd.f32 %v6118, %v8384
        %v9147 = vadd.f32 %v6119, %v8386
        %v9148 = vadd.f32 %v6120, %v9028
        %v9149 = vadd.f32 %v6121, %v9030
        %v9150 = vadd.f32 %v6122, %v8390
        %v9151 = vadd.f32 %v6123, %v8392
        %v9152 = vadd.f32 %v6124, %v9034
        %v9153 = vadd.f32 %v6125, %v9036
        %v9154 = vadd.f32 %v6126, %v8394
        %v9155 = vadd.f32 %v6127, %v8396
        %v9156 = vadd.f32 %v6128, %v9038
        %v9157 = vadd.f32 %v6129, %v9040
        %v9158 = vadd.f32 %v6130, %v8400
        %v9159 = vadd.f32 %v6131, %v8402
        %v9160 = vadd.f32 %v6132, %v9044
        %v9161 = vadd.f32 %v6133, %v9046
        %v9162 = vadd.f32 %v6134, %v8404
        %v9163 = vadd.f32 %v6135, %v8406
        %v9164 = vadd.f32 %v6136, %v9048
        %v9165 = vadd.f32 %v6137, %v9050
        %v9166 = vadd.f32 %v6138, %v8410
        %v9167 = vadd.f32 %v6139, %v8412
        %v9168 = vadd.f32 %v6140, %v9054
        %v9169 = vadd.f32 %v6141, %v9056
        %v9170 = vadd.f32 %v6142, %v8414
        %v9171 = vadd.f32 %v6143, %v8416
        %v9172 = vadd.f32 %v6144, %v9058
        %v9173 = vadd.f32 %v6145, %v9060
        %v9174 = vadd.f32 %v6146, %v8420
        %v9175 = vadd.f32 %v6147, %v8422
        %v9176 = vadd.f32 %v6148, %v9064
        %v9177 = vadd.f32 %v6149, %v9066
        %v9178 = vadd.f32 %v6150, %v8424
        %v9179 = vadd.f32 %v6151, %v8426
        %v9180 = vadd.f32 %v6152, %v9068
        %v9181 = vadd.f32 %v6153, %v9070
        %v9182 = vadd.f32 %v6154, %v8430
        %v9183 = vadd.f32 %v6155, %v8432
        %v9184 = vadd.f32 %v6156, %v9074
        %v9185 = vadd.f32 %v6157, %v9076
        %v9186 = vadd.f32 %v6158, %v8434
        %v9187 = vadd.f32 %v6159, %v8436
        %v9188 = vadd.f32 %v6160, %v9078
        %v9189 = vadd.f32 %v6161, %v9080
        %v9190 = vadd.f32 %v6162, %v8440
        %v9191 = vadd.f32 %v6163, %v8442
        %v9192 = vadd.f32 %v6164, %v9084
        %v9193 = vadd.f32 %v6165, %v9086
        %v9194 = vadd.f32 %v6166, %v8444
        %v9195 = vadd.f32 %v6167, %v8446
        %v9196 = vadd.f32 %v6168, %v9088
        %v9197 = vadd.f32 %v6169, %v9090
        %v9198 = vadd.f32 %v6170, %v8450
        %v9199 = vadd.f32 %v6171, %v8452
        %v9200 = vadd.f32 %v6172, %v9094
        %v9201 = vadd.f32 %v6173, %v9096
        %v9202 = vadd.f32 %v6174, %v8454
        %v9203 = vadd.f32 %v6175, %v8456
        %v9204 = vadd.f32 %v6176, %v9098
        %v9205 = vadd.f32 %v6177, %v9100
        %v9206 = vadd.f32 %v6178, %v8460
        %v9207 = vadd.f32 %v6179, %v8462
        %v9208 = vadd.f32 %v6180, %v9104
        %v9209 = vadd.f32 %v6181, %v9106
        %9210 = vst [vmem:[#allocation3] sm:$0xff] %v9110
        %9211 = vst [vmem:[#allocation3 + $0x8] sm:$0xff] %v9111
        %9212 = vst [vmem:[#allocation3 + $0x10] sm:$0xff] %v9112
        %9213 = vst [vmem:[#allocation3 + $0x18] sm:$0xff] %v9113
        %9214 = vst [vmem:[#allocation3 + $0x20] sm:$0xff] %v9114
        %9215 = vst [vmem:[#allocation3 + $0x28] sm:$0xff] %v9115
        %9216 = vst [vmem:[#allocation3 + $0x30] sm:$0xff] %v9116
        %9217 = vst [vmem:[#allocation3 + $0x38] sm:$0xff] %v9117
        %9218 = vst [vmem:[#allocation3 + $0x40] sm:$0xff] %v9118
        %9219 = vst [vmem:[#allocation3 + $0x48] sm:$0xff] %v9119
        %9220 = vst [vmem:[#allocation3 + $0x50] sm:$0xff] %v9120
        %9221 = vst [vmem:[#allocation3 + $0x58] sm:$0xff] %v9121
        %9222 = vst [vmem:[#allocation3 + $0x60] sm:$0xff] %v9122
        %9223 = vst [vmem:[#allocation3 + $0x68] sm:$0xff] %v9123
        %9224 = vst [vmem:[#allocation3 + $0x70] sm:$0xff] %v9124
        %9225 = vst [vmem:[#allocation3 + $0x78] sm:$0xff] %v9125
        %9226 = vst [vmem:[#allocation3 + $0x80] sm:$0xff] %v9126
        %9227 = vst [vmem:[#allocation3 + $0x88] sm:$0xff] %v9127
        %9228 = vst [vmem:[#allocation3 + $0x90] sm:$0xff] %v9128
        %9229 = vst [vmem:[#allocation3 + $0x98] sm:$0xff] %v9129
        %9230 = vst [vmem:[#allocation3 + $0xa0] sm:$0xff] %v9130
        %9231 = vst [vmem:[#allocation3 + $0xa8] sm:$0xff] %v9131
        %9232 = vst [vmem:[#allocation3 + $0xb0] sm:$0xff] %v9132
        %9233 = vst [vmem:[#allocation3 + $0xb8] sm:$0xff] %v9133
        %9234 = vst [vmem:[#allocation3 + $0xc0] sm:$0xff] %v9134
        %9235 = vst [vmem:[#allocation3 + $0xc8] sm:$0xff] %v9135
        %9236 = vst [vmem:[#allocation3 + $0xd0] sm:$0xff] %v9136
        %9237 = vst [vmem:[#allocation3 + $0xd8] sm:$0xff] %v9137
        %9238 = vst [vmem:[#allocation3 + $0xe0] sm:$0xff] %v9138
        %9239 = vst [vmem:[#allocation3 + $0xe8] sm:$0xff] %v9139
        %9240 = vst [vmem:[#allocation3 + $0xf0] sm:$0xff] %v9140
        %9241 = vst [vmem:[#allocation3 + $0xf8] sm:$0xff] %v9141
        %9242 = vst [vmem:[#allocation3 + $0x100] sm:$0xff] %v9142
        %9243 = vst [vmem:[#allocation3 + $0x108] sm:$0xff] %v9143
        %9244 = vst [vmem:[#allocation3 + $0x110] sm:$0xff] %v9144
        %9245 = vst [vmem:[#allocation3 + $0x118] sm:$0xff] %v9145
        %9246 = vst [vmem:[#allocation3 + $0x120] sm:$0xff] %v9146
        %9247 = vst [vmem:[#allocation3 + $0x128] sm:$0xff] %v9147
        %9248 = vst [vmem:[#allocation3 + $0x130] sm:$0xff] %v9148
        %9249 = vst [vmem:[#allocation3 + $0x138] sm:$0xff] %v9149
        %9250 = vst [vmem:[#allocation3 + $0x140] sm:$0xff] %v9150
        %9251 = vst [vmem:[#allocation3 + $0x148] sm:$0xff] %v9151
        %9252 = vst [vmem:[#allocation3 + $0x150] sm:$0xff] %v9152
        %9253 = vst [vmem:[#allocation3 + $0x158] sm:$0xff] %v9153
        %9254 = vst [vmem:[#allocation3 + $0x160] sm:$0xff] %v9154
        %9255 = vst [vmem:[#allocation3 + $0x168] sm:$0xff] %v9155
        %9256 = vst [vmem:[#allocation3 + $0x170] sm:$0xff] %v9156
        %9257 = vst [vmem:[#allocation3 + $0x178] sm:$0xff] %v9157
        %9258 = vst [vmem:[#allocation3 + $0x180] sm:$0xff] %v9158
        %9259 = vst [vmem:[#allocation3 + $0x188] sm:$0xff] %v9159
        %9260 = vst [vmem:[#allocation3 + $0x190] sm:$0xff] %v9160
        %9261 = vst [vmem:[#allocation3 + $0x198] sm:$0xff] %v9161
        %9262 = vst [vmem:[#allocation3 + $0x1a0] sm:$0xff] %v9162
        %9263 = vst [vmem:[#allocation3 + $0x1a8] sm:$0xff] %v9163
        %9264 = vst [vmem:[#allocation3 + $0x1b0] sm:$0xff] %v9164
        %9265 = vst [vmem:[#allocation3 + $0x1b8] sm:$0xff] %v9165
        %9266 = vst [vmem:[#allocation3 + $0x1c0] sm:$0xff] %v9166
        %9267 = vst [vmem:[#allocation3 + $0x1c8] sm:$0xff] %v9167
        %9268 = vst [vmem:[#allocation3 + $0x1d0] sm:$0xff] %v9168
        %9269 = vst [vmem:[#allocation3 + $0x1d8] sm:$0xff] %v9169
        %9270 = vst [vmem:[#allocation3 + $0x1e0] sm:$0xff] %v9170
        %9271 = vst [vmem:[#allocation3 + $0x1e8] sm:$0xff] %v9171
        %9272 = vst [vmem:[#allocation3 + $0x1f0] sm:$0xff] %v9172
        %9273 = vst [vmem:[#allocation3 + $0x1f8] sm:$0xff] %v9173
        %9274 = vst [vmem:[#allocation3 + $0x200] sm:$0xff] %v9174
        %9275 = vst [vmem:[#allocation3 + $0x208] sm:$0xff] %v9175
        %9276 = vst [vmem:[#allocation3 + $0x210] sm:$0xff] %v9176
        %9277 = vst [vmem:[#allocation3 + $0x218] sm:$0xff] %v9177
        %9278 = vst [vmem:[#allocation3 + $0x220] sm:$0xff] %v9178
        %9279 = vst [vmem:[#allocation3 + $0x228] sm:$0xff] %v9179
        %9280 = vst [vmem:[#allocation3 + $0x230] sm:$0xff] %v9180
        %9281 = vst [vmem:[#allocation3 + $0x238] sm:$0xff] %v9181
        %9282 = vst [vmem:[#allocation3 + $0x240] sm:$0xff] %v9182
        %9283 = vst [vmem:[#allocation3 + $0x248] sm:$0xff] %v9183
        %9284 = vst [vmem:[#allocation3 + $0x250] sm:$0xff] %v9184
        %9285 = vst [vmem:[#allocation3 + $0x258] sm:$0xff] %v9185
        %9286 = vst [vmem:[#allocation3 + $0x260] sm:$0xff] %v9186
        %9287 = vst [vmem:[#allocation3 + $0x268] sm:$0xff] %v9187
        %9288 = vst [vmem:[#allocation3 + $0x270] sm:$0xff] %v9188
        %9289 = vst [vmem:[#allocation3 + $0x278] sm:$0xff] %v9189
        %9290 = vst [vmem:[#allocation3 + $0x280] sm:$0xff] %v9190
        %9291 = vst [vmem:[#allocation3 + $0x288] sm:$0xff] %v9191
        %9292 = vst [vmem:[#allocation3 + $0x290] sm:$0xff] %v9192
        %9293 = vst [vmem:[#allocation3 + $0x298] sm:$0xff] %v9193
        %9294 = vst [vmem:[#allocation3 + $0x2a0] sm:$0xff] %v9194
        %9295 = vst [vmem:[#allocation3 + $0x2a8] sm:$0xff] %v9195
        %9296 = vst [vmem:[#allocation3 + $0x2b0] sm:$0xff] %v9196
        %9297 = vst [vmem:[#allocation3 + $0x2b8] sm:$0xff] %v9197
        %9298 = vst [vmem:[#allocation3 + $0x2c0] sm:$0xff] %v9198
        %9299 = vst [vmem:[#allocation3 + $0x2c8] sm:$0xff] %v9199
        %9300 = vst [vmem:[#allocation3 + $0x2d0] sm:$0xff] %v9200
        %9301 = vst [vmem:[#allocation3 + $0x2d8] sm:$0xff] %v9201
        %9302 = vst [vmem:[#allocation3 + $0x2e0] sm:$0xff] %v9202
        %9303 = vst [vmem:[#allocation3 + $0x2e8] sm:$0xff] %v9203
        %9304 = vst [vmem:[#allocation3 + $0x2f0] sm:$0xff] %v9204
        %9305 = vst [vmem:[#allocation3 + $0x2f8] sm:$0xff] %v9205
        %9306 = vst [vmem:[#allocation3 + $0x300] sm:$0xf] %v9206
        %9307 = vst [vmem:[#allocation3 + $0x308] sm:$0xf] %v9207
        %9308 = vst [vmem:[#allocation3 + $0x310] sm:$0xf] %v9208
        %9309 = vst [vmem:[#allocation3 + $0x318] sm:$0xf] %v9209
        %p9310 = scmp.eq.s32.totalorder %s25, 1
        // Predicated region
        $region77: #{ln_linear_gelu_linear.1} parent=47 // pred_check
          %p9311 = pneg %p9310
        $region78: #{ln_linear_gelu_linear.1} parent=47 // pred_check_branch
          %9313 = sbr.rel (%p9311) target = $region80
        $region79: #{ln_linear_gelu_linear.1} parent=47 // pred_region
          %v9314 = vld [vmem:[#allocation3] sm:$0xff]
          %v9315 = vld [vmem:[#allocation3 + $0x8] sm:$0xff]
          %v9316 = vld [vmem:[#allocation3 + $0x10] sm:$0xff]
          %v9317 = vld [vmem:[#allocation3 + $0x18] sm:$0xff]
          %v9318 = vld [vmem:[#allocation3 + $0x20] sm:$0xff]
          %v9319 = vld [vmem:[#allocation3 + $0x28] sm:$0xff]
          %v9320 = vld [vmem:[#allocation3 + $0x30] sm:$0xff]
          %v9321 = vld [vmem:[#allocation3 + $0x38] sm:$0xff]
          %v9322 = vld [vmem:[#allocation3 + $0x40] sm:$0xff]
          %v9323 = vld [vmem:[#allocation3 + $0x48] sm:$0xff]
          %v9324 = vld [vmem:[#allocation3 + $0x50] sm:$0xff]
          %v9325 = vld [vmem:[#allocation3 + $0x58] sm:$0xff]
          %v9326 = vld [vmem:[#allocation3 + $0x60] sm:$0xff]
          %v9327 = vld [vmem:[#allocation3 + $0x68] sm:$0xff]
          %v9328 = vld [vmem:[#allocation3 + $0x70] sm:$0xff]
          %v9329 = vld [vmem:[#allocation3 + $0x78] sm:$0xff]
          %v9330 = vld [vmem:[#allocation3 + $0x80] sm:$0xff]
          %v9331 = vld [vmem:[#allocation3 + $0x88] sm:$0xff]
          %v9332 = vld [vmem:[#allocation3 + $0x90] sm:$0xff]
          %v9333 = vld [vmem:[#allocation3 + $0x98] sm:$0xff]
          %v9334 = vld [vmem:[#allocation3 + $0xa0] sm:$0xff]
          %v9335 = vld [vmem:[#allocation3 + $0xa8] sm:$0xff]
          %v9336 = vld [vmem:[#allocation3 + $0xb0] sm:$0xff]
          %v9337 = vld [vmem:[#allocation3 + $0xb8] sm:$0xff]
          %v9338 = vld [vmem:[#allocation3 + $0xc0] sm:$0xff]
          %v9339 = vld [vmem:[#allocation3 + $0xc8] sm:$0xff]
          %v9340 = vld [vmem:[#allocation3 + $0xd0] sm:$0xff]
          %v9341 = vld [vmem:[#allocation3 + $0xd8] sm:$0xff]
          %v9342 = vld [vmem:[#allocation3 + $0xe0] sm:$0xff]
          %v9343 = vld [vmem:[#allocation3 + $0xe8] sm:$0xff]
          %v9344 = vld [vmem:[#allocation3 + $0xf0] sm:$0xff]
          %v9345 = vld [vmem:[#allocation3 + $0xf8] sm:$0xff]
          %v9346 = vld [vmem:[#allocation3 + $0x100] sm:$0xff]
          %v9347 = vld [vmem:[#allocation3 + $0x108] sm:$0xff]
          %v9348 = vld [vmem:[#allocation3 + $0x110] sm:$0xff]
          %v9349 = vld [vmem:[#allocation3 + $0x118] sm:$0xff]
          %v9350 = vld [vmem:[#allocation3 + $0x120] sm:$0xff]
          %v9351 = vld [vmem:[#allocation3 + $0x128] sm:$0xff]
          %v9352 = vld [vmem:[#allocation3 + $0x130] sm:$0xff]
          %v9353 = vld [vmem:[#allocation3 + $0x138] sm:$0xff]
          %v9354 = vld [vmem:[#allocation3 + $0x140] sm:$0xff]
          %v9355 = vld [vmem:[#allocation3 + $0x148] sm:$0xff]
          %v9356 = vld [vmem:[#allocation3 + $0x150] sm:$0xff]
          %v9357 = vld [vmem:[#allocation3 + $0x158] sm:$0xff]
          %v9358 = vld [vmem:[#allocation3 + $0x160] sm:$0xff]
          %v9359 = vld [vmem:[#allocation3 + $0x168] sm:$0xff]
          %v9360 = vld [vmem:[#allocation3 + $0x170] sm:$0xff]
          %v9361 = vld [vmem:[#allocation3 + $0x178] sm:$0xff]
          %v9362 = vld [vmem:[#allocation3 + $0x180] sm:$0xff]
          %v9363 = vld [vmem:[#allocation3 + $0x188] sm:$0xff]
          %v9364 = vld [vmem:[#allocation3 + $0x190] sm:$0xff]
          %v9365 = vld [vmem:[#allocation3 + $0x198] sm:$0xff]
          %v9366 = vld [vmem:[#allocation3 + $0x1a0] sm:$0xff]
          %v9367 = vld [vmem:[#allocation3 + $0x1a8] sm:$0xff]
          %v9368 = vld [vmem:[#allocation3 + $0x1b0] sm:$0xff]
          %v9369 = vld [vmem:[#allocation3 + $0x1b8] sm:$0xff]
          %v9370 = vld [vmem:[#allocation3 + $0x1c0] sm:$0xff]
          %v9371 = vld [vmem:[#allocation3 + $0x1c8] sm:$0xff]
          %v9372 = vld [vmem:[#allocation3 + $0x1d0] sm:$0xff]
          %v9373 = vld [vmem:[#allocation3 + $0x1d8] sm:$0xff]
          %v9374 = vld [vmem:[#allocation3 + $0x1e0] sm:$0xff]
          %v9375 = vld [vmem:[#allocation3 + $0x1e8] sm:$0xff]
          %v9376 = vld [vmem:[#allocation3 + $0x1f0] sm:$0xff]
          %v9377 = vld [vmem:[#allocation3 + $0x1f8] sm:$0xff]
          %v9378 = vld [vmem:[#allocation3 + $0x200] sm:$0xff]
          %v9379 = vld [vmem:[#allocation3 + $0x208] sm:$0xff]
          %v9380 = vld [vmem:[#allocation3 + $0x210] sm:$0xff]
          %v9381 = vld [vmem:[#allocation3 + $0x218] sm:$0xff]
          %v9382 = vld [vmem:[#allocation3 + $0x220] sm:$0xff]
          %v9383 = vld [vmem:[#allocation3 + $0x228] sm:$0xff]
          %v9384 = vld [vmem:[#allocation3 + $0x230] sm:$0xff]
          %v9385 = vld [vmem:[#allocation3 + $0x238] sm:$0xff]
          %v9386 = vld [vmem:[#allocation3 + $0x240] sm:$0xff]
          %v9387 = vld [vmem:[#allocation3 + $0x248] sm:$0xff]
          %v9388 = vld [vmem:[#allocation3 + $0x250] sm:$0xff]
          %v9389 = vld [vmem:[#allocation3 + $0x258] sm:$0xff]
          %v9390 = vld [vmem:[#allocation3 + $0x260] sm:$0xff]
          %v9391 = vld [vmem:[#allocation3 + $0x268] sm:$0xff]
          %v9392 = vld [vmem:[#allocation3 + $0x270] sm:$0xff]
          %v9393 = vld [vmem:[#allocation3 + $0x278] sm:$0xff]
          %v9394 = vld [vmem:[#allocation3 + $0x280] sm:$0xff]
          %v9395 = vld [vmem:[#allocation3 + $0x288] sm:$0xff]
          %v9396 = vld [vmem:[#allocation3 + $0x290] sm:$0xff]
          %v9397 = vld [vmem:[#allocation3 + $0x298] sm:$0xff]
          %v9398 = vld [vmem:[#allocation3 + $0x2a0] sm:$0xff]
          %v9399 = vld [vmem:[#allocation3 + $0x2a8] sm:$0xff]
          %v9400 = vld [vmem:[#allocation3 + $0x2b0] sm:$0xff]
          %v9401 = vld [vmem:[#allocation3 + $0x2b8] sm:$0xff]
          %v9402 = vld [vmem:[#allocation3 + $0x2c0] sm:$0xff]
          %v9403 = vld [vmem:[#allocation3 + $0x2c8] sm:$0xff]
          %v9404 = vld [vmem:[#allocation3 + $0x2d0] sm:$0xff]
          %v9405 = vld [vmem:[#allocation3 + $0x2d8] sm:$0xff]
          %v9406 = vld [vmem:[#allocation3 + $0x2e0] sm:$0xff]
          %v9407 = vld [vmem:[#allocation3 + $0x2e8] sm:$0xff]
          %v9408 = vld [vmem:[#allocation3 + $0x2f0] sm:$0xff]
          %v9409 = vld [vmem:[#allocation3 + $0x2f8] sm:$0xff]
          %v9410 = vld [vmem:[#allocation3 + $0x300] sm:$0xf]
          %v9411 = vld [vmem:[#allocation3 + $0x308] sm:$0xf]
          %v9412 = vld [vmem:[#allocation3 + $0x310] sm:$0xf]
          %v9413 = vld [vmem:[#allocation3 + $0x318] sm:$0xf]
          %v9414 = vld [vmem:[#allocation11] sm:$0xf]
          %v9416 = vlaneseq
          %v9417 = vshrl.u32 %v9416, 7
          %v9418 = vsub.s32 0, %v9417
          %v9419 = vrot.slane %v9414, %v9418
          %v9420 = vlaneseq
          %v9421 = vshrl.u32 %v9420, 7
          %v9422 = vsub.s32 1, %v9421
          %v9423 = vrot.slane %v9414, %v9422
          %v9424 = vlaneseq
          %v9425 = vshrl.u32 %v9424, 7
          %v9426 = vsub.s32 2, %v9425
          %v9427 = vrot.slane %v9414, %v9426
          %v9428 = vlaneseq
          %v9429 = vshrl.u32 %v9428, 7
          %v9430 = vsub.s32 3, %v9429
          %v9431 = vrot.slane %v9414, %v9430
          %v9436 = vadd.f32 %v9314, %v9419
          %v9437 = vadd.f32 %v9315, %v9423
          %v9438 = vadd.f32 %v9316, %v9427
          %v9439 = vadd.f32 %v9317, %v9431
          %v9440 = vadd.f32 %v9318, %v9419
          %v9441 = vadd.f32 %v9319, %v9423
          %v9442 = vadd.f32 %v9320, %v9427
          %v9443 = vadd.f32 %v9321, %v9431
          %v9444 = vadd.f32 %v9322, %v9419
          %v9445 = vadd.f32 %v9323, %v9423
          %v9446 = vadd.f32 %v9324, %v9427
          %v9447 = vadd.f32 %v9325, %v9431
          %v9448 = vadd.f32 %v9326, %v9419
          %v9449 = vadd.f32 %v9327, %v9423
          %v9450 = vadd.f32 %v9328, %v9427
          %v9451 = vadd.f32 %v9329, %v9431
          %v9452 = vadd.f32 %v9330, %v9419
          %v9453 = vadd.f32 %v9331, %v9423
          %v9454 = vadd.f32 %v9332, %v9427
          %v9455 = vadd.f32 %v9333, %v9431
          %v9456 = vadd.f32 %v9334, %v9419
          %v9457 = vadd.f32 %v9335, %v9423
          %v9458 = vadd.f32 %v9336, %v9427
          %v9459 = vadd.f32 %v9337, %v9431
          %v9460 = vadd.f32 %v9338, %v9419
          %v9461 = vadd.f32 %v9339, %v9423
          %v9462 = vadd.f32 %v9340, %v9427
          %v9463 = vadd.f32 %v9341, %v9431
          %v9464 = vadd.f32 %v9342, %v9419
          %v9465 = vadd.f32 %v9343, %v9423
          %v9466 = vadd.f32 %v9344, %v9427
          %v9467 = vadd.f32 %v9345, %v9431
          %v9468 = vadd.f32 %v9346, %v9419
          %v9469 = vadd.f32 %v9347, %v9423
          %v9470 = vadd.f32 %v9348, %v9427
          %v9471 = vadd.f32 %v9349, %v9431
          %v9472 = vadd.f32 %v9350, %v9419
          %v9473 = vadd.f32 %v9351, %v9423
          %v9474 = vadd.f32 %v9352, %v9427
          %v9475 = vadd.f32 %v9353, %v9431
          %v9476 = vadd.f32 %v9354, %v9419
          %v9477 = vadd.f32 %v9355, %v9423
          %v9478 = vadd.f32 %v9356, %v9427
          %v9479 = vadd.f32 %v9357, %v9431
          %v9480 = vadd.f32 %v9358, %v9419
          %v9481 = vadd.f32 %v9359, %v9423
          %v9482 = vadd.f32 %v9360, %v9427
          %v9483 = vadd.f32 %v9361, %v9431
          %v9484 = vadd.f32 %v9362, %v9419
          %v9485 = vadd.f32 %v9363, %v9423
          %v9486 = vadd.f32 %v9364, %v9427
          %v9487 = vadd.f32 %v9365, %v9431
          %v9488 = vadd.f32 %v9366, %v9419
          %v9489 = vadd.f32 %v9367, %v9423
          %v9490 = vadd.f32 %v9368, %v9427
          %v9491 = vadd.f32 %v9369, %v9431
          %v9492 = vadd.f32 %v9370, %v9419
          %v9493 = vadd.f32 %v9371, %v9423
          %v9494 = vadd.f32 %v9372, %v9427
          %v9495 = vadd.f32 %v9373, %v9431
          %v9496 = vadd.f32 %v9374, %v9419
          %v9497 = vadd.f32 %v9375, %v9423
          %v9498 = vadd.f32 %v9376, %v9427
          %v9499 = vadd.f32 %v9377, %v9431
          %v9500 = vadd.f32 %v9378, %v9419
          %v9501 = vadd.f32 %v9379, %v9423
          %v9502 = vadd.f32 %v9380, %v9427
          %v9503 = vadd.f32 %v9381, %v9431
          %v9504 = vadd.f32 %v9382, %v9419
          %v9505 = vadd.f32 %v9383, %v9423
          %v9506 = vadd.f32 %v9384, %v9427
          %v9507 = vadd.f32 %v9385, %v9431
          %v9508 = vadd.f32 %v9386, %v9419
          %v9509 = vadd.f32 %v9387, %v9423
          %v9510 = vadd.f32 %v9388, %v9427
          %v9511 = vadd.f32 %v9389, %v9431
          %v9512 = vadd.f32 %v9390, %v9419
          %v9513 = vadd.f32 %v9391, %v9423
          %v9514 = vadd.f32 %v9392, %v9427
          %v9515 = vadd.f32 %v9393, %v9431
          %v9516 = vadd.f32 %v9394, %v9419
          %v9517 = vadd.f32 %v9395, %v9423
          %v9518 = vadd.f32 %v9396, %v9427
          %v9519 = vadd.f32 %v9397, %v9431
          %v9520 = vadd.f32 %v9398, %v9419
          %v9521 = vadd.f32 %v9399, %v9423
          %v9522 = vadd.f32 %v9400, %v9427
          %v9523 = vadd.f32 %v9401, %v9431
          %v9524 = vadd.f32 %v9402, %v9419
          %v9525 = vadd.f32 %v9403, %v9423
          %v9526 = vadd.f32 %v9404, %v9427
          %v9527 = vadd.f32 %v9405, %v9431
          %v9528 = vadd.f32 %v9406, %v9419
          %v9529 = vadd.f32 %v9407, %v9423
          %v9530 = vadd.f32 %v9408, %v9427
          %v9531 = vadd.f32 %v9409, %v9431
          %v9532 = vadd.f32 %v9410, %v9419
          %v9533 = vadd.f32 %v9411, %v9423
          %v9534 = vadd.f32 %v9412, %v9427
          %v9535 = vadd.f32 %v9413, %v9431
          %9536 = vst [vmem:[%s448] sm:$0xff] %v9436
          %9537 = vst [vmem:[%s448 + $0x8] sm:$0xff] %v9437
          %9538 = vst [vmem:[%s448 + $0x10] sm:$0xff] %v9438
          %9539 = vst [vmem:[%s448 + $0x18] sm:$0xff] %v9439
          %9540 = vst [vmem:[%s448 + $0x20] sm:$0xff] %v9440
          %9541 = vst [vmem:[%s448 + $0x28] sm:$0xff] %v9441
          %9542 = vst [vmem:[%s448 + $0x30] sm:$0xff] %v9442
          %9543 = vst [vmem:[%s448 + $0x38] sm:$0xff] %v9443
          %9544 = vst [vmem:[%s448 + $0x40] sm:$0xff] %v9444
          %9545 = vst [vmem:[%s448 + $0x48] sm:$0xff] %v9445
          %9546 = vst [vmem:[%s448 + $0x50] sm:$0xff] %v9446
          %9547 = vst [vmem:[%s448 + $0x58] sm:$0xff] %v9447
          %9548 = vst [vmem:[%s448 + $0x60] sm:$0xff] %v9448
          %9549 = vst [vmem:[%s448 + $0x68] sm:$0xff] %v9449
          %9550 = vst [vmem:[%s448 + $0x70] sm:$0xff] %v9450
          %9551 = vst [vmem:[%s448 + $0x78] sm:$0xff] %v9451
          %9552 = vst [vmem:[%s448 + $0x80] sm:$0xff] %v9452
          %9553 = vst [vmem:[%s448 + $0x88] sm:$0xff] %v9453
          %9554 = vst [vmem:[%s448 + $0x90] sm:$0xff] %v9454
          %9555 = vst [vmem:[%s448 + $0x98] sm:$0xff] %v9455
          %9556 = vst [vmem:[%s448 + $0xa0] sm:$0xff] %v9456
          %9557 = vst [vmem:[%s448 + $0xa8] sm:$0xff] %v9457
          %9558 = vst [vmem:[%s448 + $0xb0] sm:$0xff] %v9458
          %9559 = vst [vmem:[%s448 + $0xb8] sm:$0xff] %v9459
          %9560 = vst [vmem:[%s448 + $0xc0] sm:$0xff] %v9460
          %9561 = vst [vmem:[%s448 + $0xc8] sm:$0xff] %v9461
          %9562 = vst [vmem:[%s448 + $0xd0] sm:$0xff] %v9462
          %9563 = vst [vmem:[%s448 + $0xd8] sm:$0xff] %v9463
          %9564 = vst [vmem:[%s448 + $0xe0] sm:$0xff] %v9464
          %9565 = vst [vmem:[%s448 + $0xe8] sm:$0xff] %v9465
          %9566 = vst [vmem:[%s448 + $0xf0] sm:$0xff] %v9466
          %9567 = vst [vmem:[%s448 + $0xf8] sm:$0xff] %v9467
          %9568 = vst [vmem:[%s448 + $0x100] sm:$0xff] %v9468
          %9569 = vst [vmem:[%s448 + $0x108] sm:$0xff] %v9469
          %9570 = vst [vmem:[%s448 + $0x110] sm:$0xff] %v9470
          %9571 = vst [vmem:[%s448 + $0x118] sm:$0xff] %v9471
          %9572 = vst [vmem:[%s448 + $0x120] sm:$0xff] %v9472
          %9573 = vst [vmem:[%s448 + $0x128] sm:$0xff] %v9473
          %9574 = vst [vmem:[%s448 + $0x130] sm:$0xff] %v9474
          %9575 = vst [vmem:[%s448 + $0x138] sm:$0xff] %v9475
          %9576 = vst [vmem:[%s448 + $0x140] sm:$0xff] %v9476
          %9577 = vst [vmem:[%s448 + $0x148] sm:$0xff] %v9477
          %9578 = vst [vmem:[%s448 + $0x150] sm:$0xff] %v9478
          %9579 = vst [vmem:[%s448 + $0x158] sm:$0xff] %v9479
          %9580 = vst [vmem:[%s448 + $0x160] sm:$0xff] %v9480
          %9581 = vst [vmem:[%s448 + $0x168] sm:$0xff] %v9481
          %9582 = vst [vmem:[%s448 + $0x170] sm:$0xff] %v9482
          %9583 = vst [vmem:[%s448 + $0x178] sm:$0xff] %v9483
          %9584 = vst [vmem:[%s448 + $0x180] sm:$0xff] %v9484
          %9585 = vst [vmem:[%s448 + $0x188] sm:$0xff] %v9485
          %9586 = vst [vmem:[%s448 + $0x190] sm:$0xff] %v9486
          %9587 = vst [vmem:[%s448 + $0x198] sm:$0xff] %v9487
          %9588 = vst [vmem:[%s448 + $0x1a0] sm:$0xff] %v9488
          %9589 = vst [vmem:[%s448 + $0x1a8] sm:$0xff] %v9489
          %9590 = vst [vmem:[%s448 + $0x1b0] sm:$0xff] %v9490
          %9591 = vst [vmem:[%s448 + $0x1b8] sm:$0xff] %v9491
          %9592 = vst [vmem:[%s448 + $0x1c0] sm:$0xff] %v9492
          %9593 = vst [vmem:[%s448 + $0x1c8] sm:$0xff] %v9493
          %9594 = vst [vmem:[%s448 + $0x1d0] sm:$0xff] %v9494
          %9595 = vst [vmem:[%s448 + $0x1d8] sm:$0xff] %v9495
          %9596 = vst [vmem:[%s448 + $0x1e0] sm:$0xff] %v9496
          %9597 = vst [vmem:[%s448 + $0x1e8] sm:$0xff] %v9497
          %9598 = vst [vmem:[%s448 + $0x1f0] sm:$0xff] %v9498
          %9599 = vst [vmem:[%s448 + $0x1f8] sm:$0xff] %v9499
          %9600 = vst [vmem:[%s448 + $0x200] sm:$0xff] %v9500
          %9601 = vst [vmem:[%s448 + $0x208] sm:$0xff] %v9501
          %9602 = vst [vmem:[%s448 + $0x210] sm:$0xff] %v9502
          %9603 = vst [vmem:[%s448 + $0x218] sm:$0xff] %v9503
          %9604 = vst [vmem:[%s448 + $0x220] sm:$0xff] %v9504
          %9605 = vst [vmem:[%s448 + $0x228] sm:$0xff] %v9505
          %9606 = vst [vmem:[%s448 + $0x230] sm:$0xff] %v9506
          %9607 = vst [vmem:[%s448 + $0x238] sm:$0xff] %v9507
          %9608 = vst [vmem:[%s448 + $0x240] sm:$0xff] %v9508
          %9609 = vst [vmem:[%s448 + $0x248] sm:$0xff] %v9509
          %9610 = vst [vmem:[%s448 + $0x250] sm:$0xff] %v9510
          %9611 = vst [vmem:[%s448 + $0x258] sm:$0xff] %v9511
          %9612 = vst [vmem:[%s448 + $0x260] sm:$0xff] %v9512
          %9613 = vst [vmem:[%s448 + $0x268] sm:$0xff] %v9513
          %9614 = vst [vmem:[%s448 + $0x270] sm:$0xff] %v9514
          %9615 = vst [vmem:[%s448 + $0x278] sm:$0xff] %v9515
          %9616 = vst [vmem:[%s448 + $0x280] sm:$0xff] %v9516
          %9617 = vst [vmem:[%s448 + $0x288] sm:$0xff] %v9517
          %9618 = vst [vmem:[%s448 + $0x290] sm:$0xff] %v9518
          %9619 = vst [vmem:[%s448 + $0x298] sm:$0xff] %v9519
          %9620 = vst [vmem:[%s448 + $0x2a0] sm:$0xff] %v9520
          %9621 = vst [vmem:[%s448 + $0x2a8] sm:$0xff] %v9521
          %9622 = vst [vmem:[%s448 + $0x2b0] sm:$0xff] %v9522
          %9623 = vst [vmem:[%s448 + $0x2b8] sm:$0xff] %v9523
          %9624 = vst [vmem:[%s448 + $0x2c0] sm:$0xff] %v9524
          %9625 = vst [vmem:[%s448 + $0x2c8] sm:$0xff] %v9525
          %9626 = vst [vmem:[%s448 + $0x2d0] sm:$0xff] %v9526
          %9627 = vst [vmem:[%s448 + $0x2d8] sm:$0xff] %v9527
          %9628 = vst [vmem:[%s448 + $0x2e0] sm:$0xff] %v9528
          %9629 = vst [vmem:[%s448 + $0x2e8] sm:$0xff] %v9529
          %9630 = vst [vmem:[%s448 + $0x2f0] sm:$0xff] %v9530
          %9631 = vst [vmem:[%s448 + $0x2f8] sm:$0xff] %v9531
          %9632 = vst [vmem:[%s448 + $0x300] sm:$0xf] %v9532
          %9633 = vst [vmem:[%s448 + $0x308] sm:$0xf] %v9533
          %9634 = vst [vmem:[%s448 + $0x310] sm:$0xf] %v9534
          %9635 = vst [vmem:[%s448 + $0x318] sm:$0xf] %v9535
        $region80: #{ln_linear_gelu_linear.1} parent=47 // pred_fallthru
          _
        %s9636 = smul.u32 25, %s24
        %p9637 = scmp.lt.s32.totalorder %s9636, 24
        %s9638 = scalar_select %p9637, %s9636, 24
        %s9639 = smul.addr %s9638, 4
        %s9640 = smul.addr %s9639, 8
        %s9641 = scalar_lea.vmem %s7, %s9640
        // Predicated region
        $region81: #{ln_linear_gelu_linear.1} parent=47 // pred_check
          %p9642 = pneg %p217
        $region82: #{ln_linear_gelu_linear.1} parent=47 // pred_check_branch
          %9644 = sbr.rel (%p9642) target = $region84
        $region83: #{ln_linear_gelu_linear.1} parent=47 // pred_region
          %s9645 = smul.u32 25, %s24
        $region84: #{ln_linear_gelu_linear.1} parent=47 // pred_fallthru
          _
        // Predicated region
        $region85: #{ln_linear_gelu_linear.1} parent=47 // pred_check
          %p9646 = pneg %p217
        $region86: #{ln_linear_gelu_linear.1} parent=47 // pred_check_branch
          %9648 = sbr.rel (%p9646) target = $region88
        $region87: #{ln_linear_gelu_linear.1} parent=47 // pred_region
          %s9649 = smul.u32 25, %s24
          %p9650 = scmp.lt.s32.totalorder %s9649, 24
          %s9651 = scalar_select %p9650, %s9649, 24
          %s9652 = smul.addr %s9651, 4
          %s9653 = smul.addr %s9652, 8
          %s9654 = scalar_lea.vmem %s7, %s9653
        $region88: #{ln_linear_gelu_linear.1} parent=47 // pred_fallthru
          _
      $region48: #{ln_linear_gelu_linear.1} parent=5 // pred_fallthru
        _
      %p9655 = scmp.le.s32.totalorder 2, %s15
      // Predicated region
      $region89: #{ln_linear_gelu_linear.1} parent=5 // pred_check
        %p9656 = pneg %p9655
      $region90: #{ln_linear_gelu_linear.1} parent=5 // pred_check_branch
        %9658 = sbr.rel (%p9656) target = $region92
      $region91: #{ln_linear_gelu_linear.1} parent=5 // pred_region
        %s9659 = ssub.s32 %s15, 2
      $region92: #{ln_linear_gelu_linear.1} parent=5 // pred_fallthru
        _
    $region6: #{ln_linear_gelu_linear.1} parent=1 // loop_footer
      %s19 = sadd.s32 1, %s15
    $region7: #{ln_linear_gelu_linear.1} parent=1 // loop_footer_branch
      %14 = sbr.rel target = $region3
    $region8: #{ln_linear_gelu_linear.1} parent=1 // loop_exit
      _
    %9660 = vsyncpa [#allocation5], 1
    %s9661 = scalar_lea.sflag [#allocation5], 1
    %9662 = vsyncpa %s9661, 1
    %9663 = vsyncpa [#allocation7], 1

</llo_original>
